<compile_context>
chip_gen: v7x
topology: tpu7x:2x2x1
jax: 0.10.0
libtpu: 0.0.40
codegen_flags: <defaults>
</compile_context>

<pallas_src>
import functools

import jax
import jax.numpy as jnp
from jax import lax
from jax.experimental import pallas as pl
from jax.experimental.pallas import tpu as pltpu


def _round_up(x, m):
    return (x + m - 1) // m * m


def _pad_gate_cols(w, H, HP):
    """Pad each of the 4 gate blocks (width H) of the last dim up to width HP."""
    if H == HP:
        return w
    parts = []
    for g in range(4):
        blk = w[..., g * H:(g + 1) * H]
        pad = [(0, 0)] * (w.ndim - 1) + [(0, HP - H)]
        parts.append(jnp.pad(blk, pad))
    return jnp.concatenate(parts, axis=-1)


def _vmem_limit_bytes():
    """Generation-aware VMEM budget: ~3/4 of physical, capped at 100 MiB.

    -> ~48 MiB on v7x (64 MiB physical), ~96 MiB on v5e/v6e (128 MiB)."""
    try:
        cap = int(pltpu.get_tpu_info().vmem_capacity_bytes)
    except Exception:
        cap = 64 * 1024 * 1024          # conservative fallback (v7x physical)
    return int(min(cap * 3 // 4, 100 * 1024 * 1024))


def _const_spec(shape):
    """BlockSpec for a grid-invariant operand (weights / biases / LN params).

    The block never changes across the grid, so double-buffering it only
    wastes VMEM; request single buffering when the API supports it."""
    idx = lambda b, t: (0,) * len(shape)
    try:
        return pl.BlockSpec(shape, idx, pipeline_mode=pl.Buffered(1))
    except Exception:                   # older Pallas without pipeline_mode
        return pl.BlockSpec(shape, idx)


# ----------------------------------------------------------------------------
# Fused kernel: per (batch-tile, time-chunk) grid step run tchunk timesteps of
# all LayerNorm-LSTM layers plus the top-k head.
# ----------------------------------------------------------------------------
def _teledal_kernel(*refs, num_layers, H, HP, tchunk, bt, eps):
    x_ref = refs[0]                                # (bt, tchunk, EP)
    pos = 1
    layer_refs = []
    for _ in range(num_layers):
        layer_refs.append(tuple(refs[pos:pos + 4]))    # w_cat, bias, gamma, beta
        pos += 4
    wtop_ref, btop_ref = refs[pos], refs[pos + 1]
    out_ref = refs[pos + 2]                        # (bt, tchunk, NP)
    h_sc, c_sc = refs[pos + 3], refs[pos + 4]      # (L, bt, HP) carries
    hout_sc = refs[pos + 5]                        # (bt, tchunk, HP)

    EP = x_ref.shape[-1]
    NP = out_ref.shape[-1]

    # (h, c) carries persist across time chunks; reset at the start of every
    # batch tile.  Correct only because time is the last (fastest-varying)
    # grid axis -- do not reorder the grid.
    @pl.when(pl.program_id(1) == 0)
    def _init():
        h_sc[...] = jnp.zeros_like(h_sc)
        c_sc[...] = jnp.zeros_like(c_sc)

    hs = [h_sc[i] for i in range(num_layers)]
    cs = [c_sc[i] for i in range(num_layers)]

    # Broadcast the (1, .) parameters to (bt, .) ONCE per chunk (JAX does not
    # CSE broadcast_in_dim; inside the unrolled loop it would be replicated).
    bias_b, gamma_b, beta_b = [], [], []
    for i in range(num_layers):
        _, b_ref, g_ref, be_ref = layer_refs[i]
        bias_b.append(jnp.broadcast_to(b_ref[...], (bt, 4 * HP)))
        gamma_b.append(jnp.broadcast_to(g_ref[...], (bt, HP)))
        beta_b.append(jnp.broadcast_to(be_ref[...], (bt, HP)))

    inv_h = 1.0 / H

    for tt in range(tchunk):                       # statically unrolled
        # Static size-1 slice of the time (sublane) axis, squeezed on the value.
        inp = x_ref[:, tt:tt + 1, :].reshape(bt, EP)       # (bt, EP)
        for i in range(num_layers):
            w_ref = layer_refs[i][0]               # weight loaded at use site
            h, c = hs[i], cs[i]
            # One MXU matmul per (layer, step): [input || h] @ [wih ; whh].
            cat = jnp.concatenate([inp, h], axis=-1)
            gates = jnp.dot(cat, w_ref[...],
                            preferred_element_type=jnp.float32) + bias_b[i]
            # Gate slices are 128-lane aligned (HP is a multiple of 128).
            i_g = jax.nn.sigmoid(gates[:, 0 * HP:1 * HP])
            f_g = jax.nn.sigmoid(gates[:, 1 * HP:2 * HP])
            g_g = jnp.tanh(gates[:, 2 * HP:3 * HP])
            o_g = jax.nn.sigmoid(gates[:, 3 * HP:4 * HP])
            c = f_g * c + i_g * g_g
            h = o_g * jnp.tanh(c)
            hs[i], cs[i] = h, c
            # LayerNorm over the real H lanes; pad lanes of h are exactly 0 so
            # the single-pass sums are exact (clamp guards fp round-off).
            mu = jnp.sum(h, axis=-1, keepdims=True) * inv_h
            var = jnp.sum(h * h, axis=-1, keepdims=True) * inv_h - mu * mu
            var = jnp.maximum(var, 0.0)
            inp = (h - mu) * lax.rsqrt(var + eps) * gamma_b[i] + beta_b[i]
        hout_sc[:, tt:tt + 1, :] = inp.reshape(bt, 1, HP)

    for i in range(num_layers):
        h_sc[i] = hs[i]
        c_sc[i] = cs[i]

    # Top-k head for the whole chunk as one lane-dense MXU matmul.
    hflat = hout_sc[...].reshape(bt * tchunk, HP)
    y = jnp.dot(hflat, wtop_ref[...],
                preferred_element_type=jnp.float32) + btop_ref[...]
    out_ref[...] = y.reshape(bt, tchunk, NP)


# ----------------------------------------------------------------------------
# TeleDAL forward
# ----------------------------------------------------------------------------
def teledal_forward(x, params, *, k, embedding_dim, eps=1e-5, bt=None,
                    tchunk=None):
    B, T, E = x.shape
    layers = params["lstm_layers"]
    L = len(layers)
    H = layers[0][1].shape[0]                      # whh_t: (H, 4H)

    HP = _round_up(H, 128)
    EP = _round_up(E, 128)
    N = embedding_dim * k
    NP = _round_up(N, 128)

    if bt is None:
        # Feed the MXU as many real batch rows as the problem allows (cap 128
        # so BP//bt >= 2 for large batches -> both v7x TensorCores stay busy).
        bt = min(128, _round_up(B, 8))
    if tchunk is None:
        # >= 8 timesteps per grid step; multiple of 8 keeps the time axis
        # sublane-tile aligned and the in-kernel reshapes layout-free.
        tchunk = min(16, _round_up(T, 8))
    BP = _round_up(B, bt)
    TP = _round_up(T, tchunk)

    # --- pad / re-layout parameters: gate blocks padded to HP lanes each,
    #     wih and whh concatenated row-wise into one MXU operand ---------------
    # TODO(synk): store these in bf16 for full-rate MXU on v6e/v7x.
    padded = []
    for i, (wih_t, whh_t, bias, gamma, beta) in enumerate(layers):
        d_in = wih_t.shape[0]
        d_in_p = EP if i == 0 else HP
        wih_p = jnp.pad(_pad_gate_cols(wih_t, H, HP),
                        ((0, d_in_p - d_in), (0, 0)))
        whh_p = jnp.pad(_pad_gate_cols(whh_t, H, HP), ((0, HP - H), (0, 0)))
        w_cat = jnp.concatenate([wih_p, whh_p], axis=0)     # (d_in_p+HP, 4HP)
        bias_p = _pad_gate_cols(bias, H, HP)
        gamma_p = jnp.pad(gamma, ((0, 0), (0, HP - H)))     # pad lanes: 0
        beta_p = jnp.pad(beta, ((0, 0), (0, HP - H)))       # pad lanes: 0
        padded.append((w_cat, bias_p, gamma_p, beta_p))
    wtop_p = jnp.pad(params["topk_w_t"], ((0, HP - H), (0, NP - N)))
    btop_p = jnp.pad(params["topk_b"], ((0, 0), (0, NP - N)))

    # Batch-major padded input; no host transposes anywhere.
    x_p = jnp.pad(x, ((0, BP - B), (0, TP - T), (0, EP - E)))

    inputs = [x_p]
    in_specs = [pl.BlockSpec((bt, tchunk, EP), lambda b, t: (b, t, 0))]
    for ops in padded:
        for a in ops:
            inputs.append(a)
            in_specs.append(_const_spec(a.shape))
    for a in (wtop_p, btop_p):
        inputs.append(a)
        in_specs.append(_const_spec(a.shape))

    kernel = functools.partial(_teledal_kernel, num_layers=L, H=H, HP=HP,
                               tchunk=tchunk, bt=bt, eps=eps)
    y = pl.pallas_call(
        kernel,
        out_shape=jax.ShapeDtypeStruct((BP, TP, NP), jnp.float32),
        grid=(BP // bt, TP // tchunk),
        in_specs=in_specs,
        out_specs=pl.BlockSpec((bt, tchunk, NP), lambda b, t: (b, t, 0)),
        scratch_shapes=[pltpu.VMEM((L, bt, HP), jnp.float32),   # h carry
                        pltpu.VMEM((L, bt, HP), jnp.float32),   # c carry
                        pltpu.VMEM((bt, tchunk, HP), jnp.float32)],  # LN out
        compiler_params=pltpu.CompilerParams(
            dimension_semantics=("parallel", "arbitrary"),
            vmem_limit_bytes=_vmem_limit_bytes()),
    )(*inputs)

    y = y[:B, :T, :N]
    return y.reshape(B, T, k, embedding_dim)


# ----------------------------------------------------------------------------
# Deterministic parameter construction (PyTorch-default-like uniform init).
# ----------------------------------------------------------------------------
def init_params(key, *, embedding_dim, hidden_dim, num_layers, k):
    layers = []
    for i in range(num_layers):
        d_in = embedding_dim if i == 0 else hidden_dim
        bound = 1.0 / jnp.sqrt(hidden_dim)
        key, k1, k2, k3, k4 = jax.random.split(key, 5)
        wih_t = jax.random.uniform(k1, (d_in, 4 * hidden_dim),
                                   minval=-bound, maxval=bound, dtype=jnp.float32)
        whh_t = jax.random.uniform(k2, (hidden_dim, 4 * hidden_dim),
                                   minval=-bound, maxval=bound, dtype=jnp.float32)
        b_ih = jax.random.uniform(k3, (4 * hidden_dim,),
                                  minval=-bound, maxval=bound, dtype=jnp.float32)
        b_hh = jax.random.uniform(k4, (4 * hidden_dim,),
                                  minval=-bound, maxval=bound, dtype=jnp.float32)
        bias = (b_ih + b_hh).reshape(1, 4 * hidden_dim)
        gamma = jnp.ones((1, hidden_dim), jnp.float32)
        beta = jnp.zeros((1, hidden_dim), jnp.float32)
        layers.append((wih_t, whh_t, bias, gamma, beta))

    bound = 1.0 / jnp.sqrt(hidden_dim)
    key, k1, k2 = jax.random.split(key, 3)
    topk_w_t = jax.random.uniform(k1, (hidden_dim, embedding_dim * k),
                                  minval=-bound, maxval=bound, dtype=jnp.float32)
    topk_b = jax.random.uniform(k2, (1, embedding_dim * k),
                                minval=-bound, maxval=bound, dtype=jnp.float32)
    return {"lstm_layers": layers, "topk_w_t": topk_w_t, "topk_b": topk_b}


# ----------------------------------------------------------------------------
# Pure-JAX reference (mirrors the PyTorch forward) for a correctness check.
# ----------------------------------------------------------------------------
def ref_forward(x, params, *, k, embedding_dim, eps=1e-5):
    B, T, _ = x.shape
    out = x
    for (wih_t, whh_t, bias, gamma, beta) in params["lstm_layers"]:
        H = whh_t.shape[0]
        h = jnp.zeros((B, H)); c = jnp.zeros((B, H))
        ys = []
        for t in range(T):
            gates = out[:, t, :] @ wih_t + h @ whh_t + bias
            i_g = jax.nn.sigmoid(gates[:, :H])
            f_g = jax.nn.sigmoid(gates[:, H:2 * H])
            g_g = jnp.tanh(gates[:, 2 * H:3 * H])
            o_g = jax.nn.sigmoid(gates[:, 3 * H:])
            c = f_g * c + i_g * g_g
            h = o_g * jnp.tanh(c)
            mu = h.mean(-1, keepdims=True)
            var = ((h - mu) ** 2).mean(-1, keepdims=True)
            ys.append((h - mu) / jnp.sqrt(var + eps) * gamma + beta)
        out = jnp.stack(ys, axis=1)
    y = out.reshape(B * T, -1) @ params["topk_w_t"] + params["topk_b"]
    return y.reshape(B, T, k, embedding_dim)


if __name__ == "__main__":
    # Small shapes consistent with the module: batch=2, seq=8,
    # embedding_dim=32, hidden_dim=32, num_layers=2, k=5.
    B, T, E, H, L, K = 2, 8, 32, 32, 2, 5

    key = jax.random.PRNGKey(0)
    kx, kp = jax.random.split(key)
    x = jax.random.normal(kx, (B, T, E), dtype=jnp.float32)
    params = init_params(kp, embedding_dim=E, hidden_dim=H, num_layers=L, k=K)

    fwd = jax.jit(functools.partial(teledal_forward, k=K, embedding_dim=E))
    out = jax.block_until_ready(fwd(x, params))
    assert out.shape == (B, T, K, E), out.shape

    ref = ref_forward(x, params, k=K, embedding_dim=E)
    err = float(jnp.max(jnp.abs(out - ref)))
    assert jnp.allclose(out, ref, atol=1e-3, rtol=1e-3), err

    print("KERNEL_OK")
</pallas_src>

<mosaic_0001>
module attributes {stable_mosaic.version = 11 : i64} {
  func.func @_teledal_kernel(%arg0: i32, %arg1: i32, %arg2: memref<8x8x128xf32, #tpu.memory_space<vmem>>, %arg3: memref<256x512xf32, #tpu.memory_space<vmem>>, %arg4: memref<1x512xf32, #tpu.memory_space<vmem>>, %arg5: memref<1x128xf32, #tpu.memory_space<vmem>>, %arg6: memref<1x128xf32, #tpu.memory_space<vmem>>, %arg7: memref<256x512xf32, #tpu.memory_space<vmem>>, %arg8: memref<1x512xf32, #tpu.memory_space<vmem>>, %arg9: memref<1x128xf32, #tpu.memory_space<vmem>>, %arg10: memref<1x128xf32, #tpu.memory_space<vmem>>, %arg11: memref<128x256xf32, #tpu.memory_space<vmem>>, %arg12: memref<1x256xf32, #tpu.memory_space<vmem>>, %arg13: memref<8x8x256xf32, #tpu.memory_space<vmem>>, %arg14: memref<2x8x128xf32, #tpu.memory_space<vmem>>, %arg15: memref<2x8x128xf32, #tpu.memory_space<vmem>>, %arg16: memref<8x8x128xf32, #tpu.memory_space<vmem>>) attributes {dimension_semantics = [#tpu.dimension_semantics<parallel>, #tpu.dimension_semantics<arbitrary>], iteration_bounds = array<i64: 1, 1>, scalar_prefetch = 0 : i64, scratch_operands = 3 : i64, tpu.core_type = #tpu.core_type<tc>, window_params = [{transform_indices = @transform_0, window_bounds = array<i64: 8, 8, 128>}, {pipeline_mode = #tpu.pipeline_mode<synchronous>, transform_indices = @transform_1, window_bounds = array<i64: 256, 512>}, {pipeline_mode = #tpu.pipeline_mode<synchronous>, transform_indices = @transform_2, window_bounds = array<i64: 1, 512>}, {pipeline_mode = #tpu.pipeline_mode<synchronous>, transform_indices = @transform_3, window_bounds = array<i64: 1, 128>}, {pipeline_mode = #tpu.pipeline_mode<synchronous>, transform_indices = @transform_4, window_bounds = array<i64: 1, 128>}, {pipeline_mode = #tpu.pipeline_mode<synchronous>, transform_indices = @transform_5, window_bounds = array<i64: 256, 512>}, {pipeline_mode = #tpu.pipeline_mode<synchronous>, transform_indices = @transform_6, window_bounds = array<i64: 1, 512>}, {pipeline_mode = #tpu.pipeline_mode<synchronous>, transform_indices = @transform_7, window_bounds = array<i64: 1, 128>}, {pipeline_mode = #tpu.pipeline_mode<synchronous>, transform_indices = @transform_8, window_bounds = array<i64: 1, 128>}, {pipeline_mode = #tpu.pipeline_mode<synchronous>, transform_indices = @transform_9, window_bounds = array<i64: 128, 256>}, {pipeline_mode = #tpu.pipeline_mode<synchronous>, transform_indices = @transform_10, window_bounds = array<i64: 1, 256>}, {transform_indices = @transform_11, window_bounds = array<i64: 8, 8, 256>}]} {
    %c0_i32 = arith.constant 0 : i32
    %0 = arith.cmpi eq, %arg1, %c0_i32 : i32
    %1 = arith.extui %0 : i1 to i32
    %c0_i32_0 = arith.constant 0 : i32
    %2 = arith.cmpi ne, %1, %c0_i32_0 : i32
    scf.if %2 {
      %cst_279 = arith.constant 0.000000e+00 : f32
      %898 = vector.broadcast %cst_279 : f32 to vector<2x8x128xf32>
      %c0_280 = arith.constant 0 : index
      %c0_281 = arith.constant 0 : index
      %c0_282 = arith.constant 0 : index
      %899 = vector.load %arg14[%c0_280, %c0_281, %c0_282] : memref<2x8x128xf32, #tpu.memory_space<vmem>>, vector<2x8x128xf32>
      tpu.vector_store %arg14[%c0_280, %c0_281, %c0_282], %898 {strides = array<i32>} : memref<2x8x128xf32, #tpu.memory_space<vmem>>, vector<2x8x128xf32>,
      %cst_283 = arith.constant 0.000000e+00 : f32
      %900 = vector.broadcast %cst_283 : f32 to vector<2x8x128xf32>
      %c0_284 = arith.constant 0 : index
      %c0_285 = arith.constant 0 : index
      %c0_286 = arith.constant 0 : index
      %901 = vector.load %arg15[%c0_284, %c0_285, %c0_286] : memref<2x8x128xf32, #tpu.memory_space<vmem>>, vector<2x8x128xf32>
      tpu.vector_store %arg15[%c0_284, %c0_285, %c0_286], %900 {strides = array<i32>} : memref<2x8x128xf32, #tpu.memory_space<vmem>>, vector<2x8x128xf32>,
    } else {
    }
    %c0 = arith.constant 0 : index
    %c0_1 = arith.constant 0 : index
    %c0_2 = arith.constant 0 : index
    %3 = vector.load %arg14[%c0, %c0_1, %c0_2] : memref<2x8x128xf32, #tpu.memory_space<vmem>>, vector<1x8x128xf32>
    %4 = vector.shape_cast %3 : vector<1x8x128xf32> to vector<8x128xf32>
    %c1 = arith.constant 1 : index
    %c0_3 = arith.constant 0 : index
    %c0_4 = arith.constant 0 : index
    %5 = vector.load %arg14[%c1, %c0_3, %c0_4] : memref<2x8x128xf32, #tpu.memory_space<vmem>>, vector<1x8x128xf32>
    %6 = vector.shape_cast %5 : vector<1x8x128xf32> to vector<8x128xf32>
    %c0_5 = arith.constant 0 : index
    %c0_6 = arith.constant 0 : index
    %c0_7 = arith.constant 0 : index
    %7 = vector.load %arg15[%c0_5, %c0_6, %c0_7] : memref<2x8x128xf32, #tpu.memory_space<vmem>>, vector<1x8x128xf32>
    %8 = vector.shape_cast %7 : vector<1x8x128xf32> to vector<8x128xf32>
    %c1_8 = arith.constant 1 : index
    %c0_9 = arith.constant 0 : index
    %c0_10 = arith.constant 0 : index
    %9 = vector.load %arg15[%c1_8, %c0_9, %c0_10] : memref<2x8x128xf32, #tpu.memory_space<vmem>>, vector<1x8x128xf32>
    %10 = vector.shape_cast %9 : vector<1x8x128xf32> to vector<8x128xf32>
    %c0_11 = arith.constant 0 : index
    %c0_12 = arith.constant 0 : index
    %11 = vector.load %arg4[%c0_11, %c0_12] : memref<1x512xf32, #tpu.memory_space<vmem>>, vector<1x512xf32>
    %12 = vector.shape_cast %11 : vector<1x512xf32> to vector<1x512xf32>
    %13 = vector.broadcast %12 : vector<1x512xf32> to vector<8x512xf32>
    %c0_13 = arith.constant 0 : index
    %c0_14 = arith.constant 0 : index
    %14 = vector.load %arg5[%c0_13, %c0_14] : memref<1x128xf32, #tpu.memory_space<vmem>>, vector<1x128xf32>
    %15 = vector.shape_cast %14 : vector<1x128xf32> to vector<1x128xf32>
    %16 = vector.broadcast %15 : vector<1x128xf32> to vector<8x128xf32>
    %c0_15 = arith.constant 0 : index
    %c0_16 = arith.constant 0 : index
    %17 = vector.load %arg6[%c0_15, %c0_16] : memref<1x128xf32, #tpu.memory_space<vmem>>, vector<1x128xf32>
    %18 = vector.shape_cast %17 : vector<1x128xf32> to vector<1x128xf32>
    %19 = vector.broadcast %18 : vector<1x128xf32> to vector<8x128xf32>
    %c0_17 = arith.constant 0 : index
    %c0_18 = arith.constant 0 : index
    %20 = vector.load %arg8[%c0_17, %c0_18] : memref<1x512xf32, #tpu.memory_space<vmem>>, vector<1x512xf32>
    %21 = vector.shape_cast %20 : vector<1x512xf32> to vector<1x512xf32>
    %22 = vector.broadcast %21 : vector<1x512xf32> to vector<8x512xf32>
    %c0_19 = arith.constant 0 : index
    %c0_20 = arith.constant 0 : index
    %23 = vector.load %arg9[%c0_19, %c0_20] : memref<1x128xf32, #tpu.memory_space<vmem>>, vector<1x128xf32>
    %24 = vector.shape_cast %23 : vector<1x128xf32> to vector<1x128xf32>
    %25 = vector.broadcast %24 : vector<1x128xf32> to vector<8x128xf32>
    %c0_21 = arith.constant 0 : index
    %c0_22 = arith.constant 0 : index
    %26 = vector.load %arg10[%c0_21, %c0_22] : memref<1x128xf32, #tpu.memory_space<vmem>>, vector<1x128xf32>
    %27 = vector.shape_cast %26 : vector<1x128xf32> to vector<1x128xf32>
    %28 = vector.broadcast %27 : vector<1x128xf32> to vector<8x128xf32>
    %c0_23 = arith.constant 0 : index
    %c0_24 = arith.constant 0 : index
    %c0_25 = arith.constant 0 : index
    %29 = vector.load %arg2[%c0_23, %c0_24, %c0_25] : memref<8x8x128xf32, #tpu.memory_space<vmem>>, vector<8x1x128xf32>
    %30 = vector.shape_cast %29 : vector<8x1x128xf32> to vector<8x128xf32>
    %31 = tpu.concatenate %30, %4 in 1 : vector<8x128xf32>, vector<8x128xf32> -> vector<8x256xf32>
    %c0_26 = arith.constant 0 : index
    %c0_27 = arith.constant 0 : index
    %32 = vector.load %arg3[%c0_26, %c0_27] : memref<256x512xf32, #tpu.memory_space<vmem>>, vector<256x512xf32>
    %cst = arith.constant dense<0.000000e+00> : vector<8x512xf32>
    %33 = tpu.matmul %31, %32, %cst {dimension_numbers = #tpu.dot_dimension_numbers<[1], [0], [0], [1], [0, 0, 1, 1], [], []>} : vector<8x256xf32>, vector<256x512xf32>, vector<8x512xf32> -> vector<8x512xf32>
    %34 = arith.addf %33, %13 : vector<8x512xf32>
    %35 = vector.extract_strided_slice %34 {offsets = [0, 0], sizes = [8, 128], strides = [1, 1]} : vector<8x512xf32> to vector<8x128xf32>
    %36 = arith.negf %35 : vector<8x128xf32>
    %37 = math.exp %36 : vector<8x128xf32>
    %cst_28 = arith.constant 1.000000e+00 : f32
    %38 = vector.broadcast %cst_28 : f32 to vector<8x128xf32>
    %39 = arith.addf %38, %37 : vector<8x128xf32>
    %40 = arith.divf %38, %39 : vector<8x128xf32>
    %41 = vector.extract_strided_slice %34 {offsets = [0, 128], sizes = [8, 128], strides = [1, 1]} : vector<8x512xf32> to vector<8x128xf32>
    %42 = arith.negf %41 : vector<8x128xf32>
    %43 = math.exp %42 : vector<8x128xf32>
    %cst_29 = arith.constant 1.000000e+00 : f32
    %44 = vector.broadcast %cst_29 : f32 to vector<8x128xf32>
    %45 = arith.addf %44, %43 : vector<8x128xf32>
    %46 = arith.divf %44, %45 : vector<8x128xf32>
    %47 = vector.extract_strided_slice %34 {offsets = [0, 256], sizes = [8, 128], strides = [1, 1]} : vector<8x512xf32> to vector<8x128xf32>
    %48 = math.tanh %47 : vector<8x128xf32>
    %49 = vector.extract_strided_slice %34 {offsets = [0, 384], sizes = [8, 128], strides = [1, 1]} : vector<8x512xf32> to vector<8x128xf32>
    %50 = arith.negf %49 : vector<8x128xf32>
    %51 = math.exp %50 : vector<8x128xf32>
    %cst_30 = arith.constant 1.000000e+00 : f32
    %52 = vector.broadcast %cst_30 : f32 to vector<8x128xf32>
    %53 = arith.addf %52, %51 : vector<8x128xf32>
    %54 = arith.divf %52, %53 : vector<8x128xf32>
    %55 = arith.mulf %46, %8 : vector<8x128xf32>
    %56 = arith.mulf %40, %48 : vector<8x128xf32>
    %57 = arith.addf %55, %56 : vector<8x128xf32>
    %58 = math.tanh %57 : vector<8x128xf32>
    %59 = arith.mulf %54, %58 : vector<8x128xf32>
    %cst_31 = arith.constant dense<0.000000e+00> : vector<8xf32>
    %60 = vector.multi_reduction <add>, %59, %cst_31 [1] : vector<8x128xf32> to vector<8xf32>
    %61 = vector.shape_cast %60 : vector<8xf32> to vector<8x1xf32>
    %cst_32 = arith.constant 3.125000e-02 : f32
    %62 = vector.broadcast %cst_32 : f32 to vector<8x1xf32>
    %63 = arith.mulf %61, %62 : vector<8x1xf32>
    %64 = arith.mulf %59, %59 : vector<8x128xf32>
    %cst_33 = arith.constant dense<0.000000e+00> : vector<8xf32>
    %65 = vector.multi_reduction <add>, %64, %cst_33 [1] : vector<8x128xf32> to vector<8xf32>
    %66 = vector.shape_cast %65 : vector<8xf32> to vector<8x1xf32>
    %cst_34 = arith.constant 3.125000e-02 : f32
    %67 = vector.broadcast %cst_34 : f32 to vector<8x1xf32>
    %68 = arith.mulf %66, %67 : vector<8x1xf32>
    %69 = arith.mulf %63, %63 : vector<8x1xf32>
    %70 = arith.subf %68, %69 : vector<8x1xf32>
    %cst_35 = arith.constant 0.000000e+00 : f32
    %71 = vector.broadcast %cst_35 : f32 to vector<8x1xf32>
    %72 = arith.maximumf %70, %71 : vector<8x1xf32>
    %73 = vector.broadcast %63 : vector<8x1xf32> to vector<8x128xf32>
    %74 = arith.subf %59, %73 : vector<8x128xf32>
    %cst_36 = arith.constant 9.99999974E-6 : f32
    %75 = vector.broadcast %cst_36 : f32 to vector<8x1xf32>
    %76 = arith.addf %72, %75 : vector<8x1xf32>
    %77 = math.rsqrt %76 : vector<8x1xf32>
    %78 = vector.broadcast %77 : vector<8x1xf32> to vector<8x128xf32>
    %79 = arith.mulf %74, %78 : vector<8x128xf32>
    %80 = arith.mulf %79, %16 : vector<8x128xf32>
    %81 = arith.addf %80, %19 : vector<8x128xf32>
    %82 = tpu.concatenate %81, %6 in 1 : vector<8x128xf32>, vector<8x128xf32> -> vector<8x256xf32>
    %c0_37 = arith.constant 0 : index
    %c0_38 = arith.constant 0 : index
    %83 = vector.load %arg7[%c0_37, %c0_38] : memref<256x512xf32, #tpu.memory_space<vmem>>, vector<256x512xf32>
    %cst_39 = arith.constant dense<0.000000e+00> : vector<8x512xf32>
    %84 = tpu.matmul %82, %83, %cst_39 {dimension_numbers = #tpu.dot_dimension_numbers<[1], [0], [0], [1], [0, 0, 1, 1], [], []>} : vector<8x256xf32>, vector<256x512xf32>, vector<8x512xf32> -> vector<8x512xf32>
    %85 = arith.addf %84, %22 : vector<8x512xf32>
    %86 = vector.extract_strided_slice %85 {offsets = [0, 0], sizes = [8, 128], strides = [1, 1]} : vector<8x512xf32> to vector<8x128xf32>
    %87 = arith.negf %86 : vector<8x128xf32>
    %88 = math.exp %87 : vector<8x128xf32>
    %cst_40 = arith.constant 1.000000e+00 : f32
    %89 = vector.broadcast %cst_40 : f32 to vector<8x128xf32>
    %90 = arith.addf %89, %88 : vector<8x128xf32>
    %91 = arith.divf %89, %90 : vector<8x128xf32>
    %92 = vector.extract_strided_slice %85 {offsets = [0, 128], sizes = [8, 128], strides = [1, 1]} : vector<8x512xf32> to vector<8x128xf32>
    %93 = arith.negf %92 : vector<8x128xf32>
    %94 = math.exp %93 : vector<8x128xf32>
    %cst_41 = arith.constant 1.000000e+00 : f32
    %95 = vector.broadcast %cst_41 : f32 to vector<8x128xf32>
    %96 = arith.addf %95, %94 : vector<8x128xf32>
    %97 = arith.divf %95, %96 : vector<8x128xf32>
    %98 = vector.extract_strided_slice %85 {offsets = [0, 256], sizes = [8, 128], strides = [1, 1]} : vector<8x512xf32> to vector<8x128xf32>
    %99 = math.tanh %98 : vector<8x128xf32>
    %100 = vector.extract_strided_slice %85 {offsets = [0, 384], sizes = [8, 128], strides = [1, 1]} : vector<8x512xf32> to vector<8x128xf32>
    %101 = arith.negf %100 : vector<8x128xf32>
    %102 = math.exp %101 : vector<8x128xf32>
    %cst_42 = arith.constant 1.000000e+00 : f32
    %103 = vector.broadcast %cst_42 : f32 to vector<8x128xf32>
    %104 = arith.addf %103, %102 : vector<8x128xf32>
    %105 = arith.divf %103, %104 : vector<8x128xf32>
    %106 = arith.mulf %97, %10 : vector<8x128xf32>
    %107 = arith.mulf %91, %99 : vector<8x128xf32>
    %108 = arith.addf %106, %107 : vector<8x128xf32>
    %109 = math.tanh %108 : vector<8x128xf32>
    %110 = arith.mulf %105, %109 : vector<8x128xf32>
    %cst_43 = arith.constant dense<0.000000e+00> : vector<8xf32>
    %111 = vector.multi_reduction <add>, %110, %cst_43 [1] : vector<8x128xf32> to vector<8xf32>
    %112 = vector.shape_cast %111 : vector<8xf32> to vector<8x1xf32>
    %cst_44 = arith.constant 3.125000e-02 : f32
    %113 = vector.broadcast %cst_44 : f32 to vector<8x1xf32>
    %114 = arith.mulf %112, %113 : vector<8x1xf32>
    %115 = arith.mulf %110, %110 : vector<8x128xf32>
    %cst_45 = arith.constant dense<0.000000e+00> : vector<8xf32>
    %116 = vector.multi_reduction <add>, %115, %cst_45 [1] : vector<8x128xf32> to vector<8xf32>
    %117 = vector.shape_cast %116 : vector<8xf32> to vector<8x1xf32>
    %cst_46 = arith.constant 3.125000e-02 : f32
    %118 = vector.broadcast %cst_46 : f32 to vector<8x1xf32>
    %119 = arith.mulf %117, %118 : vector<8x1xf32>
    %120 = arith.mulf %114, %114 : vector<8x1xf32>
    %121 = arith.subf %119, %120 : vector<8x1xf32>
    %cst_47 = arith.constant 0.000000e+00 : f32
    %122 = vector.broadcast %cst_47 : f32 to vector<8x1xf32>
    %123 = arith.maximumf %121, %122 : vector<8x1xf32>
    %124 = vector.broadcast %114 : vector<8x1xf32> to vector<8x128xf32>
    %125 = arith.subf %110, %124 : vector<8x128xf32>
    %cst_48 = arith.constant 9.99999974E-6 : f32
    %126 = vector.broadcast %cst_48 : f32 to vector<8x1xf32>
    %127 = arith.addf %123, %126 : vector<8x1xf32>
    %128 = math.rsqrt %127 : vector<8x1xf32>
    %129 = vector.broadcast %128 : vector<8x1xf32> to vector<8x128xf32>
    %130 = arith.mulf %125, %129 : vector<8x128xf32>
    %131 = arith.mulf %130, %25 : vector<8x128xf32>
    %132 = arith.addf %131, %28 : vector<8x128xf32>
    %133 = vector.shape_cast %132 : vector<8x128xf32> to vector<8x1x128xf32>
    %c0_49 = arith.constant 0 : index
    %c0_50 = arith.constant 0 : index
    %c0_51 = arith.constant 0 : index
    %134 = vector.load %arg16[%c0_49, %c0_50, %c0_51] : memref<8x8x128xf32, #tpu.memory_space<vmem>>, vector<8x1x128xf32>
    tpu.vector_store %arg16[%c0_49, %c0_50, %c0_51], %133 {strides = array<i32>} : memref<8x8x128xf32, #tpu.memory_space<vmem>>, vector<8x1x128xf32>,
    %c0_52 = arith.constant 0 : index
    %c1_53 = arith.constant 1 : index
    %c0_54 = arith.constant 0 : index
    %135 = vector.load %arg2[%c0_52, %c1_53, %c0_54] : memref<8x8x128xf32, #tpu.memory_space<vmem>>, vector<8x1x128xf32>
    %136 = vector.shape_cast %135 : vector<8x1x128xf32> to vector<8x128xf32>
    %137 = tpu.concatenate %136, %59 in 1 : vector<8x128xf32>, vector<8x128xf32> -> vector<8x256xf32>
    %c0_55 = arith.constant 0 : index
    %c0_56 = arith.constant 0 : index
    %138 = vector.load %arg3[%c0_55, %c0_56] : memref<256x512xf32, #tpu.memory_space<vmem>>, vector<256x512xf32>
    %cst_57 = arith.constant dense<0.000000e+00> : vector<8x512xf32>
    %139 = tpu.matmul %137, %138, %cst_57 {dimension_numbers = #tpu.dot_dimension_numbers<[1], [0], [0], [1], [0, 0, 1, 1], [], []>} : vector<8x256xf32>, vector<256x512xf32>, vector<8x512xf32> -> vector<8x512xf32>
    %140 = arith.addf %139, %13 : vector<8x512xf32>
    %141 = vector.extract_strided_slice %140 {offsets = [0, 0], sizes = [8, 128], strides = [1, 1]} : vector<8x512xf32> to vector<8x128xf32>
    %142 = arith.negf %141 : vector<8x128xf32>
    %143 = math.exp %142 : vector<8x128xf32>
    %cst_58 = arith.constant 1.000000e+00 : f32
    %144 = vector.broadcast %cst_58 : f32 to vector<8x128xf32>
    %145 = arith.addf %144, %143 : vector<8x128xf32>
    %146 = arith.divf %144, %145 : vector<8x128xf32>
    %147 = vector.extract_strided_slice %140 {offsets = [0, 128], sizes = [8, 128], strides = [1, 1]} : vector<8x512xf32> to vector<8x128xf32>
    %148 = arith.negf %147 : vector<8x128xf32>
    %149 = math.exp %148 : vector<8x128xf32>
    %cst_59 = arith.constant 1.000000e+00 : f32
    %150 = vector.broadcast %cst_59 : f32 to vector<8x128xf32>
    %151 = arith.addf %150, %149 : vector<8x128xf32>
    %152 = arith.divf %150, %151 : vector<8x128xf32>
    %153 = vector.extract_strided_slice %140 {offsets = [0, 256], sizes = [8, 128], strides = [1, 1]} : vector<8x512xf32> to vector<8x128xf32>
    %154 = math.tanh %153 : vector<8x128xf32>
    %155 = vector.extract_strided_slice %140 {offsets = [0, 384], sizes = [8, 128], strides = [1, 1]} : vector<8x512xf32> to vector<8x128xf32>
    %156 = arith.negf %155 : vector<8x128xf32>
    %157 = math.exp %156 : vector<8x128xf32>
    %cst_60 = arith.constant 1.000000e+00 : f32
    %158 = vector.broadcast %cst_60 : f32 to vector<8x128xf32>
    %159 = arith.addf %158, %157 : vector<8x128xf32>
    %160 = arith.divf %158, %159 : vector<8x128xf32>
    %161 = arith.mulf %152, %57 : vector<8x128xf32>
    %162 = arith.mulf %146, %154 : vector<8x128xf32>
    %163 = arith.addf %161, %162 : vector<8x128xf32>
    %164 = math.tanh %163 : vector<8x128xf32>
    %165 = arith.mulf %160, %164 : vector<8x128xf32>
    %cst_61 = arith.constant dense<0.000000e+00> : vector<8xf32>
    %166 = vector.multi_reduction <add>, %165, %cst_61 [1] : vector<8x128xf32> to vector<8xf32>
    %167 = vector.shape_cast %166 : vector<8xf32> to vector<8x1xf32>
    %cst_62 = arith.constant 3.125000e-02 : f32
    %168 = vector.broadcast %cst_62 : f32 to vector<8x1xf32>
    %169 = arith.mulf %167, %168 : vector<8x1xf32>
    %170 = arith.mulf %165, %165 : vector<8x128xf32>
    %cst_63 = arith.constant dense<0.000000e+00> : vector<8xf32>
    %171 = vector.multi_reduction <add>, %170, %cst_63 [1] : vector<8x128xf32> to vector<8xf32>
    %172 = vector.shape_cast %171 : vector<8xf32> to vector<8x1xf32>
    %cst_64 = arith.constant 3.125000e-02 : f32
    %173 = vector.broadcast %cst_64 : f32 to vector<8x1xf32>
    %174 = arith.mulf %172, %173 : vector<8x1xf32>
    %175 = arith.mulf %169, %169 : vector<8x1xf32>
    %176 = arith.subf %174, %175 : vector<8x1xf32>
    %cst_65 = arith.constant 0.000000e+00 : f32
    %177 = vector.broadcast %cst_65 : f32 to vector<8x1xf32>
    %178 = arith.maximumf %176, %177 : vector<8x1xf32>
    %179 = vector.broadcast %169 : vector<8x1xf32> to vector<8x128xf32>
    %180 = arith.subf %165, %179 : vector<8x128xf32>
    %cst_66 = arith.constant 9.99999974E-6 : f32
    %181 = vector.broadcast %cst_66 : f32 to vector<8x1xf32>
    %182 = arith.addf %178, %181 : vector<8x1xf32>
    %183 = math.rsqrt %182 : vector<8x1xf32>
    %184 = vector.broadcast %183 : vector<8x1xf32> to vector<8x128xf32>
    %185 = arith.mulf %180, %184 : vector<8x128xf32>
    %186 = arith.mulf %185, %16 : vector<8x128xf32>
    %187 = arith.addf %186, %19 : vector<8x128xf32>
    %188 = tpu.concatenate %187, %110 in 1 : vector<8x128xf32>, vector<8x128xf32> -> vector<8x256xf32>
    %c0_67 = arith.constant 0 : index
    %c0_68 = arith.constant 0 : index
    %189 = vector.load %arg7[%c0_67, %c0_68] : memref<256x512xf32, #tpu.memory_space<vmem>>, vector<256x512xf32>
    %cst_69 = arith.constant dense<0.000000e+00> : vector<8x512xf32>
    %190 = tpu.matmul %188, %189, %cst_69 {dimension_numbers = #tpu.dot_dimension_numbers<[1], [0], [0], [1], [0, 0, 1, 1], [], []>} : vector<8x256xf32>, vector<256x512xf32>, vector<8x512xf32> -> vector<8x512xf32>
    %191 = arith.addf %190, %22 : vector<8x512xf32>
    %192 = vector.extract_strided_slice %191 {offsets = [0, 0], sizes = [8, 128], strides = [1, 1]} : vector<8x512xf32> to vector<8x128xf32>
    %193 = arith.negf %192 : vector<8x128xf32>
    %194 = math.exp %193 : vector<8x128xf32>
    %cst_70 = arith.constant 1.000000e+00 : f32
    %195 = vector.broadcast %cst_70 : f32 to vector<8x128xf32>
    %196 = arith.addf %195, %194 : vector<8x128xf32>
    %197 = arith.divf %195, %196 : vector<8x128xf32>
    %198 = vector.extract_strided_slice %191 {offsets = [0, 128], sizes = [8, 128], strides = [1, 1]} : vector<8x512xf32> to vector<8x128xf32>
    %199 = arith.negf %198 : vector<8x128xf32>
    %200 = math.exp %199 : vector<8x128xf32>
    %cst_71 = arith.constant 1.000000e+00 : f32
    %201 = vector.broadcast %cst_71 : f32 to vector<8x128xf32>
    %202 = arith.addf %201, %200 : vector<8x128xf32>
    %203 = arith.divf %201, %202 : vector<8x128xf32>
    %204 = vector.extract_strided_slice %191 {offsets = [0, 256], sizes = [8, 128], strides = [1, 1]} : vector<8x512xf32> to vector<8x128xf32>
    %205 = math.tanh %204 : vector<8x128xf32>
    %206 = vector.extract_strided_slice %191 {offsets = [0, 384], sizes = [8, 128], strides = [1, 1]} : vector<8x512xf32> to vector<8x128xf32>
    %207 = arith.negf %206 : vector<8x128xf32>
    %208 = math.exp %207 : vector<8x128xf32>
    %cst_72 = arith.constant 1.000000e+00 : f32
    %209 = vector.broadcast %cst_72 : f32 to vector<8x128xf32>
    %210 = arith.addf %209, %208 : vector<8x128xf32>
    %211 = arith.divf %209, %210 : vector<8x128xf32>
    %212 = arith.mulf %203, %108 : vector<8x128xf32>
    %213 = arith.mulf %197, %205 : vector<8x128xf32>
    %214 = arith.addf %212, %213 : vector<8x128xf32>
    %215 = math.tanh %214 : vector<8x128xf32>
    %216 = arith.mulf %211, %215 : vector<8x128xf32>
    %cst_73 = arith.constant dense<0.000000e+00> : vector<8xf32>
    %217 = vector.multi_reduction <add>, %216, %cst_73 [1] : vector<8x128xf32> to vector<8xf32>
    %218 = vector.shape_cast %217 : vector<8xf32> to vector<8x1xf32>
    %cst_74 = arith.constant 3.125000e-02 : f32
    %219 = vector.broadcast %cst_74 : f32 to vector<8x1xf32>
    %220 = arith.mulf %218, %219 : vector<8x1xf32>
    %221 = arith.mulf %216, %216 : vector<8x128xf32>
    %cst_75 = arith.constant dense<0.000000e+00> : vector<8xf32>
    %222 = vector.multi_reduction <add>, %221, %cst_75 [1] : vector<8x128xf32> to vector<8xf32>
    %223 = vector.shape_cast %222 : vector<8xf32> to vector<8x1xf32>
    %cst_76 = arith.constant 3.125000e-02 : f32
    %224 = vector.broadcast %cst_76 : f32 to vector<8x1xf32>
    %225 = arith.mulf %223, %224 : vector<8x1xf32>
    %226 = arith.mulf %220, %220 : vector<8x1xf32>
    %227 = arith.subf %225, %226 : vector<8x1xf32>
    %cst_77 = arith.constant 0.000000e+00 : f32
    %228 = vector.broadcast %cst_77 : f32 to vector<8x1xf32>
    %229 = arith.maximumf %227, %228 : vector<8x1xf32>
    %230 = vector.broadcast %220 : vector<8x1xf32> to vector<8x128xf32>
    %231 = arith.subf %216, %230 : vector<8x128xf32>
    %cst_78 = arith.constant 9.99999974E-6 : f32
    %232 = vector.broadcast %cst_78 : f32 to vector<8x1xf32>
    %233 = arith.addf %229, %232 : vector<8x1xf32>
    %234 = math.rsqrt %233 : vector<8x1xf32>
    %235 = vector.broadcast %234 : vector<8x1xf32> to vector<8x128xf32>
    %236 = arith.mulf %231, %235 : vector<8x128xf32>
    %237 = arith.mulf %236, %25 : vector<8x128xf32>
    %238 = arith.addf %237, %28 : vector<8x128xf32>
    %239 = vector.shape_cast %238 : vector<8x128xf32> to vector<8x1x128xf32>
    %c0_79 = arith.constant 0 : index
    %c1_80 = arith.constant 1 : index
    %c0_81 = arith.constant 0 : index
    %240 = vector.load %arg16[%c0_79, %c1_80, %c0_81] : memref<8x8x128xf32, #tpu.memory_space<vmem>>, vector<8x1x128xf32>
    tpu.vector_store %arg16[%c0_79, %c1_80, %c0_81], %239 {strides = array<i32>} : memref<8x8x128xf32, #tpu.memory_space<vmem>>, vector<8x1x128xf32>,
    %c0_82 = arith.constant 0 : index
    %c2 = arith.constant 2 : index
    %c0_83 = arith.constant 0 : index
    %241 = vector.load %arg2[%c0_82, %c2, %c0_83] : memref<8x8x128xf32, #tpu.memory_space<vmem>>, vector<8x1x128xf32>
    %242 = vector.shape_cast %241 : vector<8x1x128xf32> to vector<8x128xf32>
    %243 = tpu.concatenate %242, %165 in 1 : vector<8x128xf32>, vector<8x128xf32> -> vector<8x256xf32>
    %c0_84 = arith.constant 0 : index
    %c0_85 = arith.constant 0 : index
    %244 = vector.load %arg3[%c0_84, %c0_85] : memref<256x512xf32, #tpu.memory_space<vmem>>, vector<256x512xf32>
    %cst_86 = arith.constant dense<0.000000e+00> : vector<8x512xf32>
    %245 = tpu.matmul %243, %244, %cst_86 {dimension_numbers = #tpu.dot_dimension_numbers<[1], [0], [0], [1], [0, 0, 1, 1], [], []>} : vector<8x256xf32>, vector<256x512xf32>, vector<8x512xf32> -> vector<8x512xf32>
    %246 = arith.addf %245, %13 : vector<8x512xf32>
    %247 = vector.extract_strided_slice %246 {offsets = [0, 0], sizes = [8, 128], strides = [1, 1]} : vector<8x512xf32> to vector<8x128xf32>
    %248 = arith.negf %247 : vector<8x128xf32>
    %249 = math.exp %248 : vector<8x128xf32>
    %cst_87 = arith.constant 1.000000e+00 : f32
    %250 = vector.broadcast %cst_87 : f32 to vector<8x128xf32>
    %251 = arith.addf %250, %249 : vector<8x128xf32>
    %252 = arith.divf %250, %251 : vector<8x128xf32>
    %253 = vector.extract_strided_slice %246 {offsets = [0, 128], sizes = [8, 128], strides = [1, 1]} : vector<8x512xf32> to vector<8x128xf32>
    %254 = arith.negf %253 : vector<8x128xf32>
    %255 = math.exp %254 : vector<8x128xf32>
    %cst_88 = arith.constant 1.000000e+00 : f32
    %256 = vector.broadcast %cst_88 : f32 to vector<8x128xf32>
    %257 = arith.addf %256, %255 : vector<8x128xf32>
    %258 = arith.divf %256, %257 : vector<8x128xf32>
    %259 = vector.extract_strided_slice %246 {offsets = [0, 256], sizes = [8, 128], strides = [1, 1]} : vector<8x512xf32> to vector<8x128xf32>
    %260 = math.tanh %259 : vector<8x128xf32>
    %261 = vector.extract_strided_slice %246 {offsets = [0, 384], sizes = [8, 128], strides = [1, 1]} : vector<8x512xf32> to vector<8x128xf32>
    %262 = arith.negf %261 : vector<8x128xf32>
    %263 = math.exp %262 : vector<8x128xf32>
    %cst_89 = arith.constant 1.000000e+00 : f32
    %264 = vector.broadcast %cst_89 : f32 to vector<8x128xf32>
    %265 = arith.addf %264, %263 : vector<8x128xf32>
    %266 = arith.divf %264, %265 : vector<8x128xf32>
    %267 = arith.mulf %258, %163 : vector<8x128xf32>
    %268 = arith.mulf %252, %260 : vector<8x128xf32>
    %269 = arith.addf %267, %268 : vector<8x128xf32>
    %270 = math.tanh %269 : vector<8x128xf32>
    %271 = arith.mulf %266, %270 : vector<8x128xf32>
    %cst_90 = arith.constant dense<0.000000e+00> : vector<8xf32>
    %272 = vector.multi_reduction <add>, %271, %cst_90 [1] : vector<8x128xf32> to vector<8xf32>
    %273 = vector.shape_cast %272 : vector<8xf32> to vector<8x1xf32>
    %cst_91 = arith.constant 3.125000e-02 : f32
    %274 = vector.broadcast %cst_91 : f32 to vector<8x1xf32>
    %275 = arith.mulf %273, %274 : vector<8x1xf32>
    %276 = arith.mulf %271, %271 : vector<8x128xf32>
    %cst_92 = arith.constant dense<0.000000e+00> : vector<8xf32>
    %277 = vector.multi_reduction <add>, %276, %cst_92 [1] : vector<8x128xf32> to vector<8xf32>
    %278 = vector.shape_cast %277 : vector<8xf32> to vector<8x1xf32>
    %cst_93 = arith.constant 3.125000e-02 : f32
    %279 = vector.broadcast %cst_93 : f32 to vector<8x1xf32>
    %280 = arith.mulf %278, %279 : vector<8x1xf32>
    %281 = arith.mulf %275, %275 : vector<8x1xf32>
    %282 = arith.subf %280, %281 : vector<8x1xf32>
    %cst_94 = arith.constant 0.000000e+00 : f32
    %283 = vector.broadcast %cst_94 : f32 to vector<8x1xf32>
    %284 = arith.maximumf %282, %283 : vector<8x1xf32>
    %285 = vector.broadcast %275 : vector<8x1xf32> to vector<8x128xf32>
    %286 = arith.subf %271, %285 : vector<8x128xf32>
    %cst_95 = arith.constant 9.99999974E-6 : f32
    %287 = vector.broadcast %cst_95 : f32 to vector<8x1xf32>
    %288 = arith.addf %284, %287 : vector<8x1xf32>
    %289 = math.rsqrt %288 : vector<8x1xf32>
    %290 = vector.broadcast %289 : vector<8x1xf32> to vector<8x128xf32>
    %291 = arith.mulf %286, %290 : vector<8x128xf32>
    %292 = arith.mulf %291, %16 : vector<8x128xf32>
    %293 = arith.addf %292, %19 : vector<8x128xf32>
    %294 = tpu.concatenate %293, %216 in 1 : vector<8x128xf32>, vector<8x128xf32> -> vector<8x256xf32>
    %c0_96 = arith.constant 0 : index
    %c0_97 = arith.constant 0 : index
    %295 = vector.load %arg7[%c0_96, %c0_97] : memref<256x512xf32, #tpu.memory_space<vmem>>, vector<256x512xf32>
    %cst_98 = arith.constant dense<0.000000e+00> : vector<8x512xf32>
    %296 = tpu.matmul %294, %295, %cst_98 {dimension_numbers = #tpu.dot_dimension_numbers<[1], [0], [0], [1], [0, 0, 1, 1], [], []>} : vector<8x256xf32>, vector<256x512xf32>, vector<8x512xf32> -> vector<8x512xf32>
    %297 = arith.addf %296, %22 : vector<8x512xf32>
    %298 = vector.extract_strided_slice %297 {offsets = [0, 0], sizes = [8, 128], strides = [1, 1]} : vector<8x512xf32> to vector<8x128xf32>
    %299 = arith.negf %298 : vector<8x128xf32>
    %300 = math.exp %299 : vector<8x128xf32>
    %cst_99 = arith.constant 1.000000e+00 : f32
    %301 = vector.broadcast %cst_99 : f32 to vector<8x128xf32>
    %302 = arith.addf %301, %300 : vector<8x128xf32>
    %303 = arith.divf %301, %302 : vector<8x128xf32>
    %304 = vector.extract_strided_slice %297 {offsets = [0, 128], sizes = [8, 128], strides = [1, 1]} : vector<8x512xf32> to vector<8x128xf32>
    %305 = arith.negf %304 : vector<8x128xf32>
    %306 = math.exp %305 : vector<8x128xf32>
    %cst_100 = arith.constant 1.000000e+00 : f32
    %307 = vector.broadcast %cst_100 : f32 to vector<8x128xf32>
    %308 = arith.addf %307, %306 : vector<8x128xf32>
    %309 = arith.divf %307, %308 : vector<8x128xf32>
    %310 = vector.extract_strided_slice %297 {offsets = [0, 256], sizes = [8, 128], strides = [1, 1]} : vector<8x512xf32> to vector<8x128xf32>
    %311 = math.tanh %310 : vector<8x128xf32>
    %312 = vector.extract_strided_slice %297 {offsets = [0, 384], sizes = [8, 128], strides = [1, 1]} : vector<8x512xf32> to vector<8x128xf32>
    %313 = arith.negf %312 : vector<8x128xf32>
    %314 = math.exp %313 : vector<8x128xf32>
    %cst_101 = arith.constant 1.000000e+00 : f32
    %315 = vector.broadcast %cst_101 : f32 to vector<8x128xf32>
    %316 = arith.addf %315, %314 : vector<8x128xf32>
    %317 = arith.divf %315, %316 : vector<8x128xf32>
    %318 = arith.mulf %309, %214 : vector<8x128xf32>
    %319 = arith.mulf %303, %311 : vector<8x128xf32>
    %320 = arith.addf %318, %319 : vector<8x128xf32>
    %321 = math.tanh %320 : vector<8x128xf32>
    %322 = arith.mulf %317, %321 : vector<8x128xf32>
    %cst_102 = arith.constant dense<0.000000e+00> : vector<8xf32>
    %323 = vector.multi_reduction <add>, %322, %cst_102 [1] : vector<8x128xf32> to vector<8xf32>
    %324 = vector.shape_cast %323 : vector<8xf32> to vector<8x1xf32>
    %cst_103 = arith.constant 3.125000e-02 : f32
    %325 = vector.broadcast %cst_103 : f32 to vector<8x1xf32>
    %326 = arith.mulf %324, %325 : vector<8x1xf32>
    %327 = arith.mulf %322, %322 : vector<8x128xf32>
    %cst_104 = arith.constant dense<0.000000e+00> : vector<8xf32>
    %328 = vector.multi_reduction <add>, %327, %cst_104 [1] : vector<8x128xf32> to vector<8xf32>
    %329 = vector.shape_cast %328 : vector<8xf32> to vector<8x1xf32>
    %cst_105 = arith.constant 3.125000e-02 : f32
    %330 = vector.broadcast %cst_105 : f32 to vector<8x1xf32>
    %331 = arith.mulf %329, %330 : vector<8x1xf32>
    %332 = arith.mulf %326, %326 : vector<8x1xf32>
    %333 = arith.subf %331, %332 : vector<8x1xf32>
    %cst_106 = arith.constant 0.000000e+00 : f32
    %334 = vector.broadcast %cst_106 : f32 to vector<8x1xf32>
    %335 = arith.maximumf %333, %334 : vector<8x1xf32>
    %336 = vector.broadcast %326 : vector<8x1xf32> to vector<8x128xf32>
    %337 = arith.subf %322, %336 : vector<8x128xf32>
    %cst_107 = arith.constant 9.99999974E-6 : f32
    %338 = vector.broadcast %cst_107 : f32 to vector<8x1xf32>
    %339 = arith.addf %335, %338 : vector<8x1xf32>
    %340 = math.rsqrt %339 : vector<8x1xf32>
    %341 = vector.broadcast %340 : vector<8x1xf32> to vector<8x128xf32>
    %342 = arith.mulf %337, %341 : vector<8x128xf32>
    %343 = arith.mulf %342, %25 : vector<8x128xf32>
    %344 = arith.addf %343, %28 : vector<8x128xf32>
    %345 = vector.shape_cast %344 : vector<8x128xf32> to vector<8x1x128xf32>
    %c0_108 = arith.constant 0 : index
    %c2_109 = arith.constant 2 : index
    %c0_110 = arith.constant 0 : index
    %346 = vector.load %arg16[%c0_108, %c2_109, %c0_110] : memref<8x8x128xf32, #tpu.memory_space<vmem>>, vector<8x1x128xf32>
    tpu.vector_store %arg16[%c0_108, %c2_109, %c0_110], %345 {strides = array<i32>} : memref<8x8x128xf32, #tpu.memory_space<vmem>>, vector<8x1x128xf32>,
    %c0_111 = arith.constant 0 : index
    %c3 = arith.constant 3 : index
    %c0_112 = arith.constant 0 : index
    %347 = vector.load %arg2[%c0_111, %c3, %c0_112] : memref<8x8x128xf32, #tpu.memory_space<vmem>>, vector<8x1x128xf32>
    %348 = vector.shape_cast %347 : vector<8x1x128xf32> to vector<8x128xf32>
    %349 = tpu.concatenate %348, %271 in 1 : vector<8x128xf32>, vector<8x128xf32> -> vector<8x256xf32>
    %c0_113 = arith.constant 0 : index
    %c0_114 = arith.constant 0 : index
    %350 = vector.load %arg3[%c0_113, %c0_114] : memref<256x512xf32, #tpu.memory_space<vmem>>, vector<256x512xf32>
    %cst_115 = arith.constant dense<0.000000e+00> : vector<8x512xf32>
    %351 = tpu.matmul %349, %350, %cst_115 {dimension_numbers = #tpu.dot_dimension_numbers<[1], [0], [0], [1], [0, 0, 1, 1], [], []>} : vector<8x256xf32>, vector<256x512xf32>, vector<8x512xf32> -> vector<8x512xf32>
    %352 = arith.addf %351, %13 : vector<8x512xf32>
    %353 = vector.extract_strided_slice %352 {offsets = [0, 0], sizes = [8, 128], strides = [1, 1]} : vector<8x512xf32> to vector<8x128xf32>
    %354 = arith.negf %353 : vector<8x128xf32>
    %355 = math.exp %354 : vector<8x128xf32>
    %cst_116 = arith.constant 1.000000e+00 : f32
    %356 = vector.broadcast %cst_116 : f32 to vector<8x128xf32>
    %357 = arith.addf %356, %355 : vector<8x128xf32>
    %358 = arith.divf %356, %357 : vector<8x128xf32>
    %359 = vector.extract_strided_slice %352 {offsets = [0, 128], sizes = [8, 128], strides = [1, 1]} : vector<8x512xf32> to vector<8x128xf32>
    %360 = arith.negf %359 : vector<8x128xf32>
    %361 = math.exp %360 : vector<8x128xf32>
    %cst_117 = arith.constant 1.000000e+00 : f32
    %362 = vector.broadcast %cst_117 : f32 to vector<8x128xf32>
    %363 = arith.addf %362, %361 : vector<8x128xf32>
    %364 = arith.divf %362, %363 : vector<8x128xf32>
    %365 = vector.extract_strided_slice %352 {offsets = [0, 256], sizes = [8, 128], strides = [1, 1]} : vector<8x512xf32> to vector<8x128xf32>
    %366 = math.tanh %365 : vector<8x128xf32>
    %367 = vector.extract_strided_slice %352 {offsets = [0, 384], sizes = [8, 128], strides = [1, 1]} : vector<8x512xf32> to vector<8x128xf32>
    %368 = arith.negf %367 : vector<8x128xf32>
    %369 = math.exp %368 : vector<8x128xf32>
    %cst_118 = arith.constant 1.000000e+00 : f32
    %370 = vector.broadcast %cst_118 : f32 to vector<8x128xf32>
    %371 = arith.addf %370, %369 : vector<8x128xf32>
    %372 = arith.divf %370, %371 : vector<8x128xf32>
    %373 = arith.mulf %364, %269 : vector<8x128xf32>
    %374 = arith.mulf %358, %366 : vector<8x128xf32>
    %375 = arith.addf %373, %374 : vector<8x128xf32>
    %376 = math.tanh %375 : vector<8x128xf32>
    %377 = arith.mulf %372, %376 : vector<8x128xf32>
    %cst_119 = arith.constant dense<0.000000e+00> : vector<8xf32>
    %378 = vector.multi_reduction <add>, %377, %cst_119 [1] : vector<8x128xf32> to vector<8xf32>
    %379 = vector.shape_cast %378 : vector<8xf32> to vector<8x1xf32>
    %cst_120 = arith.constant 3.125000e-02 : f32
    %380 = vector.broadcast %cst_120 : f32 to vector<8x1xf32>
    %381 = arith.mulf %379, %380 : vector<8x1xf32>
    %382 = arith.mulf %377, %377 : vector<8x128xf32>
    %cst_121 = arith.constant dense<0.000000e+00> : vector<8xf32>
    %383 = vector.multi_reduction <add>, %382, %cst_121 [1] : vector<8x128xf32> to vector<8xf32>
    %384 = vector.shape_cast %383 : vector<8xf32> to vector<8x1xf32>
    %cst_122 = arith.constant 3.125000e-02 : f32
    %385 = vector.broadcast %cst_122 : f32 to vector<8x1xf32>
    %386 = arith.mulf %384, %385 : vector<8x1xf32>
    %387 = arith.mulf %381, %381 : vector<8x1xf32>
    %388 = arith.subf %386, %387 : vector<8x1xf32>
    %cst_123 = arith.constant 0.000000e+00 : f32
    %389 = vector.broadcast %cst_123 : f32 to vector<8x1xf32>
    %390 = arith.maximumf %388, %389 : vector<8x1xf32>
    %391 = vector.broadcast %381 : vector<8x1xf32> to vector<8x128xf32>
    %392 = arith.subf %377, %391 : vector<8x128xf32>
    %cst_124 = arith.constant 9.99999974E-6 : f32
    %393 = vector.broadcast %cst_124 : f32 to vector<8x1xf32>
    %394 = arith.addf %390, %393 : vector<8x1xf32>
    %395 = math.rsqrt %394 : vector<8x1xf32>
    %396 = vector.broadcast %395 : vector<8x1xf32> to vector<8x128xf32>
    %397 = arith.mulf %392, %396 : vector<8x128xf32>
    %398 = arith.mulf %397, %16 : vector<8x128xf32>
    %399 = arith.addf %398, %19 : vector<8x128xf32>
    %400 = tpu.concatenate %399, %322 in 1 : vector<8x128xf32>, vector<8x128xf32> -> vector<8x256xf32>
    %c0_125 = arith.constant 0 : index
    %c0_126 = arith.constant 0 : index
    %401 = vector.load %arg7[%c0_125, %c0_126] : memref<256x512xf32, #tpu.memory_space<vmem>>, vector<256x512xf32>
    %cst_127 = arith.constant dense<0.000000e+00> : vector<8x512xf32>
    %402 = tpu.matmul %400, %401, %cst_127 {dimension_numbers = #tpu.dot_dimension_numbers<[1], [0], [0], [1], [0, 0, 1, 1], [], []>} : vector<8x256xf32>, vector<256x512xf32>, vector<8x512xf32> -> vector<8x512xf32>
    %403 = arith.addf %402, %22 : vector<8x512xf32>
    %404 = vector.extract_strided_slice %403 {offsets = [0, 0], sizes = [8, 128], strides = [1, 1]} : vector<8x512xf32> to vector<8x128xf32>
    %405 = arith.negf %404 : vector<8x128xf32>
    %406 = math.exp %405 : vector<8x128xf32>
    %cst_128 = arith.constant 1.000000e+00 : f32
    %407 = vector.broadcast %cst_128 : f32 to vector<8x128xf32>
    %408 = arith.addf %407, %406 : vector<8x128xf32>
    %409 = arith.divf %407, %408 : vector<8x128xf32>
    %410 = vector.extract_strided_slice %403 {offsets = [0, 128], sizes = [8, 128], strides = [1, 1]} : vector<8x512xf32> to vector<8x128xf32>
    %411 = arith.negf %410 : vector<8x128xf32>
    %412 = math.exp %411 : vector<8x128xf32>
    %cst_129 = arith.constant 1.000000e+00 : f32
    %413 = vector.broadcast %cst_129 : f32 to vector<8x128xf32>
    %414 = arith.addf %413, %412 : vector<8x128xf32>
    %415 = arith.divf %413, %414 : vector<8x128xf32>
    %416 = vector.extract_strided_slice %403 {offsets = [0, 256], sizes = [8, 128], strides = [1, 1]} : vector<8x512xf32> to vector<8x128xf32>
    %417 = math.tanh %416 : vector<8x128xf32>
    %418 = vector.extract_strided_slice %403 {offsets = [0, 384], sizes = [8, 128], strides = [1, 1]} : vector<8x512xf32> to vector<8x128xf32>
    %419 = arith.negf %418 : vector<8x128xf32>
    %420 = math.exp %419 : vector<8x128xf32>
    %cst_130 = arith.constant 1.000000e+00 : f32
    %421 = vector.broadcast %cst_130 : f32 to vector<8x128xf32>
    %422 = arith.addf %421, %420 : vector<8x128xf32>
    %423 = arith.divf %421, %422 : vector<8x128xf32>
    %424 = arith.mulf %415, %320 : vector<8x128xf32>
    %425 = arith.mulf %409, %417 : vector<8x128xf32>
    %426 = arith.addf %424, %425 : vector<8x128xf32>
    %427 = math.tanh %426 : vector<8x128xf32>
    %428 = arith.mulf %423, %427 : vector<8x128xf32>
    %cst_131 = arith.constant dense<0.000000e+00> : vector<8xf32>
    %429 = vector.multi_reduction <add>, %428, %cst_131 [1] : vector<8x128xf32> to vector<8xf32>
    %430 = vector.shape_cast %429 : vector<8xf32> to vector<8x1xf32>
    %cst_132 = arith.constant 3.125000e-02 : f32
    %431 = vector.broadcast %cst_132 : f32 to vector<8x1xf32>
    %432 = arith.mulf %430, %431 : vector<8x1xf32>
    %433 = arith.mulf %428, %428 : vector<8x128xf32>
    %cst_133 = arith.constant dense<0.000000e+00> : vector<8xf32>
    %434 = vector.multi_reduction <add>, %433, %cst_133 [1] : vector<8x128xf32> to vector<8xf32>
    %435 = vector.shape_cast %434 : vector<8xf32> to vector<8x1xf32>
    %cst_134 = arith.constant 3.125000e-02 : f32
    %436 = vector.broadcast %cst_134 : f32 to vector<8x1xf32>
    %437 = arith.mulf %435, %436 : vector<8x1xf32>
    %438 = arith.mulf %432, %432 : vector<8x1xf32>
    %439 = arith.subf %437, %438 : vector<8x1xf32>
    %cst_135 = arith.constant 0.000000e+00 : f32
    %440 = vector.broadcast %cst_135 : f32 to vector<8x1xf32>
    %441 = arith.maximumf %439, %440 : vector<8x1xf32>
    %442 = vector.broadcast %432 : vector<8x1xf32> to vector<8x128xf32>
    %443 = arith.subf %428, %442 : vector<8x128xf32>
    %cst_136 = arith.constant 9.99999974E-6 : f32
    %444 = vector.broadcast %cst_136 : f32 to vector<8x1xf32>
    %445 = arith.addf %441, %444 : vector<8x1xf32>
    %446 = math.rsqrt %445 : vector<8x1xf32>
    %447 = vector.broadcast %446 : vector<8x1xf32> to vector<8x128xf32>
    %448 = arith.mulf %443, %447 : vector<8x128xf32>
    %449 = arith.mulf %448, %25 : vector<8x128xf32>
    %450 = arith.addf %449, %28 : vector<8x128xf32>
    %451 = vector.shape_cast %450 : vector<8x128xf32> to vector<8x1x128xf32>
    %c0_137 = arith.constant 0 : index
    %c3_138 = arith.constant 3 : index
    %c0_139 = arith.constant 0 : index
    %452 = vector.load %arg16[%c0_137, %c3_138, %c0_139] : memref<8x8x128xf32, #tpu.memory_space<vmem>>, vector<8x1x128xf32>
    tpu.vector_store %arg16[%c0_137, %c3_138, %c0_139], %451 {strides = array<i32>} : memref<8x8x128xf32, #tpu.memory_space<vmem>>, vector<8x1x128xf32>,
    %c0_140 = arith.constant 0 : index
    %c4 = arith.constant 4 : index
    %c0_141 = arith.constant 0 : index
    %453 = vector.load %arg2[%c0_140, %c4, %c0_141] : memref<8x8x128xf32, #tpu.memory_space<vmem>>, vector<8x1x128xf32>
    %454 = vector.shape_cast %453 : vector<8x1x128xf32> to vector<8x128xf32>
    %455 = tpu.concatenate %454, %377 in 1 : vector<8x128xf32>, vector<8x128xf32> -> vector<8x256xf32>
    %c0_142 = arith.constant 0 : index
    %c0_143 = arith.constant 0 : index
    %456 = vector.load %arg3[%c0_142, %c0_143] : memref<256x512xf32, #tpu.memory_space<vmem>>, vector<256x512xf32>
    %cst_144 = arith.constant dense<0.000000e+00> : vector<8x512xf32>
    %457 = tpu.matmul %455, %456, %cst_144 {dimension_numbers = #tpu.dot_dimension_numbers<[1], [0], [0], [1], [0, 0, 1, 1], [], []>} : vector<8x256xf32>, vector<256x512xf32>, vector<8x512xf32> -> vector<8x512xf32>
    %458 = arith.addf %457, %13 : vector<8x512xf32>
    %459 = vector.extract_strided_slice %458 {offsets = [0, 0], sizes = [8, 128], strides = [1, 1]} : vector<8x512xf32> to vector<8x128xf32>
    %460 = arith.negf %459 : vector<8x128xf32>
    %461 = math.exp %460 : vector<8x128xf32>
    %cst_145 = arith.constant 1.000000e+00 : f32
    %462 = vector.broadcast %cst_145 : f32 to vector<8x128xf32>
    %463 = arith.addf %462, %461 : vector<8x128xf32>
    %464 = arith.divf %462, %463 : vector<8x128xf32>
    %465 = vector.extract_strided_slice %458 {offsets = [0, 128], sizes = [8, 128], strides = [1, 1]} : vector<8x512xf32> to vector<8x128xf32>
    %466 = arith.negf %465 : vector<8x128xf32>
    %467 = math.exp %466 : vector<8x128xf32>
    %cst_146 = arith.constant 1.000000e+00 : f32
    %468 = vector.broadcast %cst_146 : f32 to vector<8x128xf32>
    %469 = arith.addf %468, %467 : vector<8x128xf32>
    %470 = arith.divf %468, %469 : vector<8x128xf32>
    %471 = vector.extract_strided_slice %458 {offsets = [0, 256], sizes = [8, 128], strides = [1, 1]} : vector<8x512xf32> to vector<8x128xf32>
    %472 = math.tanh %471 : vector<8x128xf32>
    %473 = vector.extract_strided_slice %458 {offsets = [0, 384], sizes = [8, 128], strides = [1, 1]} : vector<8x512xf32> to vector<8x128xf32>
    %474 = arith.negf %473 : vector<8x128xf32>
    %475 = math.exp %474 : vector<8x128xf32>
    %cst_147 = arith.constant 1.000000e+00 : f32
    %476 = vector.broadcast %cst_147 : f32 to vector<8x128xf32>
    %477 = arith.addf %476, %475 : vector<8x128xf32>
    %478 = arith.divf %476, %477 : vector<8x128xf32>
    %479 = arith.mulf %470, %375 : vector<8x128xf32>
    %480 = arith.mulf %464, %472 : vector<8x128xf32>
    %481 = arith.addf %479, %480 : vector<8x128xf32>
    %482 = math.tanh %481 : vector<8x128xf32>
    %483 = arith.mulf %478, %482 : vector<8x128xf32>
    %cst_148 = arith.constant dense<0.000000e+00> : vector<8xf32>
    %484 = vector.multi_reduction <add>, %483, %cst_148 [1] : vector<8x128xf32> to vector<8xf32>
    %485 = vector.shape_cast %484 : vector<8xf32> to vector<8x1xf32>
    %cst_149 = arith.constant 3.125000e-02 : f32
    %486 = vector.broadcast %cst_149 : f32 to vector<8x1xf32>
    %487 = arith.mulf %485, %486 : vector<8x1xf32>
    %488 = arith.mulf %483, %483 : vector<8x128xf32>
    %cst_150 = arith.constant dense<0.000000e+00> : vector<8xf32>
    %489 = vector.multi_reduction <add>, %488, %cst_150 [1] : vector<8x128xf32> to vector<8xf32>
    %490 = vector.shape_cast %489 : vector<8xf32> to vector<8x1xf32>
    %cst_151 = arith.constant 3.125000e-02 : f32
    %491 = vector.broadcast %cst_151 : f32 to vector<8x1xf32>
    %492 = arith.mulf %490, %491 : vector<8x1xf32>
    %493 = arith.mulf %487, %487 : vector<8x1xf32>
    %494 = arith.subf %492, %493 : vector<8x1xf32>
    %cst_152 = arith.constant 0.000000e+00 : f32
    %495 = vector.broadcast %cst_152 : f32 to vector<8x1xf32>
    %496 = arith.maximumf %494, %495 : vector<8x1xf32>
    %497 = vector.broadcast %487 : vector<8x1xf32> to vector<8x128xf32>
    %498 = arith.subf %483, %497 : vector<8x128xf32>
    %cst_153 = arith.constant 9.99999974E-6 : f32
    %499 = vector.broadcast %cst_153 : f32 to vector<8x1xf32>
    %500 = arith.addf %496, %499 : vector<8x1xf32>
    %501 = math.rsqrt %500 : vector<8x1xf32>
    %502 = vector.broadcast %501 : vector<8x1xf32> to vector<8x128xf32>
    %503 = arith.mulf %498, %502 : vector<8x128xf32>
    %504 = arith.mulf %503, %16 : vector<8x128xf32>
    %505 = arith.addf %504, %19 : vector<8x128xf32>
    %506 = tpu.concatenate %505, %428 in 1 : vector<8x128xf32>, vector<8x128xf32> -> vector<8x256xf32>
    %c0_154 = arith.constant 0 : index
    %c0_155 = arith.constant 0 : index
    %507 = vector.load %arg7[%c0_154, %c0_155] : memref<256x512xf32, #tpu.memory_space<vmem>>, vector<256x512xf32>
    %cst_156 = arith.constant dense<0.000000e+00> : vector<8x512xf32>
    %508 = tpu.matmul %506, %507, %cst_156 {dimension_numbers = #tpu.dot_dimension_numbers<[1], [0], [0], [1], [0, 0, 1, 1], [], []>} : vector<8x256xf32>, vector<256x512xf32>, vector<8x512xf32> -> vector<8x512xf32>
    %509 = arith.addf %508, %22 : vector<8x512xf32>
    %510 = vector.extract_strided_slice %509 {offsets = [0, 0], sizes = [8, 128], strides = [1, 1]} : vector<8x512xf32> to vector<8x128xf32>
    %511 = arith.negf %510 : vector<8x128xf32>
    %512 = math.exp %511 : vector<8x128xf32>
    %cst_157 = arith.constant 1.000000e+00 : f32
    %513 = vector.broadcast %cst_157 : f32 to vector<8x128xf32>
    %514 = arith.addf %513, %512 : vector<8x128xf32>
    %515 = arith.divf %513, %514 : vector<8x128xf32>
    %516 = vector.extract_strided_slice %509 {offsets = [0, 128], sizes = [8, 128], strides = [1, 1]} : vector<8x512xf32> to vector<8x128xf32>
    %517 = arith.negf %516 : vector<8x128xf32>
    %518 = math.exp %517 : vector<8x128xf32>
    %cst_158 = arith.constant 1.000000e+00 : f32
    %519 = vector.broadcast %cst_158 : f32 to vector<8x128xf32>
    %520 = arith.addf %519, %518 : vector<8x128xf32>
    %521 = arith.divf %519, %520 : vector<8x128xf32>
    %522 = vector.extract_strided_slice %509 {offsets = [0, 256], sizes = [8, 128], strides = [1, 1]} : vector<8x512xf32> to vector<8x128xf32>
    %523 = math.tanh %522 : vector<8x128xf32>
    %524 = vector.extract_strided_slice %509 {offsets = [0, 384], sizes = [8, 128], strides = [1, 1]} : vector<8x512xf32> to vector<8x128xf32>
    %525 = arith.negf %524 : vector<8x128xf32>
    %526 = math.exp %525 : vector<8x128xf32>
    %cst_159 = arith.constant 1.000000e+00 : f32
    %527 = vector.broadcast %cst_159 : f32 to vector<8x128xf32>
    %528 = arith.addf %527, %526 : vector<8x128xf32>
    %529 = arith.divf %527, %528 : vector<8x128xf32>
    %530 = arith.mulf %521, %426 : vector<8x128xf32>
    %531 = arith.mulf %515, %523 : vector<8x128xf32>
    %532 = arith.addf %530, %531 : vector<8x128xf32>
    %533 = math.tanh %532 : vector<8x128xf32>
    %534 = arith.mulf %529, %533 : vector<8x128xf32>
    %cst_160 = arith.constant dense<0.000000e+00> : vector<8xf32>
    %535 = vector.multi_reduction <add>, %534, %cst_160 [1] : vector<8x128xf32> to vector<8xf32>
    %536 = vector.shape_cast %535 : vector<8xf32> to vector<8x1xf32>
    %cst_161 = arith.constant 3.125000e-02 : f32
    %537 = vector.broadcast %cst_161 : f32 to vector<8x1xf32>
    %538 = arith.mulf %536, %537 : vector<8x1xf32>
    %539 = arith.mulf %534, %534 : vector<8x128xf32>
    %cst_162 = arith.constant dense<0.000000e+00> : vector<8xf32>
    %540 = vector.multi_reduction <add>, %539, %cst_162 [1] : vector<8x128xf32> to vector<8xf32>
    %541 = vector.shape_cast %540 : vector<8xf32> to vector<8x1xf32>
    %cst_163 = arith.constant 3.125000e-02 : f32
    %542 = vector.broadcast %cst_163 : f32 to vector<8x1xf32>
    %543 = arith.mulf %541, %542 : vector<8x1xf32>
    %544 = arith.mulf %538, %538 : vector<8x1xf32>
    %545 = arith.subf %543, %544 : vector<8x1xf32>
    %cst_164 = arith.constant 0.000000e+00 : f32
    %546 = vector.broadcast %cst_164 : f32 to vector<8x1xf32>
    %547 = arith.maximumf %545, %546 : vector<8x1xf32>
    %548 = vector.broadcast %538 : vector<8x1xf32> to vector<8x128xf32>
    %549 = arith.subf %534, %548 : vector<8x128xf32>
    %cst_165 = arith.constant 9.99999974E-6 : f32
    %550 = vector.broadcast %cst_165 : f32 to vector<8x1xf32>
    %551 = arith.addf %547, %550 : vector<8x1xf32>
    %552 = math.rsqrt %551 : vector<8x1xf32>
    %553 = vector.broadcast %552 : vector<8x1xf32> to vector<8x128xf32>
    %554 = arith.mulf %549, %553 : vector<8x128xf32>
    %555 = arith.mulf %554, %25 : vector<8x128xf32>
    %556 = arith.addf %555, %28 : vector<8x128xf32>
    %557 = vector.shape_cast %556 : vector<8x128xf32> to vector<8x1x128xf32>
    %c0_166 = arith.constant 0 : index
    %c4_167 = arith.constant 4 : index
    %c0_168 = arith.constant 0 : index
    %558 = vector.load %arg16[%c0_166, %c4_167, %c0_168] : memref<8x8x128xf32, #tpu.memory_space<vmem>>, vector<8x1x128xf32>
    tpu.vector_store %arg16[%c0_166, %c4_167, %c0_168], %557 {strides = array<i32>} : memref<8x8x128xf32, #tpu.memory_space<vmem>>, vector<8x1x128xf32>,
    %c0_169 = arith.constant 0 : index
    %c5 = arith.constant 5 : index
    %c0_170 = arith.constant 0 : index
    %559 = vector.load %arg2[%c0_169, %c5, %c0_170] : memref<8x8x128xf32, #tpu.memory_space<vmem>>, vector<8x1x128xf32>
    %560 = vector.shape_cast %559 : vector<8x1x128xf32> to vector<8x128xf32>
    %561 = tpu.concatenate %560, %483 in 1 : vector<8x128xf32>, vector<8x128xf32> -> vector<8x256xf32>
    %c0_171 = arith.constant 0 : index
    %c0_172 = arith.constant 0 : index
    %562 = vector.load %arg3[%c0_171, %c0_172] : memref<256x512xf32, #tpu.memory_space<vmem>>, vector<256x512xf32>
    %cst_173 = arith.constant dense<0.000000e+00> : vector<8x512xf32>
    %563 = tpu.matmul %561, %562, %cst_173 {dimension_numbers = #tpu.dot_dimension_numbers<[1], [0], [0], [1], [0, 0, 1, 1], [], []>} : vector<8x256xf32>, vector<256x512xf32>, vector<8x512xf32> -> vector<8x512xf32>
    %564 = arith.addf %563, %13 : vector<8x512xf32>
    %565 = vector.extract_strided_slice %564 {offsets = [0, 0], sizes = [8, 128], strides = [1, 1]} : vector<8x512xf32> to vector<8x128xf32>
    %566 = arith.negf %565 : vector<8x128xf32>
    %567 = math.exp %566 : vector<8x128xf32>
    %cst_174 = arith.constant 1.000000e+00 : f32
    %568 = vector.broadcast %cst_174 : f32 to vector<8x128xf32>
    %569 = arith.addf %568, %567 : vector<8x128xf32>
    %570 = arith.divf %568, %569 : vector<8x128xf32>
    %571 = vector.extract_strided_slice %564 {offsets = [0, 128], sizes = [8, 128], strides = [1, 1]} : vector<8x512xf32> to vector<8x128xf32>
    %572 = arith.negf %571 : vector<8x128xf32>
    %573 = math.exp %572 : vector<8x128xf32>
    %cst_175 = arith.constant 1.000000e+00 : f32
    %574 = vector.broadcast %cst_175 : f32 to vector<8x128xf32>
    %575 = arith.addf %574, %573 : vector<8x128xf32>
    %576 = arith.divf %574, %575 : vector<8x128xf32>
    %577 = vector.extract_strided_slice %564 {offsets = [0, 256], sizes = [8, 128], strides = [1, 1]} : vector<8x512xf32> to vector<8x128xf32>
    %578 = math.tanh %577 : vector<8x128xf32>
    %579 = vector.extract_strided_slice %564 {offsets = [0, 384], sizes = [8, 128], strides = [1, 1]} : vector<8x512xf32> to vector<8x128xf32>
    %580 = arith.negf %579 : vector<8x128xf32>
    %581 = math.exp %580 : vector<8x128xf32>
    %cst_176 = arith.constant 1.000000e+00 : f32
    %582 = vector.broadcast %cst_176 : f32 to vector<8x128xf32>
    %583 = arith.addf %582, %581 : vector<8x128xf32>
    %584 = arith.divf %582, %583 : vector<8x128xf32>
    %585 = arith.mulf %576, %481 : vector<8x128xf32>
    %586 = arith.mulf %570, %578 : vector<8x128xf32>
    %587 = arith.addf %585, %586 : vector<8x128xf32>
    %588 = math.tanh %587 : vector<8x128xf32>
    %589 = arith.mulf %584, %588 : vector<8x128xf32>
    %cst_177 = arith.constant dense<0.000000e+00> : vector<8xf32>
    %590 = vector.multi_reduction <add>, %589, %cst_177 [1] : vector<8x128xf32> to vector<8xf32>
    %591 = vector.shape_cast %590 : vector<8xf32> to vector<8x1xf32>
    %cst_178 = arith.constant 3.125000e-02 : f32
    %592 = vector.broadcast %cst_178 : f32 to vector<8x1xf32>
    %593 = arith.mulf %591, %592 : vector<8x1xf32>
    %594 = arith.mulf %589, %589 : vector<8x128xf32>
    %cst_179 = arith.constant dense<0.000000e+00> : vector<8xf32>
    %595 = vector.multi_reduction <add>, %594, %cst_179 [1] : vector<8x128xf32> to vector<8xf32>
    %596 = vector.shape_cast %595 : vector<8xf32> to vector<8x1xf32>
    %cst_180 = arith.constant 3.125000e-02 : f32
    %597 = vector.broadcast %cst_180 : f32 to vector<8x1xf32>
    %598 = arith.mulf %596, %597 : vector<8x1xf32>
    %599 = arith.mulf %593, %593 : vector<8x1xf32>
    %600 = arith.subf %598, %599 : vector<8x1xf32>
    %cst_181 = arith.constant 0.000000e+00 : f32
    %601 = vector.broadcast %cst_181 : f32 to vector<8x1xf32>
    %602 = arith.maximumf %600, %601 : vector<8x1xf32>
    %603 = vector.broadcast %593 : vector<8x1xf32> to vector<8x128xf32>
    %604 = arith.subf %589, %603 : vector<8x128xf32>
    %cst_182 = arith.constant 9.99999974E-6 : f32
    %605 = vector.broadcast %cst_182 : f32 to vector<8x1xf32>
    %606 = arith.addf %602, %605 : vector<8x1xf32>
    %607 = math.rsqrt %606 : vector<8x1xf32>
    %608 = vector.broadcast %607 : vector<8x1xf32> to vector<8x128xf32>
    %609 = arith.mulf %604, %608 : vector<8x128xf32>
    %610 = arith.mulf %609, %16 : vector<8x128xf32>
    %611 = arith.addf %610, %19 : vector<8x128xf32>
    %612 = tpu.concatenate %611, %534 in 1 : vector<8x128xf32>, vector<8x128xf32> -> vector<8x256xf32>
    %c0_183 = arith.constant 0 : index
    %c0_184 = arith.constant 0 : index
    %613 = vector.load %arg7[%c0_183, %c0_184] : memref<256x512xf32, #tpu.memory_space<vmem>>, vector<256x512xf32>
    %cst_185 = arith.constant dense<0.000000e+00> : vector<8x512xf32>
    %614 = tpu.matmul %612, %613, %cst_185 {dimension_numbers = #tpu.dot_dimension_numbers<[1], [0], [0], [1], [0, 0, 1, 1], [], []>} : vector<8x256xf32>, vector<256x512xf32>, vector<8x512xf32> -> vector<8x512xf32>
    %615 = arith.addf %614, %22 : vector<8x512xf32>
    %616 = vector.extract_strided_slice %615 {offsets = [0, 0], sizes = [8, 128], strides = [1, 1]} : vector<8x512xf32> to vector<8x128xf32>
    %617 = arith.negf %616 : vector<8x128xf32>
    %618 = math.exp %617 : vector<8x128xf32>
    %cst_186 = arith.constant 1.000000e+00 : f32
    %619 = vector.broadcast %cst_186 : f32 to vector<8x128xf32>
    %620 = arith.addf %619, %618 : vector<8x128xf32>
    %621 = arith.divf %619, %620 : vector<8x128xf32>
    %622 = vector.extract_strided_slice %615 {offsets = [0, 128], sizes = [8, 128], strides = [1, 1]} : vector<8x512xf32> to vector<8x128xf32>
    %623 = arith.negf %622 : vector<8x128xf32>
    %624 = math.exp %623 : vector<8x128xf32>
    %cst_187 = arith.constant 1.000000e+00 : f32
    %625 = vector.broadcast %cst_187 : f32 to vector<8x128xf32>
    %626 = arith.addf %625, %624 : vector<8x128xf32>
    %627 = arith.divf %625, %626 : vector<8x128xf32>
    %628 = vector.extract_strided_slice %615 {offsets = [0, 256], sizes = [8, 128], strides = [1, 1]} : vector<8x512xf32> to vector<8x128xf32>
    %629 = math.tanh %628 : vector<8x128xf32>
    %630 = vector.extract_strided_slice %615 {offsets = [0, 384], sizes = [8, 128], strides = [1, 1]} : vector<8x512xf32> to vector<8x128xf32>
    %631 = arith.negf %630 : vector<8x128xf32>
    %632 = math.exp %631 : vector<8x128xf32>
    %cst_188 = arith.constant 1.000000e+00 : f32
    %633 = vector.broadcast %cst_188 : f32 to vector<8x128xf32>
    %634 = arith.addf %633, %632 : vector<8x128xf32>
    %635 = arith.divf %633, %634 : vector<8x128xf32>
    %636 = arith.mulf %627, %532 : vector<8x128xf32>
    %637 = arith.mulf %621, %629 : vector<8x128xf32>
    %638 = arith.addf %636, %637 : vector<8x128xf32>
    %639 = math.tanh %638 : vector<8x128xf32>
    %640 = arith.mulf %635, %639 : vector<8x128xf32>
    %cst_189 = arith.constant dense<0.000000e+00> : vector<8xf32>
    %641 = vector.multi_reduction <add>, %640, %cst_189 [1] : vector<8x128xf32> to vector<8xf32>
    %642 = vector.shape_cast %641 : vector<8xf32> to vector<8x1xf32>
    %cst_190 = arith.constant 3.125000e-02 : f32
    %643 = vector.broadcast %cst_190 : f32 to vector<8x1xf32>
    %644 = arith.mulf %642, %643 : vector<8x1xf32>
    %645 = arith.mulf %640, %640 : vector<8x128xf32>
    %cst_191 = arith.constant dense<0.000000e+00> : vector<8xf32>
    %646 = vector.multi_reduction <add>, %645, %cst_191 [1] : vector<8x128xf32> to vector<8xf32>
    %647 = vector.shape_cast %646 : vector<8xf32> to vector<8x1xf32>
    %cst_192 = arith.constant 3.125000e-02 : f32
    %648 = vector.broadcast %cst_192 : f32 to vector<8x1xf32>
    %649 = arith.mulf %647, %648 : vector<8x1xf32>
    %650 = arith.mulf %644, %644 : vector<8x1xf32>
    %651 = arith.subf %649, %650 : vector<8x1xf32>
    %cst_193 = arith.constant 0.000000e+00 : f32
    %652 = vector.broadcast %cst_193 : f32 to vector<8x1xf32>
    %653 = arith.maximumf %651, %652 : vector<8x1xf32>
    %654 = vector.broadcast %644 : vector<8x1xf32> to vector<8x128xf32>
    %655 = arith.subf %640, %654 : vector<8x128xf32>
    %cst_194 = arith.constant 9.99999974E-6 : f32
    %656 = vector.broadcast %cst_194 : f32 to vector<8x1xf32>
    %657 = arith.addf %653, %656 : vector<8x1xf32>
    %658 = math.rsqrt %657 : vector<8x1xf32>
    %659 = vector.broadcast %658 : vector<8x1xf32> to vector<8x128xf32>
    %660 = arith.mulf %655, %659 : vector<8x128xf32>
    %661 = arith.mulf %660, %25 : vector<8x128xf32>
    %662 = arith.addf %661, %28 : vector<8x128xf32>
    %663 = vector.shape_cast %662 : vector<8x128xf32> to vector<8x1x128xf32>
    %c0_195 = arith.constant 0 : index
    %c5_196 = arith.constant 5 : index
    %c0_197 = arith.constant 0 : index
    %664 = vector.load %arg16[%c0_195, %c5_196, %c0_197] : memref<8x8x128xf32, #tpu.memory_space<vmem>>, vector<8x1x128xf32>
    tpu.vector_store %arg16[%c0_195, %c5_196, %c0_197], %663 {strides = array<i32>} : memref<8x8x128xf32, #tpu.memory_space<vmem>>, vector<8x1x128xf32>,
    %c0_198 = arith.constant 0 : index
    %c6 = arith.constant 6 : index
    %c0_199 = arith.constant 0 : index
    %665 = vector.load %arg2[%c0_198, %c6, %c0_199] : memref<8x8x128xf32, #tpu.memory_space<vmem>>, vector<8x1x128xf32>
    %666 = vector.shape_cast %665 : vector<8x1x128xf32> to vector<8x128xf32>
    %667 = tpu.concatenate %666, %589 in 1 : vector<8x128xf32>, vector<8x128xf32> -> vector<8x256xf32>
    %c0_200 = arith.constant 0 : index
    %c0_201 = arith.constant 0 : index
    %668 = vector.load %arg3[%c0_200, %c0_201] : memref<256x512xf32, #tpu.memory_space<vmem>>, vector<256x512xf32>
    %cst_202 = arith.constant dense<0.000000e+00> : vector<8x512xf32>
    %669 = tpu.matmul %667, %668, %cst_202 {dimension_numbers = #tpu.dot_dimension_numbers<[1], [0], [0], [1], [0, 0, 1, 1], [], []>} : vector<8x256xf32>, vector<256x512xf32>, vector<8x512xf32> -> vector<8x512xf32>
    %670 = arith.addf %669, %13 : vector<8x512xf32>
    %671 = vector.extract_strided_slice %670 {offsets = [0, 0], sizes = [8, 128], strides = [1, 1]} : vector<8x512xf32> to vector<8x128xf32>
    %672 = arith.negf %671 : vector<8x128xf32>
    %673 = math.exp %672 : vector<8x128xf32>
    %cst_203 = arith.constant 1.000000e+00 : f32
    %674 = vector.broadcast %cst_203 : f32 to vector<8x128xf32>
    %675 = arith.addf %674, %673 : vector<8x128xf32>
    %676 = arith.divf %674, %675 : vector<8x128xf32>
    %677 = vector.extract_strided_slice %670 {offsets = [0, 128], sizes = [8, 128], strides = [1, 1]} : vector<8x512xf32> to vector<8x128xf32>
    %678 = arith.negf %677 : vector<8x128xf32>
    %679 = math.exp %678 : vector<8x128xf32>
    %cst_204 = arith.constant 1.000000e+00 : f32
    %680 = vector.broadcast %cst_204 : f32 to vector<8x128xf32>
    %681 = arith.addf %680, %679 : vector<8x128xf32>
    %682 = arith.divf %680, %681 : vector<8x128xf32>
    %683 = vector.extract_strided_slice %670 {offsets = [0, 256], sizes = [8, 128], strides = [1, 1]} : vector<8x512xf32> to vector<8x128xf32>
    %684 = math.tanh %683 : vector<8x128xf32>
    %685 = vector.extract_strided_slice %670 {offsets = [0, 384], sizes = [8, 128], strides = [1, 1]} : vector<8x512xf32> to vector<8x128xf32>
    %686 = arith.negf %685 : vector<8x128xf32>
    %687 = math.exp %686 : vector<8x128xf32>
    %cst_205 = arith.constant 1.000000e+00 : f32
    %688 = vector.broadcast %cst_205 : f32 to vector<8x128xf32>
    %689 = arith.addf %688, %687 : vector<8x128xf32>
    %690 = arith.divf %688, %689 : vector<8x128xf32>
    %691 = arith.mulf %682, %587 : vector<8x128xf32>
    %692 = arith.mulf %676, %684 : vector<8x128xf32>
    %693 = arith.addf %691, %692 : vector<8x128xf32>
    %694 = math.tanh %693 : vector<8x128xf32>
    %695 = arith.mulf %690, %694 : vector<8x128xf32>
    %cst_206 = arith.constant dense<0.000000e+00> : vector<8xf32>
    %696 = vector.multi_reduction <add>, %695, %cst_206 [1] : vector<8x128xf32> to vector<8xf32>
    %697 = vector.shape_cast %696 : vector<8xf32> to vector<8x1xf32>
    %cst_207 = arith.constant 3.125000e-02 : f32
    %698 = vector.broadcast %cst_207 : f32 to vector<8x1xf32>
    %699 = arith.mulf %697, %698 : vector<8x1xf32>
    %700 = arith.mulf %695, %695 : vector<8x128xf32>
    %cst_208 = arith.constant dense<0.000000e+00> : vector<8xf32>
    %701 = vector.multi_reduction <add>, %700, %cst_208 [1] : vector<8x128xf32> to vector<8xf32>
    %702 = vector.shape_cast %701 : vector<8xf32> to vector<8x1xf32>
    %cst_209 = arith.constant 3.125000e-02 : f32
    %703 = vector.broadcast %cst_209 : f32 to vector<8x1xf32>
    %704 = arith.mulf %702, %703 : vector<8x1xf32>
    %705 = arith.mulf %699, %699 : vector<8x1xf32>
    %706 = arith.subf %704, %705 : vector<8x1xf32>
    %cst_210 = arith.constant 0.000000e+00 : f32
    %707 = vector.broadcast %cst_210 : f32 to vector<8x1xf32>
    %708 = arith.maximumf %706, %707 : vector<8x1xf32>
    %709 = vector.broadcast %699 : vector<8x1xf32> to vector<8x128xf32>
    %710 = arith.subf %695, %709 : vector<8x128xf32>
    %cst_211 = arith.constant 9.99999974E-6 : f32
    %711 = vector.broadcast %cst_211 : f32 to vector<8x1xf32>
    %712 = arith.addf %708, %711 : vector<8x1xf32>
    %713 = math.rsqrt %712 : vector<8x1xf32>
    %714 = vector.broadcast %713 : vector<8x1xf32> to vector<8x128xf32>
    %715 = arith.mulf %710, %714 : vector<8x128xf32>
    %716 = arith.mulf %715, %16 : vector<8x128xf32>
    %717 = arith.addf %716, %19 : vector<8x128xf32>
    %718 = tpu.concatenate %717, %640 in 1 : vector<8x128xf32>, vector<8x128xf32> -> vector<8x256xf32>
    %c0_212 = arith.constant 0 : index
    %c0_213 = arith.constant 0 : index
    %719 = vector.load %arg7[%c0_212, %c0_213] : memref<256x512xf32, #tpu.memory_space<vmem>>, vector<256x512xf32>
    %cst_214 = arith.constant dense<0.000000e+00> : vector<8x512xf32>
    %720 = tpu.matmul %718, %719, %cst_214 {dimension_numbers = #tpu.dot_dimension_numbers<[1], [0], [0], [1], [0, 0, 1, 1], [], []>} : vector<8x256xf32>, vector<256x512xf32>, vector<8x512xf32> -> vector<8x512xf32>
    %721 = arith.addf %720, %22 : vector<8x512xf32>
    %722 = vector.extract_strided_slice %721 {offsets = [0, 0], sizes = [8, 128], strides = [1, 1]} : vector<8x512xf32> to vector<8x128xf32>
    %723 = arith.negf %722 : vector<8x128xf32>
    %724 = math.exp %723 : vector<8x128xf32>
    %cst_215 = arith.constant 1.000000e+00 : f32
    %725 = vector.broadcast %cst_215 : f32 to vector<8x128xf32>
    %726 = arith.addf %725, %724 : vector<8x128xf32>
    %727 = arith.divf %725, %726 : vector<8x128xf32>
    %728 = vector.extract_strided_slice %721 {offsets = [0, 128], sizes = [8, 128], strides = [1, 1]} : vector<8x512xf32> to vector<8x128xf32>
    %729 = arith.negf %728 : vector<8x128xf32>
    %730 = math.exp %729 : vector<8x128xf32>
    %cst_216 = arith.constant 1.000000e+00 : f32
    %731 = vector.broadcast %cst_216 : f32 to vector<8x128xf32>
    %732 = arith.addf %731, %730 : vector<8x128xf32>
    %733 = arith.divf %731, %732 : vector<8x128xf32>
    %734 = vector.extract_strided_slice %721 {offsets = [0, 256], sizes = [8, 128], strides = [1, 1]} : vector<8x512xf32> to vector<8x128xf32>
    %735 = math.tanh %734 : vector<8x128xf32>
    %736 = vector.extract_strided_slice %721 {offsets = [0, 384], sizes = [8, 128], strides = [1, 1]} : vector<8x512xf32> to vector<8x128xf32>
    %737 = arith.negf %736 : vector<8x128xf32>
    %738 = math.exp %737 : vector<8x128xf32>
    %cst_217 = arith.constant 1.000000e+00 : f32
    %739 = vector.broadcast %cst_217 : f32 to vector<8x128xf32>
    %740 = arith.addf %739, %738 : vector<8x128xf32>
    %741 = arith.divf %739, %740 : vector<8x128xf32>
    %742 = arith.mulf %733, %638 : vector<8x128xf32>
    %743 = arith.mulf %727, %735 : vector<8x128xf32>
    %744 = arith.addf %742, %743 : vector<8x128xf32>
    %745 = math.tanh %744 : vector<8x128xf32>
    %746 = arith.mulf %741, %745 : vector<8x128xf32>
    %cst_218 = arith.constant dense<0.000000e+00> : vector<8xf32>
    %747 = vector.multi_reduction <add>, %746, %cst_218 [1] : vector<8x128xf32> to vector<8xf32>
    %748 = vector.shape_cast %747 : vector<8xf32> to vector<8x1xf32>
    %cst_219 = arith.constant 3.125000e-02 : f32
    %749 = vector.broadcast %cst_219 : f32 to vector<8x1xf32>
    %750 = arith.mulf %748, %749 : vector<8x1xf32>
    %751 = arith.mulf %746, %746 : vector<8x128xf32>
    %cst_220 = arith.constant dense<0.000000e+00> : vector<8xf32>
    %752 = vector.multi_reduction <add>, %751, %cst_220 [1] : vector<8x128xf32> to vector<8xf32>
    %753 = vector.shape_cast %752 : vector<8xf32> to vector<8x1xf32>
    %cst_221 = arith.constant 3.125000e-02 : f32
    %754 = vector.broadcast %cst_221 : f32 to vector<8x1xf32>
    %755 = arith.mulf %753, %754 : vector<8x1xf32>
    %756 = arith.mulf %750, %750 : vector<8x1xf32>
    %757 = arith.subf %755, %756 : vector<8x1xf32>
    %cst_222 = arith.constant 0.000000e+00 : f32
    %758 = vector.broadcast %cst_222 : f32 to vector<8x1xf32>
    %759 = arith.maximumf %757, %758 : vector<8x1xf32>
    %760 = vector.broadcast %750 : vector<8x1xf32> to vector<8x128xf32>
    %761 = arith.subf %746, %760 : vector<8x128xf32>
    %cst_223 = arith.constant 9.99999974E-6 : f32
    %762 = vector.broadcast %cst_223 : f32 to vector<8x1xf32>
    %763 = arith.addf %759, %762 : vector<8x1xf32>
    %764 = math.rsqrt %763 : vector<8x1xf32>
    %765 = vector.broadcast %764 : vector<8x1xf32> to vector<8x128xf32>
    %766 = arith.mulf %761, %765 : vector<8x128xf32>
    %767 = arith.mulf %766, %25 : vector<8x128xf32>
    %768 = arith.addf %767, %28 : vector<8x128xf32>
    %769 = vector.shape_cast %768 : vector<8x128xf32> to vector<8x1x128xf32>
    %c0_224 = arith.constant 0 : index
    %c6_225 = arith.constant 6 : index
    %c0_226 = arith.constant 0 : index
    %770 = vector.load %arg16[%c0_224, %c6_225, %c0_226] : memref<8x8x128xf32, #tpu.memory_space<vmem>>, vector<8x1x128xf32>
    tpu.vector_store %arg16[%c0_224, %c6_225, %c0_226], %769 {strides = array<i32>} : memref<8x8x128xf32, #tpu.memory_space<vmem>>, vector<8x1x128xf32>,
    %c0_227 = arith.constant 0 : index
    %c7 = arith.constant 7 : index
    %c0_228 = arith.constant 0 : index
    %771 = vector.load %arg2[%c0_227, %c7, %c0_228] : memref<8x8x128xf32, #tpu.memory_space<vmem>>, vector<8x1x128xf32>
    %772 = vector.shape_cast %771 : vector<8x1x128xf32> to vector<8x128xf32>
    %773 = tpu.concatenate %772, %695 in 1 : vector<8x128xf32>, vector<8x128xf32> -> vector<8x256xf32>
    %c0_229 = arith.constant 0 : index
    %c0_230 = arith.constant 0 : index
    %774 = vector.load %arg3[%c0_229, %c0_230] : memref<256x512xf32, #tpu.memory_space<vmem>>, vector<256x512xf32>
    %cst_231 = arith.constant dense<0.000000e+00> : vector<8x512xf32>
    %775 = tpu.matmul %773, %774, %cst_231 {dimension_numbers = #tpu.dot_dimension_numbers<[1], [0], [0], [1], [0, 0, 1, 1], [], []>} : vector<8x256xf32>, vector<256x512xf32>, vector<8x512xf32> -> vector<8x512xf32>
    %776 = arith.addf %775, %13 : vector<8x512xf32>
    %777 = vector.extract_strided_slice %776 {offsets = [0, 0], sizes = [8, 128], strides = [1, 1]} : vector<8x512xf32> to vector<8x128xf32>
    %778 = arith.negf %777 : vector<8x128xf32>
    %779 = math.exp %778 : vector<8x128xf32>
    %cst_232 = arith.constant 1.000000e+00 : f32
    %780 = vector.broadcast %cst_232 : f32 to vector<8x128xf32>
    %781 = arith.addf %780, %779 : vector<8x128xf32>
    %782 = arith.divf %780, %781 : vector<8x128xf32>
    %783 = vector.extract_strided_slice %776 {offsets = [0, 128], sizes = [8, 128], strides = [1, 1]} : vector<8x512xf32> to vector<8x128xf32>
    %784 = arith.negf %783 : vector<8x128xf32>
    %785 = math.exp %784 : vector<8x128xf32>
    %cst_233 = arith.constant 1.000000e+00 : f32
    %786 = vector.broadcast %cst_233 : f32 to vector<8x128xf32>
    %787 = arith.addf %786, %785 : vector<8x128xf32>
    %788 = arith.divf %786, %787 : vector<8x128xf32>
    %789 = vector.extract_strided_slice %776 {offsets = [0, 256], sizes = [8, 128], strides = [1, 1]} : vector<8x512xf32> to vector<8x128xf32>
    %790 = math.tanh %789 : vector<8x128xf32>
    %791 = vector.extract_strided_slice %776 {offsets = [0, 384], sizes = [8, 128], strides = [1, 1]} : vector<8x512xf32> to vector<8x128xf32>
    %792 = arith.negf %791 : vector<8x128xf32>
    %793 = math.exp %792 : vector<8x128xf32>
    %cst_234 = arith.constant 1.000000e+00 : f32
    %794 = vector.broadcast %cst_234 : f32 to vector<8x128xf32>
    %795 = arith.addf %794, %793 : vector<8x128xf32>
    %796 = arith.divf %794, %795 : vector<8x128xf32>
    %797 = arith.mulf %788, %693 : vector<8x128xf32>
    %798 = arith.mulf %782, %790 : vector<8x128xf32>
    %799 = arith.addf %797, %798 : vector<8x128xf32>
    %800 = math.tanh %799 : vector<8x128xf32>
    %801 = arith.mulf %796, %800 : vector<8x128xf32>
    %cst_235 = arith.constant dense<0.000000e+00> : vector<8xf32>
    %802 = vector.multi_reduction <add>, %801, %cst_235 [1] : vector<8x128xf32> to vector<8xf32>
    %803 = vector.shape_cast %802 : vector<8xf32> to vector<8x1xf32>
    %cst_236 = arith.constant 3.125000e-02 : f32
    %804 = vector.broadcast %cst_236 : f32 to vector<8x1xf32>
    %805 = arith.mulf %803, %804 : vector<8x1xf32>
    %806 = arith.mulf %801, %801 : vector<8x128xf32>
    %cst_237 = arith.constant dense<0.000000e+00> : vector<8xf32>
    %807 = vector.multi_reduction <add>, %806, %cst_237 [1] : vector<8x128xf32> to vector<8xf32>
    %808 = vector.shape_cast %807 : vector<8xf32> to vector<8x1xf32>
    %cst_238 = arith.constant 3.125000e-02 : f32
    %809 = vector.broadcast %cst_238 : f32 to vector<8x1xf32>
    %810 = arith.mulf %808, %809 : vector<8x1xf32>
    %811 = arith.mulf %805, %805 : vector<8x1xf32>
    %812 = arith.subf %810, %811 : vector<8x1xf32>
    %cst_239 = arith.constant 0.000000e+00 : f32
    %813 = vector.broadcast %cst_239 : f32 to vector<8x1xf32>
    %814 = arith.maximumf %812, %813 : vector<8x1xf32>
    %815 = vector.broadcast %805 : vector<8x1xf32> to vector<8x128xf32>
    %816 = arith.subf %801, %815 : vector<8x128xf32>
    %cst_240 = arith.constant 9.99999974E-6 : f32
    %817 = vector.broadcast %cst_240 : f32 to vector<8x1xf32>
    %818 = arith.addf %814, %817 : vector<8x1xf32>
    %819 = math.rsqrt %818 : vector<8x1xf32>
    %820 = vector.broadcast %819 : vector<8x1xf32> to vector<8x128xf32>
    %821 = arith.mulf %816, %820 : vector<8x128xf32>
    %822 = arith.mulf %821, %16 : vector<8x128xf32>
    %823 = arith.addf %822, %19 : vector<8x128xf32>
    %824 = tpu.concatenate %823, %746 in 1 : vector<8x128xf32>, vector<8x128xf32> -> vector<8x256xf32>
    %c0_241 = arith.constant 0 : index
    %c0_242 = arith.constant 0 : index
    %825 = vector.load %arg7[%c0_241, %c0_242] : memref<256x512xf32, #tpu.memory_space<vmem>>, vector<256x512xf32>
    %cst_243 = arith.constant dense<0.000000e+00> : vector<8x512xf32>
    %826 = tpu.matmul %824, %825, %cst_243 {dimension_numbers = #tpu.dot_dimension_numbers<[1], [0], [0], [1], [0, 0, 1, 1], [], []>} : vector<8x256xf32>, vector<256x512xf32>, vector<8x512xf32> -> vector<8x512xf32>
    %827 = arith.addf %826, %22 : vector<8x512xf32>
    %828 = vector.extract_strided_slice %827 {offsets = [0, 0], sizes = [8, 128], strides = [1, 1]} : vector<8x512xf32> to vector<8x128xf32>
    %829 = arith.negf %828 : vector<8x128xf32>
    %830 = math.exp %829 : vector<8x128xf32>
    %cst_244 = arith.constant 1.000000e+00 : f32
    %831 = vector.broadcast %cst_244 : f32 to vector<8x128xf32>
    %832 = arith.addf %831, %830 : vector<8x128xf32>
    %833 = arith.divf %831, %832 : vector<8x128xf32>
    %834 = vector.extract_strided_slice %827 {offsets = [0, 128], sizes = [8, 128], strides = [1, 1]} : vector<8x512xf32> to vector<8x128xf32>
    %835 = arith.negf %834 : vector<8x128xf32>
    %836 = math.exp %835 : vector<8x128xf32>
    %cst_245 = arith.constant 1.000000e+00 : f32
    %837 = vector.broadcast %cst_245 : f32 to vector<8x128xf32>
    %838 = arith.addf %837, %836 : vector<8x128xf32>
    %839 = arith.divf %837, %838 : vector<8x128xf32>
    %840 = vector.extract_strided_slice %827 {offsets = [0, 256], sizes = [8, 128], strides = [1, 1]} : vector<8x512xf32> to vector<8x128xf32>
    %841 = math.tanh %840 : vector<8x128xf32>
    %842 = vector.extract_strided_slice %827 {offsets = [0, 384], sizes = [8, 128], strides = [1, 1]} : vector<8x512xf32> to vector<8x128xf32>
    %843 = arith.negf %842 : vector<8x128xf32>
    %844 = math.exp %843 : vector<8x128xf32>
    %cst_246 = arith.constant 1.000000e+00 : f32
    %845 = vector.broadcast %cst_246 : f32 to vector<8x128xf32>
    %846 = arith.addf %845, %844 : vector<8x128xf32>
    %847 = arith.divf %845, %846 : vector<8x128xf32>
    %848 = arith.mulf %839, %744 : vector<8x128xf32>
    %849 = arith.mulf %833, %841 : vector<8x128xf32>
    %850 = arith.addf %848, %849 : vector<8x128xf32>
    %851 = math.tanh %850 : vector<8x128xf32>
    %852 = arith.mulf %847, %851 : vector<8x128xf32>
    %cst_247 = arith.constant dense<0.000000e+00> : vector<8xf32>
    %853 = vector.multi_reduction <add>, %852, %cst_247 [1] : vector<8x128xf32> to vector<8xf32>
    %854 = vector.shape_cast %853 : vector<8xf32> to vector<8x1xf32>
    %cst_248 = arith.constant 3.125000e-02 : f32
    %855 = vector.broadcast %cst_248 : f32 to vector<8x1xf32>
    %856 = arith.mulf %854, %855 : vector<8x1xf32>
    %857 = arith.mulf %852, %852 : vector<8x128xf32>
    %cst_249 = arith.constant dense<0.000000e+00> : vector<8xf32>
    %858 = vector.multi_reduction <add>, %857, %cst_249 [1] : vector<8x128xf32> to vector<8xf32>
    %859 = vector.shape_cast %858 : vector<8xf32> to vector<8x1xf32>
    %cst_250 = arith.constant 3.125000e-02 : f32
    %860 = vector.broadcast %cst_250 : f32 to vector<8x1xf32>
    %861 = arith.mulf %859, %860 : vector<8x1xf32>
    %862 = arith.mulf %856, %856 : vector<8x1xf32>
    %863 = arith.subf %861, %862 : vector<8x1xf32>
    %cst_251 = arith.constant 0.000000e+00 : f32
    %864 = vector.broadcast %cst_251 : f32 to vector<8x1xf32>
    %865 = arith.maximumf %863, %864 : vector<8x1xf32>
    %866 = vector.broadcast %856 : vector<8x1xf32> to vector<8x128xf32>
    %867 = arith.subf %852, %866 : vector<8x128xf32>
    %cst_252 = arith.constant 9.99999974E-6 : f32
    %868 = vector.broadcast %cst_252 : f32 to vector<8x1xf32>
    %869 = arith.addf %865, %868 : vector<8x1xf32>
    %870 = math.rsqrt %869 : vector<8x1xf32>
    %871 = vector.broadcast %870 : vector<8x1xf32> to vector<8x128xf32>
    %872 = arith.mulf %867, %871 : vector<8x128xf32>
    %873 = arith.mulf %872, %25 : vector<8x128xf32>
    %874 = arith.addf %873, %28 : vector<8x128xf32>
    %875 = vector.shape_cast %874 : vector<8x128xf32> to vector<8x1x128xf32>
    %c0_253 = arith.constant 0 : index
    %c7_254 = arith.constant 7 : index
    %c0_255 = arith.constant 0 : index
    %876 = vector.load %arg16[%c0_253, %c7_254, %c0_255] : memref<8x8x128xf32, #tpu.memory_space<vmem>>, vector<8x1x128xf32>
    tpu.vector_store %arg16[%c0_253, %c7_254, %c0_255], %875 {strides = array<i32>} : memref<8x8x128xf32, #tpu.memory_space<vmem>>, vector<8x1x128xf32>,
    %c0_256 = arith.constant 0 : index
    %c0_257 = arith.constant 0 : index
    %c0_258 = arith.constant 0 : index
    %877 = vector.load %arg14[%c0_256, %c0_257, %c0_258] : memref<2x8x128xf32, #tpu.memory_space<vmem>>, vector<1x8x128xf32>
    %878 = vector.shape_cast %877 : vector<1x8x128xf32> to vector<8x128xf32>
    %879 = vector.shape_cast %801 : vector<8x128xf32> to vector<1x8x128xf32>
    tpu.vector_store %arg14[%c0_256, %c0_257, %c0_258], %879 {strides = array<i32>} : memref<2x8x128xf32, #tpu.memory_space<vmem>>, vector<1x8x128xf32>,
    %c0_259 = arith.constant 0 : index
    %c0_260 = arith.constant 0 : index
    %c0_261 = arith.constant 0 : index
    %880 = vector.load %arg15[%c0_259, %c0_260, %c0_261] : memref<2x8x128xf32, #tpu.memory_space<vmem>>, vector<1x8x128xf32>
    %881 = vector.shape_cast %880 : vector<1x8x128xf32> to vector<8x128xf32>
    %882 = vector.shape_cast %799 : vector<8x128xf32> to vector<1x8x128xf32>
    tpu.vector_store %arg15[%c0_259, %c0_260, %c0_261], %882 {strides = array<i32>} : memref<2x8x128xf32, #tpu.memory_space<vmem>>, vector<1x8x128xf32>,
    %c1_262 = arith.constant 1 : index
    %c0_263 = arith.constant 0 : index
    %c0_264 = arith.constant 0 : index
    %883 = vector.load %arg14[%c1_262, %c0_263, %c0_264] : memref<2x8x128xf32, #tpu.memory_space<vmem>>, vector<1x8x128xf32>
    %884 = vector.shape_cast %883 : vector<1x8x128xf32> to vector<8x128xf32>
    %885 = vector.shape_cast %852 : vector<8x128xf32> to vector<1x8x128xf32>
    tpu.vector_store %arg14[%c1_262, %c0_263, %c0_264], %885 {strides = array<i32>} : memref<2x8x128xf32, #tpu.memory_space<vmem>>, vector<1x8x128xf32>,
    %c1_265 = arith.constant 1 : index
    %c0_266 = arith.constant 0 : index
    %c0_267 = arith.constant 0 : index
    %886 = vector.load %arg15[%c1_265, %c0_266, %c0_267] : memref<2x8x128xf32, #tpu.memory_space<vmem>>, vector<1x8x128xf32>
    %887 = vector.shape_cast %886 : vector<1x8x128xf32> to vector<8x128xf32>
    %888 = vector.shape_cast %850 : vector<8x128xf32> to vector<1x8x128xf32>
    tpu.vector_store %arg15[%c1_265, %c0_266, %c0_267], %888 {strides = array<i32>} : memref<2x8x128xf32, #tpu.memory_space<vmem>>, vector<1x8x128xf32>,
    %c0_268 = arith.constant 0 : index
    %c0_269 = arith.constant 0 : index
    %c0_270 = arith.constant 0 : index
    %889 = vector.load %arg16[%c0_268, %c0_269, %c0_270] : memref<8x8x128xf32, #tpu.memory_space<vmem>>, vector<8x8x128xf32>
    %890 = vector.shape_cast %889 : vector<8x8x128xf32> to vector<64x128xf32>
    %c0_271 = arith.constant 0 : index
    %c0_272 = arith.constant 0 : index
    %891 = vector.load %arg11[%c0_271, %c0_272] : memref<128x256xf32, #tpu.memory_space<vmem>>, vector<128x256xf32>
    %cst_273 = arith.constant dense<0.000000e+00> : vector<64x256xf32>
    %892 = tpu.matmul %890, %891, %cst_273 {dimension_numbers = #tpu.dot_dimension_numbers<[1], [0], [0], [1], [0, 0, 1, 1], [], []>} : vector<64x128xf32>, vector<128x256xf32>, vector<64x256xf32> -> vector<64x256xf32>
    %c0_274 = arith.constant 0 : index
    %c0_275 = arith.constant 0 : index
    %893 = vector.load %arg12[%c0_274, %c0_275] : memref<1x256xf32, #tpu.memory_space<vmem>>, vector<1x256xf32>
    %894 = vector.broadcast %893 : vector<1x256xf32> to vector<64x256xf32>
    %895 = arith.addf %892, %894 : vector<64x256xf32>
    %896 = vector.shape_cast %895 : vector<64x256xf32> to vector<8x8x256xf32>
    %c0_276 = arith.constant 0 : index
    %c0_277 = arith.constant 0 : index
    %c0_278 = arith.constant 0 : index
    %897 = vector.load %arg13[%c0_276, %c0_277, %c0_278] : memref<8x8x256xf32, #tpu.memory_space<vmem>>, vector<8x8x256xf32>
    tpu.vector_store %arg13[%c0_276, %c0_277, %c0_278], %896 {strides = array<i32>} : memref<8x8x256xf32, #tpu.memory_space<vmem>>, vector<8x8x256xf32>,
    return
  }
  func.func @transform_0(%arg0: i32, %arg1: i32) -> (i32, i32, i32) {
    %c0_i32 = arith.constant 0 : i32
    %c0_i32_0 = arith.constant 0 : i32
    return %arg0, %arg1, %c0_i32 : i32, i32, i32
  }
  func.func @transform_1(%arg0: i32, %arg1: i32) -> (i32, i32) {
    %c0_i32 = arith.constant 0 : i32
    %c0_i32_0 = arith.constant 0 : i32
    %c0_i32_1 = arith.constant 0 : i32
    return %c0_i32, %c0_i32_0 : i32, i32
  }
  func.func @transform_2(%arg0: i32, %arg1: i32) -> (i32, i32) {
    %c0_i32 = arith.constant 0 : i32
    %c0_i32_0 = arith.constant 0 : i32
    %c0_i32_1 = arith.constant 0 : i32
    return %c0_i32, %c0_i32_0 : i32, i32
  }
  func.func @transform_3(%arg0: i32, %arg1: i32) -> (i32, i32) {
    %c0_i32 = arith.constant 0 : i32
    %c0_i32_0 = arith.constant 0 : i32
    %c0_i32_1 = arith.constant 0 : i32
    return %c0_i32, %c0_i32_0 : i32, i32
  }
  func.func @transform_4(%arg0: i32, %arg1: i32) -> (i32, i32) {
    %c0_i32 = arith.constant 0 : i32
    %c0_i32_0 = arith.constant 0 : i32
    %c0_i32_1 = arith.constant 0 : i32
    return %c0_i32, %c0_i32_0 : i32, i32
  }
  func.func @transform_5(%arg0: i32, %arg1: i32) -> (i32, i32) {
    %c0_i32 = arith.constant 0 : i32
    %c0_i32_0 = arith.constant 0 : i32
    %c0_i32_1 = arith.constant 0 : i32
    return %c0_i32, %c0_i32_0 : i32, i32
  }
  func.func @transform_6(%arg0: i32, %arg1: i32) -> (i32, i32) {
    %c0_i32 = arith.constant 0 : i32
    %c0_i32_0 = arith.constant 0 : i32
    %c0_i32_1 = arith.constant 0 : i32
    return %c0_i32, %c0_i32_0 : i32, i32
  }
  func.func @transform_7(%arg0: i32, %arg1: i32) -> (i32, i32) {
    %c0_i32 = arith.constant 0 : i32
    %c0_i32_0 = arith.constant 0 : i32
    %c0_i32_1 = arith.constant 0 : i32
    return %c0_i32, %c0_i32_0 : i32, i32
  }
  func.func @transform_8(%arg0: i32, %arg1: i32) -> (i32, i32) {
    %c0_i32 = arith.constant 0 : i32
    %c0_i32_0 = arith.constant 0 : i32
    %c0_i32_1 = arith.constant 0 : i32
    return %c0_i32, %c0_i32_0 : i32, i32
  }
  func.func @transform_9(%arg0: i32, %arg1: i32) -> (i32, i32) {
    %c0_i32 = arith.constant 0 : i32
    %c0_i32_0 = arith.constant 0 : i32
    %c0_i32_1 = arith.constant 0 : i32
    return %c0_i32, %c0_i32_0 : i32, i32
  }
  func.func @transform_10(%arg0: i32, %arg1: i32) -> (i32, i32) {
    %c0_i32 = arith.constant 0 : i32
    %c0_i32_0 = arith.constant 0 : i32
    %c0_i32_1 = arith.constant 0 : i32
    return %c0_i32, %c0_i32_0 : i32, i32
  }
  func.func @transform_11(%arg0: i32, %arg1: i32) -> (i32, i32, i32) {
    %c0_i32 = arith.constant 0 : i32
    %c0_i32_0 = arith.constant 0 : i32
    return %arg0, %arg1, %c0_i32 : i32, i32, i32
  }
}

</mosaic_0001>

<llo_original>
// kernel: teledal_forward.1
$region0: #{teledal_forward.1}
  #allocation0 [shape = 'u32[]', space=smem, size = 0x4, offset = 0x4, fixed_abs, tag = 'smem constant byte address 0x4 - core index']
  #allocation1 [shape = 'u32[144,128]{1,0:T(1,128)}', space=vmem, size = 0x12000, scoped, tag = 'internal scratch']
  #allocation2 [shape = 'f32[2,8,128]{2,1,0:T(8,128)}', space=vmem, size = 0x2000, scoped, tag = 'scratch operand']
  #allocation3 [shape = 'f32[2,8,128]{2,1,0:T(8,128)}', space=vmem, size = 0x2000, scoped, tag = 'scratch operand']
  #allocation4 [shape = 'f32[8,8,128]{2,1,0:T(8,128)}', space=vmem, size = 0x8000, scoped, tag = 'scratch operand']
  %s0 = inlined_call_operand.vmem [shape: f32[8,8,128], index: 0, kind: input, shape index: {}]
  %s1 = inlined_call_operand.vmem [shape: f32[256,512], index: 1, kind: input, shape index: {}]
  %s2 = inlined_call_operand.vmem [shape: f32[1,512], index: 2, kind: input, shape index: {}]
  %s3 = inlined_call_operand.vmem [shape: f32[1,128], index: 3, kind: input, shape index: {}]
  %s4 = inlined_call_operand.vmem [shape: f32[1,128], index: 4, kind: input, shape index: {}]
  %s5 = inlined_call_operand.vmem [shape: f32[256,512], index: 5, kind: input, shape index: {}]
  %s6 = inlined_call_operand.vmem [shape: f32[1,512], index: 6, kind: input, shape index: {}]
  %s7 = inlined_call_operand.vmem [shape: f32[1,128], index: 7, kind: input, shape index: {}]
  %s8 = inlined_call_operand.vmem [shape: f32[1,128], index: 8, kind: input, shape index: {}]
  %s9 = inlined_call_operand.vmem [shape: f32[128,256], index: 9, kind: input, shape index: {}]
  %s10 = inlined_call_operand.vmem [shape: f32[1,256], index: 10, kind: input, shape index: {}]
  %s11 = inlined_call_operand.vmem [shape: f32[8,8,256], index: 11, kind: output, shape index: {}]
  %s12 = sld [smem:[#allocation0]]
  $region58: #{teledal_forward.1} parent=0
    _
  %s14 = ssub.s32 1, %s12
  %s15 = scalar_select 0, %s14, %s12
  // Predicated region
  $region2: #{teledal_forward.1} parent=0 // pred_check
    _
  $region3: #{teledal_forward.1} parent=0 // pred_check_branch
    %17 = sbr.rel (0) target = $region5
  $region4: #{teledal_forward.1} parent=0 // pred_region
    _
  $region5: #{teledal_forward.1} parent=0 // pred_fallthru
    _
  // Predicated region
  $region6: #{teledal_forward.1} parent=0 // pred_check
    _
  $region7: #{teledal_forward.1} parent=0 // pred_check_branch
    %19 = sbr.rel (0) target = $region9
  $region8: #{teledal_forward.1} parent=0 // pred_region
    _
  $region9: #{teledal_forward.1} parent=0 // pred_fallthru
    _
  // Predicated region
  $region10: #{teledal_forward.1} parent=0 // pred_check
    _
  $region11: #{teledal_forward.1} parent=0 // pred_check_branch
    %21 = sbr.rel (0) target = $region13
  $region12: #{teledal_forward.1} parent=0 // pred_region
    _
  $region13: #{teledal_forward.1} parent=0 // pred_fallthru
    _
  // Predicated region
  $region14: #{teledal_forward.1} parent=0 // pred_check
    _
  $region15: #{teledal_forward.1} parent=0 // pred_check_branch
    %23 = sbr.rel (0) target = $region17
  $region16: #{teledal_forward.1} parent=0 // pred_region
    _
  $region17: #{teledal_forward.1} parent=0 // pred_fallthru
    _
  // Predicated region
  $region18: #{teledal_forward.1} parent=0 // pred_check
    _
  $region19: #{teledal_forward.1} parent=0 // pred_check_branch
    %25 = sbr.rel (0) target = $region21
  $region20: #{teledal_forward.1} parent=0 // pred_region
    _
  $region21: #{teledal_forward.1} parent=0 // pred_fallthru
    _
  // Predicated region
  $region22: #{teledal_forward.1} parent=0 // pred_check
    _
  $region23: #{teledal_forward.1} parent=0 // pred_check_branch
    %27 = sbr.rel (0) target = $region25
  $region24: #{teledal_forward.1} parent=0 // pred_region
    _
  $region25: #{teledal_forward.1} parent=0 // pred_fallthru
    _
  // Predicated region
  $region26: #{teledal_forward.1} parent=0 // pred_check
    _
  $region27: #{teledal_forward.1} parent=0 // pred_check_branch
    %29 = sbr.rel (0) target = $region29
  $region28: #{teledal_forward.1} parent=0 // pred_region
    _
  $region29: #{teledal_forward.1} parent=0 // pred_fallthru
    _
  // Predicated region
  $region30: #{teledal_forward.1} parent=0 // pred_check
    _
  $region31: #{teledal_forward.1} parent=0 // pred_check_branch
    %31 = sbr.rel (0) target = $region33
  $region32: #{teledal_forward.1} parent=0 // pred_region
    _
  $region33: #{teledal_forward.1} parent=0 // pred_fallthru
    _
  // Predicated region
  $region34: #{teledal_forward.1} parent=0 // pred_check
    _
  $region35: #{teledal_forward.1} parent=0 // pred_check_branch
    %33 = sbr.rel (0) target = $region37
  $region36: #{teledal_forward.1} parent=0 // pred_region
    _
  $region37: #{teledal_forward.1} parent=0 // pred_fallthru
    _
  // Predicated region
  $region38: #{teledal_forward.1} parent=0 // pred_check
    _
  $region39: #{teledal_forward.1} parent=0 // pred_check_branch
    %35 = sbr.rel (0) target = $region41
  $region40: #{teledal_forward.1} parent=0 // pred_region
    _
  $region41: #{teledal_forward.1} parent=0 // pred_fallthru
    _
  // Predicated region
  $region42: #{teledal_forward.1} parent=0 // pred_check
    _
  $region43: #{teledal_forward.1} parent=0 // pred_check_branch
    %37 = sbr.rel (0) target = $region45
  $region44: #{teledal_forward.1} parent=0 // pred_region
    _
  $region45: #{teledal_forward.1} parent=0 // pred_fallthru
    _
  %p38 = scmp.eq.s32.totalorder 0, 0
  // Predicated region
  $region46: #{teledal_forward.1} parent=0 // pred_check
    %p39 = pneg %p38
  $region47: #{teledal_forward.1} parent=0 // pred_check_branch
    %41 = sbr.rel (%p39) target = $region49
  $region48: #{teledal_forward.1} parent=0 // pred_region
    %42 = vst [vmem:[#allocation2] sm:$0xff] 0.0
    %43 = vst [vmem:[#allocation2 + $0x8] sm:$0xff] 0.0
    %44 = vst [vmem:[#allocation3] sm:$0xff] 0.0
    %45 = vst [vmem:[#allocation3 + $0x8] sm:$0xff] 0.0
  $region49: #{teledal_forward.1} parent=0 // pred_fallthru
    _
  %v46 = vld [vmem:[#allocation2] sm:$0xff]
  %s47 = scalar_lea.vmem [#allocation2], 8
  %v48 = vld [vmem:[%s47] sm:$0xff]
  %v49 = vld [vmem:[#allocation3] sm:$0xff]
  %s50 = scalar_lea.vmem [#allocation3], 8
  %v51 = vld [vmem:[%s50] sm:$0xff]
  %v52 = vld [vmem:[%s2] sm:$0xf]
  %v54 = vlaneseq
  %v55 = vshrl.u32 %v54, 7
  %v56 = vsub.s32 0, %v55
  %v57 = vrot.slane %v52, %v56
  %v58 = vlaneseq
  %v59 = vshrl.u32 %v58, 7
  %v60 = vsub.s32 1, %v59
  %v61 = vrot.slane %v52, %v60
  %v62 = vlaneseq
  %v63 = vshrl.u32 %v62, 7
  %v64 = vsub.s32 2, %v63
  %v65 = vrot.slane %v52, %v64
  %v66 = vlaneseq
  %v67 = vshrl.u32 %v66, 7
  %v68 = vsub.s32 3, %v67
  %v69 = vrot.slane %v52, %v68
  %v74 = vld [vmem:[%s3] sm:$0x1]
  %v76 = vlaneseq
  %v77 = vshrl.u32 %v76, 7
  %v78 = vsub.s32 0, %v77
  %v79 = vrot.slane %v74, %v78
  %v81 = vld [vmem:[%s4] sm:$0x1]
  %v83 = vlaneseq
  %v84 = vshrl.u32 %v83, 7
  %v85 = vsub.s32 0, %v84
  %v86 = vrot.slane %v81, %v85
  %v88 = vld [vmem:[%s6] sm:$0xf]
  %v90 = vlaneseq
  %v91 = vshrl.u32 %v90, 7
  %v92 = vsub.s32 0, %v91
  %v93 = vrot.slane %v88, %v92
  %v94 = vlaneseq
  %v95 = vshrl.u32 %v94, 7
  %v96 = vsub.s32 1, %v95
  %v97 = vrot.slane %v88, %v96
  %v98 = vlaneseq
  %v99 = vshrl.u32 %v98, 7
  %v100 = vsub.s32 2, %v99
  %v101 = vrot.slane %v88, %v100
  %v102 = vlaneseq
  %v103 = vshrl.u32 %v102, 7
  %v104 = vsub.s32 3, %v103
  %v105 = vrot.slane %v88, %v104
  %v110 = vld [vmem:[%s7] sm:$0x1]
  %v112 = vlaneseq
  %v113 = vshrl.u32 %v112, 7
  %v114 = vsub.s32 0, %v113
  %v115 = vrot.slane %v110, %v114
  %v117 = vld [vmem:[%s8] sm:$0x1]
  %v119 = vlaneseq
  %v120 = vshrl.u32 %v119, 7
  %v121 = vsub.s32 0, %v120
  %v122 = vrot.slane %v117, %v121
  %v124 = vld [vmem:[%s0] sm:$0x1]
  %v125 = vld [vmem:[%s0 + $0x8] sm:$0x1]
  %v126 = vld [vmem:[%s0 + $0x10] sm:$0x1]
  %v127 = vld [vmem:[%s0 + $0x18] sm:$0x1]
  %v128 = vld [vmem:[%s0 + $0x20] sm:$0x1]
  %v129 = vld [vmem:[%s0 + $0x28] sm:$0x1]
  %v130 = vld [vmem:[%s0 + $0x30] sm:$0x1]
  %v131 = vld [vmem:[%s0 + $0x38] sm:$0x1]
  %v140 = vrot.slane %v125, 7
  %vm141 = vcmask 1041409
  %v142 = vsel %vm141, %v140, %v124
  %v143 = vrot.slane %v126, 6
  %vm144 = vcmask 1042434
  %v145 = vsel %vm144, %v143, %v142
  %v146 = vrot.slane %v127, 5
  %vm147 = vcmask 1043459
  %v148 = vsel %vm147, %v146, %v145
  %v149 = vrot.slane %v128, 4
  %vm150 = vcmask 1044484
  %v151 = vsel %vm150, %v149, %v148
  %v152 = vrot.slane %v129, 3
  %vm153 = vcmask 1045509
  %v154 = vsel %vm153, %v152, %v151
  %v155 = vrot.slane %v130, 2
  %vm156 = vcmask 1046534
  %v157 = vsel %vm156, %v155, %v154
  %v158 = vrot.slane %v131, 1
  %vm159 = vcmask 1047559
  %v160 = vsel %vm159, %v158, %v157
  %v162 = vld [vmem:[%s1] sm:$0xff]
  %v163 = vld [vmem:[%s1 + $0x8] sm:$0xff]
  %v164 = vld [vmem:[%s1 + $0x10] sm:$0xff]
  %v165 = vld [vmem:[%s1 + $0x18] sm:$0xff]
  %v166 = vld [vmem:[%s1 + $0x20] sm:$0xff]
  %v167 = vld [vmem:[%s1 + $0x28] sm:$0xff]
  %v168 = vld [vmem:[%s1 + $0x30] sm:$0xff]
  %v169 = vld [vmem:[%s1 + $0x38] sm:$0xff]
  %v170 = vld [vmem:[%s1 + $0x40] sm:$0xff]
  %v171 = vld [vmem:[%s1 + $0x48] sm:$0xff]
  %v172 = vld [vmem:[%s1 + $0x50] sm:$0xff]
  %v173 = vld [vmem:[%s1 + $0x58] sm:$0xff]
  %v174 = vld [vmem:[%s1 + $0x60] sm:$0xff]
  %v175 = vld [vmem:[%s1 + $0x68] sm:$0xff]
  %v176 = vld [vmem:[%s1 + $0x70] sm:$0xff]
  %v177 = vld [vmem:[%s1 + $0x78] sm:$0xff]
  %v178 = vld [vmem:[%s1 + $0x80] sm:$0xff]
  %v179 = vld [vmem:[%s1 + $0x88] sm:$0xff]
  %v180 = vld [vmem:[%s1 + $0x90] sm:$0xff]
  %v181 = vld [vmem:[%s1 + $0x98] sm:$0xff]
  %v182 = vld [vmem:[%s1 + $0xa0] sm:$0xff]
  %v183 = vld [vmem:[%s1 + $0xa8] sm:$0xff]
  %v184 = vld [vmem:[%s1 + $0xb0] sm:$0xff]
  %v185 = vld [vmem:[%s1 + $0xb8] sm:$0xff]
  %v186 = vld [vmem:[%s1 + $0xc0] sm:$0xff]
  %v187 = vld [vmem:[%s1 + $0xc8] sm:$0xff]
  %v188 = vld [vmem:[%s1 + $0xd0] sm:$0xff]
  %v189 = vld [vmem:[%s1 + $0xd8] sm:$0xff]
  %v190 = vld [vmem:[%s1 + $0xe0] sm:$0xff]
  %v191 = vld [vmem:[%s1 + $0xe8] sm:$0xff]
  %v192 = vld [vmem:[%s1 + $0xf0] sm:$0xff]
  %v193 = vld [vmem:[%s1 + $0xf8] sm:$0xff]
  %v194 = vld [vmem:[%s1 + $0x100] sm:$0xff]
  %v195 = vld [vmem:[%s1 + $0x108] sm:$0xff]
  %v196 = vld [vmem:[%s1 + $0x110] sm:$0xff]
  %v197 = vld [vmem:[%s1 + $0x118] sm:$0xff]
  %v198 = vld [vmem:[%s1 + $0x120] sm:$0xff]
  %v199 = vld [vmem:[%s1 + $0x128] sm:$0xff]
  %v200 = vld [vmem:[%s1 + $0x130] sm:$0xff]
  %v201 = vld [vmem:[%s1 + $0x138] sm:$0xff]
  %v202 = vld [vmem:[%s1 + $0x140] sm:$0xff]
  %v203 = vld [vmem:[%s1 + $0x148] sm:$0xff]
  %v204 = vld [vmem:[%s1 + $0x150] sm:$0xff]
  %v205 = vld [vmem:[%s1 + $0x158] sm:$0xff]
  %v206 = vld [vmem:[%s1 + $0x160] sm:$0xff]
  %v207 = vld [vmem:[%s1 + $0x168] sm:$0xff]
  %v208 = vld [vmem:[%s1 + $0x170] sm:$0xff]
  %v209 = vld [vmem:[%s1 + $0x178] sm:$0xff]
  %v210 = vld [vmem:[%s1 + $0x180] sm:$0xff]
  %v211 = vld [vmem:[%s1 + $0x188] sm:$0xff]
  %v212 = vld [vmem:[%s1 + $0x190] sm:$0xff]
  %v213 = vld [vmem:[%s1 + $0x198] sm:$0xff]
  %v214 = vld [vmem:[%s1 + $0x1a0] sm:$0xff]
  %v215 = vld [vmem:[%s1 + $0x1a8] sm:$0xff]
  %v216 = vld [vmem:[%s1 + $0x1b0] sm:$0xff]
  %v217 = vld [vmem:[%s1 + $0x1b8] sm:$0xff]
  %v218 = vld [vmem:[%s1 + $0x1c0] sm:$0xff]
  %v219 = vld [vmem:[%s1 + $0x1c8] sm:$0xff]
  %v220 = vld [vmem:[%s1 + $0x1d0] sm:$0xff]
  %v221 = vld [vmem:[%s1 + $0x1d8] sm:$0xff]
  %v222 = vld [vmem:[%s1 + $0x1e0] sm:$0xff]
  %v223 = vld [vmem:[%s1 + $0x1e8] sm:$0xff]
  %v224 = vld [vmem:[%s1 + $0x1f0] sm:$0xff]
  %v225 = vld [vmem:[%s1 + $0x1f8] sm:$0xff]
  %v226 = vld [vmem:[%s1 + $0x200] sm:$0xff]
  %v227 = vld [vmem:[%s1 + $0x208] sm:$0xff]
  %v228 = vld [vmem:[%s1 + $0x210] sm:$0xff]
  %v229 = vld [vmem:[%s1 + $0x218] sm:$0xff]
  %v230 = vld [vmem:[%s1 + $0x220] sm:$0xff]
  %v231 = vld [vmem:[%s1 + $0x228] sm:$0xff]
  %v232 = vld [vmem:[%s1 + $0x230] sm:$0xff]
  %v233 = vld [vmem:[%s1 + $0x238] sm:$0xff]
  %v234 = vld [vmem:[%s1 + $0x240] sm:$0xff]
  %v235 = vld [vmem:[%s1 + $0x248] sm:$0xff]
  %v236 = vld [vmem:[%s1 + $0x250] sm:$0xff]
  %v237 = vld [vmem:[%s1 + $0x258] sm:$0xff]
  %v238 = vld [vmem:[%s1 + $0x260] sm:$0xff]
  %v239 = vld [vmem:[%s1 + $0x268] sm:$0xff]
  %v240 = vld [vmem:[%s1 + $0x270] sm:$0xff]
  %v241 = vld [vmem:[%s1 + $0x278] sm:$0xff]
  %v242 = vld [vmem:[%s1 + $0x280] sm:$0xff]
  %v243 = vld [vmem:[%s1 + $0x288] sm:$0xff]
  %v244 = vld [vmem:[%s1 + $0x290] sm:$0xff]
  %v245 = vld [vmem:[%s1 + $0x298] sm:$0xff]
  %v246 = vld [vmem:[%s1 + $0x2a0] sm:$0xff]
  %v247 = vld [vmem:[%s1 + $0x2a8] sm:$0xff]
  %v248 = vld [vmem:[%s1 + $0x2b0] sm:$0xff]
  %v249 = vld [vmem:[%s1 + $0x2b8] sm:$0xff]
  %v250 = vld [vmem:[%s1 + $0x2c0] sm:$0xff]
  %v251 = vld [vmem:[%s1 + $0x2c8] sm:$0xff]
  %v252 = vld [vmem:[%s1 + $0x2d0] sm:$0xff]
  %v253 = vld [vmem:[%s1 + $0x2d8] sm:$0xff]
  %v254 = vld [vmem:[%s1 + $0x2e0] sm:$0xff]
  %v255 = vld [vmem:[%s1 + $0x2e8] sm:$0xff]
  %v256 = vld [vmem:[%s1 + $0x2f0] sm:$0xff]
  %v257 = vld [vmem:[%s1 + $0x2f8] sm:$0xff]
  %v258 = vld [vmem:[%s1 + $0x300] sm:$0xff]
  %v259 = vld [vmem:[%s1 + $0x308] sm:$0xff]
  %v260 = vld [vmem:[%s1 + $0x310] sm:$0xff]
  %v261 = vld [vmem:[%s1 + $0x318] sm:$0xff]
  %v262 = vld [vmem:[%s1 + $0x320] sm:$0xff]
  %v263 = vld [vmem:[%s1 + $0x328] sm:$0xff]
  %v264 = vld [vmem:[%s1 + $0x330] sm:$0xff]
  %v265 = vld [vmem:[%s1 + $0x338] sm:$0xff]
  %v266 = vld [vmem:[%s1 + $0x340] sm:$0xff]
  %v267 = vld [vmem:[%s1 + $0x348] sm:$0xff]
  %v268 = vld [vmem:[%s1 + $0x350] sm:$0xff]
  %v269 = vld [vmem:[%s1 + $0x358] sm:$0xff]
  %v270 = vld [vmem:[%s1 + $0x360] sm:$0xff]
  %v271 = vld [vmem:[%s1 + $0x368] sm:$0xff]
  %v272 = vld [vmem:[%s1 + $0x370] sm:$0xff]
  %v273 = vld [vmem:[%s1 + $0x378] sm:$0xff]
  %v274 = vld [vmem:[%s1 + $0x380] sm:$0xff]
  %v275 = vld [vmem:[%s1 + $0x388] sm:$0xff]
  %v276 = vld [vmem:[%s1 + $0x390] sm:$0xff]
  %v277 = vld [vmem:[%s1 + $0x398] sm:$0xff]
  %v278 = vld [vmem:[%s1 + $0x3a0] sm:$0xff]
  %v279 = vld [vmem:[%s1 + $0x3a8] sm:$0xff]
  %v280 = vld [vmem:[%s1 + $0x3b0] sm:$0xff]
  %v281 = vld [vmem:[%s1 + $0x3b8] sm:$0xff]
  %v282 = vld [vmem:[%s1 + $0x3c0] sm:$0xff]
  %v283 = vld [vmem:[%s1 + $0x3c8] sm:$0xff]
  %v284 = vld [vmem:[%s1 + $0x3d0] sm:$0xff]
  %v285 = vld [vmem:[%s1 + $0x3d8] sm:$0xff]
  %v286 = vld [vmem:[%s1 + $0x3e0] sm:$0xff]
  %v287 = vld [vmem:[%s1 + $0x3e8] sm:$0xff]
  %v288 = vld [vmem:[%s1 + $0x3f0] sm:$0xff]
  %v289 = vld [vmem:[%s1 + $0x3f8] sm:$0xff]
  %290 = vmatprep.subr.mxu0 %v163
  %291 = vmatpush1.msra.mxu0 %v162
  %292 = vmatprep.subr.mxu0 %v167
  %293 = vmatpush1.msra.mxu0 %v166
  %294 = vmatprep.subr.mxu0 %v171
  %295 = vmatpush1.msra.mxu0 %v170
  %296 = vmatprep.subr.mxu0 %v175
  %297 = vmatpush1.msra.mxu0 %v174
  %298 = vmatprep.subr.mxu0 %v179
  %299 = vmatpush1.msra.mxu0 %v178
  %300 = vmatprep.subr.mxu0 %v183
  %301 = vmatpush1.msra.mxu0 %v182
  %302 = vmatprep.subr.mxu0 %v187
  %303 = vmatpush1.msra.mxu0 %v186
  %304 = vmatprep.subr.mxu0 %v191
  %305 = vmatpush1.msra.mxu0 %v190
  %306 = vmatprep.subr.mxu0 %v195
  %307 = vmatpush1.msra.mxu0 %v194
  %308 = vmatprep.subr.mxu0 %v199
  %309 = vmatpush1.msra.mxu0 %v198
  %310 = vmatprep.subr.mxu0 %v203
  %311 = vmatpush1.msra.mxu0 %v202
  %312 = vmatprep.subr.mxu0 %v207
  %313 = vmatpush1.msra.mxu0 %v206
  %314 = vmatprep.subr.mxu0 %v211
  %315 = vmatpush1.msra.mxu0 %v210
  %316 = vmatprep.subr.mxu0 %v215
  %317 = vmatpush1.msra.mxu0 %v214
  %318 = vmatprep.subr.mxu0 %v219
  %319 = vmatpush1.msra.mxu0 %v218
  %320 = vmatprep.subr.mxu0 %v223
  %321 = vmatpush1.msra.mxu0 %v222
  %322 = vmatprep.subr.mxu0 %v227
  %323 = vmatpush1.msra.mxu0 %v226
  %324 = vmatprep.subr.mxu0 %v231
  %325 = vmatpush1.msra.mxu0 %v230
  %326 = vmatprep.subr.mxu0 %v235
  %327 = vmatpush1.msra.mxu0 %v234
  %328 = vmatprep.subr.mxu0 %v239
  %329 = vmatpush1.msra.mxu0 %v238
  %330 = vmatprep.subr.mxu0 %v243
  %331 = vmatpush1.msra.mxu0 %v242
  %332 = vmatprep.subr.mxu0 %v247
  %333 = vmatpush1.msra.mxu0 %v246
  %334 = vmatprep.subr.mxu0 %v251
  %335 = vmatpush1.msra.mxu0 %v250
  %336 = vmatprep.subr.mxu0 %v255
  %337 = vmatpush1.msra.mxu0 %v254
  %338 = vmatprep.subr.mxu0 %v259
  %339 = vmatpush1.msra.mxu0 %v258
  %340 = vmatprep.subr.mxu0 %v263
  %341 = vmatpush1.msra.mxu0 %v262
  %342 = vmatprep.subr.mxu0 %v267
  %343 = vmatpush1.msra.mxu0 %v266
  %344 = vmatprep.subr.mxu0 %v271
  %345 = vmatpush1.msra.mxu0 %v270
  %346 = vmatprep.subr.mxu0 %v275
  %347 = vmatpush1.msra.mxu0 %v274
  %348 = vmatprep.subr.mxu0 %v279
  %349 = vmatpush1.msra.mxu0 %v278
  %350 = vmatprep.subr.mxu0 %v283
  %351 = vmatpush1.msra.mxu0 %v282
  %352 = vmatprep.subr.mxu0 %v287
  %353 = vmatpush1.msra.mxu0 %v286
  %354 = vmatprep.mubr.f32.mxu0 %v46
  %355 = vmatmul.mubr.f32.gmra.mrb[0].mxu0 %v160
  %v356 = vpop.f32.mrb[0].mxu0
  %v357 = vadd.f32 %v57, %v356
  %v358 = vpop.f32.mrb[0].mxu0
  %v359 = vadd.f32 %v61, %v358
  %360 = vdwg.mxu0
  %361 = vmatprep.subr.mxu0 %v165
  %362 = vmatpush1.msra.mxu0 %v164
  %363 = vmatprep.subr.mxu0 %v169
  %364 = vmatpush1.msra.mxu0 %v168
  %365 = vmatprep.subr.mxu0 %v173
  %366 = vmatpush1.msra.mxu0 %v172
  %367 = vmatprep.subr.mxu0 %v177
  %368 = vmatpush1.msra.mxu0 %v176
  %369 = vmatprep.subr.mxu0 %v181
  %370 = vmatpush1.msra.mxu0 %v180
  %371 = vmatprep.subr.mxu0 %v185
  %372 = vmatpush1.msra.mxu0 %v184
  %373 = vmatprep.subr.mxu0 %v189
  %374 = vmatpush1.msra.mxu0 %v188
  %375 = vmatprep.subr.mxu0 %v193
  %376 = vmatpush1.msra.mxu0 %v192
  %377 = vmatprep.subr.mxu0 %v197
  %378 = vmatpush1.msra.mxu0 %v196
  %379 = vmatprep.subr.mxu0 %v201
  %380 = vmatpush1.msra.mxu0 %v200
  %381 = vmatprep.subr.mxu0 %v205
  %382 = vmatpush1.msra.mxu0 %v204
  %383 = vmatprep.subr.mxu0 %v209
  %384 = vmatpush1.msra.mxu0 %v208
  %385 = vmatprep.subr.mxu0 %v213
  %386 = vmatpush1.msra.mxu0 %v212
  %387 = vmatprep.subr.mxu0 %v217
  %388 = vmatpush1.msra.mxu0 %v216
  %389 = vmatprep.subr.mxu0 %v221
  %390 = vmatpush1.msra.mxu0 %v220
  %391 = vmatprep.subr.mxu0 %v225
  %392 = vmatpush1.msra.mxu0 %v224
  %393 = vmatprep.subr.mxu0 %v229
  %394 = vmatpush1.msra.mxu0 %v228
  %395 = vmatprep.subr.mxu0 %v233
  %396 = vmatpush1.msra.mxu0 %v232
  %397 = vmatprep.subr.mxu0 %v237
  %398 = vmatpush1.msra.mxu0 %v236
  %399 = vmatprep.subr.mxu0 %v241
  %400 = vmatpush1.msra.mxu0 %v240
  %401 = vmatprep.subr.mxu0 %v245
  %402 = vmatpush1.msra.mxu0 %v244
  %403 = vmatprep.subr.mxu0 %v249
  %404 = vmatpush1.msra.mxu0 %v248
  %405 = vmatprep.subr.mxu0 %v253
  %406 = vmatpush1.msra.mxu0 %v252
  %407 = vmatprep.subr.mxu0 %v257
  %408 = vmatpush1.msra.mxu0 %v256
  %409 = vmatprep.subr.mxu0 %v261
  %410 = vmatpush1.msra.mxu0 %v260
  %411 = vmatprep.subr.mxu0 %v265
  %412 = vmatpush1.msra.mxu0 %v264
  %413 = vmatprep.subr.mxu0 %v269
  %414 = vmatpush1.msra.mxu0 %v268
  %415 = vmatprep.subr.mxu0 %v273
  %416 = vmatpush1.msra.mxu0 %v272
  %417 = vmatprep.subr.mxu0 %v277
  %418 = vmatpush1.msra.mxu0 %v276
  %419 = vmatprep.subr.mxu0 %v281
  %420 = vmatpush1.msra.mxu0 %v280
  %421 = vmatprep.subr.mxu0 %v285
  %422 = vmatpush1.msra.mxu0 %v284
  %423 = vmatprep.subr.mxu0 %v289
  %424 = vmatpush1.msra.mxu0 %v288
  %425 = vmatprep.mubr.f32.mxu0 %v46
  %426 = vmatmul.mubr.f32.gmra.mrb[0].mxu0 %v160
  %v427 = vpop.f32.mrb[0].mxu0
  %v428 = vadd.f32 %v65, %v427
  %v429 = vpop.f32.mrb[0].mxu0
  %v430 = vadd.f32 %v69, %v429
  %431 = vdwg.mxu0
  %v432 = vxor.u32 %v357, 2147483648
  %v433 = vmul.f32 %v432, 1.442695
  %v434 = vpow.pop %v433
  %v435 = vadd.f32 %v434, 1.0
  %v436 = vrcp.pop %v435
  %v437 = vmul.f32 1.0, %v436
  %v438 = vxor.u32 %v359, 2147483648
  %v439 = vmul.f32 %v438, 1.442695
  %v440 = vpow.pop %v439
  %v441 = vadd.f32 %v440, 1.0
  %v442 = vrcp.pop %v441
  %v443 = vmul.f32 1.0, %v442
  %v444 = vtanh.pop %v428
  %v445 = vxor.u32 %v430, 2147483648
  %v446 = vmul.f32 %v445, 1.442695
  %v447 = vpow.pop %v446
  %v448 = vadd.f32 %v447, 1.0
  %v449 = vrcp.pop %v448
  %v450 = vmul.f32 1.0, %v449
  %v451 = vmul.f32 %v443, %v49
  %v452 = vmul.f32 %v437, %v444
  %v453 = vadd.f32 %v451, %v452
  %v454 = vtanh.pop %v453
  %v455 = vmul.f32 %v450, %v454
  %456 = vadd.xlane.f32.xlu0 %v455
  %v457 = vpop.xlane.xlu0 %456
  %v458 = vmul.f32 %v457, 0.03125
  %v459 = vmul.f32 %v455, %v455
  %460 = vadd.xlane.f32.xlu0 %v459
  %v461 = vpop.xlane.xlu0 %460
  %v462 = vmul.f32 %v461, 0.03125
  %v463 = vmul.f32 %v458, %v458
  %v464 = vsub.f32 %v462, %v463
  %v465 = vmax.f32 %v464, 0.0
  %v466 = vsub.f32 %v455, %v458
  %v467 = vadd.f32 %v465, 1e-05
  %v468 = vrsqrt.pop %v467
  %v469 = vmul.f32 %v466, %v468
  %v470 = vmul.f32 %v469, %v79
  %v471 = vadd.f32 %v470, %v86
  %v472 = vld [vmem:[%s5] sm:$0xff]
  %v473 = vld [vmem:[%s5 + $0x8] sm:$0xff]
  %v474 = vld [vmem:[%s5 + $0x10] sm:$0xff]
  %v475 = vld [vmem:[%s5 + $0x18] sm:$0xff]
  %v476 = vld [vmem:[%s5 + $0x20] sm:$0xff]
  %v477 = vld [vmem:[%s5 + $0x28] sm:$0xff]
  %v478 = vld [vmem:[%s5 + $0x30] sm:$0xff]
  %v479 = vld [vmem:[%s5 + $0x38] sm:$0xff]
  %v480 = vld [vmem:[%s5 + $0x40] sm:$0xff]
  %v481 = vld [vmem:[%s5 + $0x48] sm:$0xff]
  %v482 = vld [vmem:[%s5 + $0x50] sm:$0xff]
  %v483 = vld [vmem:[%s5 + $0x58] sm:$0xff]
  %v484 = vld [vmem:[%s5 + $0x60] sm:$0xff]
  %v485 = vld [vmem:[%s5 + $0x68] sm:$0xff]
  %v486 = vld [vmem:[%s5 + $0x70] sm:$0xff]
  %v487 = vld [vmem:[%s5 + $0x78] sm:$0xff]
  %v488 = vld [vmem:[%s5 + $0x80] sm:$0xff]
  %v489 = vld [vmem:[%s5 + $0x88] sm:$0xff]
  %v490 = vld [vmem:[%s5 + $0x90] sm:$0xff]
  %v491 = vld [vmem:[%s5 + $0x98] sm:$0xff]
  %v492 = vld [vmem:[%s5 + $0xa0] sm:$0xff]
  %v493 = vld [vmem:[%s5 + $0xa8] sm:$0xff]
  %v494 = vld [vmem:[%s5 + $0xb0] sm:$0xff]
  %v495 = vld [vmem:[%s5 + $0xb8] sm:$0xff]
  %v496 = vld [vmem:[%s5 + $0xc0] sm:$0xff]
  %v497 = vld [vmem:[%s5 + $0xc8] sm:$0xff]
  %v498 = vld [vmem:[%s5 + $0xd0] sm:$0xff]
  %v499 = vld [vmem:[%s5 + $0xd8] sm:$0xff]
  %v500 = vld [vmem:[%s5 + $0xe0] sm:$0xff]
  %v501 = vld [vmem:[%s5 + $0xe8] sm:$0xff]
  %v502 = vld [vmem:[%s5 + $0xf0] sm:$0xff]
  %v503 = vld [vmem:[%s5 + $0xf8] sm:$0xff]
  %v504 = vld [vmem:[%s5 + $0x100] sm:$0xff]
  %v505 = vld [vmem:[%s5 + $0x108] sm:$0xff]
  %v506 = vld [vmem:[%s5 + $0x110] sm:$0xff]
  %v507 = vld [vmem:[%s5 + $0x118] sm:$0xff]
  %v508 = vld [vmem:[%s5 + $0x120] sm:$0xff]
  %v509 = vld [vmem:[%s5 + $0x128] sm:$0xff]
  %v510 = vld [vmem:[%s5 + $0x130] sm:$0xff]
  %v511 = vld [vmem:[%s5 + $0x138] sm:$0xff]
  %v512 = vld [vmem:[%s5 + $0x140] sm:$0xff]
  %v513 = vld [vmem:[%s5 + $0x148] sm:$0xff]
  %v514 = vld [vmem:[%s5 + $0x150] sm:$0xff]
  %v515 = vld [vmem:[%s5 + $0x158] sm:$0xff]
  %v516 = vld [vmem:[%s5 + $0x160] sm:$0xff]
  %v517 = vld [vmem:[%s5 + $0x168] sm:$0xff]
  %v518 = vld [vmem:[%s5 + $0x170] sm:$0xff]
  %v519 = vld [vmem:[%s5 + $0x178] sm:$0xff]
  %v520 = vld [vmem:[%s5 + $0x180] sm:$0xff]
  %v521 = vld [vmem:[%s5 + $0x188] sm:$0xff]
  %v522 = vld [vmem:[%s5 + $0x190] sm:$0xff]
  %v523 = vld [vmem:[%s5 + $0x198] sm:$0xff]
  %v524 = vld [vmem:[%s5 + $0x1a0] sm:$0xff]
  %v525 = vld [vmem:[%s5 + $0x1a8] sm:$0xff]
  %v526 = vld [vmem:[%s5 + $0x1b0] sm:$0xff]
  %v527 = vld [vmem:[%s5 + $0x1b8] sm:$0xff]
  %v528 = vld [vmem:[%s5 + $0x1c0] sm:$0xff]
  %v529 = vld [vmem:[%s5 + $0x1c8] sm:$0xff]
  %v530 = vld [vmem:[%s5 + $0x1d0] sm:$0xff]
  %v531 = vld [vmem:[%s5 + $0x1d8] sm:$0xff]
  %v532 = vld [vmem:[%s5 + $0x1e0] sm:$0xff]
  %v533 = vld [vmem:[%s5 + $0x1e8] sm:$0xff]
  %v534 = vld [vmem:[%s5 + $0x1f0] sm:$0xff]
  %v535 = vld [vmem:[%s5 + $0x1f8] sm:$0xff]
  %v536 = vld [vmem:[%s5 + $0x200] sm:$0xff]
  %v537 = vld [vmem:[%s5 + $0x208] sm:$0xff]
  %v538 = vld [vmem:[%s5 + $0x210] sm:$0xff]
  %v539 = vld [vmem:[%s5 + $0x218] sm:$0xff]
  %v540 = vld [vmem:[%s5 + $0x220] sm:$0xff]
  %v541 = vld [vmem:[%s5 + $0x228] sm:$0xff]
  %v542 = vld [vmem:[%s5 + $0x230] sm:$0xff]
  %v543 = vld [vmem:[%s5 + $0x238] sm:$0xff]
  %v544 = vld [vmem:[%s5 + $0x240] sm:$0xff]
  %v545 = vld [vmem:[%s5 + $0x248] sm:$0xff]
  %v546 = vld [vmem:[%s5 + $0x250] sm:$0xff]
  %v547 = vld [vmem:[%s5 + $0x258] sm:$0xff]
  %v548 = vld [vmem:[%s5 + $0x260] sm:$0xff]
  %v549 = vld [vmem:[%s5 + $0x268] sm:$0xff]
  %v550 = vld [vmem:[%s5 + $0x270] sm:$0xff]
  %v551 = vld [vmem:[%s5 + $0x278] sm:$0xff]
  %v552 = vld [vmem:[%s5 + $0x280] sm:$0xff]
  %v553 = vld [vmem:[%s5 + $0x288] sm:$0xff]
  %v554 = vld [vmem:[%s5 + $0x290] sm:$0xff]
  %v555 = vld [vmem:[%s5 + $0x298] sm:$0xff]
  %v556 = vld [vmem:[%s5 + $0x2a0] sm:$0xff]
  %v557 = vld [vmem:[%s5 + $0x2a8] sm:$0xff]
  %v558 = vld [vmem:[%s5 + $0x2b0] sm:$0xff]
  %v559 = vld [vmem:[%s5 + $0x2b8] sm:$0xff]
  %v560 = vld [vmem:[%s5 + $0x2c0] sm:$0xff]
  %v561 = vld [vmem:[%s5 + $0x2c8] sm:$0xff]
  %v562 = vld [vmem:[%s5 + $0x2d0] sm:$0xff]
  %v563 = vld [vmem:[%s5 + $0x2d8] sm:$0xff]
  %v564 = vld [vmem:[%s5 + $0x2e0] sm:$0xff]
  %v565 = vld [vmem:[%s5 + $0x2e8] sm:$0xff]
  %v566 = vld [vmem:[%s5 + $0x2f0] sm:$0xff]
  %v567 = vld [vmem:[%s5 + $0x2f8] sm:$0xff]
  %v568 = vld [vmem:[%s5 + $0x300] sm:$0xff]
  %v569 = vld [vmem:[%s5 + $0x308] sm:$0xff]
  %v570 = vld [vmem:[%s5 + $0x310] sm:$0xff]
  %v571 = vld [vmem:[%s5 + $0x318] sm:$0xff]
  %v572 = vld [vmem:[%s5 + $0x320] sm:$0xff]
  %v573 = vld [vmem:[%s5 + $0x328] sm:$0xff]
  %v574 = vld [vmem:[%s5 + $0x330] sm:$0xff]
  %v575 = vld [vmem:[%s5 + $0x338] sm:$0xff]
  %v576 = vld [vmem:[%s5 + $0x340] sm:$0xff]
  %v577 = vld [vmem:[%s5 + $0x348] sm:$0xff]
  %v578 = vld [vmem:[%s5 + $0x350] sm:$0xff]
  %v579 = vld [vmem:[%s5 + $0x358] sm:$0xff]
  %v580 = vld [vmem:[%s5 + $0x360] sm:$0xff]
  %v581 = vld [vmem:[%s5 + $0x368] sm:$0xff]
  %v582 = vld [vmem:[%s5 + $0x370] sm:$0xff]
  %v583 = vld [vmem:[%s5 + $0x378] sm:$0xff]
  %v584 = vld [vmem:[%s5 + $0x380] sm:$0xff]
  %v585 = vld [vmem:[%s5 + $0x388] sm:$0xff]
  %v586 = vld [vmem:[%s5 + $0x390] sm:$0xff]
  %v587 = vld [vmem:[%s5 + $0x398] sm:$0xff]
  %v588 = vld [vmem:[%s5 + $0x3a0] sm:$0xff]
  %v589 = vld [vmem:[%s5 + $0x3a8] sm:$0xff]
  %v590 = vld [vmem:[%s5 + $0x3b0] sm:$0xff]
  %v591 = vld [vmem:[%s5 + $0x3b8] sm:$0xff]
  %v592 = vld [vmem:[%s5 + $0x3c0] sm:$0xff]
  %v593 = vld [vmem:[%s5 + $0x3c8] sm:$0xff]
  %v594 = vld [vmem:[%s5 + $0x3d0] sm:$0xff]
  %v595 = vld [vmem:[%s5 + $0x3d8] sm:$0xff]
  %v596 = vld [vmem:[%s5 + $0x3e0] sm:$0xff]
  %v597 = vld [vmem:[%s5 + $0x3e8] sm:$0xff]
  %v598 = vld [vmem:[%s5 + $0x3f0] sm:$0xff]
  %v599 = vld [vmem:[%s5 + $0x3f8] sm:$0xff]
  %600 = vmatprep.subr.mxu0 %v473
  %601 = vmatpush1.msra.mxu0 %v472
  %602 = vmatprep.subr.mxu0 %v477
  %603 = vmatpush1.msra.mxu0 %v476
  %604 = vmatprep.subr.mxu0 %v481
  %605 = vmatpush1.msra.mxu0 %v480
  %606 = vmatprep.subr.mxu0 %v485
  %607 = vmatpush1.msra.mxu0 %v484
  %608 = vmatprep.subr.mxu0 %v489
  %609 = vmatpush1.msra.mxu0 %v488
  %610 = vmatprep.subr.mxu0 %v493
  %611 = vmatpush1.msra.mxu0 %v492
  %612 = vmatprep.subr.mxu0 %v497
  %613 = vmatpush1.msra.mxu0 %v496
  %614 = vmatprep.subr.mxu0 %v501
  %615 = vmatpush1.msra.mxu0 %v500
  %616 = vmatprep.subr.mxu0 %v505
  %617 = vmatpush1.msra.mxu0 %v504
  %618 = vmatprep.subr.mxu0 %v509
  %619 = vmatpush1.msra.mxu0 %v508
  %620 = vmatprep.subr.mxu0 %v513
  %621 = vmatpush1.msra.mxu0 %v512
  %622 = vmatprep.subr.mxu0 %v517
  %623 = vmatpush1.msra.mxu0 %v516
  %624 = vmatprep.subr.mxu0 %v521
  %625 = vmatpush1.msra.mxu0 %v520
  %626 = vmatprep.subr.mxu0 %v525
  %627 = vmatpush1.msra.mxu0 %v524
  %628 = vmatprep.subr.mxu0 %v529
  %629 = vmatpush1.msra.mxu0 %v528
  %630 = vmatprep.subr.mxu0 %v533
  %631 = vmatpush1.msra.mxu0 %v532
  %632 = vmatprep.subr.mxu0 %v537
  %633 = vmatpush1.msra.mxu0 %v536
  %634 = vmatprep.subr.mxu0 %v541
  %635 = vmatpush1.msra.mxu0 %v540
  %636 = vmatprep.subr.mxu0 %v545
  %637 = vmatpush1.msra.mxu0 %v544
  %638 = vmatprep.subr.mxu0 %v549
  %639 = vmatpush1.msra.mxu0 %v548
  %640 = vmatprep.subr.mxu0 %v553
  %641 = vmatpush1.msra.mxu0 %v552
  %642 = vmatprep.subr.mxu0 %v557
  %643 = vmatpush1.msra.mxu0 %v556
  %644 = vmatprep.subr.mxu0 %v561
  %645 = vmatpush1.msra.mxu0 %v560
  %646 = vmatprep.subr.mxu0 %v565
  %647 = vmatpush1.msra.mxu0 %v564
  %648 = vmatprep.subr.mxu0 %v569
  %649 = vmatpush1.msra.mxu0 %v568
  %650 = vmatprep.subr.mxu0 %v573
  %651 = vmatpush1.msra.mxu0 %v572
  %652 = vmatprep.subr.mxu0 %v577
  %653 = vmatpush1.msra.mxu0 %v576
  %654 = vmatprep.subr.mxu0 %v581
  %655 = vmatpush1.msra.mxu0 %v580
  %656 = vmatprep.subr.mxu0 %v585
  %657 = vmatpush1.msra.mxu0 %v584
  %658 = vmatprep.subr.mxu0 %v589
  %659 = vmatpush1.msra.mxu0 %v588
  %660 = vmatprep.subr.mxu0 %v593
  %661 = vmatpush1.msra.mxu0 %v592
  %662 = vmatprep.subr.mxu0 %v597
  %663 = vmatpush1.msra.mxu0 %v596
  %664 = vmatprep.mubr.f32.mxu0 %v48
  %665 = vmatmul.mubr.f32.gmra.mrb[0].mxu0 %v471
  %v666 = vpop.f32.mrb[0].mxu0
  %v667 = vadd.f32 %v93, %v666
  %v668 = vpop.f32.mrb[0].mxu0
  %v669 = vadd.f32 %v97, %v668
  %670 = vdwg.mxu0
  %671 = vmatprep.subr.mxu0 %v475
  %672 = vmatpush1.msra.mxu0 %v474
  %673 = vmatprep.subr.mxu0 %v479
  %674 = vmatpush1.msra.mxu0 %v478
  %675 = vmatprep.subr.mxu0 %v483
  %676 = vmatpush1.msra.mxu0 %v482
  %677 = vmatprep.subr.mxu0 %v487
  %678 = vmatpush1.msra.mxu0 %v486
  %679 = vmatprep.subr.mxu0 %v491
  %680 = vmatpush1.msra.mxu0 %v490
  %681 = vmatprep.subr.mxu0 %v495
  %682 = vmatpush1.msra.mxu0 %v494
  %683 = vmatprep.subr.mxu0 %v499
  %684 = vmatpush1.msra.mxu0 %v498
  %685 = vmatprep.subr.mxu0 %v503
  %686 = vmatpush1.msra.mxu0 %v502
  %687 = vmatprep.subr.mxu0 %v507
  %688 = vmatpush1.msra.mxu0 %v506
  %689 = vmatprep.subr.mxu0 %v511
  %690 = vmatpush1.msra.mxu0 %v510
  %691 = vmatprep.subr.mxu0 %v515
  %692 = vmatpush1.msra.mxu0 %v514
  %693 = vmatprep.subr.mxu0 %v519
  %694 = vmatpush1.msra.mxu0 %v518
  %695 = vmatprep.subr.mxu0 %v523
  %696 = vmatpush1.msra.mxu0 %v522
  %697 = vmatprep.subr.mxu0 %v527
  %698 = vmatpush1.msra.mxu0 %v526
  %699 = vmatprep.subr.mxu0 %v531
  %700 = vmatpush1.msra.mxu0 %v530
  %701 = vmatprep.subr.mxu0 %v535
  %702 = vmatpush1.msra.mxu0 %v534
  %703 = vmatprep.subr.mxu0 %v539
  %704 = vmatpush1.msra.mxu0 %v538
  %705 = vmatprep.subr.mxu0 %v543
  %706 = vmatpush1.msra.mxu0 %v542
  %707 = vmatprep.subr.mxu0 %v547
  %708 = vmatpush1.msra.mxu0 %v546
  %709 = vmatprep.subr.mxu0 %v551
  %710 = vmatpush1.msra.mxu0 %v550
  %711 = vmatprep.subr.mxu0 %v555
  %712 = vmatpush1.msra.mxu0 %v554
  %713 = vmatprep.subr.mxu0 %v559
  %714 = vmatpush1.msra.mxu0 %v558
  %715 = vmatprep.subr.mxu0 %v563
  %716 = vmatpush1.msra.mxu0 %v562
  %717 = vmatprep.subr.mxu0 %v567
  %718 = vmatpush1.msra.mxu0 %v566
  %719 = vmatprep.subr.mxu0 %v571
  %720 = vmatpush1.msra.mxu0 %v570
  %721 = vmatprep.subr.mxu0 %v575
  %722 = vmatpush1.msra.mxu0 %v574
  %723 = vmatprep.subr.mxu0 %v579
  %724 = vmatpush1.msra.mxu0 %v578
  %725 = vmatprep.subr.mxu0 %v583
  %726 = vmatpush1.msra.mxu0 %v582
  %727 = vmatprep.subr.mxu0 %v587
  %728 = vmatpush1.msra.mxu0 %v586
  %729 = vmatprep.subr.mxu0 %v591
  %730 = vmatpush1.msra.mxu0 %v590
  %731 = vmatprep.subr.mxu0 %v595
  %732 = vmatpush1.msra.mxu0 %v594
  %733 = vmatprep.subr.mxu0 %v599
  %734 = vmatpush1.msra.mxu0 %v598
  %735 = vmatprep.mubr.f32.mxu0 %v48
  %736 = vmatmul.mubr.f32.gmra.mrb[0].mxu0 %v471
  %v737 = vpop.f32.mrb[0].mxu0
  %v738 = vadd.f32 %v101, %v737
  %v739 = vpop.f32.mrb[0].mxu0
  %v740 = vadd.f32 %v105, %v739
  %741 = vdwg.mxu0
  %v742 = vxor.u32 %v667, 2147483648
  %v743 = vmul.f32 %v742, 1.442695
  %v744 = vpow.pop %v743
  %v745 = vadd.f32 %v744, 1.0
  %v746 = vrcp.pop %v745
  %v747 = vmul.f32 1.0, %v746
  %v748 = vxor.u32 %v669, 2147483648
  %v749 = vmul.f32 %v748, 1.442695
  %v750 = vpow.pop %v749
  %v751 = vadd.f32 %v750, 1.0
  %v752 = vrcp.pop %v751
  %v753 = vmul.f32 1.0, %v752
  %v754 = vtanh.pop %v738
  %v755 = vxor.u32 %v740, 2147483648
  %v756 = vmul.f32 %v755, 1.442695
  %v757 = vpow.pop %v756
  %v758 = vadd.f32 %v757, 1.0
  %v759 = vrcp.pop %v758
  %v760 = vmul.f32 1.0, %v759
  %v761 = vmul.f32 %v753, %v51
  %v762 = vmul.f32 %v747, %v754
  %v763 = vadd.f32 %v761, %v762
  %v764 = vtanh.pop %v763
  %v765 = vmul.f32 %v760, %v764
  %766 = vadd.xlane.f32.xlu0 %v765
  %v767 = vpop.xlane.xlu0 %766
  %v768 = vmul.f32 %v767, 0.03125
  %v769 = vmul.f32 %v765, %v765
  %770 = vadd.xlane.f32.xlu0 %v769
  %v771 = vpop.xlane.xlu0 %770
  %v772 = vmul.f32 %v771, 0.03125
  %v773 = vmul.f32 %v768, %v768
  %v774 = vsub.f32 %v772, %v773
  %v775 = vmax.f32 %v774, 0.0
  %v776 = vsub.f32 %v765, %v768
  %v777 = vadd.f32 %v775, 1e-05
  %v778 = vrsqrt.pop %v777
  %v779 = vmul.f32 %v776, %v778
  %v780 = vmul.f32 %v779, %v115
  %v781 = vadd.f32 %v780, %v122
  %v783 = vcombine.high %v781, %v781
  %v785 = vunpack.c.l.s4 1966171168
  %v786 = vunpack.c.0.s8 %v785
  %v787 = vlaneseq
  %v788 = vshrl.u32 %v787, 7
  %v789 = vsub.s32 %v786, %v788
  %v790 = vrot.slane %v781, %v789
  %v792 = vunpack.c.l.s4 1966171168
  %v793 = vunpack.c.0.s8 %v792
  %v794 = vlaneseq
  %v795 = vshrl.u32 %v794, 7
  %v796 = vsub.s32 %v793, %v795
  %v797 = vrot.slane %v783, %v796
  %v798 = vcombine.high %v790, %v790
  %v799 = vcombine.high %v797, %v797
  %v801 = vunpack.c.l.s4 1966171168
  %v802 = vunpack.c.0.s8 %v801
  %v803 = vlaneseq
  %v804 = vshrl.u32 %v803, 7
  %v805 = vsub.s32 %v802, %v804
  %v806 = vrot.slane %v790, %v805
  %v808 = vunpack.c.l.s4 1966171168
  %v809 = vunpack.c.0.s8 %v808
  %v810 = vlaneseq
  %v811 = vshrl.u32 %v810, 7
  %v812 = vsub.s32 %v809, %v811
  %v813 = vrot.slane %v797, %v812
  %v815 = vunpack.c.l.s4 1966171168
  %v816 = vunpack.c.0.s8 %v815
  %v817 = vlaneseq
  %v818 = vshrl.u32 %v817, 7
  %v819 = vsub.s32 %v816, %v818
  %v820 = vrot.slane %v798, %v819
  %v822 = vunpack.c.l.s4 1966171168
  %v823 = vunpack.c.0.s8 %v822
  %v824 = vlaneseq
  %v825 = vshrl.u32 %v824, 7
  %v826 = vsub.s32 %v823, %v825
  %v827 = vrot.slane %v799, %v826
  %v828 = vcombine.high %v806, %v806
  %v829 = vcombine.high %v813, %v813
  %v830 = vcombine.high %v820, %v820
  %v831 = vcombine.high %v827, %v827
  %840 = vst [vmem:[#allocation4] sm:$0x1] %v806
  %841 = vst [vmem:[#allocation4 + $0x8] sm:$0x1] %v820
  %842 = vst [vmem:[#allocation4 + $0x10] sm:$0x1] %v828
  %843 = vst [vmem:[#allocation4 + $0x18] sm:$0x1] %v830
  %844 = vst [vmem:[#allocation4 + $0x20] sm:$0x1] %v813
  %845 = vst [vmem:[#allocation4 + $0x28] sm:$0x1] %v827
  %846 = vst [vmem:[#allocation4 + $0x30] sm:$0x1] %v829
  %847 = vst [vmem:[#allocation4 + $0x38] sm:$0x1] %v831
  %v848 = vld [vmem:[%s0 + $0x1] sm:$0x1]
  %v849 = vld [vmem:[%s0 + $0x9] sm:$0x1]
  %v850 = vld [vmem:[%s0 + $0x11] sm:$0x1]
  %v851 = vld [vmem:[%s0 + $0x19] sm:$0x1]
  %v852 = vld [vmem:[%s0 + $0x21] sm:$0x1]
  %v853 = vld [vmem:[%s0 + $0x29] sm:$0x1]
  %v854 = vld [vmem:[%s0 + $0x31] sm:$0x1]
  %v855 = vld [vmem:[%s0 + $0x39] sm:$0x1]
  %v864 = vrot.slane %v849, 7
  %v865 = vsel %vm141, %v864, %v848
  %v866 = vrot.slane %v850, 6
  %v867 = vsel %vm144, %v866, %v865
  %v868 = vrot.slane %v851, 5
  %v869 = vsel %vm147, %v868, %v867
  %v870 = vrot.slane %v852, 4
  %v871 = vsel %vm150, %v870, %v869
  %v872 = vrot.slane %v853, 3
  %v873 = vsel %vm153, %v872, %v871
  %v874 = vrot.slane %v854, 2
  %v875 = vsel %vm156, %v874, %v873
  %v876 = vrot.slane %v855, 1
  %v877 = vsel %vm159, %v876, %v875
  %v879 = vld [vmem:[%s1] sm:$0xff]
  %v880 = vld [vmem:[%s1 + $0x8] sm:$0xff]
  %v881 = vld [vmem:[%s1 + $0x10] sm:$0xff]
  %v882 = vld [vmem:[%s1 + $0x18] sm:$0xff]
  %v883 = vld [vmem:[%s1 + $0x20] sm:$0xff]
  %v884 = vld [vmem:[%s1 + $0x28] sm:$0xff]
  %v885 = vld [vmem:[%s1 + $0x30] sm:$0xff]
  %v886 = vld [vmem:[%s1 + $0x38] sm:$0xff]
  %v887 = vld [vmem:[%s1 + $0x40] sm:$0xff]
  %v888 = vld [vmem:[%s1 + $0x48] sm:$0xff]
  %v889 = vld [vmem:[%s1 + $0x50] sm:$0xff]
  %v890 = vld [vmem:[%s1 + $0x58] sm:$0xff]
  %v891 = vld [vmem:[%s1 + $0x60] sm:$0xff]
  %v892 = vld [vmem:[%s1 + $0x68] sm:$0xff]
  %v893 = vld [vmem:[%s1 + $0x70] sm:$0xff]
  %v894 = vld [vmem:[%s1 + $0x78] sm:$0xff]
  %v895 = vld [vmem:[%s1 + $0x80] sm:$0xff]
  %v896 = vld [vmem:[%s1 + $0x88] sm:$0xff]
  %v897 = vld [vmem:[%s1 + $0x90] sm:$0xff]
  %v898 = vld [vmem:[%s1 + $0x98] sm:$0xff]
  %v899 = vld [vmem:[%s1 + $0xa0] sm:$0xff]
  %v900 = vld [vmem:[%s1 + $0xa8] sm:$0xff]
  %v901 = vld [vmem:[%s1 + $0xb0] sm:$0xff]
  %v902 = vld [vmem:[%s1 + $0xb8] sm:$0xff]
  %v903 = vld [vmem:[%s1 + $0xc0] sm:$0xff]
  %v904 = vld [vmem:[%s1 + $0xc8] sm:$0xff]
  %v905 = vld [vmem:[%s1 + $0xd0] sm:$0xff]
  %v906 = vld [vmem:[%s1 + $0xd8] sm:$0xff]
  %v907 = vld [vmem:[%s1 + $0xe0] sm:$0xff]
  %v908 = vld [vmem:[%s1 + $0xe8] sm:$0xff]
  %v909 = vld [vmem:[%s1 + $0xf0] sm:$0xff]
  %v910 = vld [vmem:[%s1 + $0xf8] sm:$0xff]
  %v911 = vld [vmem:[%s1 + $0x100] sm:$0xff]
  %v912 = vld [vmem:[%s1 + $0x108] sm:$0xff]
  %v913 = vld [vmem:[%s1 + $0x110] sm:$0xff]
  %v914 = vld [vmem:[%s1 + $0x118] sm:$0xff]
  %v915 = vld [vmem:[%s1 + $0x120] sm:$0xff]
  %v916 = vld [vmem:[%s1 + $0x128] sm:$0xff]
  %v917 = vld [vmem:[%s1 + $0x130] sm:$0xff]
  %v918 = vld [vmem:[%s1 + $0x138] sm:$0xff]
  %v919 = vld [vmem:[%s1 + $0x140] sm:$0xff]
  %v920 = vld [vmem:[%s1 + $0x148] sm:$0xff]
  %v921 = vld [vmem:[%s1 + $0x150] sm:$0xff]
  %v922 = vld [vmem:[%s1 + $0x158] sm:$0xff]
  %v923 = vld [vmem:[%s1 + $0x160] sm:$0xff]
  %v924 = vld [vmem:[%s1 + $0x168] sm:$0xff]
  %v925 = vld [vmem:[%s1 + $0x170] sm:$0xff]
  %v926 = vld [vmem:[%s1 + $0x178] sm:$0xff]
  %v927 = vld [vmem:[%s1 + $0x180] sm:$0xff]
  %v928 = vld [vmem:[%s1 + $0x188] sm:$0xff]
  %v929 = vld [vmem:[%s1 + $0x190] sm:$0xff]
  %v930 = vld [vmem:[%s1 + $0x198] sm:$0xff]
  %v931 = vld [vmem:[%s1 + $0x1a0] sm:$0xff]
  %v932 = vld [vmem:[%s1 + $0x1a8] sm:$0xff]
  %v933 = vld [vmem:[%s1 + $0x1b0] sm:$0xff]
  %v934 = vld [vmem:[%s1 + $0x1b8] sm:$0xff]
  %v935 = vld [vmem:[%s1 + $0x1c0] sm:$0xff]
  %v936 = vld [vmem:[%s1 + $0x1c8] sm:$0xff]
  %v937 = vld [vmem:[%s1 + $0x1d0] sm:$0xff]
  %v938 = vld [vmem:[%s1 + $0x1d8] sm:$0xff]
  %v939 = vld [vmem:[%s1 + $0x1e0] sm:$0xff]
  %v940 = vld [vmem:[%s1 + $0x1e8] sm:$0xff]
  %v941 = vld [vmem:[%s1 + $0x1f0] sm:$0xff]
  %v942 = vld [vmem:[%s1 + $0x1f8] sm:$0xff]
  %v943 = vld [vmem:[%s1 + $0x200] sm:$0xff]
  %v944 = vld [vmem:[%s1 + $0x208] sm:$0xff]
  %v945 = vld [vmem:[%s1 + $0x210] sm:$0xff]
  %v946 = vld [vmem:[%s1 + $0x218] sm:$0xff]
  %v947 = vld [vmem:[%s1 + $0x220] sm:$0xff]
  %v948 = vld [vmem:[%s1 + $0x228] sm:$0xff]
  %v949 = vld [vmem:[%s1 + $0x230] sm:$0xff]
  %v950 = vld [vmem:[%s1 + $0x238] sm:$0xff]
  %v951 = vld [vmem:[%s1 + $0x240] sm:$0xff]
  %v952 = vld [vmem:[%s1 + $0x248] sm:$0xff]
  %v953 = vld [vmem:[%s1 + $0x250] sm:$0xff]
  %v954 = vld [vmem:[%s1 + $0x258] sm:$0xff]
  %v955 = vld [vmem:[%s1 + $0x260] sm:$0xff]
  %v956 = vld [vmem:[%s1 + $0x268] sm:$0xff]
  %v957 = vld [vmem:[%s1 + $0x270] sm:$0xff]
  %v958 = vld [vmem:[%s1 + $0x278] sm:$0xff]
  %v959 = vld [vmem:[%s1 + $0x280] sm:$0xff]
  %v960 = vld [vmem:[%s1 + $0x288] sm:$0xff]
  %v961 = vld [vmem:[%s1 + $0x290] sm:$0xff]
  %v962 = vld [vmem:[%s1 + $0x298] sm:$0xff]
  %v963 = vld [vmem:[%s1 + $0x2a0] sm:$0xff]
  %v964 = vld [vmem:[%s1 + $0x2a8] sm:$0xff]
  %v965 = vld [vmem:[%s1 + $0x2b0] sm:$0xff]
  %v966 = vld [vmem:[%s1 + $0x2b8] sm:$0xff]
  %v967 = vld [vmem:[%s1 + $0x2c0] sm:$0xff]
  %v968 = vld [vmem:[%s1 + $0x2c8] sm:$0xff]
  %v969 = vld [vmem:[%s1 + $0x2d0] sm:$0xff]
  %v970 = vld [vmem:[%s1 + $0x2d8] sm:$0xff]
  %v971 = vld [vmem:[%s1 + $0x2e0] sm:$0xff]
  %v972 = vld [vmem:[%s1 + $0x2e8] sm:$0xff]
  %v973 = vld [vmem:[%s1 + $0x2f0] sm:$0xff]
  %v974 = vld [vmem:[%s1 + $0x2f8] sm:$0xff]
  %v975 = vld [vmem:[%s1 + $0x300] sm:$0xff]
  %v976 = vld [vmem:[%s1 + $0x308] sm:$0xff]
  %v977 = vld [vmem:[%s1 + $0x310] sm:$0xff]
  %v978 = vld [vmem:[%s1 + $0x318] sm:$0xff]
  %v979 = vld [vmem:[%s1 + $0x320] sm:$0xff]
  %v980 = vld [vmem:[%s1 + $0x328] sm:$0xff]
  %v981 = vld [vmem:[%s1 + $0x330] sm:$0xff]
  %v982 = vld [vmem:[%s1 + $0x338] sm:$0xff]
  %v983 = vld [vmem:[%s1 + $0x340] sm:$0xff]
  %v984 = vld [vmem:[%s1 + $0x348] sm:$0xff]
  %v985 = vld [vmem:[%s1 + $0x350] sm:$0xff]
  %v986 = vld [vmem:[%s1 + $0x358] sm:$0xff]
  %v987 = vld [vmem:[%s1 + $0x360] sm:$0xff]
  %v988 = vld [vmem:[%s1 + $0x368] sm:$0xff]
  %v989 = vld [vmem:[%s1 + $0x370] sm:$0xff]
  %v990 = vld [vmem:[%s1 + $0x378] sm:$0xff]
  %v991 = vld [vmem:[%s1 + $0x380] sm:$0xff]
  %v992 = vld [vmem:[%s1 + $0x388] sm:$0xff]
  %v993 = vld [vmem:[%s1 + $0x390] sm:$0xff]
  %v994 = vld [vmem:[%s1 + $0x398] sm:$0xff]
  %v995 = vld [vmem:[%s1 + $0x3a0] sm:$0xff]
  %v996 = vld [vmem:[%s1 + $0x3a8] sm:$0xff]
  %v997 = vld [vmem:[%s1 + $0x3b0] sm:$0xff]
  %v998 = vld [vmem:[%s1 + $0x3b8] sm:$0xff]
  %v999 = vld [vmem:[%s1 + $0x3c0] sm:$0xff]
  %v1000 = vld [vmem:[%s1 + $0x3c8] sm:$0xff]
  %v1001 = vld [vmem:[%s1 + $0x3d0] sm:$0xff]
  %v1002 = vld [vmem:[%s1 + $0x3d8] sm:$0xff]
  %v1003 = vld [vmem:[%s1 + $0x3e0] sm:$0xff]
  %v1004 = vld [vmem:[%s1 + $0x3e8] sm:$0xff]
  %v1005 = vld [vmem:[%s1 + $0x3f0] sm:$0xff]
  %v1006 = vld [vmem:[%s1 + $0x3f8] sm:$0xff]
  %1007 = vmatprep.subr.mxu0 %v880
  %1008 = vmatpush1.msra.mxu0 %v879
  %1009 = vmatprep.subr.mxu0 %v884
  %1010 = vmatpush1.msra.mxu0 %v883
  %1011 = vmatprep.subr.mxu0 %v888
  %1012 = vmatpush1.msra.mxu0 %v887
  %1013 = vmatprep.subr.mxu0 %v892
  %1014 = vmatpush1.msra.mxu0 %v891
  %1015 = vmatprep.subr.mxu0 %v896
  %1016 = vmatpush1.msra.mxu0 %v895
  %1017 = vmatprep.subr.mxu0 %v900
  %1018 = vmatpush1.msra.mxu0 %v899
  %1019 = vmatprep.subr.mxu0 %v904
  %1020 = vmatpush1.msra.mxu0 %v903
  %1021 = vmatprep.subr.mxu0 %v908
  %1022 = vmatpush1.msra.mxu0 %v907
  %1023 = vmatprep.subr.mxu0 %v912
  %1024 = vmatpush1.msra.mxu0 %v911
  %1025 = vmatprep.subr.mxu0 %v916
  %1026 = vmatpush1.msra.mxu0 %v915
  %1027 = vmatprep.subr.mxu0 %v920
  %1028 = vmatpush1.msra.mxu0 %v919
  %1029 = vmatprep.subr.mxu0 %v924
  %1030 = vmatpush1.msra.mxu0 %v923
  %1031 = vmatprep.subr.mxu0 %v928
  %1032 = vmatpush1.msra.mxu0 %v927
  %1033 = vmatprep.subr.mxu0 %v932
  %1034 = vmatpush1.msra.mxu0 %v931
  %1035 = vmatprep.subr.mxu0 %v936
  %1036 = vmatpush1.msra.mxu0 %v935
  %1037 = vmatprep.subr.mxu0 %v940
  %1038 = vmatpush1.msra.mxu0 %v939
  %1039 = vmatprep.subr.mxu0 %v944
  %1040 = vmatpush1.msra.mxu0 %v943
  %1041 = vmatprep.subr.mxu0 %v948
  %1042 = vmatpush1.msra.mxu0 %v947
  %1043 = vmatprep.subr.mxu0 %v952
  %1044 = vmatpush1.msra.mxu0 %v951
  %1045 = vmatprep.subr.mxu0 %v956
  %1046 = vmatpush1.msra.mxu0 %v955
  %1047 = vmatprep.subr.mxu0 %v960
  %1048 = vmatpush1.msra.mxu0 %v959
  %1049 = vmatprep.subr.mxu0 %v964
  %1050 = vmatpush1.msra.mxu0 %v963
  %1051 = vmatprep.subr.mxu0 %v968
  %1052 = vmatpush1.msra.mxu0 %v967
  %1053 = vmatprep.subr.mxu0 %v972
  %1054 = vmatpush1.msra.mxu0 %v971
  %1055 = vmatprep.subr.mxu0 %v976
  %1056 = vmatpush1.msra.mxu0 %v975
  %1057 = vmatprep.subr.mxu0 %v980
  %1058 = vmatpush1.msra.mxu0 %v979
  %1059 = vmatprep.subr.mxu0 %v984
  %1060 = vmatpush1.msra.mxu0 %v983
  %1061 = vmatprep.subr.mxu0 %v988
  %1062 = vmatpush1.msra.mxu0 %v987
  %1063 = vmatprep.subr.mxu0 %v992
  %1064 = vmatpush1.msra.mxu0 %v991
  %1065 = vmatprep.subr.mxu0 %v996
  %1066 = vmatpush1.msra.mxu0 %v995
  %1067 = vmatprep.subr.mxu0 %v1000
  %1068 = vmatpush1.msra.mxu0 %v999
  %1069 = vmatprep.subr.mxu0 %v1004
  %1070 = vmatpush1.msra.mxu0 %v1003
  %1071 = vmatprep.mubr.f32.mxu0 %v455
  %1072 = vmatmul.mubr.f32.gmra.mrb[0].mxu0 %v877
  %v1073 = vpop.f32.mrb[0].mxu0
  %v1074 = vadd.f32 %v57, %v1073
  %v1075 = vpop.f32.mrb[0].mxu0
  %v1076 = vadd.f32 %v61, %v1075
  %1077 = vdwg.mxu0
  %1078 = vmatprep.subr.mxu0 %v882
  %1079 = vmatpush1.msra.mxu0 %v881
  %1080 = vmatprep.subr.mxu0 %v886
  %1081 = vmatpush1.msra.mxu0 %v885
  %1082 = vmatprep.subr.mxu0 %v890
  %1083 = vmatpush1.msra.mxu0 %v889
  %1084 = vmatprep.subr.mxu0 %v894
  %1085 = vmatpush1.msra.mxu0 %v893
  %1086 = vmatprep.subr.mxu0 %v898
  %1087 = vmatpush1.msra.mxu0 %v897
  %1088 = vmatprep.subr.mxu0 %v902
  %1089 = vmatpush1.msra.mxu0 %v901
  %1090 = vmatprep.subr.mxu0 %v906
  %1091 = vmatpush1.msra.mxu0 %v905
  %1092 = vmatprep.subr.mxu0 %v910
  %1093 = vmatpush1.msra.mxu0 %v909
  %1094 = vmatprep.subr.mxu0 %v914
  %1095 = vmatpush1.msra.mxu0 %v913
  %1096 = vmatprep.subr.mxu0 %v918
  %1097 = vmatpush1.msra.mxu0 %v917
  %1098 = vmatprep.subr.mxu0 %v922
  %1099 = vmatpush1.msra.mxu0 %v921
  %1100 = vmatprep.subr.mxu0 %v926
  %1101 = vmatpush1.msra.mxu0 %v925
  %1102 = vmatprep.subr.mxu0 %v930
  %1103 = vmatpush1.msra.mxu0 %v929
  %1104 = vmatprep.subr.mxu0 %v934
  %1105 = vmatpush1.msra.mxu0 %v933
  %1106 = vmatprep.subr.mxu0 %v938
  %1107 = vmatpush1.msra.mxu0 %v937
  %1108 = vmatprep.subr.mxu0 %v942
  %1109 = vmatpush1.msra.mxu0 %v941
  %1110 = vmatprep.subr.mxu0 %v946
  %1111 = vmatpush1.msra.mxu0 %v945
  %1112 = vmatprep.subr.mxu0 %v950
  %1113 = vmatpush1.msra.mxu0 %v949
  %1114 = vmatprep.subr.mxu0 %v954
  %1115 = vmatpush1.msra.mxu0 %v953
  %1116 = vmatprep.subr.mxu0 %v958
  %1117 = vmatpush1.msra.mxu0 %v957
  %1118 = vmatprep.subr.mxu0 %v962
  %1119 = vmatpush1.msra.mxu0 %v961
  %1120 = vmatprep.subr.mxu0 %v966
  %1121 = vmatpush1.msra.mxu0 %v965
  %1122 = vmatprep.subr.mxu0 %v970
  %1123 = vmatpush1.msra.mxu0 %v969
  %1124 = vmatprep.subr.mxu0 %v974
  %1125 = vmatpush1.msra.mxu0 %v973
  %1126 = vmatprep.subr.mxu0 %v978
  %1127 = vmatpush1.msra.mxu0 %v977
  %1128 = vmatprep.subr.mxu0 %v982
  %1129 = vmatpush1.msra.mxu0 %v981
  %1130 = vmatprep.subr.mxu0 %v986
  %1131 = vmatpush1.msra.mxu0 %v985
  %1132 = vmatprep.subr.mxu0 %v990
  %1133 = vmatpush1.msra.mxu0 %v989
  %1134 = vmatprep.subr.mxu0 %v994
  %1135 = vmatpush1.msra.mxu0 %v993
  %1136 = vmatprep.subr.mxu0 %v998
  %1137 = vmatpush1.msra.mxu0 %v997
  %1138 = vmatprep.subr.mxu0 %v1002
  %1139 = vmatpush1.msra.mxu0 %v1001
  %1140 = vmatprep.subr.mxu0 %v1006
  %1141 = vmatpush1.msra.mxu0 %v1005
  %1142 = vmatprep.mubr.f32.mxu0 %v455
  %1143 = vmatmul.mubr.f32.gmra.mrb[0].mxu0 %v877
  %v1144 = vpop.f32.mrb[0].mxu0
  %v1145 = vadd.f32 %v65, %v1144
  %v1146 = vpop.f32.mrb[0].mxu0
  %v1147 = vadd.f32 %v69, %v1146
  %1148 = vdwg.mxu0
  %v1149 = vxor.u32 %v1074, 2147483648
  %v1150 = vmul.f32 %v1149, 1.442695
  %v1151 = vpow.pop %v1150
  %v1152 = vadd.f32 %v1151, 1.0
  %v1153 = vrcp.pop %v1152
  %v1154 = vmul.f32 1.0, %v1153
  %v1155 = vxor.u32 %v1076, 2147483648
  %v1156 = vmul.f32 %v1155, 1.442695
  %v1157 = vpow.pop %v1156
  %v1158 = vadd.f32 %v1157, 1.0
  %v1159 = vrcp.pop %v1158
  %v1160 = vmul.f32 1.0, %v1159
  %v1161 = vtanh.pop %v1145
  %v1162 = vxor.u32 %v1147, 2147483648
  %v1163 = vmul.f32 %v1162, 1.442695
  %v1164 = vpow.pop %v1163
  %v1165 = vadd.f32 %v1164, 1.0
  %v1166 = vrcp.pop %v1165
  %v1167 = vmul.f32 1.0, %v1166
  %v1168 = vmul.f32 %v1160, %v453
  %v1169 = vmul.f32 %v1154, %v1161
  %v1170 = vadd.f32 %v1168, %v1169
  %v1171 = vtanh.pop %v1170
  %v1172 = vmul.f32 %v1167, %v1171
  %1173 = vadd.xlane.f32.xlu0 %v1172
  %v1174 = vpop.xlane.xlu0 %1173
  %v1175 = vmul.f32 %v1174, 0.03125
  %v1176 = vmul.f32 %v1172, %v1172
  %1177 = vadd.xlane.f32.xlu0 %v1176
  %v1178 = vpop.xlane.xlu0 %1177
  %v1179 = vmul.f32 %v1178, 0.03125
  %v1180 = vmul.f32 %v1175, %v1175
  %v1181 = vsub.f32 %v1179, %v1180
  %v1182 = vmax.f32 %v1181, 0.0
  %v1183 = vsub.f32 %v1172, %v1175
  %v1184 = vadd.f32 %v1182, 1e-05
  %v1185 = vrsqrt.pop %v1184
  %v1186 = vmul.f32 %v1183, %v1185
  %v1187 = vmul.f32 %v1186, %v79
  %v1188 = vadd.f32 %v1187, %v86
  %v1189 = vld [vmem:[%s5] sm:$0xff]
  %v1190 = vld [vmem:[%s5 + $0x8] sm:$0xff]
  %v1191 = vld [vmem:[%s5 + $0x10] sm:$0xff]
  %v1192 = vld [vmem:[%s5 + $0x18] sm:$0xff]
  %v1193 = vld [vmem:[%s5 + $0x20] sm:$0xff]
  %v1194 = vld [vmem:[%s5 + $0x28] sm:$0xff]
  %v1195 = vld [vmem:[%s5 + $0x30] sm:$0xff]
  %v1196 = vld [vmem:[%s5 + $0x38] sm:$0xff]
  %v1197 = vld [vmem:[%s5 + $0x40] sm:$0xff]
  %v1198 = vld [vmem:[%s5 + $0x48] sm:$0xff]
  %v1199 = vld [vmem:[%s5 + $0x50] sm:$0xff]
  %v1200 = vld [vmem:[%s5 + $0x58] sm:$0xff]
  %v1201 = vld [vmem:[%s5 + $0x60] sm:$0xff]
  %v1202 = vld [vmem:[%s5 + $0x68] sm:$0xff]
  %v1203 = vld [vmem:[%s5 + $0x70] sm:$0xff]
  %v1204 = vld [vmem:[%s5 + $0x78] sm:$0xff]
  %v1205 = vld [vmem:[%s5 + $0x80] sm:$0xff]
  %v1206 = vld [vmem:[%s5 + $0x88] sm:$0xff]
  %v1207 = vld [vmem:[%s5 + $0x90] sm:$0xff]
  %v1208 = vld [vmem:[%s5 + $0x98] sm:$0xff]
  %v1209 = vld [vmem:[%s5 + $0xa0] sm:$0xff]
  %v1210 = vld [vmem:[%s5 + $0xa8] sm:$0xff]
  %v1211 = vld [vmem:[%s5 + $0xb0] sm:$0xff]
  %v1212 = vld [vmem:[%s5 + $0xb8] sm:$0xff]
  %v1213 = vld [vmem:[%s5 + $0xc0] sm:$0xff]
  %v1214 = vld [vmem:[%s5 + $0xc8] sm:$0xff]
  %v1215 = vld [vmem:[%s5 + $0xd0] sm:$0xff]
  %v1216 = vld [vmem:[%s5 + $0xd8] sm:$0xff]
  %v1217 = vld [vmem:[%s5 + $0xe0] sm:$0xff]
  %v1218 = vld [vmem:[%s5 + $0xe8] sm:$0xff]
  %v1219 = vld [vmem:[%s5 + $0xf0] sm:$0xff]
  %v1220 = vld [vmem:[%s5 + $0xf8] sm:$0xff]
  %v1221 = vld [vmem:[%s5 + $0x100] sm:$0xff]
  %v1222 = vld [vmem:[%s5 + $0x108] sm:$0xff]
  %v1223 = vld [vmem:[%s5 + $0x110] sm:$0xff]
  %v1224 = vld [vmem:[%s5 + $0x118] sm:$0xff]
  %v1225 = vld [vmem:[%s5 + $0x120] sm:$0xff]
  %v1226 = vld [vmem:[%s5 + $0x128] sm:$0xff]
  %v1227 = vld [vmem:[%s5 + $0x130] sm:$0xff]
  %v1228 = vld [vmem:[%s5 + $0x138] sm:$0xff]
  %v1229 = vld [vmem:[%s5 + $0x140] sm:$0xff]
  %v1230 = vld [vmem:[%s5 + $0x148] sm:$0xff]
  %v1231 = vld [vmem:[%s5 + $0x150] sm:$0xff]
  %v1232 = vld [vmem:[%s5 + $0x158] sm:$0xff]
  %v1233 = vld [vmem:[%s5 + $0x160] sm:$0xff]
  %v1234 = vld [vmem:[%s5 + $0x168] sm:$0xff]
  %v1235 = vld [vmem:[%s5 + $0x170] sm:$0xff]
  %v1236 = vld [vmem:[%s5 + $0x178] sm:$0xff]
  %v1237 = vld [vmem:[%s5 + $0x180] sm:$0xff]
  %v1238 = vld [vmem:[%s5 + $0x188] sm:$0xff]
  %v1239 = vld [vmem:[%s5 + $0x190] sm:$0xff]
  %v1240 = vld [vmem:[%s5 + $0x198] sm:$0xff]
  %v1241 = vld [vmem:[%s5 + $0x1a0] sm:$0xff]
  %v1242 = vld [vmem:[%s5 + $0x1a8] sm:$0xff]
  %v1243 = vld [vmem:[%s5 + $0x1b0] sm:$0xff]
  %v1244 = vld [vmem:[%s5 + $0x1b8] sm:$0xff]
  %v1245 = vld [vmem:[%s5 + $0x1c0] sm:$0xff]
  %v1246 = vld [vmem:[%s5 + $0x1c8] sm:$0xff]
  %v1247 = vld [vmem:[%s5 + $0x1d0] sm:$0xff]
  %v1248 = vld [vmem:[%s5 + $0x1d8] sm:$0xff]
  %v1249 = vld [vmem:[%s5 + $0x1e0] sm:$0xff]
  %v1250 = vld [vmem:[%s5 + $0x1e8] sm:$0xff]
  %v1251 = vld [vmem:[%s5 + $0x1f0] sm:$0xff]
  %v1252 = vld [vmem:[%s5 + $0x1f8] sm:$0xff]
  %v1253 = vld [vmem:[%s5 + $0x200] sm:$0xff]
  %v1254 = vld [vmem:[%s5 + $0x208] sm:$0xff]
  %v1255 = vld [vmem:[%s5 + $0x210] sm:$0xff]
  %v1256 = vld [vmem:[%s5 + $0x218] sm:$0xff]
  %v1257 = vld [vmem:[%s5 + $0x220] sm:$0xff]
  %v1258 = vld [vmem:[%s5 + $0x228] sm:$0xff]
  %v1259 = vld [vmem:[%s5 + $0x230] sm:$0xff]
  %v1260 = vld [vmem:[%s5 + $0x238] sm:$0xff]
  %v1261 = vld [vmem:[%s5 + $0x240] sm:$0xff]
  %v1262 = vld [vmem:[%s5 + $0x248] sm:$0xff]
  %v1263 = vld [vmem:[%s5 + $0x250] sm:$0xff]
  %v1264 = vld [vmem:[%s5 + $0x258] sm:$0xff]
  %v1265 = vld [vmem:[%s5 + $0x260] sm:$0xff]
  %v1266 = vld [vmem:[%s5 + $0x268] sm:$0xff]
  %v1267 = vld [vmem:[%s5 + $0x270] sm:$0xff]
  %v1268 = vld [vmem:[%s5 + $0x278] sm:$0xff]
  %v1269 = vld [vmem:[%s5 + $0x280] sm:$0xff]
  %v1270 = vld [vmem:[%s5 + $0x288] sm:$0xff]
  %v1271 = vld [vmem:[%s5 + $0x290] sm:$0xff]
  %v1272 = vld [vmem:[%s5 + $0x298] sm:$0xff]
  %v1273 = vld [vmem:[%s5 + $0x2a0] sm:$0xff]
  %v1274 = vld [vmem:[%s5 + $0x2a8] sm:$0xff]
  %v1275 = vld [vmem:[%s5 + $0x2b0] sm:$0xff]
  %v1276 = vld [vmem:[%s5 + $0x2b8] sm:$0xff]
  %v1277 = vld [vmem:[%s5 + $0x2c0] sm:$0xff]
  %v1278 = vld [vmem:[%s5 + $0x2c8] sm:$0xff]
  %v1279 = vld [vmem:[%s5 + $0x2d0] sm:$0xff]
  %v1280 = vld [vmem:[%s5 + $0x2d8] sm:$0xff]
  %v1281 = vld [vmem:[%s5 + $0x2e0] sm:$0xff]
  %v1282 = vld [vmem:[%s5 + $0x2e8] sm:$0xff]
  %v1283 = vld [vmem:[%s5 + $0x2f0] sm:$0xff]
  %v1284 = vld [vmem:[%s5 + $0x2f8] sm:$0xff]
  %v1285 = vld [vmem:[%s5 + $0x300] sm:$0xff]
  %v1286 = vld [vmem:[%s5 + $0x308] sm:$0xff]
  %v1287 = vld [vmem:[%s5 + $0x310] sm:$0xff]
  %v1288 = vld [vmem:[%s5 + $0x318] sm:$0xff]
  %v1289 = vld [vmem:[%s5 + $0x320] sm:$0xff]
  %v1290 = vld [vmem:[%s5 + $0x328] sm:$0xff]
  %v1291 = vld [vmem:[%s5 + $0x330] sm:$0xff]
  %v1292 = vld [vmem:[%s5 + $0x338] sm:$0xff]
  %v1293 = vld [vmem:[%s5 + $0x340] sm:$0xff]
  %v1294 = vld [vmem:[%s5 + $0x348] sm:$0xff]
  %v1295 = vld [vmem:[%s5 + $0x350] sm:$0xff]
  %v1296 = vld [vmem:[%s5 + $0x358] sm:$0xff]
  %v1297 = vld [vmem:[%s5 + $0x360] sm:$0xff]
  %v1298 = vld [vmem:[%s5 + $0x368] sm:$0xff]
  %v1299 = vld [vmem:[%s5 + $0x370] sm:$0xff]
  %v1300 = vld [vmem:[%s5 + $0x378] sm:$0xff]
  %v1301 = vld [vmem:[%s5 + $0x380] sm:$0xff]
  %v1302 = vld [vmem:[%s5 + $0x388] sm:$0xff]
  %v1303 = vld [vmem:[%s5 + $0x390] sm:$0xff]
  %v1304 = vld [vmem:[%s5 + $0x398] sm:$0xff]
  %v1305 = vld [vmem:[%s5 + $0x3a0] sm:$0xff]
  %v1306 = vld [vmem:[%s5 + $0x3a8] sm:$0xff]
  %v1307 = vld [vmem:[%s5 + $0x3b0] sm:$0xff]
  %v1308 = vld [vmem:[%s5 + $0x3b8] sm:$0xff]
  %v1309 = vld [vmem:[%s5 + $0x3c0] sm:$0xff]
  %v1310 = vld [vmem:[%s5 + $0x3c8] sm:$0xff]
  %v1311 = vld [vmem:[%s5 + $0x3d0] sm:$0xff]
  %v1312 = vld [vmem:[%s5 + $0x3d8] sm:$0xff]
  %v1313 = vld [vmem:[%s5 + $0x3e0] sm:$0xff]
  %v1314 = vld [vmem:[%s5 + $0x3e8] sm:$0xff]
  %v1315 = vld [vmem:[%s5 + $0x3f0] sm:$0xff]
  %v1316 = vld [vmem:[%s5 + $0x3f8] sm:$0xff]
  %1317 = vmatprep.subr.mxu0 %v1190
  %1318 = vmatpush1.msra.mxu0 %v1189
  %1319 = vmatprep.subr.mxu0 %v1194
  %1320 = vmatpush1.msra.mxu0 %v1193
  %1321 = vmatprep.subr.mxu0 %v1198
  %1322 = vmatpush1.msra.mxu0 %v1197
  %1323 = vmatprep.subr.mxu0 %v1202
  %1324 = vmatpush1.msra.mxu0 %v1201
  %1325 = vmatprep.subr.mxu0 %v1206
  %1326 = vmatpush1.msra.mxu0 %v1205
  %1327 = vmatprep.subr.mxu0 %v1210
  %1328 = vmatpush1.msra.mxu0 %v1209
  %1329 = vmatprep.subr.mxu0 %v1214
  %1330 = vmatpush1.msra.mxu0 %v1213
  %1331 = vmatprep.subr.mxu0 %v1218
  %1332 = vmatpush1.msra.mxu0 %v1217
  %1333 = vmatprep.subr.mxu0 %v1222
  %1334 = vmatpush1.msra.mxu0 %v1221
  %1335 = vmatprep.subr.mxu0 %v1226
  %1336 = vmatpush1.msra.mxu0 %v1225
  %1337 = vmatprep.subr.mxu0 %v1230
  %1338 = vmatpush1.msra.mxu0 %v1229
  %1339 = vmatprep.subr.mxu0 %v1234
  %1340 = vmatpush1.msra.mxu0 %v1233
  %1341 = vmatprep.subr.mxu0 %v1238
  %1342 = vmatpush1.msra.mxu0 %v1237
  %1343 = vmatprep.subr.mxu0 %v1242
  %1344 = vmatpush1.msra.mxu0 %v1241
  %1345 = vmatprep.subr.mxu0 %v1246
  %1346 = vmatpush1.msra.mxu0 %v1245
  %1347 = vmatprep.subr.mxu0 %v1250
  %1348 = vmatpush1.msra.mxu0 %v1249
  %1349 = vmatprep.subr.mxu0 %v1254
  %1350 = vmatpush1.msra.mxu0 %v1253
  %1351 = vmatprep.subr.mxu0 %v1258
  %1352 = vmatpush1.msra.mxu0 %v1257
  %1353 = vmatprep.subr.mxu0 %v1262
  %1354 = vmatpush1.msra.mxu0 %v1261
  %1355 = vmatprep.subr.mxu0 %v1266
  %1356 = vmatpush1.msra.mxu0 %v1265
  %1357 = vmatprep.subr.mxu0 %v1270
  %1358 = vmatpush1.msra.mxu0 %v1269
  %1359 = vmatprep.subr.mxu0 %v1274
  %1360 = vmatpush1.msra.mxu0 %v1273
  %1361 = vmatprep.subr.mxu0 %v1278
  %1362 = vmatpush1.msra.mxu0 %v1277
  %1363 = vmatprep.subr.mxu0 %v1282
  %1364 = vmatpush1.msra.mxu0 %v1281
  %1365 = vmatprep.subr.mxu0 %v1286
  %1366 = vmatpush1.msra.mxu0 %v1285
  %1367 = vmatprep.subr.mxu0 %v1290
  %1368 = vmatpush1.msra.mxu0 %v1289
  %1369 = vmatprep.subr.mxu0 %v1294
  %1370 = vmatpush1.msra.mxu0 %v1293
  %1371 = vmatprep.subr.mxu0 %v1298
  %1372 = vmatpush1.msra.mxu0 %v1297
  %1373 = vmatprep.subr.mxu0 %v1302
  %1374 = vmatpush1.msra.mxu0 %v1301
  %1375 = vmatprep.subr.mxu0 %v1306
  %1376 = vmatpush1.msra.mxu0 %v1305
  %1377 = vmatprep.subr.mxu0 %v1310
  %1378 = vmatpush1.msra.mxu0 %v1309
  %1379 = vmatprep.subr.mxu0 %v1314
  %1380 = vmatpush1.msra.mxu0 %v1313
  %1381 = vmatprep.mubr.f32.mxu0 %v765
  %1382 = vmatmul.mubr.f32.gmra.mrb[0].mxu0 %v1188
  %v1383 = vpop.f32.mrb[0].mxu0
  %v1384 = vadd.f32 %v93, %v1383
  %v1385 = vpop.f32.mrb[0].mxu0
  %v1386 = vadd.f32 %v97, %v1385
  %1387 = vdwg.mxu0
  %1388 = vmatprep.subr.mxu0 %v1192
  %1389 = vmatpush1.msra.mxu0 %v1191
  %1390 = vmatprep.subr.mxu0 %v1196
  %1391 = vmatpush1.msra.mxu0 %v1195
  %1392 = vmatprep.subr.mxu0 %v1200
  %1393 = vmatpush1.msra.mxu0 %v1199
  %1394 = vmatprep.subr.mxu0 %v1204
  %1395 = vmatpush1.msra.mxu0 %v1203
  %1396 = vmatprep.subr.mxu0 %v1208
  %1397 = vmatpush1.msra.mxu0 %v1207
  %1398 = vmatprep.subr.mxu0 %v1212
  %1399 = vmatpush1.msra.mxu0 %v1211
  %1400 = vmatprep.subr.mxu0 %v1216
  %1401 = vmatpush1.msra.mxu0 %v1215
  %1402 = vmatprep.subr.mxu0 %v1220
  %1403 = vmatpush1.msra.mxu0 %v1219
  %1404 = vmatprep.subr.mxu0 %v1224
  %1405 = vmatpush1.msra.mxu0 %v1223
  %1406 = vmatprep.subr.mxu0 %v1228
  %1407 = vmatpush1.msra.mxu0 %v1227
  %1408 = vmatprep.subr.mxu0 %v1232
  %1409 = vmatpush1.msra.mxu0 %v1231
  %1410 = vmatprep.subr.mxu0 %v1236
  %1411 = vmatpush1.msra.mxu0 %v1235
  %1412 = vmatprep.subr.mxu0 %v1240
  %1413 = vmatpush1.msra.mxu0 %v1239
  %1414 = vmatprep.subr.mxu0 %v1244
  %1415 = vmatpush1.msra.mxu0 %v1243
  %1416 = vmatprep.subr.mxu0 %v1248
  %1417 = vmatpush1.msra.mxu0 %v1247
  %1418 = vmatprep.subr.mxu0 %v1252
  %1419 = vmatpush1.msra.mxu0 %v1251
  %1420 = vmatprep.subr.mxu0 %v1256
  %1421 = vmatpush1.msra.mxu0 %v1255
  %1422 = vmatprep.subr.mxu0 %v1260
  %1423 = vmatpush1.msra.mxu0 %v1259
  %1424 = vmatprep.subr.mxu0 %v1264
  %1425 = vmatpush1.msra.mxu0 %v1263
  %1426 = vmatprep.subr.mxu0 %v1268
  %1427 = vmatpush1.msra.mxu0 %v1267
  %1428 = vmatprep.subr.mxu0 %v1272
  %1429 = vmatpush1.msra.mxu0 %v1271
  %1430 = vmatprep.subr.mxu0 %v1276
  %1431 = vmatpush1.msra.mxu0 %v1275
  %1432 = vmatprep.subr.mxu0 %v1280
  %1433 = vmatpush1.msra.mxu0 %v1279
  %1434 = vmatprep.subr.mxu0 %v1284
  %1435 = vmatpush1.msra.mxu0 %v1283
  %1436 = vmatprep.subr.mxu0 %v1288
  %1437 = vmatpush1.msra.mxu0 %v1287
  %1438 = vmatprep.subr.mxu0 %v1292
  %1439 = vmatpush1.msra.mxu0 %v1291
  %1440 = vmatprep.subr.mxu0 %v1296
  %1441 = vmatpush1.msra.mxu0 %v1295
  %1442 = vmatprep.subr.mxu0 %v1300
  %1443 = vmatpush1.msra.mxu0 %v1299
  %1444 = vmatprep.subr.mxu0 %v1304
  %1445 = vmatpush1.msra.mxu0 %v1303
  %1446 = vmatprep.subr.mxu0 %v1308
  %1447 = vmatpush1.msra.mxu0 %v1307
  %1448 = vmatprep.subr.mxu0 %v1312
  %1449 = vmatpush1.msra.mxu0 %v1311
  %1450 = vmatprep.subr.mxu0 %v1316
  %1451 = vmatpush1.msra.mxu0 %v1315
  %1452 = vmatprep.mubr.f32.mxu0 %v765
  %1453 = vmatmul.mubr.f32.gmra.mrb[0].mxu0 %v1188
  %v1454 = vpop.f32.mrb[0].mxu0
  %v1455 = vadd.f32 %v101, %v1454
  %v1456 = vpop.f32.mrb[0].mxu0
  %v1457 = vadd.f32 %v105, %v1456
  %1458 = vdwg.mxu0
  %v1459 = vxor.u32 %v1384, 2147483648
  %v1460 = vmul.f32 %v1459, 1.442695
  %v1461 = vpow.pop %v1460
  %v1462 = vadd.f32 %v1461, 1.0
  %v1463 = vrcp.pop %v1462
  %v1464 = vmul.f32 1.0, %v1463
  %v1465 = vxor.u32 %v1386, 2147483648
  %v1466 = vmul.f32 %v1465, 1.442695
  %v1467 = vpow.pop %v1466
  %v1468 = vadd.f32 %v1467, 1.0
  %v1469 = vrcp.pop %v1468
  %v1470 = vmul.f32 1.0, %v1469
  %v1471 = vtanh.pop %v1455
  %v1472 = vxor.u32 %v1457, 2147483648
  %v1473 = vmul.f32 %v1472, 1.442695
  %v1474 = vpow.pop %v1473
  %v1475 = vadd.f32 %v1474, 1.0
  %v1476 = vrcp.pop %v1475
  %v1477 = vmul.f32 1.0, %v1476
  %v1478 = vmul.f32 %v1470, %v763
  %v1479 = vmul.f32 %v1464, %v1471
  %v1480 = vadd.f32 %v1478, %v1479
  %v1481 = vtanh.pop %v1480
  %v1482 = vmul.f32 %v1477, %v1481
  %1483 = vadd.xlane.f32.xlu0 %v1482
  %v1484 = vpop.xlane.xlu0 %1483
  %v1485 = vmul.f32 %v1484, 0.03125
  %v1486 = vmul.f32 %v1482, %v1482
  %1487 = vadd.xlane.f32.xlu0 %v1486
  %v1488 = vpop.xlane.xlu0 %1487
  %v1489 = vmul.f32 %v1488, 0.03125
  %v1490 = vmul.f32 %v1485, %v1485
  %v1491 = vsub.f32 %v1489, %v1490
  %v1492 = vmax.f32 %v1491, 0.0
  %v1493 = vsub.f32 %v1482, %v1485
  %v1494 = vadd.f32 %v1492, 1e-05
  %v1495 = vrsqrt.pop %v1494
  %v1496 = vmul.f32 %v1493, %v1495
  %v1497 = vmul.f32 %v1496, %v115
  %v1498 = vadd.f32 %v1497, %v122
  %v1500 = vcombine.high %v1498, %v1498
  %v1502 = vunpack.c.l.s4 1966171168
  %v1503 = vunpack.c.0.s8 %v1502
  %v1504 = vlaneseq
  %v1505 = vshrl.u32 %v1504, 7
  %v1506 = vsub.s32 %v1503, %v1505
  %v1507 = vrot.slane %v1498, %v1506
  %v1509 = vunpack.c.l.s4 1966171168
  %v1510 = vunpack.c.0.s8 %v1509
  %v1511 = vlaneseq
  %v1512 = vshrl.u32 %v1511, 7
  %v1513 = vsub.s32 %v1510, %v1512
  %v1514 = vrot.slane %v1500, %v1513
  %v1515 = vcombine.high %v1507, %v1507
  %v1516 = vcombine.high %v1514, %v1514
  %v1518 = vunpack.c.l.s4 1966171168
  %v1519 = vunpack.c.0.s8 %v1518
  %v1520 = vlaneseq
  %v1521 = vshrl.u32 %v1520, 7
  %v1522 = vsub.s32 %v1519, %v1521
  %v1523 = vrot.slane %v1507, %v1522
  %v1525 = vunpack.c.l.s4 1966171168
  %v1526 = vunpack.c.0.s8 %v1525
  %v1527 = vlaneseq
  %v1528 = vshrl.u32 %v1527, 7
  %v1529 = vsub.s32 %v1526, %v1528
  %v1530 = vrot.slane %v1514, %v1529
  %v1532 = vunpack.c.l.s4 1966171168
  %v1533 = vunpack.c.0.s8 %v1532
  %v1534 = vlaneseq
  %v1535 = vshrl.u32 %v1534, 7
  %v1536 = vsub.s32 %v1533, %v1535
  %v1537 = vrot.slane %v1515, %v1536
  %v1539 = vunpack.c.l.s4 1966171168
  %v1540 = vunpack.c.0.s8 %v1539
  %v1541 = vlaneseq
  %v1542 = vshrl.u32 %v1541, 7
  %v1543 = vsub.s32 %v1540, %v1542
  %v1544 = vrot.slane %v1516, %v1543
  %v1545 = vcombine.high %v1523, %v1523
  %v1546 = vcombine.high %v1530, %v1530
  %v1547 = vcombine.high %v1537, %v1537
  %v1548 = vcombine.high %v1544, %v1544
  %1557 = vst [vmem:[#allocation4 + $0x1] sm:$0x1] %v1523
  %1558 = vst [vmem:[#allocation4 + $0x9] sm:$0x1] %v1537
  %1559 = vst [vmem:[#allocation4 + $0x11] sm:$0x1] %v1545
  %1560 = vst [vmem:[#allocation4 + $0x19] sm:$0x1] %v1547
  %1561 = vst [vmem:[#allocation4 + $0x21] sm:$0x1] %v1530
  %1562 = vst [vmem:[#allocation4 + $0x29] sm:$0x1] %v1544
  %1563 = vst [vmem:[#allocation4 + $0x31] sm:$0x1] %v1546
  %1564 = vst [vmem:[#allocation4 + $0x39] sm:$0x1] %v1548
  %v1565 = vld [vmem:[%s0 + $0x2] sm:$0x1]
  %v1566 = vld [vmem:[%s0 + $0xa] sm:$0x1]
  %v1567 = vld [vmem:[%s0 + $0x12] sm:$0x1]
  %v1568 = vld [vmem:[%s0 + $0x1a] sm:$0x1]
  %v1569 = vld [vmem:[%s0 + $0x22] sm:$0x1]
  %v1570 = vld [vmem:[%s0 + $0x2a] sm:$0x1]
  %v1571 = vld [vmem:[%s0 + $0x32] sm:$0x1]
  %v1572 = vld [vmem:[%s0 + $0x3a] sm:$0x1]
  %v1581 = vrot.slane %v1566, 7
  %v1582 = vsel %vm141, %v1581, %v1565
  %v1583 = vrot.slane %v1567, 6
  %v1584 = vsel %vm144, %v1583, %v1582
  %v1585 = vrot.slane %v1568, 5
  %v1586 = vsel %vm147, %v1585, %v1584
  %v1587 = vrot.slane %v1569, 4
  %v1588 = vsel %vm150, %v1587, %v1586
  %v1589 = vrot.slane %v1570, 3
  %v1590 = vsel %vm153, %v1589, %v1588
  %v1591 = vrot.slane %v1571, 2
  %v1592 = vsel %vm156, %v1591, %v1590
  %v1593 = vrot.slane %v1572, 1
  %v1594 = vsel %vm159, %v1593, %v1592
  %v1596 = vld [vmem:[%s1] sm:$0xff]
  %v1597 = vld [vmem:[%s1 + $0x8] sm:$0xff]
  %v1598 = vld [vmem:[%s1 + $0x10] sm:$0xff]
  %v1599 = vld [vmem:[%s1 + $0x18] sm:$0xff]
  %v1600 = vld [vmem:[%s1 + $0x20] sm:$0xff]
  %v1601 = vld [vmem:[%s1 + $0x28] sm:$0xff]
  %v1602 = vld [vmem:[%s1 + $0x30] sm:$0xff]
  %v1603 = vld [vmem:[%s1 + $0x38] sm:$0xff]
  %v1604 = vld [vmem:[%s1 + $0x40] sm:$0xff]
  %v1605 = vld [vmem:[%s1 + $0x48] sm:$0xff]
  %v1606 = vld [vmem:[%s1 + $0x50] sm:$0xff]
  %v1607 = vld [vmem:[%s1 + $0x58] sm:$0xff]
  %v1608 = vld [vmem:[%s1 + $0x60] sm:$0xff]
  %v1609 = vld [vmem:[%s1 + $0x68] sm:$0xff]
  %v1610 = vld [vmem:[%s1 + $0x70] sm:$0xff]
  %v1611 = vld [vmem:[%s1 + $0x78] sm:$0xff]
  %v1612 = vld [vmem:[%s1 + $0x80] sm:$0xff]
  %v1613 = vld [vmem:[%s1 + $0x88] sm:$0xff]
  %v1614 = vld [vmem:[%s1 + $0x90] sm:$0xff]
  %v1615 = vld [vmem:[%s1 + $0x98] sm:$0xff]
  %v1616 = vld [vmem:[%s1 + $0xa0] sm:$0xff]
  %v1617 = vld [vmem:[%s1 + $0xa8] sm:$0xff]
  %v1618 = vld [vmem:[%s1 + $0xb0] sm:$0xff]
  %v1619 = vld [vmem:[%s1 + $0xb8] sm:$0xff]
  %v1620 = vld [vmem:[%s1 + $0xc0] sm:$0xff]
  %v1621 = vld [vmem:[%s1 + $0xc8] sm:$0xff]
  %v1622 = vld [vmem:[%s1 + $0xd0] sm:$0xff]
  %v1623 = vld [vmem:[%s1 + $0xd8] sm:$0xff]
  %v1624 = vld [vmem:[%s1 + $0xe0] sm:$0xff]
  %v1625 = vld [vmem:[%s1 + $0xe8] sm:$0xff]
  %v1626 = vld [vmem:[%s1 + $0xf0] sm:$0xff]
  %v1627 = vld [vmem:[%s1 + $0xf8] sm:$0xff]
  %v1628 = vld [vmem:[%s1 + $0x100] sm:$0xff]
  %v1629 = vld [vmem:[%s1 + $0x108] sm:$0xff]
  %v1630 = vld [vmem:[%s1 + $0x110] sm:$0xff]
  %v1631 = vld [vmem:[%s1 + $0x118] sm:$0xff]
  %v1632 = vld [vmem:[%s1 + $0x120] sm:$0xff]
  %v1633 = vld [vmem:[%s1 + $0x128] sm:$0xff]
  %v1634 = vld [vmem:[%s1 + $0x130] sm:$0xff]
  %v1635 = vld [vmem:[%s1 + $0x138] sm:$0xff]
  %v1636 = vld [vmem:[%s1 + $0x140] sm:$0xff]
  %v1637 = vld [vmem:[%s1 + $0x148] sm:$0xff]
  %v1638 = vld [vmem:[%s1 + $0x150] sm:$0xff]
  %v1639 = vld [vmem:[%s1 + $0x158] sm:$0xff]
  %v1640 = vld [vmem:[%s1 + $0x160] sm:$0xff]
  %v1641 = vld [vmem:[%s1 + $0x168] sm:$0xff]
  %v1642 = vld [vmem:[%s1 + $0x170] sm:$0xff]
  %v1643 = vld [vmem:[%s1 + $0x178] sm:$0xff]
  %v1644 = vld [vmem:[%s1 + $0x180] sm:$0xff]
  %v1645 = vld [vmem:[%s1 + $0x188] sm:$0xff]
  %v1646 = vld [vmem:[%s1 + $0x190] sm:$0xff]
  %v1647 = vld [vmem:[%s1 + $0x198] sm:$0xff]
  %v1648 = vld [vmem:[%s1 + $0x1a0] sm:$0xff]
  %v1649 = vld [vmem:[%s1 + $0x1a8] sm:$0xff]
  %v1650 = vld [vmem:[%s1 + $0x1b0] sm:$0xff]
  %v1651 = vld [vmem:[%s1 + $0x1b8] sm:$0xff]
  %v1652 = vld [vmem:[%s1 + $0x1c0] sm:$0xff]
  %v1653 = vld [vmem:[%s1 + $0x1c8] sm:$0xff]
  %v1654 = vld [vmem:[%s1 + $0x1d0] sm:$0xff]
  %v1655 = vld [vmem:[%s1 + $0x1d8] sm:$0xff]
  %v1656 = vld [vmem:[%s1 + $0x1e0] sm:$0xff]
  %v1657 = vld [vmem:[%s1 + $0x1e8] sm:$0xff]
  %v1658 = vld [vmem:[%s1 + $0x1f0] sm:$0xff]
  %v1659 = vld [vmem:[%s1 + $0x1f8] sm:$0xff]
  %v1660 = vld [vmem:[%s1 + $0x200] sm:$0xff]
  %v1661 = vld [vmem:[%s1 + $0x208] sm:$0xff]
  %v1662 = vld [vmem:[%s1 + $0x210] sm:$0xff]
  %v1663 = vld [vmem:[%s1 + $0x218] sm:$0xff]
  %v1664 = vld [vmem:[%s1 + $0x220] sm:$0xff]
  %v1665 = vld [vmem:[%s1 + $0x228] sm:$0xff]
  %v1666 = vld [vmem:[%s1 + $0x230] sm:$0xff]
  %v1667 = vld [vmem:[%s1 + $0x238] sm:$0xff]
  %v1668 = vld [vmem:[%s1 + $0x240] sm:$0xff]
  %v1669 = vld [vmem:[%s1 + $0x248] sm:$0xff]
  %v1670 = vld [vmem:[%s1 + $0x250] sm:$0xff]
  %v1671 = vld [vmem:[%s1 + $0x258] sm:$0xff]
  %v1672 = vld [vmem:[%s1 + $0x260] sm:$0xff]
  %v1673 = vld [vmem:[%s1 + $0x268] sm:$0xff]
  %v1674 = vld [vmem:[%s1 + $0x270] sm:$0xff]
  %v1675 = vld [vmem:[%s1 + $0x278] sm:$0xff]
  %v1676 = vld [vmem:[%s1 + $0x280] sm:$0xff]
  %v1677 = vld [vmem:[%s1 + $0x288] sm:$0xff]
  %v1678 = vld [vmem:[%s1 + $0x290] sm:$0xff]
  %v1679 = vld [vmem:[%s1 + $0x298] sm:$0xff]
  %v1680 = vld [vmem:[%s1 + $0x2a0] sm:$0xff]
  %v1681 = vld [vmem:[%s1 + $0x2a8] sm:$0xff]
  %v1682 = vld [vmem:[%s1 + $0x2b0] sm:$0xff]
  %v1683 = vld [vmem:[%s1 + $0x2b8] sm:$0xff]
  %v1684 = vld [vmem:[%s1 + $0x2c0] sm:$0xff]
  %v1685 = vld [vmem:[%s1 + $0x2c8] sm:$0xff]
  %v1686 = vld [vmem:[%s1 + $0x2d0] sm:$0xff]
  %v1687 = vld [vmem:[%s1 + $0x2d8] sm:$0xff]
  %v1688 = vld [vmem:[%s1 + $0x2e0] sm:$0xff]
  %v1689 = vld [vmem:[%s1 + $0x2e8] sm:$0xff]
  %v1690 = vld [vmem:[%s1 + $0x2f0] sm:$0xff]
  %v1691 = vld [vmem:[%s1 + $0x2f8] sm:$0xff]
  %v1692 = vld [vmem:[%s1 + $0x300] sm:$0xff]
  %v1693 = vld [vmem:[%s1 + $0x308] sm:$0xff]
  %v1694 = vld [vmem:[%s1 + $0x310] sm:$0xff]
  %v1695 = vld [vmem:[%s1 + $0x318] sm:$0xff]
  %v1696 = vld [vmem:[%s1 + $0x320] sm:$0xff]
  %v1697 = vld [vmem:[%s1 + $0x328] sm:$0xff]
  %v1698 = vld [vmem:[%s1 + $0x330] sm:$0xff]
  %v1699 = vld [vmem:[%s1 + $0x338] sm:$0xff]
  %v1700 = vld [vmem:[%s1 + $0x340] sm:$0xff]
  %v1701 = vld [vmem:[%s1 + $0x348] sm:$0xff]
  %v1702 = vld [vmem:[%s1 + $0x350] sm:$0xff]
  %v1703 = vld [vmem:[%s1 + $0x358] sm:$0xff]
  %v1704 = vld [vmem:[%s1 + $0x360] sm:$0xff]
  %v1705 = vld [vmem:[%s1 + $0x368] sm:$0xff]
  %v1706 = vld [vmem:[%s1 + $0x370] sm:$0xff]
  %v1707 = vld [vmem:[%s1 + $0x378] sm:$0xff]
  %v1708 = vld [vmem:[%s1 + $0x380] sm:$0xff]
  %v1709 = vld [vmem:[%s1 + $0x388] sm:$0xff]
  %v1710 = vld [vmem:[%s1 + $0x390] sm:$0xff]
  %v1711 = vld [vmem:[%s1 + $0x398] sm:$0xff]
  %v1712 = vld [vmem:[%s1 + $0x3a0] sm:$0xff]
  %v1713 = vld [vmem:[%s1 + $0x3a8] sm:$0xff]
  %v1714 = vld [vmem:[%s1 + $0x3b0] sm:$0xff]
  %v1715 = vld [vmem:[%s1 + $0x3b8] sm:$0xff]
  %v1716 = vld [vmem:[%s1 + $0x3c0] sm:$0xff]
  %v1717 = vld [vmem:[%s1 + $0x3c8] sm:$0xff]
  %v1718 = vld [vmem:[%s1 + $0x3d0] sm:$0xff]
  %v1719 = vld [vmem:[%s1 + $0x3d8] sm:$0xff]
  %v1720 = vld [vmem:[%s1 + $0x3e0] sm:$0xff]
  %v1721 = vld [vmem:[%s1 + $0x3e8] sm:$0xff]
  %v1722 = vld [vmem:[%s1 + $0x3f0] sm:$0xff]
  %v1723 = vld [vmem:[%s1 + $0x3f8] sm:$0xff]
  %1724 = vmatprep.subr.mxu0 %v1597
  %1725 = vmatpush1.msra.mxu0 %v1596
  %1726 = vmatprep.subr.mxu0 %v1601
  %1727 = vmatpush1.msra.mxu0 %v1600
  %1728 = vmatprep.subr.mxu0 %v1605
  %1729 = vmatpush1.msra.mxu0 %v1604
  %1730 = vmatprep.subr.mxu0 %v1609
  %1731 = vmatpush1.msra.mxu0 %v1608
  %1732 = vmatprep.subr.mxu0 %v1613
  %1733 = vmatpush1.msra.mxu0 %v1612
  %1734 = vmatprep.subr.mxu0 %v1617
  %1735 = vmatpush1.msra.mxu0 %v1616
  %1736 = vmatprep.subr.mxu0 %v1621
  %1737 = vmatpush1.msra.mxu0 %v1620
  %1738 = vmatprep.subr.mxu0 %v1625
  %1739 = vmatpush1.msra.mxu0 %v1624
  %1740 = vmatprep.subr.mxu0 %v1629
  %1741 = vmatpush1.msra.mxu0 %v1628
  %1742 = vmatprep.subr.mxu0 %v1633
  %1743 = vmatpush1.msra.mxu0 %v1632
  %1744 = vmatprep.subr.mxu0 %v1637
  %1745 = vmatpush1.msra.mxu0 %v1636
  %1746 = vmatprep.subr.mxu0 %v1641
  %1747 = vmatpush1.msra.mxu0 %v1640
  %1748 = vmatprep.subr.mxu0 %v1645
  %1749 = vmatpush1.msra.mxu0 %v1644
  %1750 = vmatprep.subr.mxu0 %v1649
  %1751 = vmatpush1.msra.mxu0 %v1648
  %1752 = vmatprep.subr.mxu0 %v1653
  %1753 = vmatpush1.msra.mxu0 %v1652
  %1754 = vmatprep.subr.mxu0 %v1657
  %1755 = vmatpush1.msra.mxu0 %v1656
  %1756 = vmatprep.subr.mxu0 %v1661
  %1757 = vmatpush1.msra.mxu0 %v1660
  %1758 = vmatprep.subr.mxu0 %v1665
  %1759 = vmatpush1.msra.mxu0 %v1664
  %1760 = vmatprep.subr.mxu0 %v1669
  %1761 = vmatpush1.msra.mxu0 %v1668
  %1762 = vmatprep.subr.mxu0 %v1673
  %1763 = vmatpush1.msra.mxu0 %v1672
  %1764 = vmatprep.subr.mxu0 %v1677
  %1765 = vmatpush1.msra.mxu0 %v1676
  %1766 = vmatprep.subr.mxu0 %v1681
  %1767 = vmatpush1.msra.mxu0 %v1680
  %1768 = vmatprep.subr.mxu0 %v1685
  %1769 = vmatpush1.msra.mxu0 %v1684
  %1770 = vmatprep.subr.mxu0 %v1689
  %1771 = vmatpush1.msra.mxu0 %v1688
  %1772 = vmatprep.subr.mxu0 %v1693
  %1773 = vmatpush1.msra.mxu0 %v1692
  %1774 = vmatprep.subr.mxu0 %v1697
  %1775 = vmatpush1.msra.mxu0 %v1696
  %1776 = vmatprep.subr.mxu0 %v1701
  %1777 = vmatpush1.msra.mxu0 %v1700
  %1778 = vmatprep.subr.mxu0 %v1705
  %1779 = vmatpush1.msra.mxu0 %v1704
  %1780 = vmatprep.subr.mxu0 %v1709
  %1781 = vmatpush1.msra.mxu0 %v1708
  %1782 = vmatprep.subr.mxu0 %v1713
  %1783 = vmatpush1.msra.mxu0 %v1712
  %1784 = vmatprep.subr.mxu0 %v1717
  %1785 = vmatpush1.msra.mxu0 %v1716
  %1786 = vmatprep.subr.mxu0 %v1721
  %1787 = vmatpush1.msra.mxu0 %v1720
  %1788 = vmatprep.mubr.f32.mxu0 %v1172
  %1789 = vmatmul.mubr.f32.gmra.mrb[0].mxu0 %v1594
  %v1790 = vpop.f32.mrb[0].mxu0
  %v1791 = vadd.f32 %v57, %v1790
  %v1792 = vpop.f32.mrb[0].mxu0
  %v1793 = vadd.f32 %v61, %v1792
  %1794 = vdwg.mxu0
  %1795 = vmatprep.subr.mxu0 %v1599
  %1796 = vmatpush1.msra.mxu0 %v1598
  %1797 = vmatprep.subr.mxu0 %v1603
  %1798 = vmatpush1.msra.mxu0 %v1602
  %1799 = vmatprep.subr.mxu0 %v1607
  %1800 = vmatpush1.msra.mxu0 %v1606
  %1801 = vmatprep.subr.mxu0 %v1611
  %1802 = vmatpush1.msra.mxu0 %v1610
  %1803 = vmatprep.subr.mxu0 %v1615
  %1804 = vmatpush1.msra.mxu0 %v1614
  %1805 = vmatprep.subr.mxu0 %v1619
  %1806 = vmatpush1.msra.mxu0 %v1618
  %1807 = vmatprep.subr.mxu0 %v1623
  %1808 = vmatpush1.msra.mxu0 %v1622
  %1809 = vmatprep.subr.mxu0 %v1627
  %1810 = vmatpush1.msra.mxu0 %v1626
  %1811 = vmatprep.subr.mxu0 %v1631
  %1812 = vmatpush1.msra.mxu0 %v1630
  %1813 = vmatprep.subr.mxu0 %v1635
  %1814 = vmatpush1.msra.mxu0 %v1634
  %1815 = vmatprep.subr.mxu0 %v1639
  %1816 = vmatpush1.msra.mxu0 %v1638
  %1817 = vmatprep.subr.mxu0 %v1643
  %1818 = vmatpush1.msra.mxu0 %v1642
  %1819 = vmatprep.subr.mxu0 %v1647
  %1820 = vmatpush1.msra.mxu0 %v1646
  %1821 = vmatprep.subr.mxu0 %v1651
  %1822 = vmatpush1.msra.mxu0 %v1650
  %1823 = vmatprep.subr.mxu0 %v1655
  %1824 = vmatpush1.msra.mxu0 %v1654
  %1825 = vmatprep.subr.mxu0 %v1659
  %1826 = vmatpush1.msra.mxu0 %v1658
  %1827 = vmatprep.subr.mxu0 %v1663
  %1828 = vmatpush1.msra.mxu0 %v1662
  %1829 = vmatprep.subr.mxu0 %v1667
  %1830 = vmatpush1.msra.mxu0 %v1666
  %1831 = vmatprep.subr.mxu0 %v1671
  %1832 = vmatpush1.msra.mxu0 %v1670
  %1833 = vmatprep.subr.mxu0 %v1675
  %1834 = vmatpush1.msra.mxu0 %v1674
  %1835 = vmatprep.subr.mxu0 %v1679
  %1836 = vmatpush1.msra.mxu0 %v1678
  %1837 = vmatprep.subr.mxu0 %v1683
  %1838 = vmatpush1.msra.mxu0 %v1682
  %1839 = vmatprep.subr.mxu0 %v1687
  %1840 = vmatpush1.msra.mxu0 %v1686
  %1841 = vmatprep.subr.mxu0 %v1691
  %1842 = vmatpush1.msra.mxu0 %v1690
  %1843 = vmatprep.subr.mxu0 %v1695
  %1844 = vmatpush1.msra.mxu0 %v1694
  %1845 = vmatprep.subr.mxu0 %v1699
  %1846 = vmatpush1.msra.mxu0 %v1698
  %1847 = vmatprep.subr.mxu0 %v1703
  %1848 = vmatpush1.msra.mxu0 %v1702
  %1849 = vmatprep.subr.mxu0 %v1707
  %1850 = vmatpush1.msra.mxu0 %v1706
  %1851 = vmatprep.subr.mxu0 %v1711
  %1852 = vmatpush1.msra.mxu0 %v1710
  %1853 = vmatprep.subr.mxu0 %v1715
  %1854 = vmatpush1.msra.mxu0 %v1714
  %1855 = vmatprep.subr.mxu0 %v1719
  %1856 = vmatpush1.msra.mxu0 %v1718
  %1857 = vmatprep.subr.mxu0 %v1723
  %1858 = vmatpush1.msra.mxu0 %v1722
  %1859 = vmatprep.mubr.f32.mxu0 %v1172
  %1860 = vmatmul.mubr.f32.gmra.mrb[0].mxu0 %v1594
  %v1861 = vpop.f32.mrb[0].mxu0
  %v1862 = vadd.f32 %v65, %v1861
  %v1863 = vpop.f32.mrb[0].mxu0
  %v1864 = vadd.f32 %v69, %v1863
  %1865 = vdwg.mxu0
  %v1866 = vxor.u32 %v1791, 2147483648
  %v1867 = vmul.f32 %v1866, 1.442695
  %v1868 = vpow.pop %v1867
  %v1869 = vadd.f32 %v1868, 1.0
  %v1870 = vrcp.pop %v1869
  %v1871 = vmul.f32 1.0, %v1870
  %v1872 = vxor.u32 %v1793, 2147483648
  %v1873 = vmul.f32 %v1872, 1.442695
  %v1874 = vpow.pop %v1873
  %v1875 = vadd.f32 %v1874, 1.0
  %v1876 = vrcp.pop %v1875
  %v1877 = vmul.f32 1.0, %v1876
  %v1878 = vtanh.pop %v1862
  %v1879 = vxor.u32 %v1864, 2147483648
  %v1880 = vmul.f32 %v1879, 1.442695
  %v1881 = vpow.pop %v1880
  %v1882 = vadd.f32 %v1881, 1.0
  %v1883 = vrcp.pop %v1882
  %v1884 = vmul.f32 1.0, %v1883
  %v1885 = vmul.f32 %v1877, %v1170
  %v1886 = vmul.f32 %v1871, %v1878
  %v1887 = vadd.f32 %v1885, %v1886
  %v1888 = vtanh.pop %v1887
  %v1889 = vmul.f32 %v1884, %v1888
  %1890 = vadd.xlane.f32.xlu0 %v1889
  %v1891 = vpop.xlane.xlu0 %1890
  %v1892 = vmul.f32 %v1891, 0.03125
  %v1893 = vmul.f32 %v1889, %v1889
  %1894 = vadd.xlane.f32.xlu0 %v1893
  %v1895 = vpop.xlane.xlu0 %1894
  %v1896 = vmul.f32 %v1895, 0.03125
  %v1897 = vmul.f32 %v1892, %v1892
  %v1898 = vsub.f32 %v1896, %v1897
  %v1899 = vmax.f32 %v1898, 0.0
  %v1900 = vsub.f32 %v1889, %v1892
  %v1901 = vadd.f32 %v1899, 1e-05
  %v1902 = vrsqrt.pop %v1901
  %v1903 = vmul.f32 %v1900, %v1902
  %v1904 = vmul.f32 %v1903, %v79
  %v1905 = vadd.f32 %v1904, %v86
  %v1906 = vld [vmem:[%s5] sm:$0xff]
  %v1907 = vld [vmem:[%s5 + $0x8] sm:$0xff]
  %v1908 = vld [vmem:[%s5 + $0x10] sm:$0xff]
  %v1909 = vld [vmem:[%s5 + $0x18] sm:$0xff]
  %v1910 = vld [vmem:[%s5 + $0x20] sm:$0xff]
  %v1911 = vld [vmem:[%s5 + $0x28] sm:$0xff]
  %v1912 = vld [vmem:[%s5 + $0x30] sm:$0xff]
  %v1913 = vld [vmem:[%s5 + $0x38] sm:$0xff]
  %v1914 = vld [vmem:[%s5 + $0x40] sm:$0xff]
  %v1915 = vld [vmem:[%s5 + $0x48] sm:$0xff]
  %v1916 = vld [vmem:[%s5 + $0x50] sm:$0xff]
  %v1917 = vld [vmem:[%s5 + $0x58] sm:$0xff]
  %v1918 = vld [vmem:[%s5 + $0x60] sm:$0xff]
  %v1919 = vld [vmem:[%s5 + $0x68] sm:$0xff]
  %v1920 = vld [vmem:[%s5 + $0x70] sm:$0xff]
  %v1921 = vld [vmem:[%s5 + $0x78] sm:$0xff]
  %v1922 = vld [vmem:[%s5 + $0x80] sm:$0xff]
  %v1923 = vld [vmem:[%s5 + $0x88] sm:$0xff]
  %v1924 = vld [vmem:[%s5 + $0x90] sm:$0xff]
  %v1925 = vld [vmem:[%s5 + $0x98] sm:$0xff]
  %v1926 = vld [vmem:[%s5 + $0xa0] sm:$0xff]
  %v1927 = vld [vmem:[%s5 + $0xa8] sm:$0xff]
  %v1928 = vld [vmem:[%s5 + $0xb0] sm:$0xff]
  %v1929 = vld [vmem:[%s5 + $0xb8] sm:$0xff]
  %v1930 = vld [vmem:[%s5 + $0xc0] sm:$0xff]
  %v1931 = vld [vmem:[%s5 + $0xc8] sm:$0xff]
  %v1932 = vld [vmem:[%s5 + $0xd0] sm:$0xff]
  %v1933 = vld [vmem:[%s5 + $0xd8] sm:$0xff]
  %v1934 = vld [vmem:[%s5 + $0xe0] sm:$0xff]
  %v1935 = vld [vmem:[%s5 + $0xe8] sm:$0xff]
  %v1936 = vld [vmem:[%s5 + $0xf0] sm:$0xff]
  %v1937 = vld [vmem:[%s5 + $0xf8] sm:$0xff]
  %v1938 = vld [vmem:[%s5 + $0x100] sm:$0xff]
  %v1939 = vld [vmem:[%s5 + $0x108] sm:$0xff]
  %v1940 = vld [vmem:[%s5 + $0x110] sm:$0xff]
  %v1941 = vld [vmem:[%s5 + $0x118] sm:$0xff]
  %v1942 = vld [vmem:[%s5 + $0x120] sm:$0xff]
  %v1943 = vld [vmem:[%s5 + $0x128] sm:$0xff]
  %v1944 = vld [vmem:[%s5 + $0x130] sm:$0xff]
  %v1945 = vld [vmem:[%s5 + $0x138] sm:$0xff]
  %v1946 = vld [vmem:[%s5 + $0x140] sm:$0xff]
  %v1947 = vld [vmem:[%s5 + $0x148] sm:$0xff]
  %v1948 = vld [vmem:[%s5 + $0x150] sm:$0xff]
  %v1949 = vld [vmem:[%s5 + $0x158] sm:$0xff]
  %v1950 = vld [vmem:[%s5 + $0x160] sm:$0xff]
  %v1951 = vld [vmem:[%s5 + $0x168] sm:$0xff]
  %v1952 = vld [vmem:[%s5 + $0x170] sm:$0xff]
  %v1953 = vld [vmem:[%s5 + $0x178] sm:$0xff]
  %v1954 = vld [vmem:[%s5 + $0x180] sm:$0xff]
  %v1955 = vld [vmem:[%s5 + $0x188] sm:$0xff]
  %v1956 = vld [vmem:[%s5 + $0x190] sm:$0xff]
  %v1957 = vld [vmem:[%s5 + $0x198] sm:$0xff]
  %v1958 = vld [vmem:[%s5 + $0x1a0] sm:$0xff]
  %v1959 = vld [vmem:[%s5 + $0x1a8] sm:$0xff]
  %v1960 = vld [vmem:[%s5 + $0x1b0] sm:$0xff]
  %v1961 = vld [vmem:[%s5 + $0x1b8] sm:$0xff]
  %v1962 = vld [vmem:[%s5 + $0x1c0] sm:$0xff]
  %v1963 = vld [vmem:[%s5 + $0x1c8] sm:$0xff]
  %v1964 = vld [vmem:[%s5 + $0x1d0] sm:$0xff]
  %v1965 = vld [vmem:[%s5 + $0x1d8] sm:$0xff]
  %v1966 = vld [vmem:[%s5 + $0x1e0] sm:$0xff]
  %v1967 = vld [vmem:[%s5 + $0x1e8] sm:$0xff]
  %v1968 = vld [vmem:[%s5 + $0x1f0] sm:$0xff]
  %v1969 = vld [vmem:[%s5 + $0x1f8] sm:$0xff]
  %v1970 = vld [vmem:[%s5 + $0x200] sm:$0xff]
  %v1971 = vld [vmem:[%s5 + $0x208] sm:$0xff]
  %v1972 = vld [vmem:[%s5 + $0x210] sm:$0xff]
  %v1973 = vld [vmem:[%s5 + $0x218] sm:$0xff]
  %v1974 = vld [vmem:[%s5 + $0x220] sm:$0xff]
  %v1975 = vld [vmem:[%s5 + $0x228] sm:$0xff]
  %v1976 = vld [vmem:[%s5 + $0x230] sm:$0xff]
  %v1977 = vld [vmem:[%s5 + $0x238] sm:$0xff]
  %v1978 = vld [vmem:[%s5 + $0x240] sm:$0xff]
  %v1979 = vld [vmem:[%s5 + $0x248] sm:$0xff]
  %v1980 = vld [vmem:[%s5 + $0x250] sm:$0xff]
  %v1981 = vld [vmem:[%s5 + $0x258] sm:$0xff]
  %v1982 = vld [vmem:[%s5 + $0x260] sm:$0xff]
  %v1983 = vld [vmem:[%s5 + $0x268] sm:$0xff]
  %v1984 = vld [vmem:[%s5 + $0x270] sm:$0xff]
  %v1985 = vld [vmem:[%s5 + $0x278] sm:$0xff]
  %v1986 = vld [vmem:[%s5 + $0x280] sm:$0xff]
  %v1987 = vld [vmem:[%s5 + $0x288] sm:$0xff]
  %v1988 = vld [vmem:[%s5 + $0x290] sm:$0xff]
  %v1989 = vld [vmem:[%s5 + $0x298] sm:$0xff]
  %v1990 = vld [vmem:[%s5 + $0x2a0] sm:$0xff]
  %v1991 = vld [vmem:[%s5 + $0x2a8] sm:$0xff]
  %v1992 = vld [vmem:[%s5 + $0x2b0] sm:$0xff]
  %v1993 = vld [vmem:[%s5 + $0x2b8] sm:$0xff]
  %v1994 = vld [vmem:[%s5 + $0x2c0] sm:$0xff]
  %v1995 = vld [vmem:[%s5 + $0x2c8] sm:$0xff]
  %v1996 = vld [vmem:[%s5 + $0x2d0] sm:$0xff]
  %v1997 = vld [vmem:[%s5 + $0x2d8] sm:$0xff]
  %v1998 = vld [vmem:[%s5 + $0x2e0] sm:$0xff]
  %v1999 = vld [vmem:[%s5 + $0x2e8] sm:$0xff]
  %v2000 = vld [vmem:[%s5 + $0x2f0] sm:$0xff]
  %v2001 = vld [vmem:[%s5 + $0x2f8] sm:$0xff]
  %v2002 = vld [vmem:[%s5 + $0x300] sm:$0xff]
  %v2003 = vld [vmem:[%s5 + $0x308] sm:$0xff]
  %v2004 = vld [vmem:[%s5 + $0x310] sm:$0xff]
  %v2005 = vld [vmem:[%s5 + $0x318] sm:$0xff]
  %v2006 = vld [vmem:[%s5 + $0x320] sm:$0xff]
  %v2007 = vld [vmem:[%s5 + $0x328] sm:$0xff]
  %v2008 = vld [vmem:[%s5 + $0x330] sm:$0xff]
  %v2009 = vld [vmem:[%s5 + $0x338] sm:$0xff]
  %v2010 = vld [vmem:[%s5 + $0x340] sm:$0xff]
  %v2011 = vld [vmem:[%s5 + $0x348] sm:$0xff]
  %v2012 = vld [vmem:[%s5 + $0x350] sm:$0xff]
  %v2013 = vld [vmem:[%s5 + $0x358] sm:$0xff]
  %v2014 = vld [vmem:[%s5 + $0x360] sm:$0xff]
  %v2015 = vld [vmem:[%s5 + $0x368] sm:$0xff]
  %v2016 = vld [vmem:[%s5 + $0x370] sm:$0xff]
  %v2017 = vld [vmem:[%s5 + $0x378] sm:$0xff]
  %v2018 = vld [vmem:[%s5 + $0x380] sm:$0xff]
  %v2019 = vld [vmem:[%s5 + $0x388] sm:$0xff]
  %v2020 = vld [vmem:[%s5 + $0x390] sm:$0xff]
  %v2021 = vld [vmem:[%s5 + $0x398] sm:$0xff]
  %v2022 = vld [vmem:[%s5 + $0x3a0] sm:$0xff]
  %v2023 = vld [vmem:[%s5 + $0x3a8] sm:$0xff]
  %v2024 = vld [vmem:[%s5 + $0x3b0] sm:$0xff]
  %v2025 = vld [vmem:[%s5 + $0x3b8] sm:$0xff]
  %v2026 = vld [vmem:[%s5 + $0x3c0] sm:$0xff]
  %v2027 = vld [vmem:[%s5 + $0x3c8] sm:$0xff]
  %v2028 = vld [vmem:[%s5 + $0x3d0] sm:$0xff]
  %v2029 = vld [vmem:[%s5 + $0x3d8] sm:$0xff]
  %v2030 = vld [vmem:[%s5 + $0x3e0] sm:$0xff]
  %v2031 = vld [vmem:[%s5 + $0x3e8] sm:$0xff]
  %v2032 = vld [vmem:[%s5 + $0x3f0] sm:$0xff]
  %v2033 = vld [vmem:[%s5 + $0x3f8] sm:$0xff]
  %2034 = vmatprep.subr.mxu0 %v1907
  %2035 = vmatpush1.msra.mxu0 %v1906
  %2036 = vmatprep.subr.mxu0 %v1911
  %2037 = vmatpush1.msra.mxu0 %v1910
  %2038 = vmatprep.subr.mxu0 %v1915
  %2039 = vmatpush1.msra.mxu0 %v1914
  %2040 = vmatprep.subr.mxu0 %v1919
  %2041 = vmatpush1.msra.mxu0 %v1918
  %2042 = vmatprep.subr.mxu0 %v1923
  %2043 = vmatpush1.msra.mxu0 %v1922
  %2044 = vmatprep.subr.mxu0 %v1927
  %2045 = vmatpush1.msra.mxu0 %v1926
  %2046 = vmatprep.subr.mxu0 %v1931
  %2047 = vmatpush1.msra.mxu0 %v1930
  %2048 = vmatprep.subr.mxu0 %v1935
  %2049 = vmatpush1.msra.mxu0 %v1934
  %2050 = vmatprep.subr.mxu0 %v1939
  %2051 = vmatpush1.msra.mxu0 %v1938
  %2052 = vmatprep.subr.mxu0 %v1943
  %2053 = vmatpush1.msra.mxu0 %v1942
  %2054 = vmatprep.subr.mxu0 %v1947
  %2055 = vmatpush1.msra.mxu0 %v1946
  %2056 = vmatprep.subr.mxu0 %v1951
  %2057 = vmatpush1.msra.mxu0 %v1950
  %2058 = vmatprep.subr.mxu0 %v1955
  %2059 = vmatpush1.msra.mxu0 %v1954
  %2060 = vmatprep.subr.mxu0 %v1959
  %2061 = vmatpush1.msra.mxu0 %v1958
  %2062 = vmatprep.subr.mxu0 %v1963
  %2063 = vmatpush1.msra.mxu0 %v1962
  %2064 = vmatprep.subr.mxu0 %v1967
  %2065 = vmatpush1.msra.mxu0 %v1966
  %2066 = vmatprep.subr.mxu0 %v1971
  %2067 = vmatpush1.msra.mxu0 %v1970
  %2068 = vmatprep.subr.mxu0 %v1975
  %2069 = vmatpush1.msra.mxu0 %v1974
  %2070 = vmatprep.subr.mxu0 %v1979
  %2071 = vmatpush1.msra.mxu0 %v1978
  %2072 = vmatprep.subr.mxu0 %v1983
  %2073 = vmatpush1.msra.mxu0 %v1982
  %2074 = vmatprep.subr.mxu0 %v1987
  %2075 = vmatpush1.msra.mxu0 %v1986
  %2076 = vmatprep.subr.mxu0 %v1991
  %2077 = vmatpush1.msra.mxu0 %v1990
  %2078 = vmatprep.subr.mxu0 %v1995
  %2079 = vmatpush1.msra.mxu0 %v1994
  %2080 = vmatprep.subr.mxu0 %v1999
  %2081 = vmatpush1.msra.mxu0 %v1998
  %2082 = vmatprep.subr.mxu0 %v2003
  %2083 = vmatpush1.msra.mxu0 %v2002
  %2084 = vmatprep.subr.mxu0 %v2007
  %2085 = vmatpush1.msra.mxu0 %v2006
  %2086 = vmatprep.subr.mxu0 %v2011
  %2087 = vmatpush1.msra.mxu0 %v2010
  %2088 = vmatprep.subr.mxu0 %v2015
  %2089 = vmatpush1.msra.mxu0 %v2014
  %2090 = vmatprep.subr.mxu0 %v2019
  %2091 = vmatpush1.msra.mxu0 %v2018
  %2092 = vmatprep.subr.mxu0 %v2023
  %2093 = vmatpush1.msra.mxu0 %v2022
  %2094 = vmatprep.subr.mxu0 %v2027
  %2095 = vmatpush1.msra.mxu0 %v2026
  %2096 = vmatprep.subr.mxu0 %v2031
  %2097 = vmatpush1.msra.mxu0 %v2030
  %2098 = vmatprep.mubr.f32.mxu0 %v1482
  %2099 = vmatmul.mubr.f32.gmra.mrb[0].mxu0 %v1905
  %v2100 = vpop.f32.mrb[0].mxu0
  %v2101 = vadd.f32 %v93, %v2100
  %v2102 = vpop.f32.mrb[0].mxu0
  %v2103 = vadd.f32 %v97, %v2102
  %2104 = vdwg.mxu0
  %2105 = vmatprep.subr.mxu0 %v1909
  %2106 = vmatpush1.msra.mxu0 %v1908
  %2107 = vmatprep.subr.mxu0 %v1913
  %2108 = vmatpush1.msra.mxu0 %v1912
  %2109 = vmatprep.subr.mxu0 %v1917
  %2110 = vmatpush1.msra.mxu0 %v1916
  %2111 = vmatprep.subr.mxu0 %v1921
  %2112 = vmatpush1.msra.mxu0 %v1920
  %2113 = vmatprep.subr.mxu0 %v1925
  %2114 = vmatpush1.msra.mxu0 %v1924
  %2115 = vmatprep.subr.mxu0 %v1929
  %2116 = vmatpush1.msra.mxu0 %v1928
  %2117 = vmatprep.subr.mxu0 %v1933
  %2118 = vmatpush1.msra.mxu0 %v1932
  %2119 = vmatprep.subr.mxu0 %v1937
  %2120 = vmatpush1.msra.mxu0 %v1936
  %2121 = vmatprep.subr.mxu0 %v1941
  %2122 = vmatpush1.msra.mxu0 %v1940
  %2123 = vmatprep.subr.mxu0 %v1945
  %2124 = vmatpush1.msra.mxu0 %v1944
  %2125 = vmatprep.subr.mxu0 %v1949
  %2126 = vmatpush1.msra.mxu0 %v1948
  %2127 = vmatprep.subr.mxu0 %v1953
  %2128 = vmatpush1.msra.mxu0 %v1952
  %2129 = vmatprep.subr.mxu0 %v1957
  %2130 = vmatpush1.msra.mxu0 %v1956
  %2131 = vmatprep.subr.mxu0 %v1961
  %2132 = vmatpush1.msra.mxu0 %v1960
  %2133 = vmatprep.subr.mxu0 %v1965
  %2134 = vmatpush1.msra.mxu0 %v1964
  %2135 = vmatprep.subr.mxu0 %v1969
  %2136 = vmatpush1.msra.mxu0 %v1968
  %2137 = vmatprep.subr.mxu0 %v1973
  %2138 = vmatpush1.msra.mxu0 %v1972
  %2139 = vmatprep.subr.mxu0 %v1977
  %2140 = vmatpush1.msra.mxu0 %v1976
  %2141 = vmatprep.subr.mxu0 %v1981
  %2142 = vmatpush1.msra.mxu0 %v1980
  %2143 = vmatprep.subr.mxu0 %v1985
  %2144 = vmatpush1.msra.mxu0 %v1984
  %2145 = vmatprep.subr.mxu0 %v1989
  %2146 = vmatpush1.msra.mxu0 %v1988
  %2147 = vmatprep.subr.mxu0 %v1993
  %2148 = vmatpush1.msra.mxu0 %v1992
  %2149 = vmatprep.subr.mxu0 %v1997
  %2150 = vmatpush1.msra.mxu0 %v1996
  %2151 = vmatprep.subr.mxu0 %v2001
  %2152 = vmatpush1.msra.mxu0 %v2000
  %2153 = vmatprep.subr.mxu0 %v2005
  %2154 = vmatpush1.msra.mxu0 %v2004
  %2155 = vmatprep.subr.mxu0 %v2009
  %2156 = vmatpush1.msra.mxu0 %v2008
  %2157 = vmatprep.subr.mxu0 %v2013
  %2158 = vmatpush1.msra.mxu0 %v2012
  %2159 = vmatprep.subr.mxu0 %v2017
  %2160 = vmatpush1.msra.mxu0 %v2016
  %2161 = vmatprep.subr.mxu0 %v2021
  %2162 = vmatpush1.msra.mxu0 %v2020
  %2163 = vmatprep.subr.mxu0 %v2025
  %2164 = vmatpush1.msra.mxu0 %v2024
  %2165 = vmatprep.subr.mxu0 %v2029
  %2166 = vmatpush1.msra.mxu0 %v2028
  %2167 = vmatprep.subr.mxu0 %v2033
  %2168 = vmatpush1.msra.mxu0 %v2032
  %2169 = vmatprep.mubr.f32.mxu0 %v1482
  %2170 = vmatmul.mubr.f32.gmra.mrb[0].mxu0 %v1905
  %v2171 = vpop.f32.mrb[0].mxu0
  %v2172 = vadd.f32 %v101, %v2171
  %v2173 = vpop.f32.mrb[0].mxu0
  %v2174 = vadd.f32 %v105, %v2173
  %2175 = vdwg.mxu0
  %v2176 = vxor.u32 %v2101, 2147483648
  %v2177 = vmul.f32 %v2176, 1.442695
  %v2178 = vpow.pop %v2177
  %v2179 = vadd.f32 %v2178, 1.0
  %v2180 = vrcp.pop %v2179
  %v2181 = vmul.f32 1.0, %v2180
  %v2182 = vxor.u32 %v2103, 2147483648
  %v2183 = vmul.f32 %v2182, 1.442695
  %v2184 = vpow.pop %v2183
  %v2185 = vadd.f32 %v2184, 1.0
  %v2186 = vrcp.pop %v2185
  %v2187 = vmul.f32 1.0, %v2186
  %v2188 = vtanh.pop %v2172
  %v2189 = vxor.u32 %v2174, 2147483648
  %v2190 = vmul.f32 %v2189, 1.442695
  %v2191 = vpow.pop %v2190
  %v2192 = vadd.f32 %v2191, 1.0
  %v2193 = vrcp.pop %v2192
  %v2194 = vmul.f32 1.0, %v2193
  %v2195 = vmul.f32 %v2187, %v1480
  %v2196 = vmul.f32 %v2181, %v2188
  %v2197 = vadd.f32 %v2195, %v2196
  %v2198 = vtanh.pop %v2197
  %v2199 = vmul.f32 %v2194, %v2198
  %2200 = vadd.xlane.f32.xlu0 %v2199
  %v2201 = vpop.xlane.xlu0 %2200
  %v2202 = vmul.f32 %v2201, 0.03125
  %v2203 = vmul.f32 %v2199, %v2199
  %2204 = vadd.xlane.f32.xlu0 %v2203
  %v2205 = vpop.xlane.xlu0 %2204
  %v2206 = vmul.f32 %v2205, 0.03125
  %v2207 = vmul.f32 %v2202, %v2202
  %v2208 = vsub.f32 %v2206, %v2207
  %v2209 = vmax.f32 %v2208, 0.0
  %v2210 = vsub.f32 %v2199, %v2202
  %v2211 = vadd.f32 %v2209, 1e-05
  %v2212 = vrsqrt.pop %v2211
  %v2213 = vmul.f32 %v2210, %v2212
  %v2214 = vmul.f32 %v2213, %v115
  %v2215 = vadd.f32 %v2214, %v122
  %v2217 = vcombine.high %v2215, %v2215
  %v2219 = vunpack.c.l.s4 1966171168
  %v2220 = vunpack.c.0.s8 %v2219
  %v2221 = vlaneseq
  %v2222 = vshrl.u32 %v2221, 7
  %v2223 = vsub.s32 %v2220, %v2222
  %v2224 = vrot.slane %v2215, %v2223
  %v2226 = vunpack.c.l.s4 1966171168
  %v2227 = vunpack.c.0.s8 %v2226
  %v2228 = vlaneseq
  %v2229 = vshrl.u32 %v2228, 7
  %v2230 = vsub.s32 %v2227, %v2229
  %v2231 = vrot.slane %v2217, %v2230
  %v2232 = vcombine.high %v2224, %v2224
  %v2233 = vcombine.high %v2231, %v2231
  %v2235 = vunpack.c.l.s4 1966171168
  %v2236 = vunpack.c.0.s8 %v2235
  %v2237 = vlaneseq
  %v2238 = vshrl.u32 %v2237, 7
  %v2239 = vsub.s32 %v2236, %v2238
  %v2240 = vrot.slane %v2224, %v2239
  %v2242 = vunpack.c.l.s4 1966171168
  %v2243 = vunpack.c.0.s8 %v2242
  %v2244 = vlaneseq
  %v2245 = vshrl.u32 %v2244, 7
  %v2246 = vsub.s32 %v2243, %v2245
  %v2247 = vrot.slane %v2231, %v2246
  %v2249 = vunpack.c.l.s4 1966171168
  %v2250 = vunpack.c.0.s8 %v2249
  %v2251 = vlaneseq
  %v2252 = vshrl.u32 %v2251, 7
  %v2253 = vsub.s32 %v2250, %v2252
  %v2254 = vrot.slane %v2232, %v2253
  %v2256 = vunpack.c.l.s4 1966171168
  %v2257 = vunpack.c.0.s8 %v2256
  %v2258 = vlaneseq
  %v2259 = vshrl.u32 %v2258, 7
  %v2260 = vsub.s32 %v2257, %v2259
  %v2261 = vrot.slane %v2233, %v2260
  %v2262 = vcombine.high %v2240, %v2240
  %v2263 = vcombine.high %v2247, %v2247
  %v2264 = vcombine.high %v2254, %v2254
  %v2265 = vcombine.high %v2261, %v2261
  %2274 = vst [vmem:[#allocation4 + $0x2] sm:$0x1] %v2240
  %2275 = vst [vmem:[#allocation4 + $0xa] sm:$0x1] %v2254
  %2276 = vst [vmem:[#allocation4 + $0x12] sm:$0x1] %v2262
  %2277 = vst [vmem:[#allocation4 + $0x1a] sm:$0x1] %v2264
  %2278 = vst [vmem:[#allocation4 + $0x22] sm:$0x1] %v2247
  %2279 = vst [vmem:[#allocation4 + $0x2a] sm:$0x1] %v2261
  %2280 = vst [vmem:[#allocation4 + $0x32] sm:$0x1] %v2263
  %2281 = vst [vmem:[#allocation4 + $0x3a] sm:$0x1] %v2265
  %v2282 = vld [vmem:[%s0 + $0x3] sm:$0x1]
  %v2283 = vld [vmem:[%s0 + $0xb] sm:$0x1]
  %v2284 = vld [vmem:[%s0 + $0x13] sm:$0x1]
  %v2285 = vld [vmem:[%s0 + $0x1b] sm:$0x1]
  %v2286 = vld [vmem:[%s0 + $0x23] sm:$0x1]
  %v2287 = vld [vmem:[%s0 + $0x2b] sm:$0x1]
  %v2288 = vld [vmem:[%s0 + $0x33] sm:$0x1]
  %v2289 = vld [vmem:[%s0 + $0x3b] sm:$0x1]
  %v2298 = vrot.slane %v2283, 7
  %v2299 = vsel %vm141, %v2298, %v2282
  %v2300 = vrot.slane %v2284, 6
  %v2301 = vsel %vm144, %v2300, %v2299
  %v2302 = vrot.slane %v2285, 5
  %v2303 = vsel %vm147, %v2302, %v2301
  %v2304 = vrot.slane %v2286, 4
  %v2305 = vsel %vm150, %v2304, %v2303
  %v2306 = vrot.slane %v2287, 3
  %v2307 = vsel %vm153, %v2306, %v2305
  %v2308 = vrot.slane %v2288, 2
  %v2309 = vsel %vm156, %v2308, %v2307
  %v2310 = vrot.slane %v2289, 1
  %v2311 = vsel %vm159, %v2310, %v2309
  %v2313 = vld [vmem:[%s1] sm:$0xff]
  %v2314 = vld [vmem:[%s1 + $0x8] sm:$0xff]
  %v2315 = vld [vmem:[%s1 + $0x10] sm:$0xff]
  %v2316 = vld [vmem:[%s1 + $0x18] sm:$0xff]
  %v2317 = vld [vmem:[%s1 + $0x20] sm:$0xff]
  %v2318 = vld [vmem:[%s1 + $0x28] sm:$0xff]
  %v2319 = vld [vmem:[%s1 + $0x30] sm:$0xff]
  %v2320 = vld [vmem:[%s1 + $0x38] sm:$0xff]
  %v2321 = vld [vmem:[%s1 + $0x40] sm:$0xff]
  %v2322 = vld [vmem:[%s1 + $0x48] sm:$0xff]
  %v2323 = vld [vmem:[%s1 + $0x50] sm:$0xff]
  %v2324 = vld [vmem:[%s1 + $0x58] sm:$0xff]
  %v2325 = vld [vmem:[%s1 + $0x60] sm:$0xff]
  %v2326 = vld [vmem:[%s1 + $0x68] sm:$0xff]
  %v2327 = vld [vmem:[%s1 + $0x70] sm:$0xff]
  %v2328 = vld [vmem:[%s1 + $0x78] sm:$0xff]
  %v2329 = vld [vmem:[%s1 + $0x80] sm:$0xff]
  %v2330 = vld [vmem:[%s1 + $0x88] sm:$0xff]
  %v2331 = vld [vmem:[%s1 + $0x90] sm:$0xff]
  %v2332 = vld [vmem:[%s1 + $0x98] sm:$0xff]
  %v2333 = vld [vmem:[%s1 + $0xa0] sm:$0xff]
  %v2334 = vld [vmem:[%s1 + $0xa8] sm:$0xff]
  %v2335 = vld [vmem:[%s1 + $0xb0] sm:$0xff]
  %v2336 = vld [vmem:[%s1 + $0xb8] sm:$0xff]
  %v2337 = vld [vmem:[%s1 + $0xc0] sm:$0xff]
  %v2338 = vld [vmem:[%s1 + $0xc8] sm:$0xff]
  %v2339 = vld [vmem:[%s1 + $0xd0] sm:$0xff]
  %v2340 = vld [vmem:[%s1 + $0xd8] sm:$0xff]
  %v2341 = vld [vmem:[%s1 + $0xe0] sm:$0xff]
  %v2342 = vld [vmem:[%s1 + $0xe8] sm:$0xff]
  %v2343 = vld [vmem:[%s1 + $0xf0] sm:$0xff]
  %v2344 = vld [vmem:[%s1 + $0xf8] sm:$0xff]
  %v2345 = vld [vmem:[%s1 + $0x100] sm:$0xff]
  %v2346 = vld [vmem:[%s1 + $0x108] sm:$0xff]
  %v2347 = vld [vmem:[%s1 + $0x110] sm:$0xff]
  %v2348 = vld [vmem:[%s1 + $0x118] sm:$0xff]
  %v2349 = vld [vmem:[%s1 + $0x120] sm:$0xff]
  %v2350 = vld [vmem:[%s1 + $0x128] sm:$0xff]
  %v2351 = vld [vmem:[%s1 + $0x130] sm:$0xff]
  %v2352 = vld [vmem:[%s1 + $0x138] sm:$0xff]
  %v2353 = vld [vmem:[%s1 + $0x140] sm:$0xff]
  %v2354 = vld [vmem:[%s1 + $0x148] sm:$0xff]
  %v2355 = vld [vmem:[%s1 + $0x150] sm:$0xff]
  %v2356 = vld [vmem:[%s1 + $0x158] sm:$0xff]
  %v2357 = vld [vmem:[%s1 + $0x160] sm:$0xff]
  %v2358 = vld [vmem:[%s1 + $0x168] sm:$0xff]
  %v2359 = vld [vmem:[%s1 + $0x170] sm:$0xff]
  %v2360 = vld [vmem:[%s1 + $0x178] sm:$0xff]
  %v2361 = vld [vmem:[%s1 + $0x180] sm:$0xff]
  %v2362 = vld [vmem:[%s1 + $0x188] sm:$0xff]
  %v2363 = vld [vmem:[%s1 + $0x190] sm:$0xff]
  %v2364 = vld [vmem:[%s1 + $0x198] sm:$0xff]
  %v2365 = vld [vmem:[%s1 + $0x1a0] sm:$0xff]
  %v2366 = vld [vmem:[%s1 + $0x1a8] sm:$0xff]
  %v2367 = vld [vmem:[%s1 + $0x1b0] sm:$0xff]
  %v2368 = vld [vmem:[%s1 + $0x1b8] sm:$0xff]
  %v2369 = vld [vmem:[%s1 + $0x1c0] sm:$0xff]
  %v2370 = vld [vmem:[%s1 + $0x1c8] sm:$0xff]
  %v2371 = vld [vmem:[%s1 + $0x1d0] sm:$0xff]
  %v2372 = vld [vmem:[%s1 + $0x1d8] sm:$0xff]
  %v2373 = vld [vmem:[%s1 + $0x1e0] sm:$0xff]
  %v2374 = vld [vmem:[%s1 + $0x1e8] sm:$0xff]
  %v2375 = vld [vmem:[%s1 + $0x1f0] sm:$0xff]
  %v2376 = vld [vmem:[%s1 + $0x1f8] sm:$0xff]
  %v2377 = vld [vmem:[%s1 + $0x200] sm:$0xff]
  %v2378 = vld [vmem:[%s1 + $0x208] sm:$0xff]
  %v2379 = vld [vmem:[%s1 + $0x210] sm:$0xff]
  %v2380 = vld [vmem:[%s1 + $0x218] sm:$0xff]
  %v2381 = vld [vmem:[%s1 + $0x220] sm:$0xff]
  %v2382 = vld [vmem:[%s1 + $0x228] sm:$0xff]
  %v2383 = vld [vmem:[%s1 + $0x230] sm:$0xff]
  %v2384 = vld [vmem:[%s1 + $0x238] sm:$0xff]
  %v2385 = vld [vmem:[%s1 + $0x240] sm:$0xff]
  %v2386 = vld [vmem:[%s1 + $0x248] sm:$0xff]
  %v2387 = vld [vmem:[%s1 + $0x250] sm:$0xff]
  %v2388 = vld [vmem:[%s1 + $0x258] sm:$0xff]
  %v2389 = vld [vmem:[%s1 + $0x260] sm:$0xff]
  %v2390 = vld [vmem:[%s1 + $0x268] sm:$0xff]
  %v2391 = vld [vmem:[%s1 + $0x270] sm:$0xff]
  %v2392 = vld [vmem:[%s1 + $0x278] sm:$0xff]
  %v2393 = vld [vmem:[%s1 + $0x280] sm:$0xff]
  %v2394 = vld [vmem:[%s1 + $0x288] sm:$0xff]
  %v2395 = vld [vmem:[%s1 + $0x290] sm:$0xff]
  %v2396 = vld [vmem:[%s1 + $0x298] sm:$0xff]
  %v2397 = vld [vmem:[%s1 + $0x2a0] sm:$0xff]
  %v2398 = vld [vmem:[%s1 + $0x2a8] sm:$0xff]
  %v2399 = vld [vmem:[%s1 + $0x2b0] sm:$0xff]
  %v2400 = vld [vmem:[%s1 + $0x2b8] sm:$0xff]
  %v2401 = vld [vmem:[%s1 + $0x2c0] sm:$0xff]
  %v2402 = vld [vmem:[%s1 + $0x2c8] sm:$0xff]
  %v2403 = vld [vmem:[%s1 + $0x2d0] sm:$0xff]
  %v2404 = vld [vmem:[%s1 + $0x2d8] sm:$0xff]
  %v2405 = vld [vmem:[%s1 + $0x2e0] sm:$0xff]
  %v2406 = vld [vmem:[%s1 + $0x2e8] sm:$0xff]
  %v2407 = vld [vmem:[%s1 + $0x2f0] sm:$0xff]
  %v2408 = vld [vmem:[%s1 + $0x2f8] sm:$0xff]
  %v2409 = vld [vmem:[%s1 + $0x300] sm:$0xff]
  %v2410 = vld [vmem:[%s1 + $0x308] sm:$0xff]
  %v2411 = vld [vmem:[%s1 + $0x310] sm:$0xff]
  %v2412 = vld [vmem:[%s1 + $0x318] sm:$0xff]
  %v2413 = vld [vmem:[%s1 + $0x320] sm:$0xff]
  %v2414 = vld [vmem:[%s1 + $0x328] sm:$0xff]
  %v2415 = vld [vmem:[%s1 + $0x330] sm:$0xff]
  %v2416 = vld [vmem:[%s1 + $0x338] sm:$0xff]
  %v2417 = vld [vmem:[%s1 + $0x340] sm:$0xff]
  %v2418 = vld [vmem:[%s1 + $0x348] sm:$0xff]
  %v2419 = vld [vmem:[%s1 + $0x350] sm:$0xff]
  %v2420 = vld [vmem:[%s1 + $0x358] sm:$0xff]
  %v2421 = vld [vmem:[%s1 + $0x360] sm:$0xff]
  %v2422 = vld [vmem:[%s1 + $0x368] sm:$0xff]
  %v2423 = vld [vmem:[%s1 + $0x370] sm:$0xff]
  %v2424 = vld [vmem:[%s1 + $0x378] sm:$0xff]
  %v2425 = vld [vmem:[%s1 + $0x380] sm:$0xff]
  %v2426 = vld [vmem:[%s1 + $0x388] sm:$0xff]
  %v2427 = vld [vmem:[%s1 + $0x390] sm:$0xff]
  %v2428 = vld [vmem:[%s1 + $0x398] sm:$0xff]
  %v2429 = vld [vmem:[%s1 + $0x3a0] sm:$0xff]
  %v2430 = vld [vmem:[%s1 + $0x3a8] sm:$0xff]
  %v2431 = vld [vmem:[%s1 + $0x3b0] sm:$0xff]
  %v2432 = vld [vmem:[%s1 + $0x3b8] sm:$0xff]
  %v2433 = vld [vmem:[%s1 + $0x3c0] sm:$0xff]
  %v2434 = vld [vmem:[%s1 + $0x3c8] sm:$0xff]
  %v2435 = vld [vmem:[%s1 + $0x3d0] sm:$0xff]
  %v2436 = vld [vmem:[%s1 + $0x3d8] sm:$0xff]
  %v2437 = vld [vmem:[%s1 + $0x3e0] sm:$0xff]
  %v2438 = vld [vmem:[%s1 + $0x3e8] sm:$0xff]
  %v2439 = vld [vmem:[%s1 + $0x3f0] sm:$0xff]
  %v2440 = vld [vmem:[%s1 + $0x3f8] sm:$0xff]
  %2441 = vmatprep.subr.mxu0 %v2314
  %2442 = vmatpush1.msra.mxu0 %v2313
  %2443 = vmatprep.subr.mxu0 %v2318
  %2444 = vmatpush1.msra.mxu0 %v2317
  %2445 = vmatprep.subr.mxu0 %v2322
  %2446 = vmatpush1.msra.mxu0 %v2321
  %2447 = vmatprep.subr.mxu0 %v2326
  %2448 = vmatpush1.msra.mxu0 %v2325
  %2449 = vmatprep.subr.mxu0 %v2330
  %2450 = vmatpush1.msra.mxu0 %v2329
  %2451 = vmatprep.subr.mxu0 %v2334
  %2452 = vmatpush1.msra.mxu0 %v2333
  %2453 = vmatprep.subr.mxu0 %v2338
  %2454 = vmatpush1.msra.mxu0 %v2337
  %2455 = vmatprep.subr.mxu0 %v2342
  %2456 = vmatpush1.msra.mxu0 %v2341
  %2457 = vmatprep.subr.mxu0 %v2346
  %2458 = vmatpush1.msra.mxu0 %v2345
  %2459 = vmatprep.subr.mxu0 %v2350
  %2460 = vmatpush1.msra.mxu0 %v2349
  %2461 = vmatprep.subr.mxu0 %v2354
  %2462 = vmatpush1.msra.mxu0 %v2353
  %2463 = vmatprep.subr.mxu0 %v2358
  %2464 = vmatpush1.msra.mxu0 %v2357
  %2465 = vmatprep.subr.mxu0 %v2362
  %2466 = vmatpush1.msra.mxu0 %v2361
  %2467 = vmatprep.subr.mxu0 %v2366
  %2468 = vmatpush1.msra.mxu0 %v2365
  %2469 = vmatprep.subr.mxu0 %v2370
  %2470 = vmatpush1.msra.mxu0 %v2369
  %2471 = vmatprep.subr.mxu0 %v2374
  %2472 = vmatpush1.msra.mxu0 %v2373
  %2473 = vmatprep.subr.mxu0 %v2378
  %2474 = vmatpush1.msra.mxu0 %v2377
  %2475 = vmatprep.subr.mxu0 %v2382
  %2476 = vmatpush1.msra.mxu0 %v2381
  %2477 = vmatprep.subr.mxu0 %v2386
  %2478 = vmatpush1.msra.mxu0 %v2385
  %2479 = vmatprep.subr.mxu0 %v2390
  %2480 = vmatpush1.msra.mxu0 %v2389
  %2481 = vmatprep.subr.mxu0 %v2394
  %2482 = vmatpush1.msra.mxu0 %v2393
  %2483 = vmatprep.subr.mxu0 %v2398
  %2484 = vmatpush1.msra.mxu0 %v2397
  %2485 = vmatprep.subr.mxu0 %v2402
  %2486 = vmatpush1.msra.mxu0 %v2401
  %2487 = vmatprep.subr.mxu0 %v2406
  %2488 = vmatpush1.msra.mxu0 %v2405
  %2489 = vmatprep.subr.mxu0 %v2410
  %2490 = vmatpush1.msra.mxu0 %v2409
  %2491 = vmatprep.subr.mxu0 %v2414
  %2492 = vmatpush1.msra.mxu0 %v2413
  %2493 = vmatprep.subr.mxu0 %v2418
  %2494 = vmatpush1.msra.mxu0 %v2417
  %2495 = vmatprep.subr.mxu0 %v2422
  %2496 = vmatpush1.msra.mxu0 %v2421
  %2497 = vmatprep.subr.mxu0 %v2426
  %2498 = vmatpush1.msra.mxu0 %v2425
  %2499 = vmatprep.subr.mxu0 %v2430
  %2500 = vmatpush1.msra.mxu0 %v2429
  %2501 = vmatprep.subr.mxu0 %v2434
  %2502 = vmatpush1.msra.mxu0 %v2433
  %2503 = vmatprep.subr.mxu0 %v2438
  %2504 = vmatpush1.msra.mxu0 %v2437
  %2505 = vmatprep.mubr.f32.mxu0 %v1889
  %2506 = vmatmul.mubr.f32.gmra.mrb[0].mxu0 %v2311
  %v2507 = vpop.f32.mrb[0].mxu0
  %v2508 = vadd.f32 %v57, %v2507
  %v2509 = vpop.f32.mrb[0].mxu0
  %v2510 = vadd.f32 %v61, %v2509
  %2511 = vdwg.mxu0
  %2512 = vmatprep.subr.mxu0 %v2316
  %2513 = vmatpush1.msra.mxu0 %v2315
  %2514 = vmatprep.subr.mxu0 %v2320
  %2515 = vmatpush1.msra.mxu0 %v2319
  %2516 = vmatprep.subr.mxu0 %v2324
  %2517 = vmatpush1.msra.mxu0 %v2323
  %2518 = vmatprep.subr.mxu0 %v2328
  %2519 = vmatpush1.msra.mxu0 %v2327
  %2520 = vmatprep.subr.mxu0 %v2332
  %2521 = vmatpush1.msra.mxu0 %v2331
  %2522 = vmatprep.subr.mxu0 %v2336
  %2523 = vmatpush1.msra.mxu0 %v2335
  %2524 = vmatprep.subr.mxu0 %v2340
  %2525 = vmatpush1.msra.mxu0 %v2339
  %2526 = vmatprep.subr.mxu0 %v2344
  %2527 = vmatpush1.msra.mxu0 %v2343
  %2528 = vmatprep.subr.mxu0 %v2348
  %2529 = vmatpush1.msra.mxu0 %v2347
  %2530 = vmatprep.subr.mxu0 %v2352
  %2531 = vmatpush1.msra.mxu0 %v2351
  %2532 = vmatprep.subr.mxu0 %v2356
  %2533 = vmatpush1.msra.mxu0 %v2355
  %2534 = vmatprep.subr.mxu0 %v2360
  %2535 = vmatpush1.msra.mxu0 %v2359
  %2536 = vmatprep.subr.mxu0 %v2364
  %2537 = vmatpush1.msra.mxu0 %v2363
  %2538 = vmatprep.subr.mxu0 %v2368
  %2539 = vmatpush1.msra.mxu0 %v2367
  %2540 = vmatprep.subr.mxu0 %v2372
  %2541 = vmatpush1.msra.mxu0 %v2371
  %2542 = vmatprep.subr.mxu0 %v2376
  %2543 = vmatpush1.msra.mxu0 %v2375
  %2544 = vmatprep.subr.mxu0 %v2380
  %2545 = vmatpush1.msra.mxu0 %v2379
  %2546 = vmatprep.subr.mxu0 %v2384
  %2547 = vmatpush1.msra.mxu0 %v2383
  %2548 = vmatprep.subr.mxu0 %v2388
  %2549 = vmatpush1.msra.mxu0 %v2387
  %2550 = vmatprep.subr.mxu0 %v2392
  %2551 = vmatpush1.msra.mxu0 %v2391
  %2552 = vmatprep.subr.mxu0 %v2396
  %2553 = vmatpush1.msra.mxu0 %v2395
  %2554 = vmatprep.subr.mxu0 %v2400
  %2555 = vmatpush1.msra.mxu0 %v2399
  %2556 = vmatprep.subr.mxu0 %v2404
  %2557 = vmatpush1.msra.mxu0 %v2403
  %2558 = vmatprep.subr.mxu0 %v2408
  %2559 = vmatpush1.msra.mxu0 %v2407
  %2560 = vmatprep.subr.mxu0 %v2412
  %2561 = vmatpush1.msra.mxu0 %v2411
  %2562 = vmatprep.subr.mxu0 %v2416
  %2563 = vmatpush1.msra.mxu0 %v2415
  %2564 = vmatprep.subr.mxu0 %v2420
  %2565 = vmatpush1.msra.mxu0 %v2419
  %2566 = vmatprep.subr.mxu0 %v2424
  %2567 = vmatpush1.msra.mxu0 %v2423
  %2568 = vmatprep.subr.mxu0 %v2428
  %2569 = vmatpush1.msra.mxu0 %v2427
  %2570 = vmatprep.subr.mxu0 %v2432
  %2571 = vmatpush1.msra.mxu0 %v2431
  %2572 = vmatprep.subr.mxu0 %v2436
  %2573 = vmatpush1.msra.mxu0 %v2435
  %2574 = vmatprep.subr.mxu0 %v2440
  %2575 = vmatpush1.msra.mxu0 %v2439
  %2576 = vmatprep.mubr.f32.mxu0 %v1889
  %2577 = vmatmul.mubr.f32.gmra.mrb[0].mxu0 %v2311
  %v2578 = vpop.f32.mrb[0].mxu0
  %v2579 = vadd.f32 %v65, %v2578
  %v2580 = vpop.f32.mrb[0].mxu0
  %v2581 = vadd.f32 %v69, %v2580
  %2582 = vdwg.mxu0
  %v2583 = vxor.u32 %v2508, 2147483648
  %v2584 = vmul.f32 %v2583, 1.442695
  %v2585 = vpow.pop %v2584
  %v2586 = vadd.f32 %v2585, 1.0
  %v2587 = vrcp.pop %v2586
  %v2588 = vmul.f32 1.0, %v2587
  %v2589 = vxor.u32 %v2510, 2147483648
  %v2590 = vmul.f32 %v2589, 1.442695
  %v2591 = vpow.pop %v2590
  %v2592 = vadd.f32 %v2591, 1.0
  %v2593 = vrcp.pop %v2592
  %v2594 = vmul.f32 1.0, %v2593
  %v2595 = vtanh.pop %v2579
  %v2596 = vxor.u32 %v2581, 2147483648
  %v2597 = vmul.f32 %v2596, 1.442695
  %v2598 = vpow.pop %v2597
  %v2599 = vadd.f32 %v2598, 1.0
  %v2600 = vrcp.pop %v2599
  %v2601 = vmul.f32 1.0, %v2600
  %v2602 = vmul.f32 %v2594, %v1887
  %v2603 = vmul.f32 %v2588, %v2595
  %v2604 = vadd.f32 %v2602, %v2603
  %v2605 = vtanh.pop %v2604
  %v2606 = vmul.f32 %v2601, %v2605
  %2607 = vadd.xlane.f32.xlu0 %v2606
  %v2608 = vpop.xlane.xlu0 %2607
  %v2609 = vmul.f32 %v2608, 0.03125
  %v2610 = vmul.f32 %v2606, %v2606
  %2611 = vadd.xlane.f32.xlu0 %v2610
  %v2612 = vpop.xlane.xlu0 %2611
  %v2613 = vmul.f32 %v2612, 0.03125
  %v2614 = vmul.f32 %v2609, %v2609
  %v2615 = vsub.f32 %v2613, %v2614
  %v2616 = vmax.f32 %v2615, 0.0
  %v2617 = vsub.f32 %v2606, %v2609
  %v2618 = vadd.f32 %v2616, 1e-05
  %v2619 = vrsqrt.pop %v2618
  %v2620 = vmul.f32 %v2617, %v2619
  %v2621 = vmul.f32 %v2620, %v79
  %v2622 = vadd.f32 %v2621, %v86
  %v2623 = vld [vmem:[%s5] sm:$0xff]
  %v2624 = vld [vmem:[%s5 + $0x8] sm:$0xff]
  %v2625 = vld [vmem:[%s5 + $0x10] sm:$0xff]
  %v2626 = vld [vmem:[%s5 + $0x18] sm:$0xff]
  %v2627 = vld [vmem:[%s5 + $0x20] sm:$0xff]
  %v2628 = vld [vmem:[%s5 + $0x28] sm:$0xff]
  %v2629 = vld [vmem:[%s5 + $0x30] sm:$0xff]
  %v2630 = vld [vmem:[%s5 + $0x38] sm:$0xff]
  %v2631 = vld [vmem:[%s5 + $0x40] sm:$0xff]
  %v2632 = vld [vmem:[%s5 + $0x48] sm:$0xff]
  %v2633 = vld [vmem:[%s5 + $0x50] sm:$0xff]
  %v2634 = vld [vmem:[%s5 + $0x58] sm:$0xff]
  %v2635 = vld [vmem:[%s5 + $0x60] sm:$0xff]
  %v2636 = vld [vmem:[%s5 + $0x68] sm:$0xff]
  %v2637 = vld [vmem:[%s5 + $0x70] sm:$0xff]
  %v2638 = vld [vmem:[%s5 + $0x78] sm:$0xff]
  %v2639 = vld [vmem:[%s5 + $0x80] sm:$0xff]
  %v2640 = vld [vmem:[%s5 + $0x88] sm:$0xff]
  %v2641 = vld [vmem:[%s5 + $0x90] sm:$0xff]
  %v2642 = vld [vmem:[%s5 + $0x98] sm:$0xff]
  %v2643 = vld [vmem:[%s5 + $0xa0] sm:$0xff]
  %v2644 = vld [vmem:[%s5 + $0xa8] sm:$0xff]
  %v2645 = vld [vmem:[%s5 + $0xb0] sm:$0xff]
  %v2646 = vld [vmem:[%s5 + $0xb8] sm:$0xff]
  %v2647 = vld [vmem:[%s5 + $0xc0] sm:$0xff]
  %v2648 = vld [vmem:[%s5 + $0xc8] sm:$0xff]
  %v2649 = vld [vmem:[%s5 + $0xd0] sm:$0xff]
  %v2650 = vld [vmem:[%s5 + $0xd8] sm:$0xff]
  %v2651 = vld [vmem:[%s5 + $0xe0] sm:$0xff]
  %v2652 = vld [vmem:[%s5 + $0xe8] sm:$0xff]
  %v2653 = vld [vmem:[%s5 + $0xf0] sm:$0xff]
  %v2654 = vld [vmem:[%s5 + $0xf8] sm:$0xff]
  %v2655 = vld [vmem:[%s5 + $0x100] sm:$0xff]
  %v2656 = vld [vmem:[%s5 + $0x108] sm:$0xff]
  %v2657 = vld [vmem:[%s5 + $0x110] sm:$0xff]
  %v2658 = vld [vmem:[%s5 + $0x118] sm:$0xff]
  %v2659 = vld [vmem:[%s5 + $0x120] sm:$0xff]
  %v2660 = vld [vmem:[%s5 + $0x128] sm:$0xff]
  %v2661 = vld [vmem:[%s5 + $0x130] sm:$0xff]
  %v2662 = vld [vmem:[%s5 + $0x138] sm:$0xff]
  %v2663 = vld [vmem:[%s5 + $0x140] sm:$0xff]
  %v2664 = vld [vmem:[%s5 + $0x148] sm:$0xff]
  %v2665 = vld [vmem:[%s5 + $0x150] sm:$0xff]
  %v2666 = vld [vmem:[%s5 + $0x158] sm:$0xff]
  %v2667 = vld [vmem:[%s5 + $0x160] sm:$0xff]
  %v2668 = vld [vmem:[%s5 + $0x168] sm:$0xff]
  %v2669 = vld [vmem:[%s5 + $0x170] sm:$0xff]
  %v2670 = vld [vmem:[%s5 + $0x178] sm:$0xff]
  %v2671 = vld [vmem:[%s5 + $0x180] sm:$0xff]
  %v2672 = vld [vmem:[%s5 + $0x188] sm:$0xff]
  %v2673 = vld [vmem:[%s5 + $0x190] sm:$0xff]
  %v2674 = vld [vmem:[%s5 + $0x198] sm:$0xff]
  %v2675 = vld [vmem:[%s5 + $0x1a0] sm:$0xff]
  %v2676 = vld [vmem:[%s5 + $0x1a8] sm:$0xff]
  %v2677 = vld [vmem:[%s5 + $0x1b0] sm:$0xff]
  %v2678 = vld [vmem:[%s5 + $0x1b8] sm:$0xff]
  %v2679 = vld [vmem:[%s5 + $0x1c0] sm:$0xff]
  %v2680 = vld [vmem:[%s5 + $0x1c8] sm:$0xff]
  %v2681 = vld [vmem:[%s5 + $0x1d0] sm:$0xff]
  %v2682 = vld [vmem:[%s5 + $0x1d8] sm:$0xff]
  %v2683 = vld [vmem:[%s5 + $0x1e0] sm:$0xff]
  %v2684 = vld [vmem:[%s5 + $0x1e8] sm:$0xff]
  %v2685 = vld [vmem:[%s5 + $0x1f0] sm:$0xff]
  %v2686 = vld [vmem:[%s5 + $0x1f8] sm:$0xff]
  %v2687 = vld [vmem:[%s5 + $0x200] sm:$0xff]
  %v2688 = vld [vmem:[%s5 + $0x208] sm:$0xff]
  %v2689 = vld [vmem:[%s5 + $0x210] sm:$0xff]
  %v2690 = vld [vmem:[%s5 + $0x218] sm:$0xff]
  %v2691 = vld [vmem:[%s5 + $0x220] sm:$0xff]
  %v2692 = vld [vmem:[%s5 + $0x228] sm:$0xff]
  %v2693 = vld [vmem:[%s5 + $0x230] sm:$0xff]
  %v2694 = vld [vmem:[%s5 + $0x238] sm:$0xff]
  %v2695 = vld [vmem:[%s5 + $0x240] sm:$0xff]
  %v2696 = vld [vmem:[%s5 + $0x248] sm:$0xff]
  %v2697 = vld [vmem:[%s5 + $0x250] sm:$0xff]
  %v2698 = vld [vmem:[%s5 + $0x258] sm:$0xff]
  %v2699 = vld [vmem:[%s5 + $0x260] sm:$0xff]
  %v2700 = vld [vmem:[%s5 + $0x268] sm:$0xff]
  %v2701 = vld [vmem:[%s5 + $0x270] sm:$0xff]
  %v2702 = vld [vmem:[%s5 + $0x278] sm:$0xff]
  %v2703 = vld [vmem:[%s5 + $0x280] sm:$0xff]
  %v2704 = vld [vmem:[%s5 + $0x288] sm:$0xff]
  %v2705 = vld [vmem:[%s5 + $0x290] sm:$0xff]
  %v2706 = vld [vmem:[%s5 + $0x298] sm:$0xff]
  %v2707 = vld [vmem:[%s5 + $0x2a0] sm:$0xff]
  %v2708 = vld [vmem:[%s5 + $0x2a8] sm:$0xff]
  %v2709 = vld [vmem:[%s5 + $0x2b0] sm:$0xff]
  %v2710 = vld [vmem:[%s5 + $0x2b8] sm:$0xff]
  %v2711 = vld [vmem:[%s5 + $0x2c0] sm:$0xff]
  %v2712 = vld [vmem:[%s5 + $0x2c8] sm:$0xff]
  %v2713 = vld [vmem:[%s5 + $0x2d0] sm:$0xff]
  %v2714 = vld [vmem:[%s5 + $0x2d8] sm:$0xff]
  %v2715 = vld [vmem:[%s5 + $0x2e0] sm:$0xff]
  %v2716 = vld [vmem:[%s5 + $0x2e8] sm:$0xff]
  %v2717 = vld [vmem:[%s5 + $0x2f0] sm:$0xff]
  %v2718 = vld [vmem:[%s5 + $0x2f8] sm:$0xff]
  %v2719 = vld [vmem:[%s5 + $0x300] sm:$0xff]
  %v2720 = vld [vmem:[%s5 + $0x308] sm:$0xff]
  %v2721 = vld [vmem:[%s5 + $0x310] sm:$0xff]
  %v2722 = vld [vmem:[%s5 + $0x318] sm:$0xff]
  %v2723 = vld [vmem:[%s5 + $0x320] sm:$0xff]
  %v2724 = vld [vmem:[%s5 + $0x328] sm:$0xff]
  %v2725 = vld [vmem:[%s5 + $0x330] sm:$0xff]
  %v2726 = vld [vmem:[%s5 + $0x338] sm:$0xff]
  %v2727 = vld [vmem:[%s5 + $0x340] sm:$0xff]
  %v2728 = vld [vmem:[%s5 + $0x348] sm:$0xff]
  %v2729 = vld [vmem:[%s5 + $0x350] sm:$0xff]
  %v2730 = vld [vmem:[%s5 + $0x358] sm:$0xff]
  %v2731 = vld [vmem:[%s5 + $0x360] sm:$0xff]
  %v2732 = vld [vmem:[%s5 + $0x368] sm:$0xff]
  %v2733 = vld [vmem:[%s5 + $0x370] sm:$0xff]
  %v2734 = vld [vmem:[%s5 + $0x378] sm:$0xff]
  %v2735 = vld [vmem:[%s5 + $0x380] sm:$0xff]
  %v2736 = vld [vmem:[%s5 + $0x388] sm:$0xff]
  %v2737 = vld [vmem:[%s5 + $0x390] sm:$0xff]
  %v2738 = vld [vmem:[%s5 + $0x398] sm:$0xff]
  %v2739 = vld [vmem:[%s5 + $0x3a0] sm:$0xff]
  %v2740 = vld [vmem:[%s5 + $0x3a8] sm:$0xff]
  %v2741 = vld [vmem:[%s5 + $0x3b0] sm:$0xff]
  %v2742 = vld [vmem:[%s5 + $0x3b8] sm:$0xff]
  %v2743 = vld [vmem:[%s5 + $0x3c0] sm:$0xff]
  %v2744 = vld [vmem:[%s5 + $0x3c8] sm:$0xff]
  %v2745 = vld [vmem:[%s5 + $0x3d0] sm:$0xff]
  %v2746 = vld [vmem:[%s5 + $0x3d8] sm:$0xff]
  %v2747 = vld [vmem:[%s5 + $0x3e0] sm:$0xff]
  %v2748 = vld [vmem:[%s5 + $0x3e8] sm:$0xff]
  %v2749 = vld [vmem:[%s5 + $0x3f0] sm:$0xff]
  %v2750 = vld [vmem:[%s5 + $0x3f8] sm:$0xff]
  %2751 = vmatprep.subr.mxu0 %v2624
  %2752 = vmatpush1.msra.mxu0 %v2623
  %2753 = vmatprep.subr.mxu0 %v2628
  %2754 = vmatpush1.msra.mxu0 %v2627
  %2755 = vmatprep.subr.mxu0 %v2632
  %2756 = vmatpush1.msra.mxu0 %v2631
  %2757 = vmatprep.subr.mxu0 %v2636
  %2758 = vmatpush1.msra.mxu0 %v2635
  %2759 = vmatprep.subr.mxu0 %v2640
  %2760 = vmatpush1.msra.mxu0 %v2639
  %2761 = vmatprep.subr.mxu0 %v2644
  %2762 = vmatpush1.msra.mxu0 %v2643
  %2763 = vmatprep.subr.mxu0 %v2648
  %2764 = vmatpush1.msra.mxu0 %v2647
  %2765 = vmatprep.subr.mxu0 %v2652
  %2766 = vmatpush1.msra.mxu0 %v2651
  %2767 = vmatprep.subr.mxu0 %v2656
  %2768 = vmatpush1.msra.mxu0 %v2655
  %2769 = vmatprep.subr.mxu0 %v2660
  %2770 = vmatpush1.msra.mxu0 %v2659
  %2771 = vmatprep.subr.mxu0 %v2664
  %2772 = vmatpush1.msra.mxu0 %v2663
  %2773 = vmatprep.subr.mxu0 %v2668
  %2774 = vmatpush1.msra.mxu0 %v2667
  %2775 = vmatprep.subr.mxu0 %v2672
  %2776 = vmatpush1.msra.mxu0 %v2671
  %2777 = vmatprep.subr.mxu0 %v2676
  %2778 = vmatpush1.msra.mxu0 %v2675
  %2779 = vmatprep.subr.mxu0 %v2680
  %2780 = vmatpush1.msra.mxu0 %v2679
  %2781 = vmatprep.subr.mxu0 %v2684
  %2782 = vmatpush1.msra.mxu0 %v2683
  %2783 = vmatprep.subr.mxu0 %v2688
  %2784 = vmatpush1.msra.mxu0 %v2687
  %2785 = vmatprep.subr.mxu0 %v2692
  %2786 = vmatpush1.msra.mxu0 %v2691
  %2787 = vmatprep.subr.mxu0 %v2696
  %2788 = vmatpush1.msra.mxu0 %v2695
  %2789 = vmatprep.subr.mxu0 %v2700
  %2790 = vmatpush1.msra.mxu0 %v2699
  %2791 = vmatprep.subr.mxu0 %v2704
  %2792 = vmatpush1.msra.mxu0 %v2703
  %2793 = vmatprep.subr.mxu0 %v2708
  %2794 = vmatpush1.msra.mxu0 %v2707
  %2795 = vmatprep.subr.mxu0 %v2712
  %2796 = vmatpush1.msra.mxu0 %v2711
  %2797 = vmatprep.subr.mxu0 %v2716
  %2798 = vmatpush1.msra.mxu0 %v2715
  %2799 = vmatprep.subr.mxu0 %v2720
  %2800 = vmatpush1.msra.mxu0 %v2719
  %2801 = vmatprep.subr.mxu0 %v2724
  %2802 = vmatpush1.msra.mxu0 %v2723
  %2803 = vmatprep.subr.mxu0 %v2728
  %2804 = vmatpush1.msra.mxu0 %v2727
  %2805 = vmatprep.subr.mxu0 %v2732
  %2806 = vmatpush1.msra.mxu0 %v2731
  %2807 = vmatprep.subr.mxu0 %v2736
  %2808 = vmatpush1.msra.mxu0 %v2735
  %2809 = vmatprep.subr.mxu0 %v2740
  %2810 = vmatpush1.msra.mxu0 %v2739
  %2811 = vmatprep.subr.mxu0 %v2744
  %2812 = vmatpush1.msra.mxu0 %v2743
  %2813 = vmatprep.subr.mxu0 %v2748
  %2814 = vmatpush1.msra.mxu0 %v2747
  %2815 = vmatprep.mubr.f32.mxu0 %v2199
  %2816 = vmatmul.mubr.f32.gmra.mrb[0].mxu0 %v2622
  %v2817 = vpop.f32.mrb[0].mxu0
  %v2818 = vadd.f32 %v93, %v2817
  %v2819 = vpop.f32.mrb[0].mxu0
  %v2820 = vadd.f32 %v97, %v2819
  %2821 = vdwg.mxu0
  %2822 = vmatprep.subr.mxu0 %v2626
  %2823 = vmatpush1.msra.mxu0 %v2625
  %2824 = vmatprep.subr.mxu0 %v2630
  %2825 = vmatpush1.msra.mxu0 %v2629
  %2826 = vmatprep.subr.mxu0 %v2634
  %2827 = vmatpush1.msra.mxu0 %v2633
  %2828 = vmatprep.subr.mxu0 %v2638
  %2829 = vmatpush1.msra.mxu0 %v2637
  %2830 = vmatprep.subr.mxu0 %v2642
  %2831 = vmatpush1.msra.mxu0 %v2641
  %2832 = vmatprep.subr.mxu0 %v2646
  %2833 = vmatpush1.msra.mxu0 %v2645
  %2834 = vmatprep.subr.mxu0 %v2650
  %2835 = vmatpush1.msra.mxu0 %v2649
  %2836 = vmatprep.subr.mxu0 %v2654
  %2837 = vmatpush1.msra.mxu0 %v2653
  %2838 = vmatprep.subr.mxu0 %v2658
  %2839 = vmatpush1.msra.mxu0 %v2657
  %2840 = vmatprep.subr.mxu0 %v2662
  %2841 = vmatpush1.msra.mxu0 %v2661
  %2842 = vmatprep.subr.mxu0 %v2666
  %2843 = vmatpush1.msra.mxu0 %v2665
  %2844 = vmatprep.subr.mxu0 %v2670
  %2845 = vmatpush1.msra.mxu0 %v2669
  %2846 = vmatprep.subr.mxu0 %v2674
  %2847 = vmatpush1.msra.mxu0 %v2673
  %2848 = vmatprep.subr.mxu0 %v2678
  %2849 = vmatpush1.msra.mxu0 %v2677
  %2850 = vmatprep.subr.mxu0 %v2682
  %2851 = vmatpush1.msra.mxu0 %v2681
  %2852 = vmatprep.subr.mxu0 %v2686
  %2853 = vmatpush1.msra.mxu0 %v2685
  %2854 = vmatprep.subr.mxu0 %v2690
  %2855 = vmatpush1.msra.mxu0 %v2689
  %2856 = vmatprep.subr.mxu0 %v2694
  %2857 = vmatpush1.msra.mxu0 %v2693
  %2858 = vmatprep.subr.mxu0 %v2698
  %2859 = vmatpush1.msra.mxu0 %v2697
  %2860 = vmatprep.subr.mxu0 %v2702
  %2861 = vmatpush1.msra.mxu0 %v2701
  %2862 = vmatprep.subr.mxu0 %v2706
  %2863 = vmatpush1.msra.mxu0 %v2705
  %2864 = vmatprep.subr.mxu0 %v2710
  %2865 = vmatpush1.msra.mxu0 %v2709
  %2866 = vmatprep.subr.mxu0 %v2714
  %2867 = vmatpush1.msra.mxu0 %v2713
  %2868 = vmatprep.subr.mxu0 %v2718
  %2869 = vmatpush1.msra.mxu0 %v2717
  %2870 = vmatprep.subr.mxu0 %v2722
  %2871 = vmatpush1.msra.mxu0 %v2721
  %2872 = vmatprep.subr.mxu0 %v2726
  %2873 = vmatpush1.msra.mxu0 %v2725
  %2874 = vmatprep.subr.mxu0 %v2730
  %2875 = vmatpush1.msra.mxu0 %v2729
  %2876 = vmatprep.subr.mxu0 %v2734
  %2877 = vmatpush1.msra.mxu0 %v2733
  %2878 = vmatprep.subr.mxu0 %v2738
  %2879 = vmatpush1.msra.mxu0 %v2737
  %2880 = vmatprep.subr.mxu0 %v2742
  %2881 = vmatpush1.msra.mxu0 %v2741
  %2882 = vmatprep.subr.mxu0 %v2746
  %2883 = vmatpush1.msra.mxu0 %v2745
  %2884 = vmatprep.subr.mxu0 %v2750
  %2885 = vmatpush1.msra.mxu0 %v2749
  %2886 = vmatprep.mubr.f32.mxu0 %v2199
  %2887 = vmatmul.mubr.f32.gmra.mrb[0].mxu0 %v2622
  %v2888 = vpop.f32.mrb[0].mxu0
  %v2889 = vadd.f32 %v101, %v2888
  %v2890 = vpop.f32.mrb[0].mxu0
  %v2891 = vadd.f32 %v105, %v2890
  %2892 = vdwg.mxu0
  %v2893 = vxor.u32 %v2818, 2147483648
  %v2894 = vmul.f32 %v2893, 1.442695
  %v2895 = vpow.pop %v2894
  %v2896 = vadd.f32 %v2895, 1.0
  %v2897 = vrcp.pop %v2896
  %v2898 = vmul.f32 1.0, %v2897
  %v2899 = vxor.u32 %v2820, 2147483648
  %v2900 = vmul.f32 %v2899, 1.442695
  %v2901 = vpow.pop %v2900
  %v2902 = vadd.f32 %v2901, 1.0
  %v2903 = vrcp.pop %v2902
  %v2904 = vmul.f32 1.0, %v2903
  %v2905 = vtanh.pop %v2889
  %v2906 = vxor.u32 %v2891, 2147483648
  %v2907 = vmul.f32 %v2906, 1.442695
  %v2908 = vpow.pop %v2907
  %v2909 = vadd.f32 %v2908, 1.0
  %v2910 = vrcp.pop %v2909
  %v2911 = vmul.f32 1.0, %v2910
  %v2912 = vmul.f32 %v2904, %v2197
  %v2913 = vmul.f32 %v2898, %v2905
  %v2914 = vadd.f32 %v2912, %v2913
  %v2915 = vtanh.pop %v2914
  %v2916 = vmul.f32 %v2911, %v2915
  %2917 = vadd.xlane.f32.xlu0 %v2916
  %v2918 = vpop.xlane.xlu0 %2917
  %v2919 = vmul.f32 %v2918, 0.03125
  %v2920 = vmul.f32 %v2916, %v2916
  %2921 = vadd.xlane.f32.xlu0 %v2920
  %v2922 = vpop.xlane.xlu0 %2921
  %v2923 = vmul.f32 %v2922, 0.03125
  %v2924 = vmul.f32 %v2919, %v2919
  %v2925 = vsub.f32 %v2923, %v2924
  %v2926 = vmax.f32 %v2925, 0.0
  %v2927 = vsub.f32 %v2916, %v2919
  %v2928 = vadd.f32 %v2926, 1e-05
  %v2929 = vrsqrt.pop %v2928
  %v2930 = vmul.f32 %v2927, %v2929
  %v2931 = vmul.f32 %v2930, %v115
  %v2932 = vadd.f32 %v2931, %v122
  %v2934 = vcombine.high %v2932, %v2932
  %v2936 = vunpack.c.l.s4 1966171168
  %v2937 = vunpack.c.0.s8 %v2936
  %v2938 = vlaneseq
  %v2939 = vshrl.u32 %v2938, 7
  %v2940 = vsub.s32 %v2937, %v2939
  %v2941 = vrot.slane %v2932, %v2940
  %v2943 = vunpack.c.l.s4 1966171168
  %v2944 = vunpack.c.0.s8 %v2943
  %v2945 = vlaneseq
  %v2946 = vshrl.u32 %v2945, 7
  %v2947 = vsub.s32 %v2944, %v2946
  %v2948 = vrot.slane %v2934, %v2947
  %v2949 = vcombine.high %v2941, %v2941
  %v2950 = vcombine.high %v2948, %v2948
  %v2952 = vunpack.c.l.s4 1966171168
  %v2953 = vunpack.c.0.s8 %v2952
  %v2954 = vlaneseq
  %v2955 = vshrl.u32 %v2954, 7
  %v2956 = vsub.s32 %v2953, %v2955
  %v2957 = vrot.slane %v2941, %v2956
  %v2959 = vunpack.c.l.s4 1966171168
  %v2960 = vunpack.c.0.s8 %v2959
  %v2961 = vlaneseq
  %v2962 = vshrl.u32 %v2961, 7
  %v2963 = vsub.s32 %v2960, %v2962
  %v2964 = vrot.slane %v2948, %v2963
  %v2966 = vunpack.c.l.s4 1966171168
  %v2967 = vunpack.c.0.s8 %v2966
  %v2968 = vlaneseq
  %v2969 = vshrl.u32 %v2968, 7
  %v2970 = vsub.s32 %v2967, %v2969
  %v2971 = vrot.slane %v2949, %v2970
  %v2973 = vunpack.c.l.s4 1966171168
  %v2974 = vunpack.c.0.s8 %v2973
  %v2975 = vlaneseq
  %v2976 = vshrl.u32 %v2975, 7
  %v2977 = vsub.s32 %v2974, %v2976
  %v2978 = vrot.slane %v2950, %v2977
  %v2979 = vcombine.high %v2957, %v2957
  %v2980 = vcombine.high %v2964, %v2964
  %v2981 = vcombine.high %v2971, %v2971
  %v2982 = vcombine.high %v2978, %v2978
  %2991 = vst [vmem:[#allocation4 + $0x3] sm:$0x1] %v2957
  %2992 = vst [vmem:[#allocation4 + $0xb] sm:$0x1] %v2971
  %2993 = vst [vmem:[#allocation4 + $0x13] sm:$0x1] %v2979
  %2994 = vst [vmem:[#allocation4 + $0x1b] sm:$0x1] %v2981
  %2995 = vst [vmem:[#allocation4 + $0x23] sm:$0x1] %v2964
  %2996 = vst [vmem:[#allocation4 + $0x2b] sm:$0x1] %v2978
  %2997 = vst [vmem:[#allocation4 + $0x33] sm:$0x1] %v2980
  %2998 = vst [vmem:[#allocation4 + $0x3b] sm:$0x1] %v2982
  %v2999 = vld [vmem:[%s0 + $0x4] sm:$0x1]
  %v3000 = vld [vmem:[%s0 + $0xc] sm:$0x1]
  %v3001 = vld [vmem:[%s0 + $0x14] sm:$0x1]
  %v3002 = vld [vmem:[%s0 + $0x1c] sm:$0x1]
  %v3003 = vld [vmem:[%s0 + $0x24] sm:$0x1]
  %v3004 = vld [vmem:[%s0 + $0x2c] sm:$0x1]
  %v3005 = vld [vmem:[%s0 + $0x34] sm:$0x1]
  %v3006 = vld [vmem:[%s0 + $0x3c] sm:$0x1]
  %v3015 = vrot.slane %v3000, 7
  %v3016 = vsel %vm141, %v3015, %v2999
  %v3017 = vrot.slane %v3001, 6
  %v3018 = vsel %vm144, %v3017, %v3016
  %v3019 = vrot.slane %v3002, 5
  %v3020 = vsel %vm147, %v3019, %v3018
  %v3021 = vrot.slane %v3003, 4
  %v3022 = vsel %vm150, %v3021, %v3020
  %v3023 = vrot.slane %v3004, 3
  %v3024 = vsel %vm153, %v3023, %v3022
  %v3025 = vrot.slane %v3005, 2
  %v3026 = vsel %vm156, %v3025, %v3024
  %v3027 = vrot.slane %v3006, 1
  %v3028 = vsel %vm159, %v3027, %v3026
  %v3030 = vld [vmem:[%s1] sm:$0xff]
  %v3031 = vld [vmem:[%s1 + $0x8] sm:$0xff]
  %v3032 = vld [vmem:[%s1 + $0x10] sm:$0xff]
  %v3033 = vld [vmem:[%s1 + $0x18] sm:$0xff]
  %v3034 = vld [vmem:[%s1 + $0x20] sm:$0xff]
  %v3035 = vld [vmem:[%s1 + $0x28] sm:$0xff]
  %v3036 = vld [vmem:[%s1 + $0x30] sm:$0xff]
  %v3037 = vld [vmem:[%s1 + $0x38] sm:$0xff]
  %v3038 = vld [vmem:[%s1 + $0x40] sm:$0xff]
  %v3039 = vld [vmem:[%s1 + $0x48] sm:$0xff]
  %v3040 = vld [vmem:[%s1 + $0x50] sm:$0xff]
  %v3041 = vld [vmem:[%s1 + $0x58] sm:$0xff]
  %v3042 = vld [vmem:[%s1 + $0x60] sm:$0xff]
  %v3043 = vld [vmem:[%s1 + $0x68] sm:$0xff]
  %v3044 = vld [vmem:[%s1 + $0x70] sm:$0xff]
  %v3045 = vld [vmem:[%s1 + $0x78] sm:$0xff]
  %v3046 = vld [vmem:[%s1 + $0x80] sm:$0xff]
  %v3047 = vld [vmem:[%s1 + $0x88] sm:$0xff]
  %v3048 = vld [vmem:[%s1 + $0x90] sm:$0xff]
  %v3049 = vld [vmem:[%s1 + $0x98] sm:$0xff]
  %v3050 = vld [vmem:[%s1 + $0xa0] sm:$0xff]
  %v3051 = vld [vmem:[%s1 + $0xa8] sm:$0xff]
  %v3052 = vld [vmem:[%s1 + $0xb0] sm:$0xff]
  %v3053 = vld [vmem:[%s1 + $0xb8] sm:$0xff]
  %v3054 = vld [vmem:[%s1 + $0xc0] sm:$0xff]
  %v3055 = vld [vmem:[%s1 + $0xc8] sm:$0xff]
  %v3056 = vld [vmem:[%s1 + $0xd0] sm:$0xff]
  %v3057 = vld [vmem:[%s1 + $0xd8] sm:$0xff]
  %v3058 = vld [vmem:[%s1 + $0xe0] sm:$0xff]
  %v3059 = vld [vmem:[%s1 + $0xe8] sm:$0xff]
  %v3060 = vld [vmem:[%s1 + $0xf0] sm:$0xff]
  %v3061 = vld [vmem:[%s1 + $0xf8] sm:$0xff]
  %v3062 = vld [vmem:[%s1 + $0x100] sm:$0xff]
  %v3063 = vld [vmem:[%s1 + $0x108] sm:$0xff]
  %v3064 = vld [vmem:[%s1 + $0x110] sm:$0xff]
  %v3065 = vld [vmem:[%s1 + $0x118] sm:$0xff]
  %v3066 = vld [vmem:[%s1 + $0x120] sm:$0xff]
  %v3067 = vld [vmem:[%s1 + $0x128] sm:$0xff]
  %v3068 = vld [vmem:[%s1 + $0x130] sm:$0xff]
  %v3069 = vld [vmem:[%s1 + $0x138] sm:$0xff]
  %v3070 = vld [vmem:[%s1 + $0x140] sm:$0xff]
  %v3071 = vld [vmem:[%s1 + $0x148] sm:$0xff]
  %v3072 = vld [vmem:[%s1 + $0x150] sm:$0xff]
  %v3073 = vld [vmem:[%s1 + $0x158] sm:$0xff]
  %v3074 = vld [vmem:[%s1 + $0x160] sm:$0xff]
  %v3075 = vld [vmem:[%s1 + $0x168] sm:$0xff]
  %v3076 = vld [vmem:[%s1 + $0x170] sm:$0xff]
  %v3077 = vld [vmem:[%s1 + $0x178] sm:$0xff]
  %v3078 = vld [vmem:[%s1 + $0x180] sm:$0xff]
  %v3079 = vld [vmem:[%s1 + $0x188] sm:$0xff]
  %v3080 = vld [vmem:[%s1 + $0x190] sm:$0xff]
  %v3081 = vld [vmem:[%s1 + $0x198] sm:$0xff]
  %v3082 = vld [vmem:[%s1 + $0x1a0] sm:$0xff]
  %v3083 = vld [vmem:[%s1 + $0x1a8] sm:$0xff]
  %v3084 = vld [vmem:[%s1 + $0x1b0] sm:$0xff]
  %v3085 = vld [vmem:[%s1 + $0x1b8] sm:$0xff]
  %v3086 = vld [vmem:[%s1 + $0x1c0] sm:$0xff]
  %v3087 = vld [vmem:[%s1 + $0x1c8] sm:$0xff]
  %v3088 = vld [vmem:[%s1 + $0x1d0] sm:$0xff]
  %v3089 = vld [vmem:[%s1 + $0x1d8] sm:$0xff]
  %v3090 = vld [vmem:[%s1 + $0x1e0] sm:$0xff]
  %v3091 = vld [vmem:[%s1 + $0x1e8] sm:$0xff]
  %v3092 = vld [vmem:[%s1 + $0x1f0] sm:$0xff]
  %v3093 = vld [vmem:[%s1 + $0x1f8] sm:$0xff]
  %v3094 = vld [vmem:[%s1 + $0x200] sm:$0xff]
  %v3095 = vld [vmem:[%s1 + $0x208] sm:$0xff]
  %v3096 = vld [vmem:[%s1 + $0x210] sm:$0xff]
  %v3097 = vld [vmem:[%s1 + $0x218] sm:$0xff]
  %v3098 = vld [vmem:[%s1 + $0x220] sm:$0xff]
  %v3099 = vld [vmem:[%s1 + $0x228] sm:$0xff]
  %v3100 = vld [vmem:[%s1 + $0x230] sm:$0xff]
  %v3101 = vld [vmem:[%s1 + $0x238] sm:$0xff]
  %v3102 = vld [vmem:[%s1 + $0x240] sm:$0xff]
  %v3103 = vld [vmem:[%s1 + $0x248] sm:$0xff]
  %v3104 = vld [vmem:[%s1 + $0x250] sm:$0xff]
  %v3105 = vld [vmem:[%s1 + $0x258] sm:$0xff]
  %v3106 = vld [vmem:[%s1 + $0x260] sm:$0xff]
  %v3107 = vld [vmem:[%s1 + $0x268] sm:$0xff]
  %v3108 = vld [vmem:[%s1 + $0x270] sm:$0xff]
  %v3109 = vld [vmem:[%s1 + $0x278] sm:$0xff]
  %v3110 = vld [vmem:[%s1 + $0x280] sm:$0xff]
  %v3111 = vld [vmem:[%s1 + $0x288] sm:$0xff]
  %v3112 = vld [vmem:[%s1 + $0x290] sm:$0xff]
  %v3113 = vld [vmem:[%s1 + $0x298] sm:$0xff]
  %v3114 = vld [vmem:[%s1 + $0x2a0] sm:$0xff]
  %v3115 = vld [vmem:[%s1 + $0x2a8] sm:$0xff]
  %v3116 = vld [vmem:[%s1 + $0x2b0] sm:$0xff]
  %v3117 = vld [vmem:[%s1 + $0x2b8] sm:$0xff]
  %v3118 = vld [vmem:[%s1 + $0x2c0] sm:$0xff]
  %v3119 = vld [vmem:[%s1 + $0x2c8] sm:$0xff]
  %v3120 = vld [vmem:[%s1 + $0x2d0] sm:$0xff]
  %v3121 = vld [vmem:[%s1 + $0x2d8] sm:$0xff]
  %v3122 = vld [vmem:[%s1 + $0x2e0] sm:$0xff]
  %v3123 = vld [vmem:[%s1 + $0x2e8] sm:$0xff]
  %v3124 = vld [vmem:[%s1 + $0x2f0] sm:$0xff]
  %v3125 = vld [vmem:[%s1 + $0x2f8] sm:$0xff]
  %v3126 = vld [vmem:[%s1 + $0x300] sm:$0xff]
  %v3127 = vld [vmem:[%s1 + $0x308] sm:$0xff]
  %v3128 = vld [vmem:[%s1 + $0x310] sm:$0xff]
  %v3129 = vld [vmem:[%s1 + $0x318] sm:$0xff]
  %v3130 = vld [vmem:[%s1 + $0x320] sm:$0xff]
  %v3131 = vld [vmem:[%s1 + $0x328] sm:$0xff]
  %v3132 = vld [vmem:[%s1 + $0x330] sm:$0xff]
  %v3133 = vld [vmem:[%s1 + $0x338] sm:$0xff]
  %v3134 = vld [vmem:[%s1 + $0x340] sm:$0xff]
  %v3135 = vld [vmem:[%s1 + $0x348] sm:$0xff]
  %v3136 = vld [vmem:[%s1 + $0x350] sm:$0xff]
  %v3137 = vld [vmem:[%s1 + $0x358] sm:$0xff]
  %v3138 = vld [vmem:[%s1 + $0x360] sm:$0xff]
  %v3139 = vld [vmem:[%s1 + $0x368] sm:$0xff]
  %v3140 = vld [vmem:[%s1 + $0x370] sm:$0xff]
  %v3141 = vld [vmem:[%s1 + $0x378] sm:$0xff]
  %v3142 = vld [vmem:[%s1 + $0x380] sm:$0xff]
  %v3143 = vld [vmem:[%s1 + $0x388] sm:$0xff]
  %v3144 = vld [vmem:[%s1 + $0x390] sm:$0xff]
  %v3145 = vld [vmem:[%s1 + $0x398] sm:$0xff]
  %v3146 = vld [vmem:[%s1 + $0x3a0] sm:$0xff]
  %v3147 = vld [vmem:[%s1 + $0x3a8] sm:$0xff]
  %v3148 = vld [vmem:[%s1 + $0x3b0] sm:$0xff]
  %v3149 = vld [vmem:[%s1 + $0x3b8] sm:$0xff]
  %v3150 = vld [vmem:[%s1 + $0x3c0] sm:$0xff]
  %v3151 = vld [vmem:[%s1 + $0x3c8] sm:$0xff]
  %v3152 = vld [vmem:[%s1 + $0x3d0] sm:$0xff]
  %v3153 = vld [vmem:[%s1 + $0x3d8] sm:$0xff]
  %v3154 = vld [vmem:[%s1 + $0x3e0] sm:$0xff]
  %v3155 = vld [vmem:[%s1 + $0x3e8] sm:$0xff]
  %v3156 = vld [vmem:[%s1 + $0x3f0] sm:$0xff]
  %v3157 = vld [vmem:[%s1 + $0x3f8] sm:$0xff]
  %3158 = vmatprep.subr.mxu0 %v3031
  %3159 = vmatpush1.msra.mxu0 %v3030
  %3160 = vmatprep.subr.mxu0 %v3035
  %3161 = vmatpush1.msra.mxu0 %v3034
  %3162 = vmatprep.subr.mxu0 %v3039
  %3163 = vmatpush1.msra.mxu0 %v3038
  %3164 = vmatprep.subr.mxu0 %v3043
  %3165 = vmatpush1.msra.mxu0 %v3042
  %3166 = vmatprep.subr.mxu0 %v3047
  %3167 = vmatpush1.msra.mxu0 %v3046
  %3168 = vmatprep.subr.mxu0 %v3051
  %3169 = vmatpush1.msra.mxu0 %v3050
  %3170 = vmatprep.subr.mxu0 %v3055
  %3171 = vmatpush1.msra.mxu0 %v3054
  %3172 = vmatprep.subr.mxu0 %v3059
  %3173 = vmatpush1.msra.mxu0 %v3058
  %3174 = vmatprep.subr.mxu0 %v3063
  %3175 = vmatpush1.msra.mxu0 %v3062
  %3176 = vmatprep.subr.mxu0 %v3067
  %3177 = vmatpush1.msra.mxu0 %v3066
  %3178 = vmatprep.subr.mxu0 %v3071
  %3179 = vmatpush1.msra.mxu0 %v3070
  %3180 = vmatprep.subr.mxu0 %v3075
  %3181 = vmatpush1.msra.mxu0 %v3074
  %3182 = vmatprep.subr.mxu0 %v3079
  %3183 = vmatpush1.msra.mxu0 %v3078
  %3184 = vmatprep.subr.mxu0 %v3083
  %3185 = vmatpush1.msra.mxu0 %v3082
  %3186 = vmatprep.subr.mxu0 %v3087
  %3187 = vmatpush1.msra.mxu0 %v3086
  %3188 = vmatprep.subr.mxu0 %v3091
  %3189 = vmatpush1.msra.mxu0 %v3090
  %3190 = vmatprep.subr.mxu0 %v3095
  %3191 = vmatpush1.msra.mxu0 %v3094
  %3192 = vmatprep.subr.mxu0 %v3099
  %3193 = vmatpush1.msra.mxu0 %v3098
  %3194 = vmatprep.subr.mxu0 %v3103
  %3195 = vmatpush1.msra.mxu0 %v3102
  %3196 = vmatprep.subr.mxu0 %v3107
  %3197 = vmatpush1.msra.mxu0 %v3106
  %3198 = vmatprep.subr.mxu0 %v3111
  %3199 = vmatpush1.msra.mxu0 %v3110
  %3200 = vmatprep.subr.mxu0 %v3115
  %3201 = vmatpush1.msra.mxu0 %v3114
  %3202 = vmatprep.subr.mxu0 %v3119
  %3203 = vmatpush1.msra.mxu0 %v3118
  %3204 = vmatprep.subr.mxu0 %v3123
  %3205 = vmatpush1.msra.mxu0 %v3122
  %3206 = vmatprep.subr.mxu0 %v3127
  %3207 = vmatpush1.msra.mxu0 %v3126
  %3208 = vmatprep.subr.mxu0 %v3131
  %3209 = vmatpush1.msra.mxu0 %v3130
  %3210 = vmatprep.subr.mxu0 %v3135
  %3211 = vmatpush1.msra.mxu0 %v3134
  %3212 = vmatprep.subr.mxu0 %v3139
  %3213 = vmatpush1.msra.mxu0 %v3138
  %3214 = vmatprep.subr.mxu0 %v3143
  %3215 = vmatpush1.msra.mxu0 %v3142
  %3216 = vmatprep.subr.mxu0 %v3147
  %3217 = vmatpush1.msra.mxu0 %v3146
  %3218 = vmatprep.subr.mxu0 %v3151
  %3219 = vmatpush1.msra.mxu0 %v3150
  %3220 = vmatprep.subr.mxu0 %v3155
  %3221 = vmatpush1.msra.mxu0 %v3154
  %3222 = vmatprep.mubr.f32.mxu0 %v2606
  %3223 = vmatmul.mubr.f32.gmra.mrb[0].mxu0 %v3028
  %v3224 = vpop.f32.mrb[0].mxu0
  %v3225 = vadd.f32 %v57, %v3224
  %v3226 = vpop.f32.mrb[0].mxu0
  %v3227 = vadd.f32 %v61, %v3226
  %3228 = vdwg.mxu0
  %3229 = vmatprep.subr.mxu0 %v3033
  %3230 = vmatpush1.msra.mxu0 %v3032
  %3231 = vmatprep.subr.mxu0 %v3037
  %3232 = vmatpush1.msra.mxu0 %v3036
  %3233 = vmatprep.subr.mxu0 %v3041
  %3234 = vmatpush1.msra.mxu0 %v3040
  %3235 = vmatprep.subr.mxu0 %v3045
  %3236 = vmatpush1.msra.mxu0 %v3044
  %3237 = vmatprep.subr.mxu0 %v3049
  %3238 = vmatpush1.msra.mxu0 %v3048
  %3239 = vmatprep.subr.mxu0 %v3053
  %3240 = vmatpush1.msra.mxu0 %v3052
  %3241 = vmatprep.subr.mxu0 %v3057
  %3242 = vmatpush1.msra.mxu0 %v3056
  %3243 = vmatprep.subr.mxu0 %v3061
  %3244 = vmatpush1.msra.mxu0 %v3060
  %3245 = vmatprep.subr.mxu0 %v3065
  %3246 = vmatpush1.msra.mxu0 %v3064
  %3247 = vmatprep.subr.mxu0 %v3069
  %3248 = vmatpush1.msra.mxu0 %v3068
  %3249 = vmatprep.subr.mxu0 %v3073
  %3250 = vmatpush1.msra.mxu0 %v3072
  %3251 = vmatprep.subr.mxu0 %v3077
  %3252 = vmatpush1.msra.mxu0 %v3076
  %3253 = vmatprep.subr.mxu0 %v3081
  %3254 = vmatpush1.msra.mxu0 %v3080
  %3255 = vmatprep.subr.mxu0 %v3085
  %3256 = vmatpush1.msra.mxu0 %v3084
  %3257 = vmatprep.subr.mxu0 %v3089
  %3258 = vmatpush1.msra.mxu0 %v3088
  %3259 = vmatprep.subr.mxu0 %v3093
  %3260 = vmatpush1.msra.mxu0 %v3092
  %3261 = vmatprep.subr.mxu0 %v3097
  %3262 = vmatpush1.msra.mxu0 %v3096
  %3263 = vmatprep.subr.mxu0 %v3101
  %3264 = vmatpush1.msra.mxu0 %v3100
  %3265 = vmatprep.subr.mxu0 %v3105
  %3266 = vmatpush1.msra.mxu0 %v3104
  %3267 = vmatprep.subr.mxu0 %v3109
  %3268 = vmatpush1.msra.mxu0 %v3108
  %3269 = vmatprep.subr.mxu0 %v3113
  %3270 = vmatpush1.msra.mxu0 %v3112
  %3271 = vmatprep.subr.mxu0 %v3117
  %3272 = vmatpush1.msra.mxu0 %v3116
  %3273 = vmatprep.subr.mxu0 %v3121
  %3274 = vmatpush1.msra.mxu0 %v3120
  %3275 = vmatprep.subr.mxu0 %v3125
  %3276 = vmatpush1.msra.mxu0 %v3124
  %3277 = vmatprep.subr.mxu0 %v3129
  %3278 = vmatpush1.msra.mxu0 %v3128
  %3279 = vmatprep.subr.mxu0 %v3133
  %3280 = vmatpush1.msra.mxu0 %v3132
  %3281 = vmatprep.subr.mxu0 %v3137
  %3282 = vmatpush1.msra.mxu0 %v3136
  %3283 = vmatprep.subr.mxu0 %v3141
  %3284 = vmatpush1.msra.mxu0 %v3140
  %3285 = vmatprep.subr.mxu0 %v3145
  %3286 = vmatpush1.msra.mxu0 %v3144
  %3287 = vmatprep.subr.mxu0 %v3149
  %3288 = vmatpush1.msra.mxu0 %v3148
  %3289 = vmatprep.subr.mxu0 %v3153
  %3290 = vmatpush1.msra.mxu0 %v3152
  %3291 = vmatprep.subr.mxu0 %v3157
  %3292 = vmatpush1.msra.mxu0 %v3156
  %3293 = vmatprep.mubr.f32.mxu0 %v2606
  %3294 = vmatmul.mubr.f32.gmra.mrb[0].mxu0 %v3028
  %v3295 = vpop.f32.mrb[0].mxu0
  %v3296 = vadd.f32 %v65, %v3295
  %v3297 = vpop.f32.mrb[0].mxu0
  %v3298 = vadd.f32 %v69, %v3297
  %3299 = vdwg.mxu0
  %v3300 = vxor.u32 %v3225, 2147483648
  %v3301 = vmul.f32 %v3300, 1.442695
  %v3302 = vpow.pop %v3301
  %v3303 = vadd.f32 %v3302, 1.0
  %v3304 = vrcp.pop %v3303
  %v3305 = vmul.f32 1.0, %v3304
  %v3306 = vxor.u32 %v3227, 2147483648
  %v3307 = vmul.f32 %v3306, 1.442695
  %v3308 = vpow.pop %v3307
  %v3309 = vadd.f32 %v3308, 1.0
  %v3310 = vrcp.pop %v3309
  %v3311 = vmul.f32 1.0, %v3310
  %v3312 = vtanh.pop %v3296
  %v3313 = vxor.u32 %v3298, 2147483648
  %v3314 = vmul.f32 %v3313, 1.442695
  %v3315 = vpow.pop %v3314
  %v3316 = vadd.f32 %v3315, 1.0
  %v3317 = vrcp.pop %v3316
  %v3318 = vmul.f32 1.0, %v3317
  %v3319 = vmul.f32 %v3311, %v2604
  %v3320 = vmul.f32 %v3305, %v3312
  %v3321 = vadd.f32 %v3319, %v3320
  %v3322 = vtanh.pop %v3321
  %v3323 = vmul.f32 %v3318, %v3322
  %3324 = vadd.xlane.f32.xlu0 %v3323
  %v3325 = vpop.xlane.xlu0 %3324
  %v3326 = vmul.f32 %v3325, 0.03125
  %v3327 = vmul.f32 %v3323, %v3323
  %3328 = vadd.xlane.f32.xlu0 %v3327
  %v3329 = vpop.xlane.xlu0 %3328
  %v3330 = vmul.f32 %v3329, 0.03125
  %v3331 = vmul.f32 %v3326, %v3326
  %v3332 = vsub.f32 %v3330, %v3331
  %v3333 = vmax.f32 %v3332, 0.0
  %v3334 = vsub.f32 %v3323, %v3326
  %v3335 = vadd.f32 %v3333, 1e-05
  %v3336 = vrsqrt.pop %v3335
  %v3337 = vmul.f32 %v3334, %v3336
  %v3338 = vmul.f32 %v3337, %v79
  %v3339 = vadd.f32 %v3338, %v86
  %v3340 = vld [vmem:[%s5] sm:$0xff]
  %v3341 = vld [vmem:[%s5 + $0x8] sm:$0xff]
  %v3342 = vld [vmem:[%s5 + $0x10] sm:$0xff]
  %v3343 = vld [vmem:[%s5 + $0x18] sm:$0xff]
  %v3344 = vld [vmem:[%s5 + $0x20] sm:$0xff]
  %v3345 = vld [vmem:[%s5 + $0x28] sm:$0xff]
  %v3346 = vld [vmem:[%s5 + $0x30] sm:$0xff]
  %v3347 = vld [vmem:[%s5 + $0x38] sm:$0xff]
  %v3348 = vld [vmem:[%s5 + $0x40] sm:$0xff]
  %v3349 = vld [vmem:[%s5 + $0x48] sm:$0xff]
  %v3350 = vld [vmem:[%s5 + $0x50] sm:$0xff]
  %v3351 = vld [vmem:[%s5 + $0x58] sm:$0xff]
  %v3352 = vld [vmem:[%s5 + $0x60] sm:$0xff]
  %v3353 = vld [vmem:[%s5 + $0x68] sm:$0xff]
  %v3354 = vld [vmem:[%s5 + $0x70] sm:$0xff]
  %v3355 = vld [vmem:[%s5 + $0x78] sm:$0xff]
  %v3356 = vld [vmem:[%s5 + $0x80] sm:$0xff]
  %v3357 = vld [vmem:[%s5 + $0x88] sm:$0xff]
  %v3358 = vld [vmem:[%s5 + $0x90] sm:$0xff]
  %v3359 = vld [vmem:[%s5 + $0x98] sm:$0xff]
  %v3360 = vld [vmem:[%s5 + $0xa0] sm:$0xff]
  %v3361 = vld [vmem:[%s5 + $0xa8] sm:$0xff]
  %v3362 = vld [vmem:[%s5 + $0xb0] sm:$0xff]
  %v3363 = vld [vmem:[%s5 + $0xb8] sm:$0xff]
  %v3364 = vld [vmem:[%s5 + $0xc0] sm:$0xff]
  %v3365 = vld [vmem:[%s5 + $0xc8] sm:$0xff]
  %v3366 = vld [vmem:[%s5 + $0xd0] sm:$0xff]
  %v3367 = vld [vmem:[%s5 + $0xd8] sm:$0xff]
  %v3368 = vld [vmem:[%s5 + $0xe0] sm:$0xff]
  %v3369 = vld [vmem:[%s5 + $0xe8] sm:$0xff]
  %v3370 = vld [vmem:[%s5 + $0xf0] sm:$0xff]
  %v3371 = vld [vmem:[%s5 + $0xf8] sm:$0xff]
  %v3372 = vld [vmem:[%s5 + $0x100] sm:$0xff]
  %v3373 = vld [vmem:[%s5 + $0x108] sm:$0xff]
  %v3374 = vld [vmem:[%s5 + $0x110] sm:$0xff]
  %v3375 = vld [vmem:[%s5 + $0x118] sm:$0xff]
  %v3376 = vld [vmem:[%s5 + $0x120] sm:$0xff]
  %v3377 = vld [vmem:[%s5 + $0x128] sm:$0xff]
  %v3378 = vld [vmem:[%s5 + $0x130] sm:$0xff]
  %v3379 = vld [vmem:[%s5 + $0x138] sm:$0xff]
  %v3380 = vld [vmem:[%s5 + $0x140] sm:$0xff]
  %v3381 = vld [vmem:[%s5 + $0x148] sm:$0xff]
  %v3382 = vld [vmem:[%s5 + $0x150] sm:$0xff]
  %v3383 = vld [vmem:[%s5 + $0x158] sm:$0xff]
  %v3384 = vld [vmem:[%s5 + $0x160] sm:$0xff]
  %v3385 = vld [vmem:[%s5 + $0x168] sm:$0xff]
  %v3386 = vld [vmem:[%s5 + $0x170] sm:$0xff]
  %v3387 = vld [vmem:[%s5 + $0x178] sm:$0xff]
  %v3388 = vld [vmem:[%s5 + $0x180] sm:$0xff]
  %v3389 = vld [vmem:[%s5 + $0x188] sm:$0xff]
  %v3390 = vld [vmem:[%s5 + $0x190] sm:$0xff]
  %v3391 = vld [vmem:[%s5 + $0x198] sm:$0xff]
  %v3392 = vld [vmem:[%s5 + $0x1a0] sm:$0xff]
  %v3393 = vld [vmem:[%s5 + $0x1a8] sm:$0xff]
  %v3394 = vld [vmem:[%s5 + $0x1b0] sm:$0xff]
  %v3395 = vld [vmem:[%s5 + $0x1b8] sm:$0xff]
  %v3396 = vld [vmem:[%s5 + $0x1c0] sm:$0xff]
  %v3397 = vld [vmem:[%s5 + $0x1c8] sm:$0xff]
  %v3398 = vld [vmem:[%s5 + $0x1d0] sm:$0xff]
  %v3399 = vld [vmem:[%s5 + $0x1d8] sm:$0xff]
  %v3400 = vld [vmem:[%s5 + $0x1e0] sm:$0xff]
  %v3401 = vld [vmem:[%s5 + $0x1e8] sm:$0xff]
  %v3402 = vld [vmem:[%s5 + $0x1f0] sm:$0xff]
  %v3403 = vld [vmem:[%s5 + $0x1f8] sm:$0xff]
  %v3404 = vld [vmem:[%s5 + $0x200] sm:$0xff]
  %v3405 = vld [vmem:[%s5 + $0x208] sm:$0xff]
  %v3406 = vld [vmem:[%s5 + $0x210] sm:$0xff]
  %v3407 = vld [vmem:[%s5 + $0x218] sm:$0xff]
  %v3408 = vld [vmem:[%s5 + $0x220] sm:$0xff]
  %v3409 = vld [vmem:[%s5 + $0x228] sm:$0xff]
  %v3410 = vld [vmem:[%s5 + $0x230] sm:$0xff]
  %v3411 = vld [vmem:[%s5 + $0x238] sm:$0xff]
  %v3412 = vld [vmem:[%s5 + $0x240] sm:$0xff]
  %v3413 = vld [vmem:[%s5 + $0x248] sm:$0xff]
  %v3414 = vld [vmem:[%s5 + $0x250] sm:$0xff]
  %v3415 = vld [vmem:[%s5 + $0x258] sm:$0xff]
  %v3416 = vld [vmem:[%s5 + $0x260] sm:$0xff]
  %v3417 = vld [vmem:[%s5 + $0x268] sm:$0xff]
  %v3418 = vld [vmem:[%s5 + $0x270] sm:$0xff]
  %v3419 = vld [vmem:[%s5 + $0x278] sm:$0xff]
  %v3420 = vld [vmem:[%s5 + $0x280] sm:$0xff]
  %v3421 = vld [vmem:[%s5 + $0x288] sm:$0xff]
  %v3422 = vld [vmem:[%s5 + $0x290] sm:$0xff]
  %v3423 = vld [vmem:[%s5 + $0x298] sm:$0xff]
  %v3424 = vld [vmem:[%s5 + $0x2a0] sm:$0xff]
  %v3425 = vld [vmem:[%s5 + $0x2a8] sm:$0xff]
  %v3426 = vld [vmem:[%s5 + $0x2b0] sm:$0xff]
  %v3427 = vld [vmem:[%s5 + $0x2b8] sm:$0xff]
  %v3428 = vld [vmem:[%s5 + $0x2c0] sm:$0xff]
  %v3429 = vld [vmem:[%s5 + $0x2c8] sm:$0xff]
  %v3430 = vld [vmem:[%s5 + $0x2d0] sm:$0xff]
  %v3431 = vld [vmem:[%s5 + $0x2d8] sm:$0xff]
  %v3432 = vld [vmem:[%s5 + $0x2e0] sm:$0xff]
  %v3433 = vld [vmem:[%s5 + $0x2e8] sm:$0xff]
  %v3434 = vld [vmem:[%s5 + $0x2f0] sm:$0xff]
  %v3435 = vld [vmem:[%s5 + $0x2f8] sm:$0xff]
  %v3436 = vld [vmem:[%s5 + $0x300] sm:$0xff]
  %v3437 = vld [vmem:[%s5 + $0x308] sm:$0xff]
  %v3438 = vld [vmem:[%s5 + $0x310] sm:$0xff]
  %v3439 = vld [vmem:[%s5 + $0x318] sm:$0xff]
  %v3440 = vld [vmem:[%s5 + $0x320] sm:$0xff]
  %v3441 = vld [vmem:[%s5 + $0x328] sm:$0xff]
  %v3442 = vld [vmem:[%s5 + $0x330] sm:$0xff]
  %v3443 = vld [vmem:[%s5 + $0x338] sm:$0xff]
  %v3444 = vld [vmem:[%s5 + $0x340] sm:$0xff]
  %v3445 = vld [vmem:[%s5 + $0x348] sm:$0xff]
  %v3446 = vld [vmem:[%s5 + $0x350] sm:$0xff]
  %v3447 = vld [vmem:[%s5 + $0x358] sm:$0xff]
  %v3448 = vld [vmem:[%s5 + $0x360] sm:$0xff]
  %v3449 = vld [vmem:[%s5 + $0x368] sm:$0xff]
  %v3450 = vld [vmem:[%s5 + $0x370] sm:$0xff]
  %v3451 = vld [vmem:[%s5 + $0x378] sm:$0xff]
  %v3452 = vld [vmem:[%s5 + $0x380] sm:$0xff]
  %v3453 = vld [vmem:[%s5 + $0x388] sm:$0xff]
  %v3454 = vld [vmem:[%s5 + $0x390] sm:$0xff]
  %v3455 = vld [vmem:[%s5 + $0x398] sm:$0xff]
  %v3456 = vld [vmem:[%s5 + $0x3a0] sm:$0xff]
  %v3457 = vld [vmem:[%s5 + $0x3a8] sm:$0xff]
  %v3458 = vld [vmem:[%s5 + $0x3b0] sm:$0xff]
  %v3459 = vld [vmem:[%s5 + $0x3b8] sm:$0xff]
  %v3460 = vld [vmem:[%s5 + $0x3c0] sm:$0xff]
  %v3461 = vld [vmem:[%s5 + $0x3c8] sm:$0xff]
  %v3462 = vld [vmem:[%s5 + $0x3d0] sm:$0xff]
  %v3463 = vld [vmem:[%s5 + $0x3d8] sm:$0xff]
  %v3464 = vld [vmem:[%s5 + $0x3e0] sm:$0xff]
  %v3465 = vld [vmem:[%s5 + $0x3e8] sm:$0xff]
  %v3466 = vld [vmem:[%s5 + $0x3f0] sm:$0xff]
  %v3467 = vld [vmem:[%s5 + $0x3f8] sm:$0xff]
  %3468 = vmatprep.subr.mxu0 %v3341
  %3469 = vmatpush1.msra.mxu0 %v3340
  %3470 = vmatprep.subr.mxu0 %v3345
  %3471 = vmatpush1.msra.mxu0 %v3344
  %3472 = vmatprep.subr.mxu0 %v3349
  %3473 = vmatpush1.msra.mxu0 %v3348
  %3474 = vmatprep.subr.mxu0 %v3353
  %3475 = vmatpush1.msra.mxu0 %v3352
  %3476 = vmatprep.subr.mxu0 %v3357
  %3477 = vmatpush1.msra.mxu0 %v3356
  %3478 = vmatprep.subr.mxu0 %v3361
  %3479 = vmatpush1.msra.mxu0 %v3360
  %3480 = vmatprep.subr.mxu0 %v3365
  %3481 = vmatpush1.msra.mxu0 %v3364
  %3482 = vmatprep.subr.mxu0 %v3369
  %3483 = vmatpush1.msra.mxu0 %v3368
  %3484 = vmatprep.subr.mxu0 %v3373
  %3485 = vmatpush1.msra.mxu0 %v3372
  %3486 = vmatprep.subr.mxu0 %v3377
  %3487 = vmatpush1.msra.mxu0 %v3376
  %3488 = vmatprep.subr.mxu0 %v3381
  %3489 = vmatpush1.msra.mxu0 %v3380
  %3490 = vmatprep.subr.mxu0 %v3385
  %3491 = vmatpush1.msra.mxu0 %v3384
  %3492 = vmatprep.subr.mxu0 %v3389
  %3493 = vmatpush1.msra.mxu0 %v3388
  %3494 = vmatprep.subr.mxu0 %v3393
  %3495 = vmatpush1.msra.mxu0 %v3392
  %3496 = vmatprep.subr.mxu0 %v3397
  %3497 = vmatpush1.msra.mxu0 %v3396
  %3498 = vmatprep.subr.mxu0 %v3401
  %3499 = vmatpush1.msra.mxu0 %v3400
  %3500 = vmatprep.subr.mxu0 %v3405
  %3501 = vmatpush1.msra.mxu0 %v3404
  %3502 = vmatprep.subr.mxu0 %v3409
  %3503 = vmatpush1.msra.mxu0 %v3408
  %3504 = vmatprep.subr.mxu0 %v3413
  %3505 = vmatpush1.msra.mxu0 %v3412
  %3506 = vmatprep.subr.mxu0 %v3417
  %3507 = vmatpush1.msra.mxu0 %v3416
  %3508 = vmatprep.subr.mxu0 %v3421
  %3509 = vmatpush1.msra.mxu0 %v3420
  %3510 = vmatprep.subr.mxu0 %v3425
  %3511 = vmatpush1.msra.mxu0 %v3424
  %3512 = vmatprep.subr.mxu0 %v3429
  %3513 = vmatpush1.msra.mxu0 %v3428
  %3514 = vmatprep.subr.mxu0 %v3433
  %3515 = vmatpush1.msra.mxu0 %v3432
  %3516 = vmatprep.subr.mxu0 %v3437
  %3517 = vmatpush1.msra.mxu0 %v3436
  %3518 = vmatprep.subr.mxu0 %v3441
  %3519 = vmatpush1.msra.mxu0 %v3440
  %3520 = vmatprep.subr.mxu0 %v3445
  %3521 = vmatpush1.msra.mxu0 %v3444
  %3522 = vmatprep.subr.mxu0 %v3449
  %3523 = vmatpush1.msra.mxu0 %v3448
  %3524 = vmatprep.subr.mxu0 %v3453
  %3525 = vmatpush1.msra.mxu0 %v3452
  %3526 = vmatprep.subr.mxu0 %v3457
  %3527 = vmatpush1.msra.mxu0 %v3456
  %3528 = vmatprep.subr.mxu0 %v3461
  %3529 = vmatpush1.msra.mxu0 %v3460
  %3530 = vmatprep.subr.mxu0 %v3465
  %3531 = vmatpush1.msra.mxu0 %v3464
  %3532 = vmatprep.mubr.f32.mxu0 %v2916
  %3533 = vmatmul.mubr.f32.gmra.mrb[0].mxu0 %v3339
  %v3534 = vpop.f32.mrb[0].mxu0
  %v3535 = vadd.f32 %v93, %v3534
  %v3536 = vpop.f32.mrb[0].mxu0
  %v3537 = vadd.f32 %v97, %v3536
  %3538 = vdwg.mxu0
  %3539 = vmatprep.subr.mxu0 %v3343
  %3540 = vmatpush1.msra.mxu0 %v3342
  %3541 = vmatprep.subr.mxu0 %v3347
  %3542 = vmatpush1.msra.mxu0 %v3346
  %3543 = vmatprep.subr.mxu0 %v3351
  %3544 = vmatpush1.msra.mxu0 %v3350
  %3545 = vmatprep.subr.mxu0 %v3355
  %3546 = vmatpush1.msra.mxu0 %v3354
  %3547 = vmatprep.subr.mxu0 %v3359
  %3548 = vmatpush1.msra.mxu0 %v3358
  %3549 = vmatprep.subr.mxu0 %v3363
  %3550 = vmatpush1.msra.mxu0 %v3362
  %3551 = vmatprep.subr.mxu0 %v3367
  %3552 = vmatpush1.msra.mxu0 %v3366
  %3553 = vmatprep.subr.mxu0 %v3371
  %3554 = vmatpush1.msra.mxu0 %v3370
  %3555 = vmatprep.subr.mxu0 %v3375
  %3556 = vmatpush1.msra.mxu0 %v3374
  %3557 = vmatprep.subr.mxu0 %v3379
  %3558 = vmatpush1.msra.mxu0 %v3378
  %3559 = vmatprep.subr.mxu0 %v3383
  %3560 = vmatpush1.msra.mxu0 %v3382
  %3561 = vmatprep.subr.mxu0 %v3387
  %3562 = vmatpush1.msra.mxu0 %v3386
  %3563 = vmatprep.subr.mxu0 %v3391
  %3564 = vmatpush1.msra.mxu0 %v3390
  %3565 = vmatprep.subr.mxu0 %v3395
  %3566 = vmatpush1.msra.mxu0 %v3394
  %3567 = vmatprep.subr.mxu0 %v3399
  %3568 = vmatpush1.msra.mxu0 %v3398
  %3569 = vmatprep.subr.mxu0 %v3403
  %3570 = vmatpush1.msra.mxu0 %v3402
  %3571 = vmatprep.subr.mxu0 %v3407
  %3572 = vmatpush1.msra.mxu0 %v3406
  %3573 = vmatprep.subr.mxu0 %v3411
  %3574 = vmatpush1.msra.mxu0 %v3410
  %3575 = vmatprep.subr.mxu0 %v3415
  %3576 = vmatpush1.msra.mxu0 %v3414
  %3577 = vmatprep.subr.mxu0 %v3419
  %3578 = vmatpush1.msra.mxu0 %v3418
  %3579 = vmatprep.subr.mxu0 %v3423
  %3580 = vmatpush1.msra.mxu0 %v3422
  %3581 = vmatprep.subr.mxu0 %v3427
  %3582 = vmatpush1.msra.mxu0 %v3426
  %3583 = vmatprep.subr.mxu0 %v3431
  %3584 = vmatpush1.msra.mxu0 %v3430
  %3585 = vmatprep.subr.mxu0 %v3435
  %3586 = vmatpush1.msra.mxu0 %v3434
  %3587 = vmatprep.subr.mxu0 %v3439
  %3588 = vmatpush1.msra.mxu0 %v3438
  %3589 = vmatprep.subr.mxu0 %v3443
  %3590 = vmatpush1.msra.mxu0 %v3442
  %3591 = vmatprep.subr.mxu0 %v3447
  %3592 = vmatpush1.msra.mxu0 %v3446
  %3593 = vmatprep.subr.mxu0 %v3451
  %3594 = vmatpush1.msra.mxu0 %v3450
  %3595 = vmatprep.subr.mxu0 %v3455
  %3596 = vmatpush1.msra.mxu0 %v3454
  %3597 = vmatprep.subr.mxu0 %v3459
  %3598 = vmatpush1.msra.mxu0 %v3458
  %3599 = vmatprep.subr.mxu0 %v3463
  %3600 = vmatpush1.msra.mxu0 %v3462
  %3601 = vmatprep.subr.mxu0 %v3467
  %3602 = vmatpush1.msra.mxu0 %v3466
  %3603 = vmatprep.mubr.f32.mxu0 %v2916
  %3604 = vmatmul.mubr.f32.gmra.mrb[0].mxu0 %v3339
  %v3605 = vpop.f32.mrb[0].mxu0
  %v3606 = vadd.f32 %v101, %v3605
  %v3607 = vpop.f32.mrb[0].mxu0
  %v3608 = vadd.f32 %v105, %v3607
  %3609 = vdwg.mxu0
  %v3610 = vxor.u32 %v3535, 2147483648
  %v3611 = vmul.f32 %v3610, 1.442695
  %v3612 = vpow.pop %v3611
  %v3613 = vadd.f32 %v3612, 1.0
  %v3614 = vrcp.pop %v3613
  %v3615 = vmul.f32 1.0, %v3614
  %v3616 = vxor.u32 %v3537, 2147483648
  %v3617 = vmul.f32 %v3616, 1.442695
  %v3618 = vpow.pop %v3617
  %v3619 = vadd.f32 %v3618, 1.0
  %v3620 = vrcp.pop %v3619
  %v3621 = vmul.f32 1.0, %v3620
  %v3622 = vtanh.pop %v3606
  %v3623 = vxor.u32 %v3608, 2147483648
  %v3624 = vmul.f32 %v3623, 1.442695
  %v3625 = vpow.pop %v3624
  %v3626 = vadd.f32 %v3625, 1.0
  %v3627 = vrcp.pop %v3626
  %v3628 = vmul.f32 1.0, %v3627
  %v3629 = vmul.f32 %v3621, %v2914
  %v3630 = vmul.f32 %v3615, %v3622
  %v3631 = vadd.f32 %v3629, %v3630
  %v3632 = vtanh.pop %v3631
  %v3633 = vmul.f32 %v3628, %v3632
  %3634 = vadd.xlane.f32.xlu0 %v3633
  %v3635 = vpop.xlane.xlu0 %3634
  %v3636 = vmul.f32 %v3635, 0.03125
  %v3637 = vmul.f32 %v3633, %v3633
  %3638 = vadd.xlane.f32.xlu0 %v3637
  %v3639 = vpop.xlane.xlu0 %3638
  %v3640 = vmul.f32 %v3639, 0.03125
  %v3641 = vmul.f32 %v3636, %v3636
  %v3642 = vsub.f32 %v3640, %v3641
  %v3643 = vmax.f32 %v3642, 0.0
  %v3644 = vsub.f32 %v3633, %v3636
  %v3645 = vadd.f32 %v3643, 1e-05
  %v3646 = vrsqrt.pop %v3645
  %v3647 = vmul.f32 %v3644, %v3646
  %v3648 = vmul.f32 %v3647, %v115
  %v3649 = vadd.f32 %v3648, %v122
  %v3651 = vcombine.high %v3649, %v3649
  %v3653 = vunpack.c.l.s4 1966171168
  %v3654 = vunpack.c.0.s8 %v3653
  %v3655 = vlaneseq
  %v3656 = vshrl.u32 %v3655, 7
  %v3657 = vsub.s32 %v3654, %v3656
  %v3658 = vrot.slane %v3649, %v3657
  %v3660 = vunpack.c.l.s4 1966171168
  %v3661 = vunpack.c.0.s8 %v3660
  %v3662 = vlaneseq
  %v3663 = vshrl.u32 %v3662, 7
  %v3664 = vsub.s32 %v3661, %v3663
  %v3665 = vrot.slane %v3651, %v3664
  %v3666 = vcombine.high %v3658, %v3658
  %v3667 = vcombine.high %v3665, %v3665
  %v3669 = vunpack.c.l.s4 1966171168
  %v3670 = vunpack.c.0.s8 %v3669
  %v3671 = vlaneseq
  %v3672 = vshrl.u32 %v3671, 7
  %v3673 = vsub.s32 %v3670, %v3672
  %v3674 = vrot.slane %v3658, %v3673
  %v3676 = vunpack.c.l.s4 1966171168
  %v3677 = vunpack.c.0.s8 %v3676
  %v3678 = vlaneseq
  %v3679 = vshrl.u32 %v3678, 7
  %v3680 = vsub.s32 %v3677, %v3679
  %v3681 = vrot.slane %v3665, %v3680
  %v3683 = vunpack.c.l.s4 1966171168
  %v3684 = vunpack.c.0.s8 %v3683
  %v3685 = vlaneseq
  %v3686 = vshrl.u32 %v3685, 7
  %v3687 = vsub.s32 %v3684, %v3686
  %v3688 = vrot.slane %v3666, %v3687
  %v3690 = vunpack.c.l.s4 1966171168
  %v3691 = vunpack.c.0.s8 %v3690
  %v3692 = vlaneseq
  %v3693 = vshrl.u32 %v3692, 7
  %v3694 = vsub.s32 %v3691, %v3693
  %v3695 = vrot.slane %v3667, %v3694
  %v3696 = vcombine.high %v3674, %v3674
  %v3697 = vcombine.high %v3681, %v3681
  %v3698 = vcombine.high %v3688, %v3688
  %v3699 = vcombine.high %v3695, %v3695
  %3708 = vst [vmem:[#allocation4 + $0x4] sm:$0x1] %v3674
  %3709 = vst [vmem:[#allocation4 + $0xc] sm:$0x1] %v3688
  %3710 = vst [vmem:[#allocation4 + $0x14] sm:$0x1] %v3696
  %3711 = vst [vmem:[#allocation4 + $0x1c] sm:$0x1] %v3698
  %3712 = vst [vmem:[#allocation4 + $0x24] sm:$0x1] %v3681
  %3713 = vst [vmem:[#allocation4 + $0x2c] sm:$0x1] %v3695
  %3714 = vst [vmem:[#allocation4 + $0x34] sm:$0x1] %v3697
  %3715 = vst [vmem:[#allocation4 + $0x3c] sm:$0x1] %v3699
  %v3716 = vld [vmem:[%s0 + $0x5] sm:$0x1]
  %v3717 = vld [vmem:[%s0 + $0xd] sm:$0x1]
  %v3718 = vld [vmem:[%s0 + $0x15] sm:$0x1]
  %v3719 = vld [vmem:[%s0 + $0x1d] sm:$0x1]
  %v3720 = vld [vmem:[%s0 + $0x25] sm:$0x1]
  %v3721 = vld [vmem:[%s0 + $0x2d] sm:$0x1]
  %v3722 = vld [vmem:[%s0 + $0x35] sm:$0x1]
  %v3723 = vld [vmem:[%s0 + $0x3d] sm:$0x1]
  %v3732 = vrot.slane %v3717, 7
  %v3733 = vsel %vm141, %v3732, %v3716
  %v3734 = vrot.slane %v3718, 6
  %v3735 = vsel %vm144, %v3734, %v3733
  %v3736 = vrot.slane %v3719, 5
  %v3737 = vsel %vm147, %v3736, %v3735
  %v3738 = vrot.slane %v3720, 4
  %v3739 = vsel %vm150, %v3738, %v3737
  %v3740 = vrot.slane %v3721, 3
  %v3741 = vsel %vm153, %v3740, %v3739
  %v3742 = vrot.slane %v3722, 2
  %v3743 = vsel %vm156, %v3742, %v3741
  %v3744 = vrot.slane %v3723, 1
  %v3745 = vsel %vm159, %v3744, %v3743
  %v3747 = vld [vmem:[%s1] sm:$0xff]
  %v3748 = vld [vmem:[%s1 + $0x8] sm:$0xff]
  %v3749 = vld [vmem:[%s1 + $0x10] sm:$0xff]
  %v3750 = vld [vmem:[%s1 + $0x18] sm:$0xff]
  %v3751 = vld [vmem:[%s1 + $0x20] sm:$0xff]
  %v3752 = vld [vmem:[%s1 + $0x28] sm:$0xff]
  %v3753 = vld [vmem:[%s1 + $0x30] sm:$0xff]
  %v3754 = vld [vmem:[%s1 + $0x38] sm:$0xff]
  %v3755 = vld [vmem:[%s1 + $0x40] sm:$0xff]
  %v3756 = vld [vmem:[%s1 + $0x48] sm:$0xff]
  %v3757 = vld [vmem:[%s1 + $0x50] sm:$0xff]
  %v3758 = vld [vmem:[%s1 + $0x58] sm:$0xff]
  %v3759 = vld [vmem:[%s1 + $0x60] sm:$0xff]
  %v3760 = vld [vmem:[%s1 + $0x68] sm:$0xff]
  %v3761 = vld [vmem:[%s1 + $0x70] sm:$0xff]
  %v3762 = vld [vmem:[%s1 + $0x78] sm:$0xff]
  %v3763 = vld [vmem:[%s1 + $0x80] sm:$0xff]
  %v3764 = vld [vmem:[%s1 + $0x88] sm:$0xff]
  %v3765 = vld [vmem:[%s1 + $0x90] sm:$0xff]
  %v3766 = vld [vmem:[%s1 + $0x98] sm:$0xff]
  %v3767 = vld [vmem:[%s1 + $0xa0] sm:$0xff]
  %v3768 = vld [vmem:[%s1 + $0xa8] sm:$0xff]
  %v3769 = vld [vmem:[%s1 + $0xb0] sm:$0xff]
  %v3770 = vld [vmem:[%s1 + $0xb8] sm:$0xff]
  %v3771 = vld [vmem:[%s1 + $0xc0] sm:$0xff]
  %v3772 = vld [vmem:[%s1 + $0xc8] sm:$0xff]
  %v3773 = vld [vmem:[%s1 + $0xd0] sm:$0xff]
  %v3774 = vld [vmem:[%s1 + $0xd8] sm:$0xff]
  %v3775 = vld [vmem:[%s1 + $0xe0] sm:$0xff]
  %v3776 = vld [vmem:[%s1 + $0xe8] sm:$0xff]
  %v3777 = vld [vmem:[%s1 + $0xf0] sm:$0xff]
  %v3778 = vld [vmem:[%s1 + $0xf8] sm:$0xff]
  %v3779 = vld [vmem:[%s1 + $0x100] sm:$0xff]
  %v3780 = vld [vmem:[%s1 + $0x108] sm:$0xff]
  %v3781 = vld [vmem:[%s1 + $0x110] sm:$0xff]
  %v3782 = vld [vmem:[%s1 + $0x118] sm:$0xff]
  %v3783 = vld [vmem:[%s1 + $0x120] sm:$0xff]
  %v3784 = vld [vmem:[%s1 + $0x128] sm:$0xff]
  %v3785 = vld [vmem:[%s1 + $0x130] sm:$0xff]
  %v3786 = vld [vmem:[%s1 + $0x138] sm:$0xff]
  %v3787 = vld [vmem:[%s1 + $0x140] sm:$0xff]
  %v3788 = vld [vmem:[%s1 + $0x148] sm:$0xff]
  %v3789 = vld [vmem:[%s1 + $0x150] sm:$0xff]
  %v3790 = vld [vmem:[%s1 + $0x158] sm:$0xff]
  %v3791 = vld [vmem:[%s1 + $0x160] sm:$0xff]
  %v3792 = vld [vmem:[%s1 + $0x168] sm:$0xff]
  %v3793 = vld [vmem:[%s1 + $0x170] sm:$0xff]
  %v3794 = vld [vmem:[%s1 + $0x178] sm:$0xff]
  %v3795 = vld [vmem:[%s1 + $0x180] sm:$0xff]
  %v3796 = vld [vmem:[%s1 + $0x188] sm:$0xff]
  %v3797 = vld [vmem:[%s1 + $0x190] sm:$0xff]
  %v3798 = vld [vmem:[%s1 + $0x198] sm:$0xff]
  %v3799 = vld [vmem:[%s1 + $0x1a0] sm:$0xff]
  %v3800 = vld [vmem:[%s1 + $0x1a8] sm:$0xff]
  %v3801 = vld [vmem:[%s1 + $0x1b0] sm:$0xff]
  %v3802 = vld [vmem:[%s1 + $0x1b8] sm:$0xff]
  %v3803 = vld [vmem:[%s1 + $0x1c0] sm:$0xff]
  %v3804 = vld [vmem:[%s1 + $0x1c8] sm:$0xff]
  %v3805 = vld [vmem:[%s1 + $0x1d0] sm:$0xff]
  %v3806 = vld [vmem:[%s1 + $0x1d8] sm:$0xff]
  %v3807 = vld [vmem:[%s1 + $0x1e0] sm:$0xff]
  %v3808 = vld [vmem:[%s1 + $0x1e8] sm:$0xff]
  %v3809 = vld [vmem:[%s1 + $0x1f0] sm:$0xff]
  %v3810 = vld [vmem:[%s1 + $0x1f8] sm:$0xff]
  %v3811 = vld [vmem:[%s1 + $0x200] sm:$0xff]
  %v3812 = vld [vmem:[%s1 + $0x208] sm:$0xff]
  %v3813 = vld [vmem:[%s1 + $0x210] sm:$0xff]
  %v3814 = vld [vmem:[%s1 + $0x218] sm:$0xff]
  %v3815 = vld [vmem:[%s1 + $0x220] sm:$0xff]
  %v3816 = vld [vmem:[%s1 + $0x228] sm:$0xff]
  %v3817 = vld [vmem:[%s1 + $0x230] sm:$0xff]
  %v3818 = vld [vmem:[%s1 + $0x238] sm:$0xff]
  %v3819 = vld [vmem:[%s1 + $0x240] sm:$0xff]
  %v3820 = vld [vmem:[%s1 + $0x248] sm:$0xff]
  %v3821 = vld [vmem:[%s1 + $0x250] sm:$0xff]
  %v3822 = vld [vmem:[%s1 + $0x258] sm:$0xff]
  %v3823 = vld [vmem:[%s1 + $0x260] sm:$0xff]
  %v3824 = vld [vmem:[%s1 + $0x268] sm:$0xff]
  %v3825 = vld [vmem:[%s1 + $0x270] sm:$0xff]
  %v3826 = vld [vmem:[%s1 + $0x278] sm:$0xff]
  %v3827 = vld [vmem:[%s1 + $0x280] sm:$0xff]
  %v3828 = vld [vmem:[%s1 + $0x288] sm:$0xff]
  %v3829 = vld [vmem:[%s1 + $0x290] sm:$0xff]
  %v3830 = vld [vmem:[%s1 + $0x298] sm:$0xff]
  %v3831 = vld [vmem:[%s1 + $0x2a0] sm:$0xff]
  %v3832 = vld [vmem:[%s1 + $0x2a8] sm:$0xff]
  %v3833 = vld [vmem:[%s1 + $0x2b0] sm:$0xff]
  %v3834 = vld [vmem:[%s1 + $0x2b8] sm:$0xff]
  %v3835 = vld [vmem:[%s1 + $0x2c0] sm:$0xff]
  %v3836 = vld [vmem:[%s1 + $0x2c8] sm:$0xff]
  %v3837 = vld [vmem:[%s1 + $0x2d0] sm:$0xff]
  %v3838 = vld [vmem:[%s1 + $0x2d8] sm:$0xff]
  %v3839 = vld [vmem:[%s1 + $0x2e0] sm:$0xff]
  %v3840 = vld [vmem:[%s1 + $0x2e8] sm:$0xff]
  %v3841 = vld [vmem:[%s1 + $0x2f0] sm:$0xff]
  %v3842 = vld [vmem:[%s1 + $0x2f8] sm:$0xff]
  %v3843 = vld [vmem:[%s1 + $0x300] sm:$0xff]
  %v3844 = vld [vmem:[%s1 + $0x308] sm:$0xff]
  %v3845 = vld [vmem:[%s1 + $0x310] sm:$0xff]
  %v3846 = vld [vmem:[%s1 + $0x318] sm:$0xff]
  %v3847 = vld [vmem:[%s1 + $0x320] sm:$0xff]
  %v3848 = vld [vmem:[%s1 + $0x328] sm:$0xff]
  %v3849 = vld [vmem:[%s1 + $0x330] sm:$0xff]
  %v3850 = vld [vmem:[%s1 + $0x338] sm:$0xff]
  %v3851 = vld [vmem:[%s1 + $0x340] sm:$0xff]
  %v3852 = vld [vmem:[%s1 + $0x348] sm:$0xff]
  %v3853 = vld [vmem:[%s1 + $0x350] sm:$0xff]
  %v3854 = vld [vmem:[%s1 + $0x358] sm:$0xff]
  %v3855 = vld [vmem:[%s1 + $0x360] sm:$0xff]
  %v3856 = vld [vmem:[%s1 + $0x368] sm:$0xff]
  %v3857 = vld [vmem:[%s1 + $0x370] sm:$0xff]
  %v3858 = vld [vmem:[%s1 + $0x378] sm:$0xff]
  %v3859 = vld [vmem:[%s1 + $0x380] sm:$0xff]
  %v3860 = vld [vmem:[%s1 + $0x388] sm:$0xff]
  %v3861 = vld [vmem:[%s1 + $0x390] sm:$0xff]
  %v3862 = vld [vmem:[%s1 + $0x398] sm:$0xff]
  %v3863 = vld [vmem:[%s1 + $0x3a0] sm:$0xff]
  %v3864 = vld [vmem:[%s1 + $0x3a8] sm:$0xff]
  %v3865 = vld [vmem:[%s1 + $0x3b0] sm:$0xff]
  %v3866 = vld [vmem:[%s1 + $0x3b8] sm:$0xff]
  %v3867 = vld [vmem:[%s1 + $0x3c0] sm:$0xff]
  %v3868 = vld [vmem:[%s1 + $0x3c8] sm:$0xff]
  %v3869 = vld [vmem:[%s1 + $0x3d0] sm:$0xff]
  %v3870 = vld [vmem:[%s1 + $0x3d8] sm:$0xff]
  %v3871 = vld [vmem:[%s1 + $0x3e0] sm:$0xff]
  %v3872 = vld [vmem:[%s1 + $0x3e8] sm:$0xff]
  %v3873 = vld [vmem:[%s1 + $0x3f0] sm:$0xff]
  %v3874 = vld [vmem:[%s1 + $0x3f8] sm:$0xff]
  %3875 = vmatprep.subr.mxu0 %v3748
  %3876 = vmatpush1.msra.mxu0 %v3747
  %3877 = vmatprep.subr.mxu0 %v3752
  %3878 = vmatpush1.msra.mxu0 %v3751
  %3879 = vmatprep.subr.mxu0 %v3756
  %3880 = vmatpush1.msra.mxu0 %v3755
  %3881 = vmatprep.subr.mxu0 %v3760
  %3882 = vmatpush1.msra.mxu0 %v3759
  %3883 = vmatprep.subr.mxu0 %v3764
  %3884 = vmatpush1.msra.mxu0 %v3763
  %3885 = vmatprep.subr.mxu0 %v3768
  %3886 = vmatpush1.msra.mxu0 %v3767
  %3887 = vmatprep.subr.mxu0 %v3772
  %3888 = vmatpush1.msra.mxu0 %v3771
  %3889 = vmatprep.subr.mxu0 %v3776
  %3890 = vmatpush1.msra.mxu0 %v3775
  %3891 = vmatprep.subr.mxu0 %v3780
  %3892 = vmatpush1.msra.mxu0 %v3779
  %3893 = vmatprep.subr.mxu0 %v3784
  %3894 = vmatpush1.msra.mxu0 %v3783
  %3895 = vmatprep.subr.mxu0 %v3788
  %3896 = vmatpush1.msra.mxu0 %v3787
  %3897 = vmatprep.subr.mxu0 %v3792
  %3898 = vmatpush1.msra.mxu0 %v3791
  %3899 = vmatprep.subr.mxu0 %v3796
  %3900 = vmatpush1.msra.mxu0 %v3795
  %3901 = vmatprep.subr.mxu0 %v3800
  %3902 = vmatpush1.msra.mxu0 %v3799
  %3903 = vmatprep.subr.mxu0 %v3804
  %3904 = vmatpush1.msra.mxu0 %v3803
  %3905 = vmatprep.subr.mxu0 %v3808
  %3906 = vmatpush1.msra.mxu0 %v3807
  %3907 = vmatprep.subr.mxu0 %v3812
  %3908 = vmatpush1.msra.mxu0 %v3811
  %3909 = vmatprep.subr.mxu0 %v3816
  %3910 = vmatpush1.msra.mxu0 %v3815
  %3911 = vmatprep.subr.mxu0 %v3820
  %3912 = vmatpush1.msra.mxu0 %v3819
  %3913 = vmatprep.subr.mxu0 %v3824
  %3914 = vmatpush1.msra.mxu0 %v3823
  %3915 = vmatprep.subr.mxu0 %v3828
  %3916 = vmatpush1.msra.mxu0 %v3827
  %3917 = vmatprep.subr.mxu0 %v3832
  %3918 = vmatpush1.msra.mxu0 %v3831
  %3919 = vmatprep.subr.mxu0 %v3836
  %3920 = vmatpush1.msra.mxu0 %v3835
  %3921 = vmatprep.subr.mxu0 %v3840
  %3922 = vmatpush1.msra.mxu0 %v3839
  %3923 = vmatprep.subr.mxu0 %v3844
  %3924 = vmatpush1.msra.mxu0 %v3843
  %3925 = vmatprep.subr.mxu0 %v3848
  %3926 = vmatpush1.msra.mxu0 %v3847
  %3927 = vmatprep.subr.mxu0 %v3852
  %3928 = vmatpush1.msra.mxu0 %v3851
  %3929 = vmatprep.subr.mxu0 %v3856
  %3930 = vmatpush1.msra.mxu0 %v3855
  %3931 = vmatprep.subr.mxu0 %v3860
  %3932 = vmatpush1.msra.mxu0 %v3859
  %3933 = vmatprep.subr.mxu0 %v3864
  %3934 = vmatpush1.msra.mxu0 %v3863
  %3935 = vmatprep.subr.mxu0 %v3868
  %3936 = vmatpush1.msra.mxu0 %v3867
  %3937 = vmatprep.subr.mxu0 %v3872
  %3938 = vmatpush1.msra.mxu0 %v3871
  %3939 = vmatprep.mubr.f32.mxu0 %v3323
  %3940 = vmatmul.mubr.f32.gmra.mrb[0].mxu0 %v3745
  %v3941 = vpop.f32.mrb[0].mxu0
  %v3942 = vadd.f32 %v57, %v3941
  %v3943 = vpop.f32.mrb[0].mxu0
  %v3944 = vadd.f32 %v61, %v3943
  %3945 = vdwg.mxu0
  %3946 = vmatprep.subr.mxu0 %v3750
  %3947 = vmatpush1.msra.mxu0 %v3749
  %3948 = vmatprep.subr.mxu0 %v3754
  %3949 = vmatpush1.msra.mxu0 %v3753
  %3950 = vmatprep.subr.mxu0 %v3758
  %3951 = vmatpush1.msra.mxu0 %v3757
  %3952 = vmatprep.subr.mxu0 %v3762
  %3953 = vmatpush1.msra.mxu0 %v3761
  %3954 = vmatprep.subr.mxu0 %v3766
  %3955 = vmatpush1.msra.mxu0 %v3765
  %3956 = vmatprep.subr.mxu0 %v3770
  %3957 = vmatpush1.msra.mxu0 %v3769
  %3958 = vmatprep.subr.mxu0 %v3774
  %3959 = vmatpush1.msra.mxu0 %v3773
  %3960 = vmatprep.subr.mxu0 %v3778
  %3961 = vmatpush1.msra.mxu0 %v3777
  %3962 = vmatprep.subr.mxu0 %v3782
  %3963 = vmatpush1.msra.mxu0 %v3781
  %3964 = vmatprep.subr.mxu0 %v3786
  %3965 = vmatpush1.msra.mxu0 %v3785
  %3966 = vmatprep.subr.mxu0 %v3790
  %3967 = vmatpush1.msra.mxu0 %v3789
  %3968 = vmatprep.subr.mxu0 %v3794
  %3969 = vmatpush1.msra.mxu0 %v3793
  %3970 = vmatprep.subr.mxu0 %v3798
  %3971 = vmatpush1.msra.mxu0 %v3797
  %3972 = vmatprep.subr.mxu0 %v3802
  %3973 = vmatpush1.msra.mxu0 %v3801
  %3974 = vmatprep.subr.mxu0 %v3806
  %3975 = vmatpush1.msra.mxu0 %v3805
  %3976 = vmatprep.subr.mxu0 %v3810
  %3977 = vmatpush1.msra.mxu0 %v3809
  %3978 = vmatprep.subr.mxu0 %v3814
  %3979 = vmatpush1.msra.mxu0 %v3813
  %3980 = vmatprep.subr.mxu0 %v3818
  %3981 = vmatpush1.msra.mxu0 %v3817
  %3982 = vmatprep.subr.mxu0 %v3822
  %3983 = vmatpush1.msra.mxu0 %v3821
  %3984 = vmatprep.subr.mxu0 %v3826
  %3985 = vmatpush1.msra.mxu0 %v3825
  %3986 = vmatprep.subr.mxu0 %v3830
  %3987 = vmatpush1.msra.mxu0 %v3829
  %3988 = vmatprep.subr.mxu0 %v3834
  %3989 = vmatpush1.msra.mxu0 %v3833
  %3990 = vmatprep.subr.mxu0 %v3838
  %3991 = vmatpush1.msra.mxu0 %v3837
  %3992 = vmatprep.subr.mxu0 %v3842
  %3993 = vmatpush1.msra.mxu0 %v3841
  %3994 = vmatprep.subr.mxu0 %v3846
  %3995 = vmatpush1.msra.mxu0 %v3845
  %3996 = vmatprep.subr.mxu0 %v3850
  %3997 = vmatpush1.msra.mxu0 %v3849
  %3998 = vmatprep.subr.mxu0 %v3854
  %3999 = vmatpush1.msra.mxu0 %v3853
  %4000 = vmatprep.subr.mxu0 %v3858
  %4001 = vmatpush1.msra.mxu0 %v3857
  %4002 = vmatprep.subr.mxu0 %v3862
  %4003 = vmatpush1.msra.mxu0 %v3861
  %4004 = vmatprep.subr.mxu0 %v3866
  %4005 = vmatpush1.msra.mxu0 %v3865
  %4006 = vmatprep.subr.mxu0 %v3870
  %4007 = vmatpush1.msra.mxu0 %v3869
  %4008 = vmatprep.subr.mxu0 %v3874
  %4009 = vmatpush1.msra.mxu0 %v3873
  %4010 = vmatprep.mubr.f32.mxu0 %v3323
  %4011 = vmatmul.mubr.f32.gmra.mrb[0].mxu0 %v3745
  %v4012 = vpop.f32.mrb[0].mxu0
  %v4013 = vadd.f32 %v65, %v4012
  %v4014 = vpop.f32.mrb[0].mxu0
  %v4015 = vadd.f32 %v69, %v4014
  %4016 = vdwg.mxu0
  %v4017 = vxor.u32 %v3942, 2147483648
  %v4018 = vmul.f32 %v4017, 1.442695
  %v4019 = vpow.pop %v4018
  %v4020 = vadd.f32 %v4019, 1.0
  %v4021 = vrcp.pop %v4020
  %v4022 = vmul.f32 1.0, %v4021
  %v4023 = vxor.u32 %v3944, 2147483648
  %v4024 = vmul.f32 %v4023, 1.442695
  %v4025 = vpow.pop %v4024
  %v4026 = vadd.f32 %v4025, 1.0
  %v4027 = vrcp.pop %v4026
  %v4028 = vmul.f32 1.0, %v4027
  %v4029 = vtanh.pop %v4013
  %v4030 = vxor.u32 %v4015, 2147483648
  %v4031 = vmul.f32 %v4030, 1.442695
  %v4032 = vpow.pop %v4031
  %v4033 = vadd.f32 %v4032, 1.0
  %v4034 = vrcp.pop %v4033
  %v4035 = vmul.f32 1.0, %v4034
  %v4036 = vmul.f32 %v4028, %v3321
  %v4037 = vmul.f32 %v4022, %v4029
  %v4038 = vadd.f32 %v4036, %v4037
  %v4039 = vtanh.pop %v4038
  %v4040 = vmul.f32 %v4035, %v4039
  %4041 = vadd.xlane.f32.xlu0 %v4040
  %v4042 = vpop.xlane.xlu0 %4041
  %v4043 = vmul.f32 %v4042, 0.03125
  %v4044 = vmul.f32 %v4040, %v4040
  %4045 = vadd.xlane.f32.xlu0 %v4044
  %v4046 = vpop.xlane.xlu0 %4045
  %v4047 = vmul.f32 %v4046, 0.03125
  %v4048 = vmul.f32 %v4043, %v4043
  %v4049 = vsub.f32 %v4047, %v4048
  %v4050 = vmax.f32 %v4049, 0.0
  %v4051 = vsub.f32 %v4040, %v4043
  %v4052 = vadd.f32 %v4050, 1e-05
  %v4053 = vrsqrt.pop %v4052
  %v4054 = vmul.f32 %v4051, %v4053
  %v4055 = vmul.f32 %v4054, %v79
  %v4056 = vadd.f32 %v4055, %v86
  %v4057 = vld [vmem:[%s5] sm:$0xff]
  %v4058 = vld [vmem:[%s5 + $0x8] sm:$0xff]
  %v4059 = vld [vmem:[%s5 + $0x10] sm:$0xff]
  %v4060 = vld [vmem:[%s5 + $0x18] sm:$0xff]
  %v4061 = vld [vmem:[%s5 + $0x20] sm:$0xff]
  %v4062 = vld [vmem:[%s5 + $0x28] sm:$0xff]
  %v4063 = vld [vmem:[%s5 + $0x30] sm:$0xff]
  %v4064 = vld [vmem:[%s5 + $0x38] sm:$0xff]
  %v4065 = vld [vmem:[%s5 + $0x40] sm:$0xff]
  %v4066 = vld [vmem:[%s5 + $0x48] sm:$0xff]
  %v4067 = vld [vmem:[%s5 + $0x50] sm:$0xff]
  %v4068 = vld [vmem:[%s5 + $0x58] sm:$0xff]
  %v4069 = vld [vmem:[%s5 + $0x60] sm:$0xff]
  %v4070 = vld [vmem:[%s5 + $0x68] sm:$0xff]
  %v4071 = vld [vmem:[%s5 + $0x70] sm:$0xff]
  %v4072 = vld [vmem:[%s5 + $0x78] sm:$0xff]
  %v4073 = vld [vmem:[%s5 + $0x80] sm:$0xff]
  %v4074 = vld [vmem:[%s5 + $0x88] sm:$0xff]
  %v4075 = vld [vmem:[%s5 + $0x90] sm:$0xff]
  %v4076 = vld [vmem:[%s5 + $0x98] sm:$0xff]
  %v4077 = vld [vmem:[%s5 + $0xa0] sm:$0xff]
  %v4078 = vld [vmem:[%s5 + $0xa8] sm:$0xff]
  %v4079 = vld [vmem:[%s5 + $0xb0] sm:$0xff]
  %v4080 = vld [vmem:[%s5 + $0xb8] sm:$0xff]
  %v4081 = vld [vmem:[%s5 + $0xc0] sm:$0xff]
  %v4082 = vld [vmem:[%s5 + $0xc8] sm:$0xff]
  %v4083 = vld [vmem:[%s5 + $0xd0] sm:$0xff]
  %v4084 = vld [vmem:[%s5 + $0xd8] sm:$0xff]
  %v4085 = vld [vmem:[%s5 + $0xe0] sm:$0xff]
  %v4086 = vld [vmem:[%s5 + $0xe8] sm:$0xff]
  %v4087 = vld [vmem:[%s5 + $0xf0] sm:$0xff]
  %v4088 = vld [vmem:[%s5 + $0xf8] sm:$0xff]
  %v4089 = vld [vmem:[%s5 + $0x100] sm:$0xff]
  %v4090 = vld [vmem:[%s5 + $0x108] sm:$0xff]
  %v4091 = vld [vmem:[%s5 + $0x110] sm:$0xff]
  %v4092 = vld [vmem:[%s5 + $0x118] sm:$0xff]
  %v4093 = vld [vmem:[%s5 + $0x120] sm:$0xff]
  %v4094 = vld [vmem:[%s5 + $0x128] sm:$0xff]
  %v4095 = vld [vmem:[%s5 + $0x130] sm:$0xff]
  %v4096 = vld [vmem:[%s5 + $0x138] sm:$0xff]
  %v4097 = vld [vmem:[%s5 + $0x140] sm:$0xff]
  %v4098 = vld [vmem:[%s5 + $0x148] sm:$0xff]
  %v4099 = vld [vmem:[%s5 + $0x150] sm:$0xff]
  %v4100 = vld [vmem:[%s5 + $0x158] sm:$0xff]
  %v4101 = vld [vmem:[%s5 + $0x160] sm:$0xff]
  %v4102 = vld [vmem:[%s5 + $0x168] sm:$0xff]
  %v4103 = vld [vmem:[%s5 + $0x170] sm:$0xff]
  %v4104 = vld [vmem:[%s5 + $0x178] sm:$0xff]
  %v4105 = vld [vmem:[%s5 + $0x180] sm:$0xff]
  %v4106 = vld [vmem:[%s5 + $0x188] sm:$0xff]
  %v4107 = vld [vmem:[%s5 + $0x190] sm:$0xff]
  %v4108 = vld [vmem:[%s5 + $0x198] sm:$0xff]
  %v4109 = vld [vmem:[%s5 + $0x1a0] sm:$0xff]
  %v4110 = vld [vmem:[%s5 + $0x1a8] sm:$0xff]
  %v4111 = vld [vmem:[%s5 + $0x1b0] sm:$0xff]
  %v4112 = vld [vmem:[%s5 + $0x1b8] sm:$0xff]
  %v4113 = vld [vmem:[%s5 + $0x1c0] sm:$0xff]
  %v4114 = vld [vmem:[%s5 + $0x1c8] sm:$0xff]
  %v4115 = vld [vmem:[%s5 + $0x1d0] sm:$0xff]
  %v4116 = vld [vmem:[%s5 + $0x1d8] sm:$0xff]
  %v4117 = vld [vmem:[%s5 + $0x1e0] sm:$0xff]
  %v4118 = vld [vmem:[%s5 + $0x1e8] sm:$0xff]
  %v4119 = vld [vmem:[%s5 + $0x1f0] sm:$0xff]
  %v4120 = vld [vmem:[%s5 + $0x1f8] sm:$0xff]
  %v4121 = vld [vmem:[%s5 + $0x200] sm:$0xff]
  %v4122 = vld [vmem:[%s5 + $0x208] sm:$0xff]
  %v4123 = vld [vmem:[%s5 + $0x210] sm:$0xff]
  %v4124 = vld [vmem:[%s5 + $0x218] sm:$0xff]
  %v4125 = vld [vmem:[%s5 + $0x220] sm:$0xff]
  %v4126 = vld [vmem:[%s5 + $0x228] sm:$0xff]
  %v4127 = vld [vmem:[%s5 + $0x230] sm:$0xff]
  %v4128 = vld [vmem:[%s5 + $0x238] sm:$0xff]
  %v4129 = vld [vmem:[%s5 + $0x240] sm:$0xff]
  %v4130 = vld [vmem:[%s5 + $0x248] sm:$0xff]
  %v4131 = vld [vmem:[%s5 + $0x250] sm:$0xff]
  %v4132 = vld [vmem:[%s5 + $0x258] sm:$0xff]
  %v4133 = vld [vmem:[%s5 + $0x260] sm:$0xff]
  %v4134 = vld [vmem:[%s5 + $0x268] sm:$0xff]
  %v4135 = vld [vmem:[%s5 + $0x270] sm:$0xff]
  %v4136 = vld [vmem:[%s5 + $0x278] sm:$0xff]
  %v4137 = vld [vmem:[%s5 + $0x280] sm:$0xff]
  %v4138 = vld [vmem:[%s5 + $0x288] sm:$0xff]
  %v4139 = vld [vmem:[%s5 + $0x290] sm:$0xff]
  %v4140 = vld [vmem:[%s5 + $0x298] sm:$0xff]
  %v4141 = vld [vmem:[%s5 + $0x2a0] sm:$0xff]
  %v4142 = vld [vmem:[%s5 + $0x2a8] sm:$0xff]
  %v4143 = vld [vmem:[%s5 + $0x2b0] sm:$0xff]
  %v4144 = vld [vmem:[%s5 + $0x2b8] sm:$0xff]
  %v4145 = vld [vmem:[%s5 + $0x2c0] sm:$0xff]
  %v4146 = vld [vmem:[%s5 + $0x2c8] sm:$0xff]
  %v4147 = vld [vmem:[%s5 + $0x2d0] sm:$0xff]
  %v4148 = vld [vmem:[%s5 + $0x2d8] sm:$0xff]
  %v4149 = vld [vmem:[%s5 + $0x2e0] sm:$0xff]
  %v4150 = vld [vmem:[%s5 + $0x2e8] sm:$0xff]
  %v4151 = vld [vmem:[%s5 + $0x2f0] sm:$0xff]
  %v4152 = vld [vmem:[%s5 + $0x2f8] sm:$0xff]
  %v4153 = vld [vmem:[%s5 + $0x300] sm:$0xff]
  %v4154 = vld [vmem:[%s5 + $0x308] sm:$0xff]
  %v4155 = vld [vmem:[%s5 + $0x310] sm:$0xff]
  %v4156 = vld [vmem:[%s5 + $0x318] sm:$0xff]
  %v4157 = vld [vmem:[%s5 + $0x320] sm:$0xff]
  %v4158 = vld [vmem:[%s5 + $0x328] sm:$0xff]
  %v4159 = vld [vmem:[%s5 + $0x330] sm:$0xff]
  %v4160 = vld [vmem:[%s5 + $0x338] sm:$0xff]
  %v4161 = vld [vmem:[%s5 + $0x340] sm:$0xff]
  %v4162 = vld [vmem:[%s5 + $0x348] sm:$0xff]
  %v4163 = vld [vmem:[%s5 + $0x350] sm:$0xff]
  %v4164 = vld [vmem:[%s5 + $0x358] sm:$0xff]
  %v4165 = vld [vmem:[%s5 + $0x360] sm:$0xff]
  %v4166 = vld [vmem:[%s5 + $0x368] sm:$0xff]
  %v4167 = vld [vmem:[%s5 + $0x370] sm:$0xff]
  %v4168 = vld [vmem:[%s5 + $0x378] sm:$0xff]
  %v4169 = vld [vmem:[%s5 + $0x380] sm:$0xff]
  %v4170 = vld [vmem:[%s5 + $0x388] sm:$0xff]
  %v4171 = vld [vmem:[%s5 + $0x390] sm:$0xff]
  %v4172 = vld [vmem:[%s5 + $0x398] sm:$0xff]
  %v4173 = vld [vmem:[%s5 + $0x3a0] sm:$0xff]
  %v4174 = vld [vmem:[%s5 + $0x3a8] sm:$0xff]
  %v4175 = vld [vmem:[%s5 + $0x3b0] sm:$0xff]
  %v4176 = vld [vmem:[%s5 + $0x3b8] sm:$0xff]
  %v4177 = vld [vmem:[%s5 + $0x3c0] sm:$0xff]
  %v4178 = vld [vmem:[%s5 + $0x3c8] sm:$0xff]
  %v4179 = vld [vmem:[%s5 + $0x3d0] sm:$0xff]
  %v4180 = vld [vmem:[%s5 + $0x3d8] sm:$0xff]
  %v4181 = vld [vmem:[%s5 + $0x3e0] sm:$0xff]
  %v4182 = vld [vmem:[%s5 + $0x3e8] sm:$0xff]
  %v4183 = vld [vmem:[%s5 + $0x3f0] sm:$0xff]
  %v4184 = vld [vmem:[%s5 + $0x3f8] sm:$0xff]
  %4185 = vmatprep.subr.mxu0 %v4058
  %4186 = vmatpush1.msra.mxu0 %v4057
  %4187 = vmatprep.subr.mxu0 %v4062
  %4188 = vmatpush1.msra.mxu0 %v4061
  %4189 = vmatprep.subr.mxu0 %v4066
  %4190 = vmatpush1.msra.mxu0 %v4065
  %4191 = vmatprep.subr.mxu0 %v4070
  %4192 = vmatpush1.msra.mxu0 %v4069
  %4193 = vmatprep.subr.mxu0 %v4074
  %4194 = vmatpush1.msra.mxu0 %v4073
  %4195 = vmatprep.subr.mxu0 %v4078
  %4196 = vmatpush1.msra.mxu0 %v4077
  %4197 = vmatprep.subr.mxu0 %v4082
  %4198 = vmatpush1.msra.mxu0 %v4081
  %4199 = vmatprep.subr.mxu0 %v4086
  %4200 = vmatpush1.msra.mxu0 %v4085
  %4201 = vmatprep.subr.mxu0 %v4090
  %4202 = vmatpush1.msra.mxu0 %v4089
  %4203 = vmatprep.subr.mxu0 %v4094
  %4204 = vmatpush1.msra.mxu0 %v4093
  %4205 = vmatprep.subr.mxu0 %v4098
  %4206 = vmatpush1.msra.mxu0 %v4097
  %4207 = vmatprep.subr.mxu0 %v4102
  %4208 = vmatpush1.msra.mxu0 %v4101
  %4209 = vmatprep.subr.mxu0 %v4106
  %4210 = vmatpush1.msra.mxu0 %v4105
  %4211 = vmatprep.subr.mxu0 %v4110
  %4212 = vmatpush1.msra.mxu0 %v4109
  %4213 = vmatprep.subr.mxu0 %v4114
  %4214 = vmatpush1.msra.mxu0 %v4113
  %4215 = vmatprep.subr.mxu0 %v4118
  %4216 = vmatpush1.msra.mxu0 %v4117
  %4217 = vmatprep.subr.mxu0 %v4122
  %4218 = vmatpush1.msra.mxu0 %v4121
  %4219 = vmatprep.subr.mxu0 %v4126
  %4220 = vmatpush1.msra.mxu0 %v4125
  %4221 = vmatprep.subr.mxu0 %v4130
  %4222 = vmatpush1.msra.mxu0 %v4129
  %4223 = vmatprep.subr.mxu0 %v4134
  %4224 = vmatpush1.msra.mxu0 %v4133
  %4225 = vmatprep.subr.mxu0 %v4138
  %4226 = vmatpush1.msra.mxu0 %v4137
  %4227 = vmatprep.subr.mxu0 %v4142
  %4228 = vmatpush1.msra.mxu0 %v4141
  %4229 = vmatprep.subr.mxu0 %v4146
  %4230 = vmatpush1.msra.mxu0 %v4145
  %4231 = vmatprep.subr.mxu0 %v4150
  %4232 = vmatpush1.msra.mxu0 %v4149
  %4233 = vmatprep.subr.mxu0 %v4154
  %4234 = vmatpush1.msra.mxu0 %v4153
  %4235 = vmatprep.subr.mxu0 %v4158
  %4236 = vmatpush1.msra.mxu0 %v4157
  %4237 = vmatprep.subr.mxu0 %v4162
  %4238 = vmatpush1.msra.mxu0 %v4161
  %4239 = vmatprep.subr.mxu0 %v4166
  %4240 = vmatpush1.msra.mxu0 %v4165
  %4241 = vmatprep.subr.mxu0 %v4170
  %4242 = vmatpush1.msra.mxu0 %v4169
  %4243 = vmatprep.subr.mxu0 %v4174
  %4244 = vmatpush1.msra.mxu0 %v4173
  %4245 = vmatprep.subr.mxu0 %v4178
  %4246 = vmatpush1.msra.mxu0 %v4177
  %4247 = vmatprep.subr.mxu0 %v4182
  %4248 = vmatpush1.msra.mxu0 %v4181
  %4249 = vmatprep.mubr.f32.mxu0 %v3633
  %4250 = vmatmul.mubr.f32.gmra.mrb[0].mxu0 %v4056
  %v4251 = vpop.f32.mrb[0].mxu0
  %v4252 = vadd.f32 %v93, %v4251
  %v4253 = vpop.f32.mrb[0].mxu0
  %v4254 = vadd.f32 %v97, %v4253
  %4255 = vdwg.mxu0
  %4256 = vmatprep.subr.mxu0 %v4060
  %4257 = vmatpush1.msra.mxu0 %v4059
  %4258 = vmatprep.subr.mxu0 %v4064
  %4259 = vmatpush1.msra.mxu0 %v4063
  %4260 = vmatprep.subr.mxu0 %v4068
  %4261 = vmatpush1.msra.mxu0 %v4067
  %4262 = vmatprep.subr.mxu0 %v4072
  %4263 = vmatpush1.msra.mxu0 %v4071
  %4264 = vmatprep.subr.mxu0 %v4076
  %4265 = vmatpush1.msra.mxu0 %v4075
  %4266 = vmatprep.subr.mxu0 %v4080
  %4267 = vmatpush1.msra.mxu0 %v4079
  %4268 = vmatprep.subr.mxu0 %v4084
  %4269 = vmatpush1.msra.mxu0 %v4083
  %4270 = vmatprep.subr.mxu0 %v4088
  %4271 = vmatpush1.msra.mxu0 %v4087
  %4272 = vmatprep.subr.mxu0 %v4092
  %4273 = vmatpush1.msra.mxu0 %v4091
  %4274 = vmatprep.subr.mxu0 %v4096
  %4275 = vmatpush1.msra.mxu0 %v4095
  %4276 = vmatprep.subr.mxu0 %v4100
  %4277 = vmatpush1.msra.mxu0 %v4099
  %4278 = vmatprep.subr.mxu0 %v4104
  %4279 = vmatpush1.msra.mxu0 %v4103
  %4280 = vmatprep.subr.mxu0 %v4108
  %4281 = vmatpush1.msra.mxu0 %v4107
  %4282 = vmatprep.subr.mxu0 %v4112
  %4283 = vmatpush1.msra.mxu0 %v4111
  %4284 = vmatprep.subr.mxu0 %v4116
  %4285 = vmatpush1.msra.mxu0 %v4115
  %4286 = vmatprep.subr.mxu0 %v4120
  %4287 = vmatpush1.msra.mxu0 %v4119
  %4288 = vmatprep.subr.mxu0 %v4124
  %4289 = vmatpush1.msra.mxu0 %v4123
  %4290 = vmatprep.subr.mxu0 %v4128
  %4291 = vmatpush1.msra.mxu0 %v4127
  %4292 = vmatprep.subr.mxu0 %v4132
  %4293 = vmatpush1.msra.mxu0 %v4131
  %4294 = vmatprep.subr.mxu0 %v4136
  %4295 = vmatpush1.msra.mxu0 %v4135
  %4296 = vmatprep.subr.mxu0 %v4140
  %4297 = vmatpush1.msra.mxu0 %v4139
  %4298 = vmatprep.subr.mxu0 %v4144
  %4299 = vmatpush1.msra.mxu0 %v4143
  %4300 = vmatprep.subr.mxu0 %v4148
  %4301 = vmatpush1.msra.mxu0 %v4147
  %4302 = vmatprep.subr.mxu0 %v4152
  %4303 = vmatpush1.msra.mxu0 %v4151
  %4304 = vmatprep.subr.mxu0 %v4156
  %4305 = vmatpush1.msra.mxu0 %v4155
  %4306 = vmatprep.subr.mxu0 %v4160
  %4307 = vmatpush1.msra.mxu0 %v4159
  %4308 = vmatprep.subr.mxu0 %v4164
  %4309 = vmatpush1.msra.mxu0 %v4163
  %4310 = vmatprep.subr.mxu0 %v4168
  %4311 = vmatpush1.msra.mxu0 %v4167
  %4312 = vmatprep.subr.mxu0 %v4172
  %4313 = vmatpush1.msra.mxu0 %v4171
  %4314 = vmatprep.subr.mxu0 %v4176
  %4315 = vmatpush1.msra.mxu0 %v4175
  %4316 = vmatprep.subr.mxu0 %v4180
  %4317 = vmatpush1.msra.mxu0 %v4179
  %4318 = vmatprep.subr.mxu0 %v4184
  %4319 = vmatpush1.msra.mxu0 %v4183
  %4320 = vmatprep.mubr.f32.mxu0 %v3633
  %4321 = vmatmul.mubr.f32.gmra.mrb[0].mxu0 %v4056
  %v4322 = vpop.f32.mrb[0].mxu0
  %v4323 = vadd.f32 %v101, %v4322
  %v4324 = vpop.f32.mrb[0].mxu0
  %v4325 = vadd.f32 %v105, %v4324
  %4326 = vdwg.mxu0
  %v4327 = vxor.u32 %v4252, 2147483648
  %v4328 = vmul.f32 %v4327, 1.442695
  %v4329 = vpow.pop %v4328
  %v4330 = vadd.f32 %v4329, 1.0
  %v4331 = vrcp.pop %v4330
  %v4332 = vmul.f32 1.0, %v4331
  %v4333 = vxor.u32 %v4254, 2147483648
  %v4334 = vmul.f32 %v4333, 1.442695
  %v4335 = vpow.pop %v4334
  %v4336 = vadd.f32 %v4335, 1.0
  %v4337 = vrcp.pop %v4336
  %v4338 = vmul.f32 1.0, %v4337
  %v4339 = vtanh.pop %v4323
  %v4340 = vxor.u32 %v4325, 2147483648
  %v4341 = vmul.f32 %v4340, 1.442695
  %v4342 = vpow.pop %v4341
  %v4343 = vadd.f32 %v4342, 1.0
  %v4344 = vrcp.pop %v4343
  %v4345 = vmul.f32 1.0, %v4344
  %v4346 = vmul.f32 %v4338, %v3631
  %v4347 = vmul.f32 %v4332, %v4339
  %v4348 = vadd.f32 %v4346, %v4347
  %v4349 = vtanh.pop %v4348
  %v4350 = vmul.f32 %v4345, %v4349
  %4351 = vadd.xlane.f32.xlu0 %v4350
  %v4352 = vpop.xlane.xlu0 %4351
  %v4353 = vmul.f32 %v4352, 0.03125
  %v4354 = vmul.f32 %v4350, %v4350
  %4355 = vadd.xlane.f32.xlu0 %v4354
  %v4356 = vpop.xlane.xlu0 %4355
  %v4357 = vmul.f32 %v4356, 0.03125
  %v4358 = vmul.f32 %v4353, %v4353
  %v4359 = vsub.f32 %v4357, %v4358
  %v4360 = vmax.f32 %v4359, 0.0
  %v4361 = vsub.f32 %v4350, %v4353
  %v4362 = vadd.f32 %v4360, 1e-05
  %v4363 = vrsqrt.pop %v4362
  %v4364 = vmul.f32 %v4361, %v4363
  %v4365 = vmul.f32 %v4364, %v115
  %v4366 = vadd.f32 %v4365, %v122
  %v4368 = vcombine.high %v4366, %v4366
  %v4370 = vunpack.c.l.s4 1966171168
  %v4371 = vunpack.c.0.s8 %v4370
  %v4372 = vlaneseq
  %v4373 = vshrl.u32 %v4372, 7
  %v4374 = vsub.s32 %v4371, %v4373
  %v4375 = vrot.slane %v4366, %v4374
  %v4377 = vunpack.c.l.s4 1966171168
  %v4378 = vunpack.c.0.s8 %v4377
  %v4379 = vlaneseq
  %v4380 = vshrl.u32 %v4379, 7
  %v4381 = vsub.s32 %v4378, %v4380
  %v4382 = vrot.slane %v4368, %v4381
  %v4383 = vcombine.high %v4375, %v4375
  %v4384 = vcombine.high %v4382, %v4382
  %v4386 = vunpack.c.l.s4 1966171168
  %v4387 = vunpack.c.0.s8 %v4386
  %v4388 = vlaneseq
  %v4389 = vshrl.u32 %v4388, 7
  %v4390 = vsub.s32 %v4387, %v4389
  %v4391 = vrot.slane %v4375, %v4390
  %v4393 = vunpack.c.l.s4 1966171168
  %v4394 = vunpack.c.0.s8 %v4393
  %v4395 = vlaneseq
  %v4396 = vshrl.u32 %v4395, 7
  %v4397 = vsub.s32 %v4394, %v4396
  %v4398 = vrot.slane %v4382, %v4397
  %v4400 = vunpack.c.l.s4 1966171168
  %v4401 = vunpack.c.0.s8 %v4400
  %v4402 = vlaneseq
  %v4403 = vshrl.u32 %v4402, 7
  %v4404 = vsub.s32 %v4401, %v4403
  %v4405 = vrot.slane %v4383, %v4404
  %v4407 = vunpack.c.l.s4 1966171168
  %v4408 = vunpack.c.0.s8 %v4407
  %v4409 = vlaneseq
  %v4410 = vshrl.u32 %v4409, 7
  %v4411 = vsub.s32 %v4408, %v4410
  %v4412 = vrot.slane %v4384, %v4411
  %v4413 = vcombine.high %v4391, %v4391
  %v4414 = vcombine.high %v4398, %v4398
  %v4415 = vcombine.high %v4405, %v4405
  %v4416 = vcombine.high %v4412, %v4412
  %4425 = vst [vmem:[#allocation4 + $0x5] sm:$0x1] %v4391
  %4426 = vst [vmem:[#allocation4 + $0xd] sm:$0x1] %v4405
  %4427 = vst [vmem:[#allocation4 + $0x15] sm:$0x1] %v4413
  %4428 = vst [vmem:[#allocation4 + $0x1d] sm:$0x1] %v4415
  %4429 = vst [vmem:[#allocation4 + $0x25] sm:$0x1] %v4398
  %4430 = vst [vmem:[#allocation4 + $0x2d] sm:$0x1] %v4412
  %4431 = vst [vmem:[#allocation4 + $0x35] sm:$0x1] %v4414
  %4432 = vst [vmem:[#allocation4 + $0x3d] sm:$0x1] %v4416
  %v4433 = vld [vmem:[%s0 + $0x6] sm:$0x1]
  %v4434 = vld [vmem:[%s0 + $0xe] sm:$0x1]
  %v4435 = vld [vmem:[%s0 + $0x16] sm:$0x1]
  %v4436 = vld [vmem:[%s0 + $0x1e] sm:$0x1]
  %v4437 = vld [vmem:[%s0 + $0x26] sm:$0x1]
  %v4438 = vld [vmem:[%s0 + $0x2e] sm:$0x1]
  %v4439 = vld [vmem:[%s0 + $0x36] sm:$0x1]
  %v4440 = vld [vmem:[%s0 + $0x3e] sm:$0x1]
  %v4449 = vrot.slane %v4434, 7
  %v4450 = vsel %vm141, %v4449, %v4433
  %v4451 = vrot.slane %v4435, 6
  %v4452 = vsel %vm144, %v4451, %v4450
  %v4453 = vrot.slane %v4436, 5
  %v4454 = vsel %vm147, %v4453, %v4452
  %v4455 = vrot.slane %v4437, 4
  %v4456 = vsel %vm150, %v4455, %v4454
  %v4457 = vrot.slane %v4438, 3
  %v4458 = vsel %vm153, %v4457, %v4456
  %v4459 = vrot.slane %v4439, 2
  %v4460 = vsel %vm156, %v4459, %v4458
  %v4461 = vrot.slane %v4440, 1
  %v4462 = vsel %vm159, %v4461, %v4460
  %v4464 = vld [vmem:[%s1] sm:$0xff]
  %v4465 = vld [vmem:[%s1 + $0x8] sm:$0xff]
  %v4466 = vld [vmem:[%s1 + $0x10] sm:$0xff]
  %v4467 = vld [vmem:[%s1 + $0x18] sm:$0xff]
  %v4468 = vld [vmem:[%s1 + $0x20] sm:$0xff]
  %v4469 = vld [vmem:[%s1 + $0x28] sm:$0xff]
  %v4470 = vld [vmem:[%s1 + $0x30] sm:$0xff]
  %v4471 = vld [vmem:[%s1 + $0x38] sm:$0xff]
  %v4472 = vld [vmem:[%s1 + $0x40] sm:$0xff]
  %v4473 = vld [vmem:[%s1 + $0x48] sm:$0xff]
  %v4474 = vld [vmem:[%s1 + $0x50] sm:$0xff]
  %v4475 = vld [vmem:[%s1 + $0x58] sm:$0xff]
  %v4476 = vld [vmem:[%s1 + $0x60] sm:$0xff]
  %v4477 = vld [vmem:[%s1 + $0x68] sm:$0xff]
  %v4478 = vld [vmem:[%s1 + $0x70] sm:$0xff]
  %v4479 = vld [vmem:[%s1 + $0x78] sm:$0xff]
  %v4480 = vld [vmem:[%s1 + $0x80] sm:$0xff]
  %v4481 = vld [vmem:[%s1 + $0x88] sm:$0xff]
  %v4482 = vld [vmem:[%s1 + $0x90] sm:$0xff]
  %v4483 = vld [vmem:[%s1 + $0x98] sm:$0xff]
  %v4484 = vld [vmem:[%s1 + $0xa0] sm:$0xff]
  %v4485 = vld [vmem:[%s1 + $0xa8] sm:$0xff]
  %v4486 = vld [vmem:[%s1 + $0xb0] sm:$0xff]
  %v4487 = vld [vmem:[%s1 + $0xb8] sm:$0xff]
  %v4488 = vld [vmem:[%s1 + $0xc0] sm:$0xff]
  %v4489 = vld [vmem:[%s1 + $0xc8] sm:$0xff]
  %v4490 = vld [vmem:[%s1 + $0xd0] sm:$0xff]
  %v4491 = vld [vmem:[%s1 + $0xd8] sm:$0xff]
  %v4492 = vld [vmem:[%s1 + $0xe0] sm:$0xff]
  %v4493 = vld [vmem:[%s1 + $0xe8] sm:$0xff]
  %v4494 = vld [vmem:[%s1 + $0xf0] sm:$0xff]
  %v4495 = vld [vmem:[%s1 + $0xf8] sm:$0xff]
  %v4496 = vld [vmem:[%s1 + $0x100] sm:$0xff]
  %v4497 = vld [vmem:[%s1 + $0x108] sm:$0xff]
  %v4498 = vld [vmem:[%s1 + $0x110] sm:$0xff]
  %v4499 = vld [vmem:[%s1 + $0x118] sm:$0xff]
  %v4500 = vld [vmem:[%s1 + $0x120] sm:$0xff]
  %v4501 = vld [vmem:[%s1 + $0x128] sm:$0xff]
  %v4502 = vld [vmem:[%s1 + $0x130] sm:$0xff]
  %v4503 = vld [vmem:[%s1 + $0x138] sm:$0xff]
  %v4504 = vld [vmem:[%s1 + $0x140] sm:$0xff]
  %v4505 = vld [vmem:[%s1 + $0x148] sm:$0xff]
  %v4506 = vld [vmem:[%s1 + $0x150] sm:$0xff]
  %v4507 = vld [vmem:[%s1 + $0x158] sm:$0xff]
  %v4508 = vld [vmem:[%s1 + $0x160] sm:$0xff]
  %v4509 = vld [vmem:[%s1 + $0x168] sm:$0xff]
  %v4510 = vld [vmem:[%s1 + $0x170] sm:$0xff]
  %v4511 = vld [vmem:[%s1 + $0x178] sm:$0xff]
  %v4512 = vld [vmem:[%s1 + $0x180] sm:$0xff]
  %v4513 = vld [vmem:[%s1 + $0x188] sm:$0xff]
  %v4514 = vld [vmem:[%s1 + $0x190] sm:$0xff]
  %v4515 = vld [vmem:[%s1 + $0x198] sm:$0xff]
  %v4516 = vld [vmem:[%s1 + $0x1a0] sm:$0xff]
  %v4517 = vld [vmem:[%s1 + $0x1a8] sm:$0xff]
  %v4518 = vld [vmem:[%s1 + $0x1b0] sm:$0xff]
  %v4519 = vld [vmem:[%s1 + $0x1b8] sm:$0xff]
  %v4520 = vld [vmem:[%s1 + $0x1c0] sm:$0xff]
  %v4521 = vld [vmem:[%s1 + $0x1c8] sm:$0xff]
  %v4522 = vld [vmem:[%s1 + $0x1d0] sm:$0xff]
  %v4523 = vld [vmem:[%s1 + $0x1d8] sm:$0xff]
  %v4524 = vld [vmem:[%s1 + $0x1e0] sm:$0xff]
  %v4525 = vld [vmem:[%s1 + $0x1e8] sm:$0xff]
  %v4526 = vld [vmem:[%s1 + $0x1f0] sm:$0xff]
  %v4527 = vld [vmem:[%s1 + $0x1f8] sm:$0xff]
  %v4528 = vld [vmem:[%s1 + $0x200] sm:$0xff]
  %v4529 = vld [vmem:[%s1 + $0x208] sm:$0xff]
  %v4530 = vld [vmem:[%s1 + $0x210] sm:$0xff]
  %v4531 = vld [vmem:[%s1 + $0x218] sm:$0xff]
  %v4532 = vld [vmem:[%s1 + $0x220] sm:$0xff]
  %v4533 = vld [vmem:[%s1 + $0x228] sm:$0xff]
  %v4534 = vld [vmem:[%s1 + $0x230] sm:$0xff]
  %v4535 = vld [vmem:[%s1 + $0x238] sm:$0xff]
  %v4536 = vld [vmem:[%s1 + $0x240] sm:$0xff]
  %v4537 = vld [vmem:[%s1 + $0x248] sm:$0xff]
  %v4538 = vld [vmem:[%s1 + $0x250] sm:$0xff]
  %v4539 = vld [vmem:[%s1 + $0x258] sm:$0xff]
  %v4540 = vld [vmem:[%s1 + $0x260] sm:$0xff]
  %v4541 = vld [vmem:[%s1 + $0x268] sm:$0xff]
  %v4542 = vld [vmem:[%s1 + $0x270] sm:$0xff]
  %v4543 = vld [vmem:[%s1 + $0x278] sm:$0xff]
  %v4544 = vld [vmem:[%s1 + $0x280] sm:$0xff]
  %v4545 = vld [vmem:[%s1 + $0x288] sm:$0xff]
  %v4546 = vld [vmem:[%s1 + $0x290] sm:$0xff]
  %v4547 = vld [vmem:[%s1 + $0x298] sm:$0xff]
  %v4548 = vld [vmem:[%s1 + $0x2a0] sm:$0xff]
  %v4549 = vld [vmem:[%s1 + $0x2a8] sm:$0xff]
  %v4550 = vld [vmem:[%s1 + $0x2b0] sm:$0xff]
  %v4551 = vld [vmem:[%s1 + $0x2b8] sm:$0xff]
  %v4552 = vld [vmem:[%s1 + $0x2c0] sm:$0xff]
  %v4553 = vld [vmem:[%s1 + $0x2c8] sm:$0xff]
  %v4554 = vld [vmem:[%s1 + $0x2d0] sm:$0xff]
  %v4555 = vld [vmem:[%s1 + $0x2d8] sm:$0xff]
  %v4556 = vld [vmem:[%s1 + $0x2e0] sm:$0xff]
  %v4557 = vld [vmem:[%s1 + $0x2e8] sm:$0xff]
  %v4558 = vld [vmem:[%s1 + $0x2f0] sm:$0xff]
  %v4559 = vld [vmem:[%s1 + $0x2f8] sm:$0xff]
  %v4560 = vld [vmem:[%s1 + $0x300] sm:$0xff]
  %v4561 = vld [vmem:[%s1 + $0x308] sm:$0xff]
  %v4562 = vld [vmem:[%s1 + $0x310] sm:$0xff]
  %v4563 = vld [vmem:[%s1 + $0x318] sm:$0xff]
  %v4564 = vld [vmem:[%s1 + $0x320] sm:$0xff]
  %v4565 = vld [vmem:[%s1 + $0x328] sm:$0xff]
  %v4566 = vld [vmem:[%s1 + $0x330] sm:$0xff]
  %v4567 = vld [vmem:[%s1 + $0x338] sm:$0xff]
  %v4568 = vld [vmem:[%s1 + $0x340] sm:$0xff]
  %v4569 = vld [vmem:[%s1 + $0x348] sm:$0xff]
  %v4570 = vld [vmem:[%s1 + $0x350] sm:$0xff]
  %v4571 = vld [vmem:[%s1 + $0x358] sm:$0xff]
  %v4572 = vld [vmem:[%s1 + $0x360] sm:$0xff]
  %v4573 = vld [vmem:[%s1 + $0x368] sm:$0xff]
  %v4574 = vld [vmem:[%s1 + $0x370] sm:$0xff]
  %v4575 = vld [vmem:[%s1 + $0x378] sm:$0xff]
  %v4576 = vld [vmem:[%s1 + $0x380] sm:$0xff]
  %v4577 = vld [vmem:[%s1 + $0x388] sm:$0xff]
  %v4578 = vld [vmem:[%s1 + $0x390] sm:$0xff]
  %v4579 = vld [vmem:[%s1 + $0x398] sm:$0xff]
  %v4580 = vld [vmem:[%s1 + $0x3a0] sm:$0xff]
  %v4581 = vld [vmem:[%s1 + $0x3a8] sm:$0xff]
  %v4582 = vld [vmem:[%s1 + $0x3b0] sm:$0xff]
  %v4583 = vld [vmem:[%s1 + $0x3b8] sm:$0xff]
  %v4584 = vld [vmem:[%s1 + $0x3c0] sm:$0xff]
  %v4585 = vld [vmem:[%s1 + $0x3c8] sm:$0xff]
  %v4586 = vld [vmem:[%s1 + $0x3d0] sm:$0xff]
  %v4587 = vld [vmem:[%s1 + $0x3d8] sm:$0xff]
  %v4588 = vld [vmem:[%s1 + $0x3e0] sm:$0xff]
  %v4589 = vld [vmem:[%s1 + $0x3e8] sm:$0xff]
  %v4590 = vld [vmem:[%s1 + $0x3f0] sm:$0xff]
  %v4591 = vld [vmem:[%s1 + $0x3f8] sm:$0xff]
  %4592 = vmatprep.subr.mxu0 %v4465
  %4593 = vmatpush1.msra.mxu0 %v4464
  %4594 = vmatprep.subr.mxu0 %v4469
  %4595 = vmatpush1.msra.mxu0 %v4468
  %4596 = vmatprep.subr.mxu0 %v4473
  %4597 = vmatpush1.msra.mxu0 %v4472
  %4598 = vmatprep.subr.mxu0 %v4477
  %4599 = vmatpush1.msra.mxu0 %v4476
  %4600 = vmatprep.subr.mxu0 %v4481
  %4601 = vmatpush1.msra.mxu0 %v4480
  %4602 = vmatprep.subr.mxu0 %v4485
  %4603 = vmatpush1.msra.mxu0 %v4484
  %4604 = vmatprep.subr.mxu0 %v4489
  %4605 = vmatpush1.msra.mxu0 %v4488
  %4606 = vmatprep.subr.mxu0 %v4493
  %4607 = vmatpush1.msra.mxu0 %v4492
  %4608 = vmatprep.subr.mxu0 %v4497
  %4609 = vmatpush1.msra.mxu0 %v4496
  %4610 = vmatprep.subr.mxu0 %v4501
  %4611 = vmatpush1.msra.mxu0 %v4500
  %4612 = vmatprep.subr.mxu0 %v4505
  %4613 = vmatpush1.msra.mxu0 %v4504
  %4614 = vmatprep.subr.mxu0 %v4509
  %4615 = vmatpush1.msra.mxu0 %v4508
  %4616 = vmatprep.subr.mxu0 %v4513
  %4617 = vmatpush1.msra.mxu0 %v4512
  %4618 = vmatprep.subr.mxu0 %v4517
  %4619 = vmatpush1.msra.mxu0 %v4516
  %4620 = vmatprep.subr.mxu0 %v4521
  %4621 = vmatpush1.msra.mxu0 %v4520
  %4622 = vmatprep.subr.mxu0 %v4525
  %4623 = vmatpush1.msra.mxu0 %v4524
  %4624 = vmatprep.subr.mxu0 %v4529
  %4625 = vmatpush1.msra.mxu0 %v4528
  %4626 = vmatprep.subr.mxu0 %v4533
  %4627 = vmatpush1.msra.mxu0 %v4532
  %4628 = vmatprep.subr.mxu0 %v4537
  %4629 = vmatpush1.msra.mxu0 %v4536
  %4630 = vmatprep.subr.mxu0 %v4541
  %4631 = vmatpush1.msra.mxu0 %v4540
  %4632 = vmatprep.subr.mxu0 %v4545
  %4633 = vmatpush1.msra.mxu0 %v4544
  %4634 = vmatprep.subr.mxu0 %v4549
  %4635 = vmatpush1.msra.mxu0 %v4548
  %4636 = vmatprep.subr.mxu0 %v4553
  %4637 = vmatpush1.msra.mxu0 %v4552
  %4638 = vmatprep.subr.mxu0 %v4557
  %4639 = vmatpush1.msra.mxu0 %v4556
  %4640 = vmatprep.subr.mxu0 %v4561
  %4641 = vmatpush1.msra.mxu0 %v4560
  %4642 = vmatprep.subr.mxu0 %v4565
  %4643 = vmatpush1.msra.mxu0 %v4564
  %4644 = vmatprep.subr.mxu0 %v4569
  %4645 = vmatpush1.msra.mxu0 %v4568
  %4646 = vmatprep.subr.mxu0 %v4573
  %4647 = vmatpush1.msra.mxu0 %v4572
  %4648 = vmatprep.subr.mxu0 %v4577
  %4649 = vmatpush1.msra.mxu0 %v4576
  %4650 = vmatprep.subr.mxu0 %v4581
  %4651 = vmatpush1.msra.mxu0 %v4580
  %4652 = vmatprep.subr.mxu0 %v4585
  %4653 = vmatpush1.msra.mxu0 %v4584
  %4654 = vmatprep.subr.mxu0 %v4589
  %4655 = vmatpush1.msra.mxu0 %v4588
  %4656 = vmatprep.mubr.f32.mxu0 %v4040
  %4657 = vmatmul.mubr.f32.gmra.mrb[0].mxu0 %v4462
  %v4658 = vpop.f32.mrb[0].mxu0
  %v4659 = vadd.f32 %v57, %v4658
  %v4660 = vpop.f32.mrb[0].mxu0
  %v4661 = vadd.f32 %v61, %v4660
  %4662 = vdwg.mxu0
  %4663 = vmatprep.subr.mxu0 %v4467
  %4664 = vmatpush1.msra.mxu0 %v4466
  %4665 = vmatprep.subr.mxu0 %v4471
  %4666 = vmatpush1.msra.mxu0 %v4470
  %4667 = vmatprep.subr.mxu0 %v4475
  %4668 = vmatpush1.msra.mxu0 %v4474
  %4669 = vmatprep.subr.mxu0 %v4479
  %4670 = vmatpush1.msra.mxu0 %v4478
  %4671 = vmatprep.subr.mxu0 %v4483
  %4672 = vmatpush1.msra.mxu0 %v4482
  %4673 = vmatprep.subr.mxu0 %v4487
  %4674 = vmatpush1.msra.mxu0 %v4486
  %4675 = vmatprep.subr.mxu0 %v4491
  %4676 = vmatpush1.msra.mxu0 %v4490
  %4677 = vmatprep.subr.mxu0 %v4495
  %4678 = vmatpush1.msra.mxu0 %v4494
  %4679 = vmatprep.subr.mxu0 %v4499
  %4680 = vmatpush1.msra.mxu0 %v4498
  %4681 = vmatprep.subr.mxu0 %v4503
  %4682 = vmatpush1.msra.mxu0 %v4502
  %4683 = vmatprep.subr.mxu0 %v4507
  %4684 = vmatpush1.msra.mxu0 %v4506
  %4685 = vmatprep.subr.mxu0 %v4511
  %4686 = vmatpush1.msra.mxu0 %v4510
  %4687 = vmatprep.subr.mxu0 %v4515
  %4688 = vmatpush1.msra.mxu0 %v4514
  %4689 = vmatprep.subr.mxu0 %v4519
  %4690 = vmatpush1.msra.mxu0 %v4518
  %4691 = vmatprep.subr.mxu0 %v4523
  %4692 = vmatpush1.msra.mxu0 %v4522
  %4693 = vmatprep.subr.mxu0 %v4527
  %4694 = vmatpush1.msra.mxu0 %v4526
  %4695 = vmatprep.subr.mxu0 %v4531
  %4696 = vmatpush1.msra.mxu0 %v4530
  %4697 = vmatprep.subr.mxu0 %v4535
  %4698 = vmatpush1.msra.mxu0 %v4534
  %4699 = vmatprep.subr.mxu0 %v4539
  %4700 = vmatpush1.msra.mxu0 %v4538
  %4701 = vmatprep.subr.mxu0 %v4543
  %4702 = vmatpush1.msra.mxu0 %v4542
  %4703 = vmatprep.subr.mxu0 %v4547
  %4704 = vmatpush1.msra.mxu0 %v4546
  %4705 = vmatprep.subr.mxu0 %v4551
  %4706 = vmatpush1.msra.mxu0 %v4550
  %4707 = vmatprep.subr.mxu0 %v4555
  %4708 = vmatpush1.msra.mxu0 %v4554
  %4709 = vmatprep.subr.mxu0 %v4559
  %4710 = vmatpush1.msra.mxu0 %v4558
  %4711 = vmatprep.subr.mxu0 %v4563
  %4712 = vmatpush1.msra.mxu0 %v4562
  %4713 = vmatprep.subr.mxu0 %v4567
  %4714 = vmatpush1.msra.mxu0 %v4566
  %4715 = vmatprep.subr.mxu0 %v4571
  %4716 = vmatpush1.msra.mxu0 %v4570
  %4717 = vmatprep.subr.mxu0 %v4575
  %4718 = vmatpush1.msra.mxu0 %v4574
  %4719 = vmatprep.subr.mxu0 %v4579
  %4720 = vmatpush1.msra.mxu0 %v4578
  %4721 = vmatprep.subr.mxu0 %v4583
  %4722 = vmatpush1.msra.mxu0 %v4582
  %4723 = vmatprep.subr.mxu0 %v4587
  %4724 = vmatpush1.msra.mxu0 %v4586
  %4725 = vmatprep.subr.mxu0 %v4591
  %4726 = vmatpush1.msra.mxu0 %v4590
  %4727 = vmatprep.mubr.f32.mxu0 %v4040
  %4728 = vmatmul.mubr.f32.gmra.mrb[0].mxu0 %v4462
  %v4729 = vpop.f32.mrb[0].mxu0
  %v4730 = vadd.f32 %v65, %v4729
  %v4731 = vpop.f32.mrb[0].mxu0
  %v4732 = vadd.f32 %v69, %v4731
  %4733 = vdwg.mxu0
  %v4734 = vxor.u32 %v4659, 2147483648
  %v4735 = vmul.f32 %v4734, 1.442695
  %v4736 = vpow.pop %v4735
  %v4737 = vadd.f32 %v4736, 1.0
  %v4738 = vrcp.pop %v4737
  %v4739 = vmul.f32 1.0, %v4738
  %v4740 = vxor.u32 %v4661, 2147483648
  %v4741 = vmul.f32 %v4740, 1.442695
  %v4742 = vpow.pop %v4741
  %v4743 = vadd.f32 %v4742, 1.0
  %v4744 = vrcp.pop %v4743
  %v4745 = vmul.f32 1.0, %v4744
  %v4746 = vtanh.pop %v4730
  %v4747 = vxor.u32 %v4732, 2147483648
  %v4748 = vmul.f32 %v4747, 1.442695
  %v4749 = vpow.pop %v4748
  %v4750 = vadd.f32 %v4749, 1.0
  %v4751 = vrcp.pop %v4750
  %v4752 = vmul.f32 1.0, %v4751
  %v4753 = vmul.f32 %v4745, %v4038
  %v4754 = vmul.f32 %v4739, %v4746
  %v4755 = vadd.f32 %v4753, %v4754
  %v4756 = vtanh.pop %v4755
  %v4757 = vmul.f32 %v4752, %v4756
  %4758 = vadd.xlane.f32.xlu0 %v4757
  %v4759 = vpop.xlane.xlu0 %4758
  %v4760 = vmul.f32 %v4759, 0.03125
  %v4761 = vmul.f32 %v4757, %v4757
  %4762 = vadd.xlane.f32.xlu0 %v4761
  %v4763 = vpop.xlane.xlu0 %4762
  %v4764 = vmul.f32 %v4763, 0.03125
  %v4765 = vmul.f32 %v4760, %v4760
  %v4766 = vsub.f32 %v4764, %v4765
  %v4767 = vmax.f32 %v4766, 0.0
  %v4768 = vsub.f32 %v4757, %v4760
  %v4769 = vadd.f32 %v4767, 1e-05
  %v4770 = vrsqrt.pop %v4769
  %v4771 = vmul.f32 %v4768, %v4770
  %v4772 = vmul.f32 %v4771, %v79
  %v4773 = vadd.f32 %v4772, %v86
  %v4774 = vld [vmem:[%s5] sm:$0xff]
  %v4775 = vld [vmem:[%s5 + $0x8] sm:$0xff]
  %v4776 = vld [vmem:[%s5 + $0x10] sm:$0xff]
  %v4777 = vld [vmem:[%s5 + $0x18] sm:$0xff]
  %v4778 = vld [vmem:[%s5 + $0x20] sm:$0xff]
  %v4779 = vld [vmem:[%s5 + $0x28] sm:$0xff]
  %v4780 = vld [vmem:[%s5 + $0x30] sm:$0xff]
  %v4781 = vld [vmem:[%s5 + $0x38] sm:$0xff]
  %v4782 = vld [vmem:[%s5 + $0x40] sm:$0xff]
  %v4783 = vld [vmem:[%s5 + $0x48] sm:$0xff]
  %v4784 = vld [vmem:[%s5 + $0x50] sm:$0xff]
  %v4785 = vld [vmem:[%s5 + $0x58] sm:$0xff]
  %v4786 = vld [vmem:[%s5 + $0x60] sm:$0xff]
  %v4787 = vld [vmem:[%s5 + $0x68] sm:$0xff]
  %v4788 = vld [vmem:[%s5 + $0x70] sm:$0xff]
  %v4789 = vld [vmem:[%s5 + $0x78] sm:$0xff]
  %v4790 = vld [vmem:[%s5 + $0x80] sm:$0xff]
  %v4791 = vld [vmem:[%s5 + $0x88] sm:$0xff]
  %v4792 = vld [vmem:[%s5 + $0x90] sm:$0xff]
  %v4793 = vld [vmem:[%s5 + $0x98] sm:$0xff]
  %v4794 = vld [vmem:[%s5 + $0xa0] sm:$0xff]
  %v4795 = vld [vmem:[%s5 + $0xa8] sm:$0xff]
  %v4796 = vld [vmem:[%s5 + $0xb0] sm:$0xff]
  %v4797 = vld [vmem:[%s5 + $0xb8] sm:$0xff]
  %v4798 = vld [vmem:[%s5 + $0xc0] sm:$0xff]
  %v4799 = vld [vmem:[%s5 + $0xc8] sm:$0xff]
  %v4800 = vld [vmem:[%s5 + $0xd0] sm:$0xff]
  %v4801 = vld [vmem:[%s5 + $0xd8] sm:$0xff]
  %v4802 = vld [vmem:[%s5 + $0xe0] sm:$0xff]
  %v4803 = vld [vmem:[%s5 + $0xe8] sm:$0xff]
  %v4804 = vld [vmem:[%s5 + $0xf0] sm:$0xff]
  %v4805 = vld [vmem:[%s5 + $0xf8] sm:$0xff]
  %v4806 = vld [vmem:[%s5 + $0x100] sm:$0xff]
  %v4807 = vld [vmem:[%s5 + $0x108] sm:$0xff]
  %v4808 = vld [vmem:[%s5 + $0x110] sm:$0xff]
  %v4809 = vld [vmem:[%s5 + $0x118] sm:$0xff]
  %v4810 = vld [vmem:[%s5 + $0x120] sm:$0xff]
  %v4811 = vld [vmem:[%s5 + $0x128] sm:$0xff]
  %v4812 = vld [vmem:[%s5 + $0x130] sm:$0xff]
  %v4813 = vld [vmem:[%s5 + $0x138] sm:$0xff]
  %v4814 = vld [vmem:[%s5 + $0x140] sm:$0xff]
  %v4815 = vld [vmem:[%s5 + $0x148] sm:$0xff]
  %v4816 = vld [vmem:[%s5 + $0x150] sm:$0xff]
  %v4817 = vld [vmem:[%s5 + $0x158] sm:$0xff]
  %v4818 = vld [vmem:[%s5 + $0x160] sm:$0xff]
  %v4819 = vld [vmem:[%s5 + $0x168] sm:$0xff]
  %v4820 = vld [vmem:[%s5 + $0x170] sm:$0xff]
  %v4821 = vld [vmem:[%s5 + $0x178] sm:$0xff]
  %v4822 = vld [vmem:[%s5 + $0x180] sm:$0xff]
  %v4823 = vld [vmem:[%s5 + $0x188] sm:$0xff]
  %v4824 = vld [vmem:[%s5 + $0x190] sm:$0xff]
  %v4825 = vld [vmem:[%s5 + $0x198] sm:$0xff]
  %v4826 = vld [vmem:[%s5 + $0x1a0] sm:$0xff]
  %v4827 = vld [vmem:[%s5 + $0x1a8] sm:$0xff]
  %v4828 = vld [vmem:[%s5 + $0x1b0] sm:$0xff]
  %v4829 = vld [vmem:[%s5 + $0x1b8] sm:$0xff]
  %v4830 = vld [vmem:[%s5 + $0x1c0] sm:$0xff]
  %v4831 = vld [vmem:[%s5 + $0x1c8] sm:$0xff]
  %v4832 = vld [vmem:[%s5 + $0x1d0] sm:$0xff]
  %v4833 = vld [vmem:[%s5 + $0x1d8] sm:$0xff]
  %v4834 = vld [vmem:[%s5 + $0x1e0] sm:$0xff]
  %v4835 = vld [vmem:[%s5 + $0x1e8] sm:$0xff]
  %v4836 = vld [vmem:[%s5 + $0x1f0] sm:$0xff]
  %v4837 = vld [vmem:[%s5 + $0x1f8] sm:$0xff]
  %v4838 = vld [vmem:[%s5 + $0x200] sm:$0xff]
  %v4839 = vld [vmem:[%s5 + $0x208] sm:$0xff]
  %v4840 = vld [vmem:[%s5 + $0x210] sm:$0xff]
  %v4841 = vld [vmem:[%s5 + $0x218] sm:$0xff]
  %v4842 = vld [vmem:[%s5 + $0x220] sm:$0xff]
  %v4843 = vld [vmem:[%s5 + $0x228] sm:$0xff]
  %v4844 = vld [vmem:[%s5 + $0x230] sm:$0xff]
  %v4845 = vld [vmem:[%s5 + $0x238] sm:$0xff]
  %v4846 = vld [vmem:[%s5 + $0x240] sm:$0xff]
  %v4847 = vld [vmem:[%s5 + $0x248] sm:$0xff]
  %v4848 = vld [vmem:[%s5 + $0x250] sm:$0xff]
  %v4849 = vld [vmem:[%s5 + $0x258] sm:$0xff]
  %v4850 = vld [vmem:[%s5 + $0x260] sm:$0xff]
  %v4851 = vld [vmem:[%s5 + $0x268] sm:$0xff]
  %v4852 = vld [vmem:[%s5 + $0x270] sm:$0xff]
  %v4853 = vld [vmem:[%s5 + $0x278] sm:$0xff]
  %v4854 = vld [vmem:[%s5 + $0x280] sm:$0xff]
  %v4855 = vld [vmem:[%s5 + $0x288] sm:$0xff]
  %v4856 = vld [vmem:[%s5 + $0x290] sm:$0xff]
  %v4857 = vld [vmem:[%s5 + $0x298] sm:$0xff]
  %v4858 = vld [vmem:[%s5 + $0x2a0] sm:$0xff]
  %v4859 = vld [vmem:[%s5 + $0x2a8] sm:$0xff]
  %v4860 = vld [vmem:[%s5 + $0x2b0] sm:$0xff]
  %v4861 = vld [vmem:[%s5 + $0x2b8] sm:$0xff]
  %v4862 = vld [vmem:[%s5 + $0x2c0] sm:$0xff]
  %v4863 = vld [vmem:[%s5 + $0x2c8] sm:$0xff]
  %v4864 = vld [vmem:[%s5 + $0x2d0] sm:$0xff]
  %v4865 = vld [vmem:[%s5 + $0x2d8] sm:$0xff]
  %v4866 = vld [vmem:[%s5 + $0x2e0] sm:$0xff]
  %v4867 = vld [vmem:[%s5 + $0x2e8] sm:$0xff]
  %v4868 = vld [vmem:[%s5 + $0x2f0] sm:$0xff]
  %v4869 = vld [vmem:[%s5 + $0x2f8] sm:$0xff]
  %v4870 = vld [vmem:[%s5 + $0x300] sm:$0xff]
  %v4871 = vld [vmem:[%s5 + $0x308] sm:$0xff]
  %v4872 = vld [vmem:[%s5 + $0x310] sm:$0xff]
  %v4873 = vld [vmem:[%s5 + $0x318] sm:$0xff]
  %v4874 = vld [vmem:[%s5 + $0x320] sm:$0xff]
  %v4875 = vld [vmem:[%s5 + $0x328] sm:$0xff]
  %v4876 = vld [vmem:[%s5 + $0x330] sm:$0xff]
  %v4877 = vld [vmem:[%s5 + $0x338] sm:$0xff]
  %v4878 = vld [vmem:[%s5 + $0x340] sm:$0xff]
  %v4879 = vld [vmem:[%s5 + $0x348] sm:$0xff]
  %v4880 = vld [vmem:[%s5 + $0x350] sm:$0xff]
  %v4881 = vld [vmem:[%s5 + $0x358] sm:$0xff]
  %v4882 = vld [vmem:[%s5 + $0x360] sm:$0xff]
  %v4883 = vld [vmem:[%s5 + $0x368] sm:$0xff]
  %v4884 = vld [vmem:[%s5 + $0x370] sm:$0xff]
  %v4885 = vld [vmem:[%s5 + $0x378] sm:$0xff]
  %v4886 = vld [vmem:[%s5 + $0x380] sm:$0xff]
  %v4887 = vld [vmem:[%s5 + $0x388] sm:$0xff]
  %v4888 = vld [vmem:[%s5 + $0x390] sm:$0xff]
  %v4889 = vld [vmem:[%s5 + $0x398] sm:$0xff]
  %v4890 = vld [vmem:[%s5 + $0x3a0] sm:$0xff]
  %v4891 = vld [vmem:[%s5 + $0x3a8] sm:$0xff]
  %v4892 = vld [vmem:[%s5 + $0x3b0] sm:$0xff]
  %v4893 = vld [vmem:[%s5 + $0x3b8] sm:$0xff]
  %v4894 = vld [vmem:[%s5 + $0x3c0] sm:$0xff]
  %v4895 = vld [vmem:[%s5 + $0x3c8] sm:$0xff]
  %v4896 = vld [vmem:[%s5 + $0x3d0] sm:$0xff]
  %v4897 = vld [vmem:[%s5 + $0x3d8] sm:$0xff]
  %v4898 = vld [vmem:[%s5 + $0x3e0] sm:$0xff]
  %v4899 = vld [vmem:[%s5 + $0x3e8] sm:$0xff]
  %v4900 = vld [vmem:[%s5 + $0x3f0] sm:$0xff]
  %v4901 = vld [vmem:[%s5 + $0x3f8] sm:$0xff]
  %4902 = vmatprep.subr.mxu0 %v4775
  %4903 = vmatpush1.msra.mxu0 %v4774
  %4904 = vmatprep.subr.mxu0 %v4779
  %4905 = vmatpush1.msra.mxu0 %v4778
  %4906 = vmatprep.subr.mxu0 %v4783
  %4907 = vmatpush1.msra.mxu0 %v4782
  %4908 = vmatprep.subr.mxu0 %v4787
  %4909 = vmatpush1.msra.mxu0 %v4786
  %4910 = vmatprep.subr.mxu0 %v4791
  %4911 = vmatpush1.msra.mxu0 %v4790
  %4912 = vmatprep.subr.mxu0 %v4795
  %4913 = vmatpush1.msra.mxu0 %v4794
  %4914 = vmatprep.subr.mxu0 %v4799
  %4915 = vmatpush1.msra.mxu0 %v4798
  %4916 = vmatprep.subr.mxu0 %v4803
  %4917 = vmatpush1.msra.mxu0 %v4802
  %4918 = vmatprep.subr.mxu0 %v4807
  %4919 = vmatpush1.msra.mxu0 %v4806
  %4920 = vmatprep.subr.mxu0 %v4811
  %4921 = vmatpush1.msra.mxu0 %v4810
  %4922 = vmatprep.subr.mxu0 %v4815
  %4923 = vmatpush1.msra.mxu0 %v4814
  %4924 = vmatprep.subr.mxu0 %v4819
  %4925 = vmatpush1.msra.mxu0 %v4818
  %4926 = vmatprep.subr.mxu0 %v4823
  %4927 = vmatpush1.msra.mxu0 %v4822
  %4928 = vmatprep.subr.mxu0 %v4827
  %4929 = vmatpush1.msra.mxu0 %v4826
  %4930 = vmatprep.subr.mxu0 %v4831
  %4931 = vmatpush1.msra.mxu0 %v4830
  %4932 = vmatprep.subr.mxu0 %v4835
  %4933 = vmatpush1.msra.mxu0 %v4834
  %4934 = vmatprep.subr.mxu0 %v4839
  %4935 = vmatpush1.msra.mxu0 %v4838
  %4936 = vmatprep.subr.mxu0 %v4843
  %4937 = vmatpush1.msra.mxu0 %v4842
  %4938 = vmatprep.subr.mxu0 %v4847
  %4939 = vmatpush1.msra.mxu0 %v4846
  %4940 = vmatprep.subr.mxu0 %v4851
  %4941 = vmatpush1.msra.mxu0 %v4850
  %4942 = vmatprep.subr.mxu0 %v4855
  %4943 = vmatpush1.msra.mxu0 %v4854
  %4944 = vmatprep.subr.mxu0 %v4859
  %4945 = vmatpush1.msra.mxu0 %v4858
  %4946 = vmatprep.subr.mxu0 %v4863
  %4947 = vmatpush1.msra.mxu0 %v4862
  %4948 = vmatprep.subr.mxu0 %v4867
  %4949 = vmatpush1.msra.mxu0 %v4866
  %4950 = vmatprep.subr.mxu0 %v4871
  %4951 = vmatpush1.msra.mxu0 %v4870
  %4952 = vmatprep.subr.mxu0 %v4875
  %4953 = vmatpush1.msra.mxu0 %v4874
  %4954 = vmatprep.subr.mxu0 %v4879
  %4955 = vmatpush1.msra.mxu0 %v4878
  %4956 = vmatprep.subr.mxu0 %v4883
  %4957 = vmatpush1.msra.mxu0 %v4882
  %4958 = vmatprep.subr.mxu0 %v4887
  %4959 = vmatpush1.msra.mxu0 %v4886
  %4960 = vmatprep.subr.mxu0 %v4891
  %4961 = vmatpush1.msra.mxu0 %v4890
  %4962 = vmatprep.subr.mxu0 %v4895
  %4963 = vmatpush1.msra.mxu0 %v4894
  %4964 = vmatprep.subr.mxu0 %v4899
  %4965 = vmatpush1.msra.mxu0 %v4898
  %4966 = vmatprep.mubr.f32.mxu0 %v4350
  %4967 = vmatmul.mubr.f32.gmra.mrb[0].mxu0 %v4773
  %v4968 = vpop.f32.mrb[0].mxu0
  %v4969 = vadd.f32 %v93, %v4968
  %v4970 = vpop.f32.mrb[0].mxu0
  %v4971 = vadd.f32 %v97, %v4970
  %4972 = vdwg.mxu0
  %4973 = vmatprep.subr.mxu0 %v4777
  %4974 = vmatpush1.msra.mxu0 %v4776
  %4975 = vmatprep.subr.mxu0 %v4781
  %4976 = vmatpush1.msra.mxu0 %v4780
  %4977 = vmatprep.subr.mxu0 %v4785
  %4978 = vmatpush1.msra.mxu0 %v4784
  %4979 = vmatprep.subr.mxu0 %v4789
  %4980 = vmatpush1.msra.mxu0 %v4788
  %4981 = vmatprep.subr.mxu0 %v4793
  %4982 = vmatpush1.msra.mxu0 %v4792
  %4983 = vmatprep.subr.mxu0 %v4797
  %4984 = vmatpush1.msra.mxu0 %v4796
  %4985 = vmatprep.subr.mxu0 %v4801
  %4986 = vmatpush1.msra.mxu0 %v4800
  %4987 = vmatprep.subr.mxu0 %v4805
  %4988 = vmatpush1.msra.mxu0 %v4804
  %4989 = vmatprep.subr.mxu0 %v4809
  %4990 = vmatpush1.msra.mxu0 %v4808
  %4991 = vmatprep.subr.mxu0 %v4813
  %4992 = vmatpush1.msra.mxu0 %v4812
  %4993 = vmatprep.subr.mxu0 %v4817
  %4994 = vmatpush1.msra.mxu0 %v4816
  %4995 = vmatprep.subr.mxu0 %v4821
  %4996 = vmatpush1.msra.mxu0 %v4820
  %4997 = vmatprep.subr.mxu0 %v4825
  %4998 = vmatpush1.msra.mxu0 %v4824
  %4999 = vmatprep.subr.mxu0 %v4829
  %5000 = vmatpush1.msra.mxu0 %v4828
  %5001 = vmatprep.subr.mxu0 %v4833
  %5002 = vmatpush1.msra.mxu0 %v4832
  %5003 = vmatprep.subr.mxu0 %v4837
  %5004 = vmatpush1.msra.mxu0 %v4836
  %5005 = vmatprep.subr.mxu0 %v4841
  %5006 = vmatpush1.msra.mxu0 %v4840
  %5007 = vmatprep.subr.mxu0 %v4845
  %5008 = vmatpush1.msra.mxu0 %v4844
  %5009 = vmatprep.subr.mxu0 %v4849
  %5010 = vmatpush1.msra.mxu0 %v4848
  %5011 = vmatprep.subr.mxu0 %v4853
  %5012 = vmatpush1.msra.mxu0 %v4852
  %5013 = vmatprep.subr.mxu0 %v4857
  %5014 = vmatpush1.msra.mxu0 %v4856
  %5015 = vmatprep.subr.mxu0 %v4861
  %5016 = vmatpush1.msra.mxu0 %v4860
  %5017 = vmatprep.subr.mxu0 %v4865
  %5018 = vmatpush1.msra.mxu0 %v4864
  %5019 = vmatprep.subr.mxu0 %v4869
  %5020 = vmatpush1.msra.mxu0 %v4868
  %5021 = vmatprep.subr.mxu0 %v4873
  %5022 = vmatpush1.msra.mxu0 %v4872
  %5023 = vmatprep.subr.mxu0 %v4877
  %5024 = vmatpush1.msra.mxu0 %v4876
  %5025 = vmatprep.subr.mxu0 %v4881
  %5026 = vmatpush1.msra.mxu0 %v4880
  %5027 = vmatprep.subr.mxu0 %v4885
  %5028 = vmatpush1.msra.mxu0 %v4884
  %5029 = vmatprep.subr.mxu0 %v4889
  %5030 = vmatpush1.msra.mxu0 %v4888
  %5031 = vmatprep.subr.mxu0 %v4893
  %5032 = vmatpush1.msra.mxu0 %v4892
  %5033 = vmatprep.subr.mxu0 %v4897
  %5034 = vmatpush1.msra.mxu0 %v4896
  %5035 = vmatprep.subr.mxu0 %v4901
  %5036 = vmatpush1.msra.mxu0 %v4900
  %5037 = vmatprep.mubr.f32.mxu0 %v4350
  %5038 = vmatmul.mubr.f32.gmra.mrb[0].mxu0 %v4773
  %v5039 = vpop.f32.mrb[0].mxu0
  %v5040 = vadd.f32 %v101, %v5039
  %v5041 = vpop.f32.mrb[0].mxu0
  %v5042 = vadd.f32 %v105, %v5041
  %5043 = vdwg.mxu0
  %v5044 = vxor.u32 %v4969, 2147483648
  %v5045 = vmul.f32 %v5044, 1.442695
  %v5046 = vpow.pop %v5045
  %v5047 = vadd.f32 %v5046, 1.0
  %v5048 = vrcp.pop %v5047
  %v5049 = vmul.f32 1.0, %v5048
  %v5050 = vxor.u32 %v4971, 2147483648
  %v5051 = vmul.f32 %v5050, 1.442695
  %v5052 = vpow.pop %v5051
  %v5053 = vadd.f32 %v5052, 1.0
  %v5054 = vrcp.pop %v5053
  %v5055 = vmul.f32 1.0, %v5054
  %v5056 = vtanh.pop %v5040
  %v5057 = vxor.u32 %v5042, 2147483648
  %v5058 = vmul.f32 %v5057, 1.442695
  %v5059 = vpow.pop %v5058
  %v5060 = vadd.f32 %v5059, 1.0
  %v5061 = vrcp.pop %v5060
  %v5062 = vmul.f32 1.0, %v5061
  %v5063 = vmul.f32 %v5055, %v4348
  %v5064 = vmul.f32 %v5049, %v5056
  %v5065 = vadd.f32 %v5063, %v5064
  %v5066 = vtanh.pop %v5065
  %v5067 = vmul.f32 %v5062, %v5066
  %5068 = vadd.xlane.f32.xlu0 %v5067
  %v5069 = vpop.xlane.xlu0 %5068
  %v5070 = vmul.f32 %v5069, 0.03125
  %v5071 = vmul.f32 %v5067, %v5067
  %5072 = vadd.xlane.f32.xlu0 %v5071
  %v5073 = vpop.xlane.xlu0 %5072
  %v5074 = vmul.f32 %v5073, 0.03125
  %v5075 = vmul.f32 %v5070, %v5070
  %v5076 = vsub.f32 %v5074, %v5075
  %v5077 = vmax.f32 %v5076, 0.0
  %v5078 = vsub.f32 %v5067, %v5070
  %v5079 = vadd.f32 %v5077, 1e-05
  %v5080 = vrsqrt.pop %v5079
  %v5081 = vmul.f32 %v5078, %v5080
  %v5082 = vmul.f32 %v5081, %v115
  %v5083 = vadd.f32 %v5082, %v122
  %v5085 = vcombine.high %v5083, %v5083
  %v5087 = vunpack.c.l.s4 1966171168
  %v5088 = vunpack.c.0.s8 %v5087
  %v5089 = vlaneseq
  %v5090 = vshrl.u32 %v5089, 7
  %v5091 = vsub.s32 %v5088, %v5090
  %v5092 = vrot.slane %v5083, %v5091
  %v5094 = vunpack.c.l.s4 1966171168
  %v5095 = vunpack.c.0.s8 %v5094
  %v5096 = vlaneseq
  %v5097 = vshrl.u32 %v5096, 7
  %v5098 = vsub.s32 %v5095, %v5097
  %v5099 = vrot.slane %v5085, %v5098
  %v5100 = vcombine.high %v5092, %v5092
  %v5101 = vcombine.high %v5099, %v5099
  %v5103 = vunpack.c.l.s4 1966171168
  %v5104 = vunpack.c.0.s8 %v5103
  %v5105 = vlaneseq
  %v5106 = vshrl.u32 %v5105, 7
  %v5107 = vsub.s32 %v5104, %v5106
  %v5108 = vrot.slane %v5092, %v5107
  %v5110 = vunpack.c.l.s4 1966171168
  %v5111 = vunpack.c.0.s8 %v5110
  %v5112 = vlaneseq
  %v5113 = vshrl.u32 %v5112, 7
  %v5114 = vsub.s32 %v5111, %v5113
  %v5115 = vrot.slane %v5099, %v5114
  %v5117 = vunpack.c.l.s4 1966171168
  %v5118 = vunpack.c.0.s8 %v5117
  %v5119 = vlaneseq
  %v5120 = vshrl.u32 %v5119, 7
  %v5121 = vsub.s32 %v5118, %v5120
  %v5122 = vrot.slane %v5100, %v5121
  %v5124 = vunpack.c.l.s4 1966171168
  %v5125 = vunpack.c.0.s8 %v5124
  %v5126 = vlaneseq
  %v5127 = vshrl.u32 %v5126, 7
  %v5128 = vsub.s32 %v5125, %v5127
  %v5129 = vrot.slane %v5101, %v5128
  %v5130 = vcombine.high %v5108, %v5108
  %v5131 = vcombine.high %v5115, %v5115
  %v5132 = vcombine.high %v5122, %v5122
  %v5133 = vcombine.high %v5129, %v5129
  %5142 = vst [vmem:[#allocation4 + $0x6] sm:$0x1] %v5108
  %5143 = vst [vmem:[#allocation4 + $0xe] sm:$0x1] %v5122
  %5144 = vst [vmem:[#allocation4 + $0x16] sm:$0x1] %v5130
  %5145 = vst [vmem:[#allocation4 + $0x1e] sm:$0x1] %v5132
  %5146 = vst [vmem:[#allocation4 + $0x26] sm:$0x1] %v5115
  %5147 = vst [vmem:[#allocation4 + $0x2e] sm:$0x1] %v5129
  %5148 = vst [vmem:[#allocation4 + $0x36] sm:$0x1] %v5131
  %5149 = vst [vmem:[#allocation4 + $0x3e] sm:$0x1] %v5133
  %v5150 = vld [vmem:[%s0 + $0x7] sm:$0x1]
  %v5151 = vld [vmem:[%s0 + $0xf] sm:$0x1]
  %v5152 = vld [vmem:[%s0 + $0x17] sm:$0x1]
  %v5153 = vld [vmem:[%s0 + $0x1f] sm:$0x1]
  %v5154 = vld [vmem:[%s0 + $0x27] sm:$0x1]
  %v5155 = vld [vmem:[%s0 + $0x2f] sm:$0x1]
  %v5156 = vld [vmem:[%s0 + $0x37] sm:$0x1]
  %v5157 = vld [vmem:[%s0 + $0x3f] sm:$0x1]
  %v5166 = vrot.slane %v5151, 7
  %v5167 = vsel %vm141, %v5166, %v5150
  %v5168 = vrot.slane %v5152, 6
  %v5169 = vsel %vm144, %v5168, %v5167
  %v5170 = vrot.slane %v5153, 5
  %v5171 = vsel %vm147, %v5170, %v5169
  %v5172 = vrot.slane %v5154, 4
  %v5173 = vsel %vm150, %v5172, %v5171
  %v5174 = vrot.slane %v5155, 3
  %v5175 = vsel %vm153, %v5174, %v5173
  %v5176 = vrot.slane %v5156, 2
  %v5177 = vsel %vm156, %v5176, %v5175
  %v5178 = vrot.slane %v5157, 1
  %v5179 = vsel %vm159, %v5178, %v5177
  %v5181 = vld [vmem:[%s1] sm:$0xff]
  %v5182 = vld [vmem:[%s1 + $0x8] sm:$0xff]
  %v5183 = vld [vmem:[%s1 + $0x10] sm:$0xff]
  %v5184 = vld [vmem:[%s1 + $0x18] sm:$0xff]
  %v5185 = vld [vmem:[%s1 + $0x20] sm:$0xff]
  %v5186 = vld [vmem:[%s1 + $0x28] sm:$0xff]
  %v5187 = vld [vmem:[%s1 + $0x30] sm:$0xff]
  %v5188 = vld [vmem:[%s1 + $0x38] sm:$0xff]
  %v5189 = vld [vmem:[%s1 + $0x40] sm:$0xff]
  %v5190 = vld [vmem:[%s1 + $0x48] sm:$0xff]
  %v5191 = vld [vmem:[%s1 + $0x50] sm:$0xff]
  %v5192 = vld [vmem:[%s1 + $0x58] sm:$0xff]
  %v5193 = vld [vmem:[%s1 + $0x60] sm:$0xff]
  %v5194 = vld [vmem:[%s1 + $0x68] sm:$0xff]
  %v5195 = vld [vmem:[%s1 + $0x70] sm:$0xff]
  %v5196 = vld [vmem:[%s1 + $0x78] sm:$0xff]
  %v5197 = vld [vmem:[%s1 + $0x80] sm:$0xff]
  %v5198 = vld [vmem:[%s1 + $0x88] sm:$0xff]
  %v5199 = vld [vmem:[%s1 + $0x90] sm:$0xff]
  %v5200 = vld [vmem:[%s1 + $0x98] sm:$0xff]
  %v5201 = vld [vmem:[%s1 + $0xa0] sm:$0xff]
  %v5202 = vld [vmem:[%s1 + $0xa8] sm:$0xff]
  %v5203 = vld [vmem:[%s1 + $0xb0] sm:$0xff]
  %v5204 = vld [vmem:[%s1 + $0xb8] sm:$0xff]
  %v5205 = vld [vmem:[%s1 + $0xc0] sm:$0xff]
  %v5206 = vld [vmem:[%s1 + $0xc8] sm:$0xff]
  %v5207 = vld [vmem:[%s1 + $0xd0] sm:$0xff]
  %v5208 = vld [vmem:[%s1 + $0xd8] sm:$0xff]
  %v5209 = vld [vmem:[%s1 + $0xe0] sm:$0xff]
  %v5210 = vld [vmem:[%s1 + $0xe8] sm:$0xff]
  %v5211 = vld [vmem:[%s1 + $0xf0] sm:$0xff]
  %v5212 = vld [vmem:[%s1 + $0xf8] sm:$0xff]
  %v5213 = vld [vmem:[%s1 + $0x100] sm:$0xff]
  %v5214 = vld [vmem:[%s1 + $0x108] sm:$0xff]
  %v5215 = vld [vmem:[%s1 + $0x110] sm:$0xff]
  %v5216 = vld [vmem:[%s1 + $0x118] sm:$0xff]
  %v5217 = vld [vmem:[%s1 + $0x120] sm:$0xff]
  %v5218 = vld [vmem:[%s1 + $0x128] sm:$0xff]
  %v5219 = vld [vmem:[%s1 + $0x130] sm:$0xff]
  %v5220 = vld [vmem:[%s1 + $0x138] sm:$0xff]
  %v5221 = vld [vmem:[%s1 + $0x140] sm:$0xff]
  %v5222 = vld [vmem:[%s1 + $0x148] sm:$0xff]
  %v5223 = vld [vmem:[%s1 + $0x150] sm:$0xff]
  %v5224 = vld [vmem:[%s1 + $0x158] sm:$0xff]
  %v5225 = vld [vmem:[%s1 + $0x160] sm:$0xff]
  %v5226 = vld [vmem:[%s1 + $0x168] sm:$0xff]
  %v5227 = vld [vmem:[%s1 + $0x170] sm:$0xff]
  %v5228 = vld [vmem:[%s1 + $0x178] sm:$0xff]
  %v5229 = vld [vmem:[%s1 + $0x180] sm:$0xff]
  %v5230 = vld [vmem:[%s1 + $0x188] sm:$0xff]
  %v5231 = vld [vmem:[%s1 + $0x190] sm:$0xff]
  %v5232 = vld [vmem:[%s1 + $0x198] sm:$0xff]
  %v5233 = vld [vmem:[%s1 + $0x1a0] sm:$0xff]
  %v5234 = vld [vmem:[%s1 + $0x1a8] sm:$0xff]
  %v5235 = vld [vmem:[%s1 + $0x1b0] sm:$0xff]
  %v5236 = vld [vmem:[%s1 + $0x1b8] sm:$0xff]
  %v5237 = vld [vmem:[%s1 + $0x1c0] sm:$0xff]
  %v5238 = vld [vmem:[%s1 + $0x1c8] sm:$0xff]
  %v5239 = vld [vmem:[%s1 + $0x1d0] sm:$0xff]
  %v5240 = vld [vmem:[%s1 + $0x1d8] sm:$0xff]
  %v5241 = vld [vmem:[%s1 + $0x1e0] sm:$0xff]
  %v5242 = vld [vmem:[%s1 + $0x1e8] sm:$0xff]
  %v5243 = vld [vmem:[%s1 + $0x1f0] sm:$0xff]
  %v5244 = vld [vmem:[%s1 + $0x1f8] sm:$0xff]
  %v5245 = vld [vmem:[%s1 + $0x200] sm:$0xff]
  %v5246 = vld [vmem:[%s1 + $0x208] sm:$0xff]
  %v5247 = vld [vmem:[%s1 + $0x210] sm:$0xff]
  %v5248 = vld [vmem:[%s1 + $0x218] sm:$0xff]
  %v5249 = vld [vmem:[%s1 + $0x220] sm:$0xff]
  %v5250 = vld [vmem:[%s1 + $0x228] sm:$0xff]
  %v5251 = vld [vmem:[%s1 + $0x230] sm:$0xff]
  %v5252 = vld [vmem:[%s1 + $0x238] sm:$0xff]
  %v5253 = vld [vmem:[%s1 + $0x240] sm:$0xff]
  %v5254 = vld [vmem:[%s1 + $0x248] sm:$0xff]
  %v5255 = vld [vmem:[%s1 + $0x250] sm:$0xff]
  %v5256 = vld [vmem:[%s1 + $0x258] sm:$0xff]
  %v5257 = vld [vmem:[%s1 + $0x260] sm:$0xff]
  %v5258 = vld [vmem:[%s1 + $0x268] sm:$0xff]
  %v5259 = vld [vmem:[%s1 + $0x270] sm:$0xff]
  %v5260 = vld [vmem:[%s1 + $0x278] sm:$0xff]
  %v5261 = vld [vmem:[%s1 + $0x280] sm:$0xff]
  %v5262 = vld [vmem:[%s1 + $0x288] sm:$0xff]
  %v5263 = vld [vmem:[%s1 + $0x290] sm:$0xff]
  %v5264 = vld [vmem:[%s1 + $0x298] sm:$0xff]
  %v5265 = vld [vmem:[%s1 + $0x2a0] sm:$0xff]
  %v5266 = vld [vmem:[%s1 + $0x2a8] sm:$0xff]
  %v5267 = vld [vmem:[%s1 + $0x2b0] sm:$0xff]
  %v5268 = vld [vmem:[%s1 + $0x2b8] sm:$0xff]
  %v5269 = vld [vmem:[%s1 + $0x2c0] sm:$0xff]
  %v5270 = vld [vmem:[%s1 + $0x2c8] sm:$0xff]
  %v5271 = vld [vmem:[%s1 + $0x2d0] sm:$0xff]
  %v5272 = vld [vmem:[%s1 + $0x2d8] sm:$0xff]
  %v5273 = vld [vmem:[%s1 + $0x2e0] sm:$0xff]
  %v5274 = vld [vmem:[%s1 + $0x2e8] sm:$0xff]
  %v5275 = vld [vmem:[%s1 + $0x2f0] sm:$0xff]
  %v5276 = vld [vmem:[%s1 + $0x2f8] sm:$0xff]
  %v5277 = vld [vmem:[%s1 + $0x300] sm:$0xff]
  %v5278 = vld [vmem:[%s1 + $0x308] sm:$0xff]
  %v5279 = vld [vmem:[%s1 + $0x310] sm:$0xff]
  %v5280 = vld [vmem:[%s1 + $0x318] sm:$0xff]
  %v5281 = vld [vmem:[%s1 + $0x320] sm:$0xff]
  %v5282 = vld [vmem:[%s1 + $0x328] sm:$0xff]
  %v5283 = vld [vmem:[%s1 + $0x330] sm:$0xff]
  %v5284 = vld [vmem:[%s1 + $0x338] sm:$0xff]
  %v5285 = vld [vmem:[%s1 + $0x340] sm:$0xff]
  %v5286 = vld [vmem:[%s1 + $0x348] sm:$0xff]
  %v5287 = vld [vmem:[%s1 + $0x350] sm:$0xff]
  %v5288 = vld [vmem:[%s1 + $0x358] sm:$0xff]
  %v5289 = vld [vmem:[%s1 + $0x360] sm:$0xff]
  %v5290 = vld [vmem:[%s1 + $0x368] sm:$0xff]
  %v5291 = vld [vmem:[%s1 + $0x370] sm:$0xff]
  %v5292 = vld [vmem:[%s1 + $0x378] sm:$0xff]
  %v5293 = vld [vmem:[%s1 + $0x380] sm:$0xff]
  %v5294 = vld [vmem:[%s1 + $0x388] sm:$0xff]
  %v5295 = vld [vmem:[%s1 + $0x390] sm:$0xff]
  %v5296 = vld [vmem:[%s1 + $0x398] sm:$0xff]
  %v5297 = vld [vmem:[%s1 + $0x3a0] sm:$0xff]
  %v5298 = vld [vmem:[%s1 + $0x3a8] sm:$0xff]
  %v5299 = vld [vmem:[%s1 + $0x3b0] sm:$0xff]
  %v5300 = vld [vmem:[%s1 + $0x3b8] sm:$0xff]
  %v5301 = vld [vmem:[%s1 + $0x3c0] sm:$0xff]
  %v5302 = vld [vmem:[%s1 + $0x3c8] sm:$0xff]
  %v5303 = vld [vmem:[%s1 + $0x3d0] sm:$0xff]
  %v5304 = vld [vmem:[%s1 + $0x3d8] sm:$0xff]
  %v5305 = vld [vmem:[%s1 + $0x3e0] sm:$0xff]
  %v5306 = vld [vmem:[%s1 + $0x3e8] sm:$0xff]
  %v5307 = vld [vmem:[%s1 + $0x3f0] sm:$0xff]
  %v5308 = vld [vmem:[%s1 + $0x3f8] sm:$0xff]
  %5309 = vmatprep.subr.mxu0 %v5182
  %5310 = vmatpush1.msra.mxu0 %v5181
  %5311 = vmatprep.subr.mxu0 %v5186
  %5312 = vmatpush1.msra.mxu0 %v5185
  %5313 = vmatprep.subr.mxu0 %v5190
  %5314 = vmatpush1.msra.mxu0 %v5189
  %5315 = vmatprep.subr.mxu0 %v5194
  %5316 = vmatpush1.msra.mxu0 %v5193
  %5317 = vmatprep.subr.mxu0 %v5198
  %5318 = vmatpush1.msra.mxu0 %v5197
  %5319 = vmatprep.subr.mxu0 %v5202
  %5320 = vmatpush1.msra.mxu0 %v5201
  %5321 = vmatprep.subr.mxu0 %v5206
  %5322 = vmatpush1.msra.mxu0 %v5205
  %5323 = vmatprep.subr.mxu0 %v5210
  %5324 = vmatpush1.msra.mxu0 %v5209
  %5325 = vmatprep.subr.mxu0 %v5214
  %5326 = vmatpush1.msra.mxu0 %v5213
  %5327 = vmatprep.subr.mxu0 %v5218
  %5328 = vmatpush1.msra.mxu0 %v5217
  %5329 = vmatprep.subr.mxu0 %v5222
  %5330 = vmatpush1.msra.mxu0 %v5221
  %5331 = vmatprep.subr.mxu0 %v5226
  %5332 = vmatpush1.msra.mxu0 %v5225
  %5333 = vmatprep.subr.mxu0 %v5230
  %5334 = vmatpush1.msra.mxu0 %v5229
  %5335 = vmatprep.subr.mxu0 %v5234
  %5336 = vmatpush1.msra.mxu0 %v5233
  %5337 = vmatprep.subr.mxu0 %v5238
  %5338 = vmatpush1.msra.mxu0 %v5237
  %5339 = vmatprep.subr.mxu0 %v5242
  %5340 = vmatpush1.msra.mxu0 %v5241
  %5341 = vmatprep.subr.mxu0 %v5246
  %5342 = vmatpush1.msra.mxu0 %v5245
  %5343 = vmatprep.subr.mxu0 %v5250
  %5344 = vmatpush1.msra.mxu0 %v5249
  %5345 = vmatprep.subr.mxu0 %v5254
  %5346 = vmatpush1.msra.mxu0 %v5253
  %5347 = vmatprep.subr.mxu0 %v5258
  %5348 = vmatpush1.msra.mxu0 %v5257
  %5349 = vmatprep.subr.mxu0 %v5262
  %5350 = vmatpush1.msra.mxu0 %v5261
  %5351 = vmatprep.subr.mxu0 %v5266
  %5352 = vmatpush1.msra.mxu0 %v5265
  %5353 = vmatprep.subr.mxu0 %v5270
  %5354 = vmatpush1.msra.mxu0 %v5269
  %5355 = vmatprep.subr.mxu0 %v5274
  %5356 = vmatpush1.msra.mxu0 %v5273
  %5357 = vmatprep.subr.mxu0 %v5278
  %5358 = vmatpush1.msra.mxu0 %v5277
  %5359 = vmatprep.subr.mxu0 %v5282
  %5360 = vmatpush1.msra.mxu0 %v5281
  %5361 = vmatprep.subr.mxu0 %v5286
  %5362 = vmatpush1.msra.mxu0 %v5285
  %5363 = vmatprep.subr.mxu0 %v5290
  %5364 = vmatpush1.msra.mxu0 %v5289
  %5365 = vmatprep.subr.mxu0 %v5294
  %5366 = vmatpush1.msra.mxu0 %v5293
  %5367 = vmatprep.subr.mxu0 %v5298
  %5368 = vmatpush1.msra.mxu0 %v5297
  %5369 = vmatprep.subr.mxu0 %v5302
  %5370 = vmatpush1.msra.mxu0 %v5301
  %5371 = vmatprep.subr.mxu0 %v5306
  %5372 = vmatpush1.msra.mxu0 %v5305
  %5373 = vmatprep.mubr.f32.mxu0 %v4757
  %5374 = vmatmul.mubr.f32.gmra.mrb[0].mxu0 %v5179
  %v5375 = vpop.f32.mrb[0].mxu0
  %v5376 = vadd.f32 %v57, %v5375
  %v5377 = vpop.f32.mrb[0].mxu0
  %v5378 = vadd.f32 %v61, %v5377
  %5379 = vdwg.mxu0
  %5380 = vmatprep.subr.mxu0 %v5184
  %5381 = vmatpush1.msra.mxu0 %v5183
  %5382 = vmatprep.subr.mxu0 %v5188
  %5383 = vmatpush1.msra.mxu0 %v5187
  %5384 = vmatprep.subr.mxu0 %v5192
  %5385 = vmatpush1.msra.mxu0 %v5191
  %5386 = vmatprep.subr.mxu0 %v5196
  %5387 = vmatpush1.msra.mxu0 %v5195
  %5388 = vmatprep.subr.mxu0 %v5200
  %5389 = vmatpush1.msra.mxu0 %v5199
  %5390 = vmatprep.subr.mxu0 %v5204
  %5391 = vmatpush1.msra.mxu0 %v5203
  %5392 = vmatprep.subr.mxu0 %v5208
  %5393 = vmatpush1.msra.mxu0 %v5207
  %5394 = vmatprep.subr.mxu0 %v5212
  %5395 = vmatpush1.msra.mxu0 %v5211
  %5396 = vmatprep.subr.mxu0 %v5216
  %5397 = vmatpush1.msra.mxu0 %v5215
  %5398 = vmatprep.subr.mxu0 %v5220
  %5399 = vmatpush1.msra.mxu0 %v5219
  %5400 = vmatprep.subr.mxu0 %v5224
  %5401 = vmatpush1.msra.mxu0 %v5223
  %5402 = vmatprep.subr.mxu0 %v5228
  %5403 = vmatpush1.msra.mxu0 %v5227
  %5404 = vmatprep.subr.mxu0 %v5232
  %5405 = vmatpush1.msra.mxu0 %v5231
  %5406 = vmatprep.subr.mxu0 %v5236
  %5407 = vmatpush1.msra.mxu0 %v5235
  %5408 = vmatprep.subr.mxu0 %v5240
  %5409 = vmatpush1.msra.mxu0 %v5239
  %5410 = vmatprep.subr.mxu0 %v5244
  %5411 = vmatpush1.msra.mxu0 %v5243
  %5412 = vmatprep.subr.mxu0 %v5248
  %5413 = vmatpush1.msra.mxu0 %v5247
  %5414 = vmatprep.subr.mxu0 %v5252
  %5415 = vmatpush1.msra.mxu0 %v5251
  %5416 = vmatprep.subr.mxu0 %v5256
  %5417 = vmatpush1.msra.mxu0 %v5255
  %5418 = vmatprep.subr.mxu0 %v5260
  %5419 = vmatpush1.msra.mxu0 %v5259
  %5420 = vmatprep.subr.mxu0 %v5264
  %5421 = vmatpush1.msra.mxu0 %v5263
  %5422 = vmatprep.subr.mxu0 %v5268
  %5423 = vmatpush1.msra.mxu0 %v5267
  %5424 = vmatprep.subr.mxu0 %v5272
  %5425 = vmatpush1.msra.mxu0 %v5271
  %5426 = vmatprep.subr.mxu0 %v5276
  %5427 = vmatpush1.msra.mxu0 %v5275
  %5428 = vmatprep.subr.mxu0 %v5280
  %5429 = vmatpush1.msra.mxu0 %v5279
  %5430 = vmatprep.subr.mxu0 %v5284
  %5431 = vmatpush1.msra.mxu0 %v5283
  %5432 = vmatprep.subr.mxu0 %v5288
  %5433 = vmatpush1.msra.mxu0 %v5287
  %5434 = vmatprep.subr.mxu0 %v5292
  %5435 = vmatpush1.msra.mxu0 %v5291
  %5436 = vmatprep.subr.mxu0 %v5296
  %5437 = vmatpush1.msra.mxu0 %v5295
  %5438 = vmatprep.subr.mxu0 %v5300
  %5439 = vmatpush1.msra.mxu0 %v5299
  %5440 = vmatprep.subr.mxu0 %v5304
  %5441 = vmatpush1.msra.mxu0 %v5303
  %5442 = vmatprep.subr.mxu0 %v5308
  %5443 = vmatpush1.msra.mxu0 %v5307
  %5444 = vmatprep.mubr.f32.mxu0 %v4757
  %5445 = vmatmul.mubr.f32.gmra.mrb[0].mxu0 %v5179
  %v5446 = vpop.f32.mrb[0].mxu0
  %v5447 = vadd.f32 %v65, %v5446
  %v5448 = vpop.f32.mrb[0].mxu0
  %v5449 = vadd.f32 %v69, %v5448
  %5450 = vdwg.mxu0
  %v5451 = vxor.u32 %v5376, 2147483648
  %v5452 = vmul.f32 %v5451, 1.442695
  %v5453 = vpow.pop %v5452
  %v5454 = vadd.f32 %v5453, 1.0
  %v5455 = vrcp.pop %v5454
  %v5456 = vmul.f32 1.0, %v5455
  %v5457 = vxor.u32 %v5378, 2147483648
  %v5458 = vmul.f32 %v5457, 1.442695
  %v5459 = vpow.pop %v5458
  %v5460 = vadd.f32 %v5459, 1.0
  %v5461 = vrcp.pop %v5460
  %v5462 = vmul.f32 1.0, %v5461
  %v5463 = vtanh.pop %v5447
  %v5464 = vxor.u32 %v5449, 2147483648
  %v5465 = vmul.f32 %v5464, 1.442695
  %v5466 = vpow.pop %v5465
  %v5467 = vadd.f32 %v5466, 1.0
  %v5468 = vrcp.pop %v5467
  %v5469 = vmul.f32 1.0, %v5468
  %v5470 = vmul.f32 %v5462, %v4755
  %v5471 = vmul.f32 %v5456, %v5463
  %v5472 = vadd.f32 %v5470, %v5471
  %v5473 = vtanh.pop %v5472
  %v5474 = vmul.f32 %v5469, %v5473
  %5475 = vadd.xlane.f32.xlu0 %v5474
  %v5476 = vpop.xlane.xlu0 %5475
  %v5477 = vmul.f32 %v5476, 0.03125
  %v5478 = vmul.f32 %v5474, %v5474
  %5479 = vadd.xlane.f32.xlu0 %v5478
  %v5480 = vpop.xlane.xlu0 %5479
  %v5481 = vmul.f32 %v5480, 0.03125
  %v5482 = vmul.f32 %v5477, %v5477
  %v5483 = vsub.f32 %v5481, %v5482
  %v5484 = vmax.f32 %v5483, 0.0
  %v5485 = vsub.f32 %v5474, %v5477
  %v5486 = vadd.f32 %v5484, 1e-05
  %v5487 = vrsqrt.pop %v5486
  %v5488 = vmul.f32 %v5485, %v5487
  %v5489 = vmul.f32 %v5488, %v79
  %v5490 = vadd.f32 %v5489, %v86
  %v5491 = vld [vmem:[%s5] sm:$0xff]
  %v5492 = vld [vmem:[%s5 + $0x8] sm:$0xff]
  %v5493 = vld [vmem:[%s5 + $0x10] sm:$0xff]
  %v5494 = vld [vmem:[%s5 + $0x18] sm:$0xff]
  %v5495 = vld [vmem:[%s5 + $0x20] sm:$0xff]
  %v5496 = vld [vmem:[%s5 + $0x28] sm:$0xff]
  %v5497 = vld [vmem:[%s5 + $0x30] sm:$0xff]
  %v5498 = vld [vmem:[%s5 + $0x38] sm:$0xff]
  %v5499 = vld [vmem:[%s5 + $0x40] sm:$0xff]
  %v5500 = vld [vmem:[%s5 + $0x48] sm:$0xff]
  %v5501 = vld [vmem:[%s5 + $0x50] sm:$0xff]
  %v5502 = vld [vmem:[%s5 + $0x58] sm:$0xff]
  %v5503 = vld [vmem:[%s5 + $0x60] sm:$0xff]
  %v5504 = vld [vmem:[%s5 + $0x68] sm:$0xff]
  %v5505 = vld [vmem:[%s5 + $0x70] sm:$0xff]
  %v5506 = vld [vmem:[%s5 + $0x78] sm:$0xff]
  %v5507 = vld [vmem:[%s5 + $0x80] sm:$0xff]
  %v5508 = vld [vmem:[%s5 + $0x88] sm:$0xff]
  %v5509 = vld [vmem:[%s5 + $0x90] sm:$0xff]
  %v5510 = vld [vmem:[%s5 + $0x98] sm:$0xff]
  %v5511 = vld [vmem:[%s5 + $0xa0] sm:$0xff]
  %v5512 = vld [vmem:[%s5 + $0xa8] sm:$0xff]
  %v5513 = vld [vmem:[%s5 + $0xb0] sm:$0xff]
  %v5514 = vld [vmem:[%s5 + $0xb8] sm:$0xff]
  %v5515 = vld [vmem:[%s5 + $0xc0] sm:$0xff]
  %v5516 = vld [vmem:[%s5 + $0xc8] sm:$0xff]
  %v5517 = vld [vmem:[%s5 + $0xd0] sm:$0xff]
  %v5518 = vld [vmem:[%s5 + $0xd8] sm:$0xff]
  %v5519 = vld [vmem:[%s5 + $0xe0] sm:$0xff]
  %v5520 = vld [vmem:[%s5 + $0xe8] sm:$0xff]
  %v5521 = vld [vmem:[%s5 + $0xf0] sm:$0xff]
  %v5522 = vld [vmem:[%s5 + $0xf8] sm:$0xff]
  %v5523 = vld [vmem:[%s5 + $0x100] sm:$0xff]
  %v5524 = vld [vmem:[%s5 + $0x108] sm:$0xff]
  %v5525 = vld [vmem:[%s5 + $0x110] sm:$0xff]
  %v5526 = vld [vmem:[%s5 + $0x118] sm:$0xff]
  %v5527 = vld [vmem:[%s5 + $0x120] sm:$0xff]
  %v5528 = vld [vmem:[%s5 + $0x128] sm:$0xff]
  %v5529 = vld [vmem:[%s5 + $0x130] sm:$0xff]
  %v5530 = vld [vmem:[%s5 + $0x138] sm:$0xff]
  %v5531 = vld [vmem:[%s5 + $0x140] sm:$0xff]
  %v5532 = vld [vmem:[%s5 + $0x148] sm:$0xff]
  %v5533 = vld [vmem:[%s5 + $0x150] sm:$0xff]
  %v5534 = vld [vmem:[%s5 + $0x158] sm:$0xff]
  %v5535 = vld [vmem:[%s5 + $0x160] sm:$0xff]
  %v5536 = vld [vmem:[%s5 + $0x168] sm:$0xff]
  %v5537 = vld [vmem:[%s5 + $0x170] sm:$0xff]
  %v5538 = vld [vmem:[%s5 + $0x178] sm:$0xff]
  %v5539 = vld [vmem:[%s5 + $0x180] sm:$0xff]
  %v5540 = vld [vmem:[%s5 + $0x188] sm:$0xff]
  %v5541 = vld [vmem:[%s5 + $0x190] sm:$0xff]
  %v5542 = vld [vmem:[%s5 + $0x198] sm:$0xff]
  %v5543 = vld [vmem:[%s5 + $0x1a0] sm:$0xff]
  %v5544 = vld [vmem:[%s5 + $0x1a8] sm:$0xff]
  %v5545 = vld [vmem:[%s5 + $0x1b0] sm:$0xff]
  %v5546 = vld [vmem:[%s5 + $0x1b8] sm:$0xff]
  %v5547 = vld [vmem:[%s5 + $0x1c0] sm:$0xff]
  %v5548 = vld [vmem:[%s5 + $0x1c8] sm:$0xff]
  %v5549 = vld [vmem:[%s5 + $0x1d0] sm:$0xff]
  %v5550 = vld [vmem:[%s5 + $0x1d8] sm:$0xff]
  %v5551 = vld [vmem:[%s5 + $0x1e0] sm:$0xff]
  %v5552 = vld [vmem:[%s5 + $0x1e8] sm:$0xff]
  %v5553 = vld [vmem:[%s5 + $0x1f0] sm:$0xff]
  %v5554 = vld [vmem:[%s5 + $0x1f8] sm:$0xff]
  %v5555 = vld [vmem:[%s5 + $0x200] sm:$0xff]
  %v5556 = vld [vmem:[%s5 + $0x208] sm:$0xff]
  %v5557 = vld [vmem:[%s5 + $0x210] sm:$0xff]
  %v5558 = vld [vmem:[%s5 + $0x218] sm:$0xff]
  %v5559 = vld [vmem:[%s5 + $0x220] sm:$0xff]
  %v5560 = vld [vmem:[%s5 + $0x228] sm:$0xff]
  %v5561 = vld [vmem:[%s5 + $0x230] sm:$0xff]
  %v5562 = vld [vmem:[%s5 + $0x238] sm:$0xff]
  %v5563 = vld [vmem:[%s5 + $0x240] sm:$0xff]
  %v5564 = vld [vmem:[%s5 + $0x248] sm:$0xff]
  %v5565 = vld [vmem:[%s5 + $0x250] sm:$0xff]
  %v5566 = vld [vmem:[%s5 + $0x258] sm:$0xff]
  %v5567 = vld [vmem:[%s5 + $0x260] sm:$0xff]
  %v5568 = vld [vmem:[%s5 + $0x268] sm:$0xff]
  %v5569 = vld [vmem:[%s5 + $0x270] sm:$0xff]
  %v5570 = vld [vmem:[%s5 + $0x278] sm:$0xff]
  %v5571 = vld [vmem:[%s5 + $0x280] sm:$0xff]
  %v5572 = vld [vmem:[%s5 + $0x288] sm:$0xff]
  %v5573 = vld [vmem:[%s5 + $0x290] sm:$0xff]
  %v5574 = vld [vmem:[%s5 + $0x298] sm:$0xff]
  %v5575 = vld [vmem:[%s5 + $0x2a0] sm:$0xff]
  %v5576 = vld [vmem:[%s5 + $0x2a8] sm:$0xff]
  %v5577 = vld [vmem:[%s5 + $0x2b0] sm:$0xff]
  %v5578 = vld [vmem:[%s5 + $0x2b8] sm:$0xff]
  %v5579 = vld [vmem:[%s5 + $0x2c0] sm:$0xff]
  %v5580 = vld [vmem:[%s5 + $0x2c8] sm:$0xff]
  %v5581 = vld [vmem:[%s5 + $0x2d0] sm:$0xff]
  %v5582 = vld [vmem:[%s5 + $0x2d8] sm:$0xff]
  %v5583 = vld [vmem:[%s5 + $0x2e0] sm:$0xff]
  %v5584 = vld [vmem:[%s5 + $0x2e8] sm:$0xff]
  %v5585 = vld [vmem:[%s5 + $0x2f0] sm:$0xff]
  %v5586 = vld [vmem:[%s5 + $0x2f8] sm:$0xff]
  %v5587 = vld [vmem:[%s5 + $0x300] sm:$0xff]
  %v5588 = vld [vmem:[%s5 + $0x308] sm:$0xff]
  %v5589 = vld [vmem:[%s5 + $0x310] sm:$0xff]
  %v5590 = vld [vmem:[%s5 + $0x318] sm:$0xff]
  %v5591 = vld [vmem:[%s5 + $0x320] sm:$0xff]
  %v5592 = vld [vmem:[%s5 + $0x328] sm:$0xff]
  %v5593 = vld [vmem:[%s5 + $0x330] sm:$0xff]
  %v5594 = vld [vmem:[%s5 + $0x338] sm:$0xff]
  %v5595 = vld [vmem:[%s5 + $0x340] sm:$0xff]
  %v5596 = vld [vmem:[%s5 + $0x348] sm:$0xff]
  %v5597 = vld [vmem:[%s5 + $0x350] sm:$0xff]
  %v5598 = vld [vmem:[%s5 + $0x358] sm:$0xff]
  %v5599 = vld [vmem:[%s5 + $0x360] sm:$0xff]
  %v5600 = vld [vmem:[%s5 + $0x368] sm:$0xff]
  %v5601 = vld [vmem:[%s5 + $0x370] sm:$0xff]
  %v5602 = vld [vmem:[%s5 + $0x378] sm:$0xff]
  %v5603 = vld [vmem:[%s5 + $0x380] sm:$0xff]
  %v5604 = vld [vmem:[%s5 + $0x388] sm:$0xff]
  %v5605 = vld [vmem:[%s5 + $0x390] sm:$0xff]
  %v5606 = vld [vmem:[%s5 + $0x398] sm:$0xff]
  %v5607 = vld [vmem:[%s5 + $0x3a0] sm:$0xff]
  %v5608 = vld [vmem:[%s5 + $0x3a8] sm:$0xff]
  %v5609 = vld [vmem:[%s5 + $0x3b0] sm:$0xff]
  %v5610 = vld [vmem:[%s5 + $0x3b8] sm:$0xff]
  %v5611 = vld [vmem:[%s5 + $0x3c0] sm:$0xff]
  %v5612 = vld [vmem:[%s5 + $0x3c8] sm:$0xff]
  %v5613 = vld [vmem:[%s5 + $0x3d0] sm:$0xff]
  %v5614 = vld [vmem:[%s5 + $0x3d8] sm:$0xff]
  %v5615 = vld [vmem:[%s5 + $0x3e0] sm:$0xff]
  %v5616 = vld [vmem:[%s5 + $0x3e8] sm:$0xff]
  %v5617 = vld [vmem:[%s5 + $0x3f0] sm:$0xff]
  %v5618 = vld [vmem:[%s5 + $0x3f8] sm:$0xff]
  %5619 = vmatprep.subr.mxu0 %v5492
  %5620 = vmatpush1.msra.mxu0 %v5491
  %5621 = vmatprep.subr.mxu0 %v5496
  %5622 = vmatpush1.msra.mxu0 %v5495
  %5623 = vmatprep.subr.mxu0 %v5500
  %5624 = vmatpush1.msra.mxu0 %v5499
  %5625 = vmatprep.subr.mxu0 %v5504
  %5626 = vmatpush1.msra.mxu0 %v5503
  %5627 = vmatprep.subr.mxu0 %v5508
  %5628 = vmatpush1.msra.mxu0 %v5507
  %5629 = vmatprep.subr.mxu0 %v5512
  %5630 = vmatpush1.msra.mxu0 %v5511
  %5631 = vmatprep.subr.mxu0 %v5516
  %5632 = vmatpush1.msra.mxu0 %v5515
  %5633 = vmatprep.subr.mxu0 %v5520
  %5634 = vmatpush1.msra.mxu0 %v5519
  %5635 = vmatprep.subr.mxu0 %v5524
  %5636 = vmatpush1.msra.mxu0 %v5523
  %5637 = vmatprep.subr.mxu0 %v5528
  %5638 = vmatpush1.msra.mxu0 %v5527
  %5639 = vmatprep.subr.mxu0 %v5532
  %5640 = vmatpush1.msra.mxu0 %v5531
  %5641 = vmatprep.subr.mxu0 %v5536
  %5642 = vmatpush1.msra.mxu0 %v5535
  %5643 = vmatprep.subr.mxu0 %v5540
  %5644 = vmatpush1.msra.mxu0 %v5539
  %5645 = vmatprep.subr.mxu0 %v5544
  %5646 = vmatpush1.msra.mxu0 %v5543
  %5647 = vmatprep.subr.mxu0 %v5548
  %5648 = vmatpush1.msra.mxu0 %v5547
  %5649 = vmatprep.subr.mxu0 %v5552
  %5650 = vmatpush1.msra.mxu0 %v5551
  %5651 = vmatprep.subr.mxu0 %v5556
  %5652 = vmatpush1.msra.mxu0 %v5555
  %5653 = vmatprep.subr.mxu0 %v5560
  %5654 = vmatpush1.msra.mxu0 %v5559
  %5655 = vmatprep.subr.mxu0 %v5564
  %5656 = vmatpush1.msra.mxu0 %v5563
  %5657 = vmatprep.subr.mxu0 %v5568
  %5658 = vmatpush1.msra.mxu0 %v5567
  %5659 = vmatprep.subr.mxu0 %v5572
  %5660 = vmatpush1.msra.mxu0 %v5571
  %5661 = vmatprep.subr.mxu0 %v5576
  %5662 = vmatpush1.msra.mxu0 %v5575
  %5663 = vmatprep.subr.mxu0 %v5580
  %5664 = vmatpush1.msra.mxu0 %v5579
  %5665 = vmatprep.subr.mxu0 %v5584
  %5666 = vmatpush1.msra.mxu0 %v5583
  %5667 = vmatprep.subr.mxu0 %v5588
  %5668 = vmatpush1.msra.mxu0 %v5587
  %5669 = vmatprep.subr.mxu0 %v5592
  %5670 = vmatpush1.msra.mxu0 %v5591
  %5671 = vmatprep.subr.mxu0 %v5596
  %5672 = vmatpush1.msra.mxu0 %v5595
  %5673 = vmatprep.subr.mxu0 %v5600
  %5674 = vmatpush1.msra.mxu0 %v5599
  %5675 = vmatprep.subr.mxu0 %v5604
  %5676 = vmatpush1.msra.mxu0 %v5603
  %5677 = vmatprep.subr.mxu0 %v5608
  %5678 = vmatpush1.msra.mxu0 %v5607
  %5679 = vmatprep.subr.mxu0 %v5612
  %5680 = vmatpush1.msra.mxu0 %v5611
  %5681 = vmatprep.subr.mxu0 %v5616
  %5682 = vmatpush1.msra.mxu0 %v5615
  %5683 = vmatprep.mubr.f32.mxu0 %v5067
  %5684 = vmatmul.mubr.f32.gmra.mrb[0].mxu0 %v5490
  %v5685 = vpop.f32.mrb[0].mxu0
  %v5686 = vadd.f32 %v93, %v5685
  %v5687 = vpop.f32.mrb[0].mxu0
  %v5688 = vadd.f32 %v97, %v5687
  %5689 = vdwg.mxu0
  %5690 = vmatprep.subr.mxu0 %v5494
  %5691 = vmatpush1.msra.mxu0 %v5493
  %5692 = vmatprep.subr.mxu0 %v5498
  %5693 = vmatpush1.msra.mxu0 %v5497
  %5694 = vmatprep.subr.mxu0 %v5502
  %5695 = vmatpush1.msra.mxu0 %v5501
  %5696 = vmatprep.subr.mxu0 %v5506
  %5697 = vmatpush1.msra.mxu0 %v5505
  %5698 = vmatprep.subr.mxu0 %v5510
  %5699 = vmatpush1.msra.mxu0 %v5509
  %5700 = vmatprep.subr.mxu0 %v5514
  %5701 = vmatpush1.msra.mxu0 %v5513
  %5702 = vmatprep.subr.mxu0 %v5518
  %5703 = vmatpush1.msra.mxu0 %v5517
  %5704 = vmatprep.subr.mxu0 %v5522
  %5705 = vmatpush1.msra.mxu0 %v5521
  %5706 = vmatprep.subr.mxu0 %v5526
  %5707 = vmatpush1.msra.mxu0 %v5525
  %5708 = vmatprep.subr.mxu0 %v5530
  %5709 = vmatpush1.msra.mxu0 %v5529
  %5710 = vmatprep.subr.mxu0 %v5534
  %5711 = vmatpush1.msra.mxu0 %v5533
  %5712 = vmatprep.subr.mxu0 %v5538
  %5713 = vmatpush1.msra.mxu0 %v5537
  %5714 = vmatprep.subr.mxu0 %v5542
  %5715 = vmatpush1.msra.mxu0 %v5541
  %5716 = vmatprep.subr.mxu0 %v5546
  %5717 = vmatpush1.msra.mxu0 %v5545
  %5718 = vmatprep.subr.mxu0 %v5550
  %5719 = vmatpush1.msra.mxu0 %v5549
  %5720 = vmatprep.subr.mxu0 %v5554
  %5721 = vmatpush1.msra.mxu0 %v5553
  %5722 = vmatprep.subr.mxu0 %v5558
  %5723 = vmatpush1.msra.mxu0 %v5557
  %5724 = vmatprep.subr.mxu0 %v5562
  %5725 = vmatpush1.msra.mxu0 %v5561
  %5726 = vmatprep.subr.mxu0 %v5566
  %5727 = vmatpush1.msra.mxu0 %v5565
  %5728 = vmatprep.subr.mxu0 %v5570
  %5729 = vmatpush1.msra.mxu0 %v5569
  %5730 = vmatprep.subr.mxu0 %v5574
  %5731 = vmatpush1.msra.mxu0 %v5573
  %5732 = vmatprep.subr.mxu0 %v5578
  %5733 = vmatpush1.msra.mxu0 %v5577
  %5734 = vmatprep.subr.mxu0 %v5582
  %5735 = vmatpush1.msra.mxu0 %v5581
  %5736 = vmatprep.subr.mxu0 %v5586
  %5737 = vmatpush1.msra.mxu0 %v5585
  %5738 = vmatprep.subr.mxu0 %v5590
  %5739 = vmatpush1.msra.mxu0 %v5589
  %5740 = vmatprep.subr.mxu0 %v5594
  %5741 = vmatpush1.msra.mxu0 %v5593
  %5742 = vmatprep.subr.mxu0 %v5598
  %5743 = vmatpush1.msra.mxu0 %v5597
  %5744 = vmatprep.subr.mxu0 %v5602
  %5745 = vmatpush1.msra.mxu0 %v5601
  %5746 = vmatprep.subr.mxu0 %v5606
  %5747 = vmatpush1.msra.mxu0 %v5605
  %5748 = vmatprep.subr.mxu0 %v5610
  %5749 = vmatpush1.msra.mxu0 %v5609
  %5750 = vmatprep.subr.mxu0 %v5614
  %5751 = vmatpush1.msra.mxu0 %v5613
  %5752 = vmatprep.subr.mxu0 %v5618
  %5753 = vmatpush1.msra.mxu0 %v5617
  %5754 = vmatprep.mubr.f32.mxu0 %v5067
  %5755 = vmatmul.mubr.f32.gmra.mrb[0].mxu0 %v5490
  %v5756 = vpop.f32.mrb[0].mxu0
  %v5757 = vadd.f32 %v101, %v5756
  %v5758 = vpop.f32.mrb[0].mxu0
  %v5759 = vadd.f32 %v105, %v5758
  %5760 = vdwg.mxu0
  %v5761 = vxor.u32 %v5686, 2147483648
  %v5762 = vmul.f32 %v5761, 1.442695
  %v5763 = vpow.pop %v5762
  %v5764 = vadd.f32 %v5763, 1.0
  %v5765 = vrcp.pop %v5764
  %v5766 = vmul.f32 1.0, %v5765
  %v5767 = vxor.u32 %v5688, 2147483648
  %v5768 = vmul.f32 %v5767, 1.442695
  %v5769 = vpow.pop %v5768
  %v5770 = vadd.f32 %v5769, 1.0
  %v5771 = vrcp.pop %v5770
  %v5772 = vmul.f32 1.0, %v5771
  %v5773 = vtanh.pop %v5757
  %v5774 = vxor.u32 %v5759, 2147483648
  %v5775 = vmul.f32 %v5774, 1.442695
  %v5776 = vpow.pop %v5775
  %v5777 = vadd.f32 %v5776, 1.0
  %v5778 = vrcp.pop %v5777
  %v5779 = vmul.f32 1.0, %v5778
  %v5780 = vmul.f32 %v5772, %v5065
  %v5781 = vmul.f32 %v5766, %v5773
  %v5782 = vadd.f32 %v5780, %v5781
  %v5783 = vtanh.pop %v5782
  %v5784 = vmul.f32 %v5779, %v5783
  %5785 = vadd.xlane.f32.xlu0 %v5784
  %v5786 = vpop.xlane.xlu0 %5785
  %v5787 = vmul.f32 %v5786, 0.03125
  %v5788 = vmul.f32 %v5784, %v5784
  %5789 = vadd.xlane.f32.xlu0 %v5788
  %v5790 = vpop.xlane.xlu0 %5789
  %v5791 = vmul.f32 %v5790, 0.03125
  %v5792 = vmul.f32 %v5787, %v5787
  %v5793 = vsub.f32 %v5791, %v5792
  %v5794 = vmax.f32 %v5793, 0.0
  %v5795 = vsub.f32 %v5784, %v5787
  %v5796 = vadd.f32 %v5794, 1e-05
  %v5797 = vrsqrt.pop %v5796
  %v5798 = vmul.f32 %v5795, %v5797
  %v5799 = vmul.f32 %v5798, %v115
  %v5800 = vadd.f32 %v5799, %v122
  %v5802 = vcombine.high %v5800, %v5800
  %v5804 = vunpack.c.l.s4 1966171168
  %v5805 = vunpack.c.0.s8 %v5804
  %v5806 = vlaneseq
  %v5807 = vshrl.u32 %v5806, 7
  %v5808 = vsub.s32 %v5805, %v5807
  %v5809 = vrot.slane %v5800, %v5808
  %v5811 = vunpack.c.l.s4 1966171168
  %v5812 = vunpack.c.0.s8 %v5811
  %v5813 = vlaneseq
  %v5814 = vshrl.u32 %v5813, 7
  %v5815 = vsub.s32 %v5812, %v5814
  %v5816 = vrot.slane %v5802, %v5815
  %v5817 = vcombine.high %v5809, %v5809
  %v5818 = vcombine.high %v5816, %v5816
  %v5820 = vunpack.c.l.s4 1966171168
  %v5821 = vunpack.c.0.s8 %v5820
  %v5822 = vlaneseq
  %v5823 = vshrl.u32 %v5822, 7
  %v5824 = vsub.s32 %v5821, %v5823
  %v5825 = vrot.slane %v5809, %v5824
  %v5827 = vunpack.c.l.s4 1966171168
  %v5828 = vunpack.c.0.s8 %v5827
  %v5829 = vlaneseq
  %v5830 = vshrl.u32 %v5829, 7
  %v5831 = vsub.s32 %v5828, %v5830
  %v5832 = vrot.slane %v5816, %v5831
  %v5834 = vunpack.c.l.s4 1966171168
  %v5835 = vunpack.c.0.s8 %v5834
  %v5836 = vlaneseq
  %v5837 = vshrl.u32 %v5836, 7
  %v5838 = vsub.s32 %v5835, %v5837
  %v5839 = vrot.slane %v5817, %v5838
  %v5841 = vunpack.c.l.s4 1966171168
  %v5842 = vunpack.c.0.s8 %v5841
  %v5843 = vlaneseq
  %v5844 = vshrl.u32 %v5843, 7
  %v5845 = vsub.s32 %v5842, %v5844
  %v5846 = vrot.slane %v5818, %v5845
  %v5847 = vcombine.high %v5825, %v5825
  %v5848 = vcombine.high %v5832, %v5832
  %v5849 = vcombine.high %v5839, %v5839
  %v5850 = vcombine.high %v5846, %v5846
  %5859 = vst [vmem:[#allocation4 + $0x7] sm:$0x1] %v5825
  %5860 = vst [vmem:[#allocation4 + $0xf] sm:$0x1] %v5839
  %5861 = vst [vmem:[#allocation4 + $0x17] sm:$0x1] %v5847
  %5862 = vst [vmem:[#allocation4 + $0x1f] sm:$0x1] %v5849
  %5863 = vst [vmem:[#allocation4 + $0x27] sm:$0x1] %v5832
  %5864 = vst [vmem:[#allocation4 + $0x2f] sm:$0x1] %v5846
  %5865 = vst [vmem:[#allocation4 + $0x37] sm:$0x1] %v5848
  %5866 = vst [vmem:[#allocation4 + $0x3f] sm:$0x1] %v5850
  %5867 = vst [vmem:[#allocation2] sm:$0xff] %v5474
  %5868 = vst [vmem:[#allocation3] sm:$0xff] %v5472
  %5869 = vst [vmem:[%s47] sm:$0xff] %v5784
  %5870 = vst [vmem:[%s50] sm:$0xff] %v5782
  %v5871 = vld [vmem:[#allocation4] sm:$0xff]
  %v5872 = vld [vmem:[#allocation4 + $0x8] sm:$0xff]
  %v5873 = vld [vmem:[#allocation4 + $0x10] sm:$0xff]
  %v5874 = vld [vmem:[#allocation4 + $0x18] sm:$0xff]
  %v5875 = vld [vmem:[#allocation4 + $0x20] sm:$0xff]
  %v5876 = vld [vmem:[#allocation4 + $0x28] sm:$0xff]
  %v5877 = vld [vmem:[#allocation4 + $0x30] sm:$0xff]
  %v5878 = vld [vmem:[#allocation4 + $0x38] sm:$0xff]
  %v5879 = vld [vmem:[%s9] sm:$0xff]
  %v5880 = vld [vmem:[%s9 + $0x8] sm:$0xff]
  %v5881 = vld [vmem:[%s9 + $0x10] sm:$0xff]
  %v5882 = vld [vmem:[%s9 + $0x18] sm:$0xff]
  %v5883 = vld [vmem:[%s9 + $0x20] sm:$0xff]
  %v5884 = vld [vmem:[%s9 + $0x28] sm:$0xff]
  %v5885 = vld [vmem:[%s9 + $0x30] sm:$0xff]
  %v5886 = vld [vmem:[%s9 + $0x38] sm:$0xff]
  %v5887 = vld [vmem:[%s9 + $0x40] sm:$0xff]
  %v5888 = vld [vmem:[%s9 + $0x48] sm:$0xff]
  %v5889 = vld [vmem:[%s9 + $0x50] sm:$0xff]
  %v5890 = vld [vmem:[%s9 + $0x58] sm:$0xff]
  %v5891 = vld [vmem:[%s9 + $0x60] sm:$0xff]
  %v5892 = vld [vmem:[%s9 + $0x68] sm:$0xff]
  %v5893 = vld [vmem:[%s9 + $0x70] sm:$0xff]
  %v5894 = vld [vmem:[%s9 + $0x78] sm:$0xff]
  %v5895 = vld [vmem:[%s9 + $0x80] sm:$0xff]
  %v5896 = vld [vmem:[%s9 + $0x88] sm:$0xff]
  %v5897 = vld [vmem:[%s9 + $0x90] sm:$0xff]
  %v5898 = vld [vmem:[%s9 + $0x98] sm:$0xff]
  %v5899 = vld [vmem:[%s9 + $0xa0] sm:$0xff]
  %v5900 = vld [vmem:[%s9 + $0xa8] sm:$0xff]
  %v5901 = vld [vmem:[%s9 + $0xb0] sm:$0xff]
  %v5902 = vld [vmem:[%s9 + $0xb8] sm:$0xff]
  %v5903 = vld [vmem:[%s9 + $0xc0] sm:$0xff]
  %v5904 = vld [vmem:[%s9 + $0xc8] sm:$0xff]
  %v5905 = vld [vmem:[%s9 + $0xd0] sm:$0xff]
  %v5906 = vld [vmem:[%s9 + $0xd8] sm:$0xff]
  %v5907 = vld [vmem:[%s9 + $0xe0] sm:$0xff]
  %v5908 = vld [vmem:[%s9 + $0xe8] sm:$0xff]
  %v5909 = vld [vmem:[%s9 + $0xf0] sm:$0xff]
  %v5910 = vld [vmem:[%s9 + $0xf8] sm:$0xff]
  %v5911 = vld [vmem:[%s10] sm:$0x3]
  %v5913 = vlaneseq
  %v5914 = vshrl.u32 %v5913, 7
  %v5915 = vsub.s32 0, %v5914
  %v5916 = vrot.slane %v5911, %v5915
  %v5917 = vlaneseq
  %v5918 = vshrl.u32 %v5917, 7
  %v5919 = vsub.s32 1, %v5918
  %v5920 = vrot.slane %v5911, %v5919
  %5923 = vmatprep.subr.mxu0 %v5880
  %5924 = vmatpush1.msra.mxu0 %v5879
  %5925 = vmatprep.subr.mxu0 %v5882
  %5926 = vmatpush1.msra.mxu0 %v5881
  %5927 = vmatprep.subr.mxu0 %v5884
  %5928 = vmatpush1.msra.mxu0 %v5883
  %5929 = vmatprep.subr.mxu0 %v5886
  %5930 = vmatpush1.msra.mxu0 %v5885
  %5931 = vmatprep.subr.mxu0 %v5888
  %5932 = vmatpush1.msra.mxu0 %v5887
  %5933 = vmatprep.subr.mxu0 %v5890
  %5934 = vmatpush1.msra.mxu0 %v5889
  %5935 = vmatprep.subr.mxu0 %v5892
  %5936 = vmatpush1.msra.mxu0 %v5891
  %5937 = vmatprep.subr.mxu0 %v5894
  %5938 = vmatpush1.msra.mxu0 %v5893
  %5939 = vmatprep.subr.mxu0 %v5896
  %5940 = vmatpush1.msra.mxu0 %v5895
  %5941 = vmatprep.subr.mxu0 %v5898
  %5942 = vmatpush1.msra.mxu0 %v5897
  %5943 = vmatprep.subr.mxu0 %v5900
  %5944 = vmatpush1.msra.mxu0 %v5899
  %5945 = vmatprep.subr.mxu0 %v5902
  %5946 = vmatpush1.msra.mxu0 %v5901
  %5947 = vmatprep.subr.mxu0 %v5904
  %5948 = vmatpush1.msra.mxu0 %v5903
  %5949 = vmatprep.subr.mxu0 %v5906
  %5950 = vmatpush1.msra.mxu0 %v5905
  %5951 = vmatprep.subr.mxu0 %v5908
  %5952 = vmatpush1.msra.mxu0 %v5907
  %5953 = vmatprep.subr.mxu0 %v5910
  %5954 = vmatpush1.msra.mxu0 %v5909
  %5955 = vmatprep.subr.mxu0 0.0
  %5956 = vmatpush1.msra.mxu0 0.0
  %5957 = vmatprep.subr.mxu0 0.0
  %5958 = vmatpush1.msra.mxu0 0.0
  %5959 = vmatprep.subr.mxu0 0.0
  %5960 = vmatpush1.msra.mxu0 0.0
  %5961 = vmatprep.subr.mxu0 0.0
  %5962 = vmatpush1.msra.mxu0 0.0
  %5963 = vmatprep.subr.mxu0 0.0
  %5964 = vmatpush1.msra.mxu0 0.0
  %5965 = vmatprep.subr.mxu0 0.0
  %5966 = vmatpush1.msra.mxu0 0.0
  %5967 = vmatprep.subr.mxu0 0.0
  %5968 = vmatpush1.msra.mxu0 0.0
  %5969 = vmatprep.subr.mxu0 0.0
  %5970 = vmatpush1.msra.mxu0 0.0
  %5971 = vmatprep.subr.mxu0 0.0
  %5972 = vmatpush1.msra.mxu0 0.0
  %5973 = vmatprep.subr.mxu0 0.0
  %5974 = vmatpush1.msra.mxu0 0.0
  %5975 = vmatprep.subr.mxu0 0.0
  %5976 = vmatpush1.msra.mxu0 0.0
  %5977 = vmatprep.subr.mxu0 0.0
  %5978 = vmatpush1.msra.mxu0 0.0
  %5979 = vmatprep.subr.mxu0 0.0
  %5980 = vmatpush1.msra.mxu0 0.0
  %5981 = vmatprep.subr.mxu0 0.0
  %5982 = vmatpush1.msra.mxu0 0.0
  %5983 = vmatprep.subr.mxu0 0.0
  %5984 = vmatpush1.msra.mxu0 0.0
  %5985 = vmatprep.subr.mxu0 0.0
  %5986 = vmatpush1.msra.mxu0 0.0
  %5987 = vmatprep.mubr.f32.mxu0 0.0
  %5988 = vmatmul.mubr.f32.gmra.mrb[0].mxu0 %v5871
  %v5989 = vpop.f32.mrb[0].mxu0
  %v5990 = vadd.f32 %v5916, %v5989
  %v5991 = vpop.f32.mrb[0].mxu0
  %v5992 = vadd.f32 %v5920, %v5991
  %5993 = vmatprep.mubr.f32.mxu0 0.0
  %5994 = vmatmul.mubr.f32.gmra.mrb[0].mxu0 %v5872
  %v5995 = vpop.f32.mrb[0].mxu0
  %v5996 = vadd.f32 %v5916, %v5995
  %v5997 = vpop.f32.mrb[0].mxu0
  %v5998 = vadd.f32 %v5920, %v5997
  %5999 = vmatprep.mubr.f32.mxu0 0.0
  %6000 = vmatmul.mubr.f32.gmra.mrb[0].mxu0 %v5873
  %v6001 = vpop.f32.mrb[0].mxu0
  %v6002 = vadd.f32 %v5916, %v6001
  %v6003 = vpop.f32.mrb[0].mxu0
  %v6004 = vadd.f32 %v5920, %v6003
  %6005 = vmatprep.mubr.f32.mxu0 0.0
  %6006 = vmatmul.mubr.f32.gmra.mrb[0].mxu0 %v5874
  %v6007 = vpop.f32.mrb[0].mxu0
  %v6008 = vadd.f32 %v5916, %v6007
  %v6009 = vpop.f32.mrb[0].mxu0
  %v6010 = vadd.f32 %v5920, %v6009
  %6011 = vmatprep.mubr.f32.mxu0 0.0
  %6012 = vmatmul.mubr.f32.gmra.mrb[0].mxu0 %v5875
  %v6013 = vpop.f32.mrb[0].mxu0
  %v6014 = vadd.f32 %v5916, %v6013
  %v6015 = vpop.f32.mrb[0].mxu0
  %v6016 = vadd.f32 %v5920, %v6015
  %6017 = vmatprep.mubr.f32.mxu0 0.0
  %6018 = vmatmul.mubr.f32.gmra.mrb[0].mxu0 %v5876
  %v6019 = vpop.f32.mrb[0].mxu0
  %v6020 = vadd.f32 %v5916, %v6019
  %v6021 = vpop.f32.mrb[0].mxu0
  %v6022 = vadd.f32 %v5920, %v6021
  %6023 = vmatprep.mubr.f32.mxu0 0.0
  %6024 = vmatmul.mubr.f32.gmra.mrb[0].mxu0 %v5877
  %v6025 = vpop.f32.mrb[0].mxu0
  %v6026 = vadd.f32 %v5916, %v6025
  %v6027 = vpop.f32.mrb[0].mxu0
  %v6028 = vadd.f32 %v5920, %v6027
  %6029 = vmatprep.mubr.f32.mxu0 0.0
  %6030 = vmatmul.mubr.f32.gmra.mrb[0].mxu0 %v5878
  %v6031 = vpop.f32.mrb[0].mxu0
  %v6032 = vadd.f32 %v5916, %v6031
  %v6033 = vpop.f32.mrb[0].mxu0
  %v6034 = vadd.f32 %v5920, %v6033
  %6035 = vdwg.mxu0
  %6036 = vst [vmem:[%s11] sm:$0xff] %v5990
  %6037 = vst [vmem:[%s11 + $0x8] sm:$0xff] %v5992
  %6038 = vst [vmem:[%s11 + $0x10] sm:$0xff] %v5996
  %6039 = vst [vmem:[%s11 + $0x18] sm:$0xff] %v5998
  %6040 = vst [vmem:[%s11 + $0x20] sm:$0xff] %v6002
  %6041 = vst [vmem:[%s11 + $0x28] sm:$0xff] %v6004
  %6042 = vst [vmem:[%s11 + $0x30] sm:$0xff] %v6008
  %6043 = vst [vmem:[%s11 + $0x38] sm:$0xff] %v6010
  %6044 = vst [vmem:[%s11 + $0x40] sm:$0xff] %v6014
  %6045 = vst [vmem:[%s11 + $0x48] sm:$0xff] %v6016
  %6046 = vst [vmem:[%s11 + $0x50] sm:$0xff] %v6020
  %6047 = vst [vmem:[%s11 + $0x58] sm:$0xff] %v6022
  %6048 = vst [vmem:[%s11 + $0x60] sm:$0xff] %v6026
  %6049 = vst [vmem:[%s11 + $0x68] sm:$0xff] %v6028
  %6050 = vst [vmem:[%s11 + $0x70] sm:$0xff] %v6032
  %6051 = vst [vmem:[%s11 + $0x78] sm:$0xff] %v6034
  // Predicated region
  $region50: #{teledal_forward.1} parent=0 // pred_check
    _
  $region51: #{teledal_forward.1} parent=0 // pred_check_branch
    %6053 = sbr.rel (0) target = $region53
  $region52: #{teledal_forward.1} parent=0 // pred_region
    _
  $region53: #{teledal_forward.1} parent=0 // pred_fallthru
    _
  // Predicated region
  $region54: #{teledal_forward.1} parent=0 // pred_check
    _
  $region55: #{teledal_forward.1} parent=0 // pred_check_branch
    %6055 = sbr.rel (0) target = $region57
  $region56: #{teledal_forward.1} parent=0 // pred_region
    _
  $region57: #{teledal_forward.1} parent=0 // pred_fallthru
    _

</llo_original>
